<compile_context>
chip_gen: v7x
topology: tpu7x:2x2x1
jax: 0.10.0
libtpu: 0.0.40
codegen_flags: <defaults>
</compile_context>

<pallas_src>
import functools

import jax
import jax.numpy as jnp
from jax import lax
from jax.experimental import pallas as pl
from jax.experimental.pallas import tpu as pltpu

EPS = 1e-5           # InstanceNorm2d default eps
NEG_SLOPE = 1e-2     # LeakyReLU default negative_slope (nnU-Net nonlin_kwargs)
LANE = 128           # output-channel padding target (lane-dense stores / MXU N)


def _round_up(x, m):
    return ((x + m - 1) // m) * m


def _cin_align(dtype):
    # sublane-pack width: 8 rows of 32-bit, 16 rows of 16-bit.
    return 8 * (4 // jnp.dtype(dtype).itemsize)


def _vmem_limit_bytes():
    # physical VMEM minus 16 MiB headroom; clamp to [32 MiB, 112 MiB].
    try:
        cap = pltpu.get_tpu_info().vmem_capacity_bytes
        return int(min(max(cap - (16 << 20), 32 << 20), 112 << 20))
    except Exception:                                   # noqa: BLE001
        return 48 << 20


def _instance_norm(acc, gamma_row, beta_row, inv_hw):
    """Two-pass InstanceNorm over axis 0 of an (HW, C) f32 tile, affine folded."""
    mean = jnp.sum(acc, axis=0, keepdims=True) * inv_hw
    cen = acc - mean                                     # conv bias cancels here
    var = jnp.sum(cen * cen, axis=0, keepdims=True) * inv_hw
    return cen * (gamma_row * lax.rsqrt(var + EPS)) + beta_row


def _leaky(y):
    return jnp.where(y >= 0, y, NEG_SLOPE * y)


def _fused_block_kernel(*refs, H, W, kh, kw, has_skip_conv):
    """Whole BasicResidualBlock for one sample, entirely in VMEM.

    inputs : x (1,H,W,Cin_p), w1 (kh*kw*Cin_p,Cout_p), g1,b1 (1,Cout_p),
             w2 (kh*kw*Cout_p,Cout_p), g2,b2 (1,Cout_p),
             [wd (Cin_p,Cout_p), gd,bd (1,Cout_p)]
    output : o (1,H,W,Cout_p)
    scratch: xpad (Hp,Wp,Cin_p), col1 (HW,kh*kw*Cin_p),
             hpad (Hp,Wp,Cout_p), col2 (HW,kh*kw*Cout_p)
    """
    if has_skip_conv:
        (x_ref, w1_ref, g1_ref, b1_ref, w2_ref, g2_ref, b2_ref,
         wd_ref, gd_ref, bd_ref,
         o_ref, xpad_ref, col1_ref, hpad_ref, col2_ref) = refs
    else:
        (x_ref, w1_ref, g1_ref, b1_ref, w2_ref, g2_ref, b2_ref,
         o_ref, xpad_ref, col1_ref, hpad_ref, col2_ref) = refs
        wd_ref = gd_ref = bd_ref = None

    cin_p = x_ref.shape[-1]
    cout_p = o_ref.shape[-1]
    HW = H * W
    inv_hw = 1.0 / HW
    ph, pw = (kh - 1) // 2, (kw - 1) // 2
    ntaps = kh * kw

    def im2col(src_ref, col_ref, c):
        # Build the (HW, ntaps*c) operand once; the conv is then ONE big-K
        # MXU matmul (no per-tap f32 accumulator read-modify-write).
        for t in range(ntaps):
            dy, dx = divmod(t, kw)
            win = src_ref[pl.ds(dy, H), pl.ds(dx, W), :]          # (H, W, c)
            col_ref[:, pl.ds(t * c, c)] = win.reshape(HW, c)

    # ---- halo-pad x in VMEM (no XLA pad pass) ------------------------------
    xpad_ref[...] = jnp.zeros_like(xpad_ref)      # halo must be zero every step
    x_tile = x_ref[...].reshape(H, W, cin_p).astype(xpad_ref.dtype)
    xpad_ref[pl.ds(ph, H), pl.ds(pw, W), :] = x_tile

    # ---- conv1 -> IN -> LeakyReLU  (bias dropped: cancelled by IN mean) -----
    im2col(xpad_ref, col1_ref, cin_p)
    acc1 = jnp.dot(col1_ref[...], w1_ref[...],
                   preferred_element_type=jnp.float32)            # (HW, Cout_p)
    h = _leaky(_instance_norm(acc1, g1_ref[...], b1_ref[...], inv_hw))
    # TODO(synk): dropout p > 0 not implemented (nnU-Net default p=0 -> Identity).

    # ---- conv2 on halo-padded h (VMEM scratch) -> IN ------------------------
    hpad_ref[...] = jnp.zeros_like(hpad_ref)
    hpad_ref[pl.ds(ph, H), pl.ds(pw, W), :] = (
        h.reshape(H, W, cout_p).astype(hpad_ref.dtype))
    im2col(hpad_ref, col2_ref, cout_p)
    acc2 = jnp.dot(col2_ref[...], w2_ref[...],
                   preferred_element_type=jnp.float32)
    out2 = _instance_norm(acc2, g2_ref[...], b2_ref[...], inv_hw)

    # ---- residual branch: 1x1 conv (no bias) + IN, or identity --------------
    x_flat = x_ref[...].reshape(HW, cin_p)
    if has_skip_conv:
        accd = jnp.dot(x_flat, wd_ref[...], preferred_element_type=jnp.float32)
        res = _instance_norm(accd, gd_ref[...], bd_ref[...], inv_hw)
    else:
        res = x_flat.astype(jnp.float32)          # wrapper guarantees Cin_p==Cout_p

    # ---- add + final LeakyReLU: single lane-dense HBM store -----------------
    y = _leaky(out2 + res)
    o_ref[...] = y.reshape(1, H, W, cout_p).astype(o_ref.dtype)


def _pack_conv_weight(w, cin_pad, cout_pad, dtype):
    """(Cout, Cin, kh, kw) -> (kh*kw*cin_pad, cout_pad) tap-major matrix."""
    co, ci, a, b = w.shape
    wt = jnp.transpose(w, (2, 3, 1, 0)).reshape(a * b, ci, co)
    wt = jnp.pad(wt, ((0, 0), (0, cin_pad - ci), (0, cout_pad - co)))
    return wt.reshape(a * b * cin_pad, cout_pad).astype(dtype)


def _pack_affine(v, cout_pad):
    return jnp.pad(v.astype(jnp.float32),
                   (0, cout_pad - v.shape[0])).reshape(1, cout_pad)


def basic_residual_block_nhwc(x_nhwc, w1, g1, be1, w2, g2, be2,
                              wd=None, gd=None, bed=None, *,
                              mxu_dtype=jnp.bfloat16, out_dtype=None):
    """One BasicResidualBlock on NHWC input.

    Returns channel-PADDED NHWC (N, H, W, round_up(Cout, 128)) with padded
    lanes exactly 0, so stacked blocks can stay in NHWC without per-block
    transposes. x_nhwc may already carry extra zero channel padding.
    """
    N, H, W = x_nhwc.shape[:3]
    Cout, Cin, kh, kw = w1.shape
    out_dtype = mxu_dtype if out_dtype is None else out_dtype
    has_skip_conv = wd is not None

    cout_p = _round_up(Cout, LANE)
    cin_p = cout_p if not has_skip_conv else _round_up(Cin, _cin_align(mxu_dtype))

    # channel pad / trim to cin_p (channels beyond Cin are required to be zero)
    c_have = x_nhwc.shape[-1]
    if c_have < cin_p:
        x_c = jnp.pad(x_nhwc, ((0, 0), (0, 0), (0, 0), (0, cin_p - c_have)))
    else:
        x_c = x_nhwc[..., :cin_p]
    x_c = x_c.astype(mxu_dtype)

    ntaps = kh * kw
    w1m = _pack_conv_weight(w1, cin_p, cout_p, mxu_dtype)
    w2m = _pack_conv_weight(w2, cout_p, cout_p, mxu_dtype)

    args = [x_c, w1m, _pack_affine(g1, cout_p), _pack_affine(be1, cout_p),
            w2m, _pack_affine(g2, cout_p), _pack_affine(be2, cout_p)]
    # Constant index_maps -> weights / affine rows are DMA'd once for the grid.
    # TODO(synk): pipeline_mode=pl.Buffered(1) to drop their second buffer at
    #             real nnU-Net channel counts.
    in_specs = [
        pl.BlockSpec((1, H, W, cin_p), lambda n: (n, 0, 0, 0)),
        pl.BlockSpec((ntaps * cin_p, cout_p), lambda n: (0, 0)),
        pl.BlockSpec((1, cout_p), lambda n: (0, 0)),
        pl.BlockSpec((1, cout_p), lambda n: (0, 0)),
        pl.BlockSpec((ntaps * cout_p, cout_p), lambda n: (0, 0)),
        pl.BlockSpec((1, cout_p), lambda n: (0, 0)),
        pl.BlockSpec((1, cout_p), lambda n: (0, 0)),
    ]
    if has_skip_conv:
        args += [_pack_conv_weight(wd, cin_p, cout_p, mxu_dtype),
                 _pack_affine(gd, cout_p), _pack_affine(bed, cout_p)]
        in_specs += [
            pl.BlockSpec((cin_p, cout_p), lambda n: (0, 0)),
            pl.BlockSpec((1, cout_p), lambda n: (0, 0)),
            pl.BlockSpec((1, cout_p), lambda n: (0, 0)),
        ]

    Hp, Wp = H + kh - 1, W + kw - 1
    kernel = functools.partial(_fused_block_kernel, H=H, W=W, kh=kh, kw=kw,
                               has_skip_conv=has_skip_conv)

    return pl.pallas_call(
        kernel,
        out_shape=jax.ShapeDtypeStruct((N, H, W, cout_p), out_dtype),
        grid_spec=pltpu.PrefetchScalarGridSpec(
            num_scalar_prefetch=0,
            grid=(N,),
            in_specs=in_specs,
            out_specs=pl.BlockSpec((1, H, W, cout_p), lambda n: (n, 0, 0, 0)),
            scratch_shapes=[
                pltpu.VMEM((Hp, Wp, cin_p), mxu_dtype),            # x halo pad
                pltpu.VMEM((H * W, ntaps * cin_p), mxu_dtype),     # im2col conv1
                pltpu.VMEM((Hp, Wp, cout_p), mxu_dtype),           # h halo pad
                pltpu.VMEM((H * W, ntaps * cout_p), mxu_dtype),    # im2col conv2
            ]),
        compiler_params=pltpu.CompilerParams(
            dimension_semantics=("parallel",),     # TODO(synk): CORE_PARALLEL on v7x
            vmem_limit_bytes=_vmem_limit_bytes()),
    )(*args)


def basic_residual_block(x_nchw, w1, b1, g1, be1, w2, b2, g2, be2,
                         wd=None, gd=None, bed=None, *,
                         mxu_dtype=jnp.bfloat16):
    """BasicResidualBlock forward, NCHW in/out (stride=1, dropout p=0).

    x_nchw: (N, Cin, H, W). w1: (Cout, Cin, kh, kw), w2: (Cout, Cout, kh, kw),
    wd: (Cout, Cin, 1, 1) or None for the identity skip. Returns (N, Cout, H, W).
    Conv biases b1/b2 are accepted but unused (cancelled exactly by InstanceNorm).
    """
    del b1, b2                                     # cancelled by InstanceNorm
    # TODO(synk): stride != 1 (strided conv1 / strided 1x1 skip) not implemented.
    Cout = w1.shape[0]
    x_nhwc = jnp.transpose(x_nchw, (0, 2, 3, 1))   # one transpose in
    y = basic_residual_block_nhwc(x_nhwc, w1, g1, be1, w2, g2, be2, wd, gd, bed,
                                  mxu_dtype=mxu_dtype)
    y = y[..., :Cout]                              # drop channel padding
    return jnp.transpose(y, (0, 3, 1, 2)).astype(x_nchw.dtype)   # one transpose out


def _reference(x, w1, b1, g1, be1, w2, b2, g2, be2, wd, gd, bed):
    """Pure-JAX mirror of the PyTorch forward (f32, biases included)."""
    def conv(inp, w, b, pad):
        y = lax.conv_general_dilated(
            inp.astype(jnp.float32), w.astype(jnp.float32), (1, 1),
            ((pad, pad), (pad, pad)),
            dimension_numbers=("NCHW", "OIHW", "NCHW"),
            precision=lax.Precision.HIGHEST)
        if b is not None:
            y = y + b.reshape(1, -1, 1, 1)
        return y

    def inorm(v, g, b):
        m = jnp.mean(v, axis=(2, 3), keepdims=True)
        va = jnp.var(v, axis=(2, 3), keepdims=True)
        return (v - m) * lax.rsqrt(va + EPS) * g.reshape(1, -1, 1, 1) \
            + b.reshape(1, -1, 1, 1)

    def lrelu(v):
        return jnp.where(v >= 0, v, NEG_SLOPE * v)

    h = lrelu(inorm(conv(x, w1, b1, 1), g1, be1))
    out = inorm(conv(h, w2, b2, 1), g2, be2)
    res = inorm(conv(x, wd, None, 0), gd, bed)
    return lrelu(out + res)


if __name__ == "__main__":
    N, Cin, H, W = 2, 4, 16, 16
    Cout, kh, kw = 8, 3, 3

    key = jax.random.PRNGKey(0)
    ks = jax.random.split(key, 12)
    x = jax.random.normal(ks[0], (N, Cin, H, W), jnp.float32)
    w1 = 0.1 * jax.random.normal(ks[1], (Cout, Cin, kh, kw), jnp.float32)
    b1 = 0.1 * jax.random.normal(ks[2], (Cout,), jnp.float32)
    g1 = 1.0 + 0.1 * jax.random.normal(ks[3], (Cout,), jnp.float32)
    be1 = 0.1 * jax.random.normal(ks[4], (Cout,), jnp.float32)
    w2 = 0.1 * jax.random.normal(ks[5], (Cout, Cout, kh, kw), jnp.float32)
    b2 = 0.1 * jax.random.normal(ks[6], (Cout,), jnp.float32)
    g2 = 1.0 + 0.1 * jax.random.normal(ks[7], (Cout,), jnp.float32)
    be2 = 0.1 * jax.random.normal(ks[8], (Cout,), jnp.float32)
    wd = 0.1 * jax.random.normal(ks[9], (Cout, Cin, 1, 1), jnp.float32)
    gd = 1.0 + 0.1 * jax.random.normal(ks[10], (Cout,), jnp.float32)
    bed = 0.1 * jax.random.normal(ks[11], (Cout,), jnp.float32)

    ref = jax.block_until_ready(
        _reference(x, w1, b1, g1, be1, w2, b2, g2, be2, wd, gd, bed))

    fn = jax.jit(basic_residual_block, static_argnames=("mxu_dtype",))

    # 1) exactness check of the fused structure with f32 MXU operands
    out_f32 = jax.block_until_ready(
        fn(x, w1, b1, g1, be1, w2, b2, g2, be2, wd, gd, bed,
           mxu_dtype=jnp.float32))
    assert out_f32.shape == (N, Cout, H, W)
    err = float(jnp.max(jnp.abs(out_f32 - ref)))
    assert err < 1e-3, f"f32 mismatch vs reference: {err}"

    # 2) production config: bf16 MXU operands / intermediates / output write,
    #    f32 accumulation and InstanceNorm statistics inside the kernel.
    out_bf16 = jax.block_until_ready(
        fn(x, w1, b1, g1, be1, w2, b2, g2, be2, wd, gd, bed,
           mxu_dtype=jnp.bfloat16))
    err_max = float(jnp.max(jnp.abs(out_bf16 - ref)))
    err_mean = float(jnp.mean(jnp.abs(out_bf16 - ref)))
    assert err_max < 1e-1 and err_mean < 2e-2, \
        f"bf16 mismatch vs reference: max={err_max} mean={err_mean}"

    print("KERNEL_OK")
</pallas_src>

<mosaic_0001>
module attributes {stable_mosaic.version = 11 : i64} {
  func.func @_fused_block_kernel(%arg0: i32, %arg1: memref<1x16x16x8xf32, #tpu.memory_space<vmem>>, %arg2: memref<72x128xf32, #tpu.memory_space<vmem>>, %arg3: memref<1x128xf32, #tpu.memory_space<vmem>>, %arg4: memref<1x128xf32, #tpu.memory_space<vmem>>, %arg5: memref<1152x128xf32, #tpu.memory_space<vmem>>, %arg6: memref<1x128xf32, #tpu.memory_space<vmem>>, %arg7: memref<1x128xf32, #tpu.memory_space<vmem>>, %arg8: memref<8x128xf32, #tpu.memory_space<vmem>>, %arg9: memref<1x128xf32, #tpu.memory_space<vmem>>, %arg10: memref<1x128xf32, #tpu.memory_space<vmem>>, %arg11: memref<1x16x16x128xf32, #tpu.memory_space<vmem>>, %arg12: memref<18x18x8xf32, #tpu.memory_space<vmem>>, %arg13: memref<256x72xf32, #tpu.memory_space<vmem>>, %arg14: memref<18x18x128xf32, #tpu.memory_space<vmem>>, %arg15: memref<256x1152xf32, #tpu.memory_space<vmem>>) attributes {dimension_semantics = [#tpu.dimension_semantics<parallel>], iteration_bounds = array<i64: 2>, scalar_prefetch = 0 : i64, scratch_operands = 4 : i64, tpu.core_type = #tpu.core_type<tc>, window_params = [{transform_indices = @transform_0, window_bounds = array<i64: 1, 16, 16, 8>}, {pipeline_mode = #tpu.pipeline_mode<synchronous>, transform_indices = @transform_1, window_bounds = array<i64: 72, 128>}, {pipeline_mode = #tpu.pipeline_mode<synchronous>, transform_indices = @transform_2, window_bounds = array<i64: 1, 128>}, {pipeline_mode = #tpu.pipeline_mode<synchronous>, transform_indices = @transform_3, window_bounds = array<i64: 1, 128>}, {pipeline_mode = #tpu.pipeline_mode<synchronous>, transform_indices = @transform_4, window_bounds = array<i64: 1152, 128>}, {pipeline_mode = #tpu.pipeline_mode<synchronous>, transform_indices = @transform_5, window_bounds = array<i64: 1, 128>}, {pipeline_mode = #tpu.pipeline_mode<synchronous>, transform_indices = @transform_6, window_bounds = array<i64: 1, 128>}, {pipeline_mode = #tpu.pipeline_mode<synchronous>, transform_indices = @transform_7, window_bounds = array<i64: 8, 128>}, {pipeline_mode = #tpu.pipeline_mode<synchronous>, transform_indices = @transform_8, window_bounds = array<i64: 1, 128>}, {pipeline_mode = #tpu.pipeline_mode<synchronous>, transform_indices = @transform_9, window_bounds = array<i64: 1, 128>}, {transform_indices = @transform_10, window_bounds = array<i64: 1, 16, 16, 128>}]} {
    %cst = arith.constant 0.000000e+00 : f32
    %0 = vector.broadcast %cst : f32 to vector<18x18x8xf32>
    %c0 = arith.constant 0 : index
    %c0_0 = arith.constant 0 : index
    %c0_1 = arith.constant 0 : index
    %1 = vector.load %arg12[%c0, %c0_0, %c0_1] : memref<18x18x8xf32, #tpu.memory_space<vmem>>, vector<18x18x8xf32>
    tpu.vector_store %arg12[%c0, %c0_0, %c0_1], %0 {strides = array<i32>} : memref<18x18x8xf32, #tpu.memory_space<vmem>>, vector<18x18x8xf32>,
    %c0_2 = arith.constant 0 : index
    %c0_3 = arith.constant 0 : index
    %c0_4 = arith.constant 0 : index
    %c0_5 = arith.constant 0 : index
    %2 = vector.load %arg1[%c0_2, %c0_3, %c0_4, %c0_5] : memref<1x16x16x8xf32, #tpu.memory_space<vmem>>, vector<1x16x16x8xf32>
    %3 = vector.shape_cast %2 : vector<1x16x16x8xf32> to vector<16x16x8xf32>
    %c1 = arith.constant 1 : index
    %c1_6 = arith.constant 1 : index
    %c0_7 = arith.constant 0 : index
    %4 = vector.load %arg12[%c1, %c1_6, %c0_7] : memref<18x18x8xf32, #tpu.memory_space<vmem>>, vector<16x16x8xf32>
    tpu.vector_store %arg12[%c1, %c1_6, %c0_7], %3 {strides = array<i32>} : memref<18x18x8xf32, #tpu.memory_space<vmem>>, vector<16x16x8xf32>,
    %c0_8 = arith.constant 0 : index
    %c0_9 = arith.constant 0 : index
    %c0_10 = arith.constant 0 : index
    %5 = vector.load %arg12[%c0_8, %c0_9, %c0_10] : memref<18x18x8xf32, #tpu.memory_space<vmem>>, vector<16x16x8xf32>
    %6 = vector.shape_cast %5 : vector<16x16x8xf32> to vector<256x8xf32>
    %c0_11 = arith.constant 0 : index
    %c0_12 = arith.constant 0 : index
    %7 = vector.load %arg13[%c0_11, %c0_12] : memref<256x72xf32, #tpu.memory_space<vmem>>, vector<256x8xf32>
    tpu.vector_store %arg13[%c0_11, %c0_12], %6 {strides = array<i32>} : memref<256x72xf32, #tpu.memory_space<vmem>>, vector<256x8xf32>,
    %c0_13 = arith.constant 0 : index
    %c1_14 = arith.constant 1 : index
    %c0_15 = arith.constant 0 : index
    %8 = vector.load %arg12[%c0_13, %c1_14, %c0_15] : memref<18x18x8xf32, #tpu.memory_space<vmem>>, vector<16x16x8xf32>
    %9 = vector.shape_cast %8 : vector<16x16x8xf32> to vector<256x8xf32>
    %c0_16 = arith.constant 0 : index
    %c8 = arith.constant 8 : index
    %10 = vector.load %arg13[%c0_16, %c8] : memref<256x72xf32, #tpu.memory_space<vmem>>, vector<256x8xf32>
    tpu.vector_store %arg13[%c0_16, %c8], %9 {strides = array<i32>} : memref<256x72xf32, #tpu.memory_space<vmem>>, vector<256x8xf32>,
    %c0_17 = arith.constant 0 : index
    %c2 = arith.constant 2 : index
    %c0_18 = arith.constant 0 : index
    %11 = vector.load %arg12[%c0_17, %c2, %c0_18] : memref<18x18x8xf32, #tpu.memory_space<vmem>>, vector<16x16x8xf32>
    %12 = vector.shape_cast %11 : vector<16x16x8xf32> to vector<256x8xf32>
    %c0_19 = arith.constant 0 : index
    %c16 = arith.constant 16 : index
    %13 = vector.load %arg13[%c0_19, %c16] : memref<256x72xf32, #tpu.memory_space<vmem>>, vector<256x8xf32>
    tpu.vector_store %arg13[%c0_19, %c16], %12 {strides = array<i32>} : memref<256x72xf32, #tpu.memory_space<vmem>>, vector<256x8xf32>,
    %c1_20 = arith.constant 1 : index
    %c0_21 = arith.constant 0 : index
    %c0_22 = arith.constant 0 : index
    %14 = vector.load %arg12[%c1_20, %c0_21, %c0_22] : memref<18x18x8xf32, #tpu.memory_space<vmem>>, vector<16x16x8xf32>
    %15 = vector.shape_cast %14 : vector<16x16x8xf32> to vector<256x8xf32>
    %c0_23 = arith.constant 0 : index
    %c24 = arith.constant 24 : index
    %16 = vector.load %arg13[%c0_23, %c24] : memref<256x72xf32, #tpu.memory_space<vmem>>, vector<256x8xf32>
    tpu.vector_store %arg13[%c0_23, %c24], %15 {strides = array<i32>} : memref<256x72xf32, #tpu.memory_space<vmem>>, vector<256x8xf32>,
    %c1_24 = arith.constant 1 : index
    %c1_25 = arith.constant 1 : index
    %c0_26 = arith.constant 0 : index
    %17 = vector.load %arg12[%c1_24, %c1_25, %c0_26] : memref<18x18x8xf32, #tpu.memory_space<vmem>>, vector<16x16x8xf32>
    %18 = vector.shape_cast %17 : vector<16x16x8xf32> to vector<256x8xf32>
    %c0_27 = arith.constant 0 : index
    %c32 = arith.constant 32 : index
    %19 = vector.load %arg13[%c0_27, %c32] : memref<256x72xf32, #tpu.memory_space<vmem>>, vector<256x8xf32>
    tpu.vector_store %arg13[%c0_27, %c32], %18 {strides = array<i32>} : memref<256x72xf32, #tpu.memory_space<vmem>>, vector<256x8xf32>,
    %c1_28 = arith.constant 1 : index
    %c2_29 = arith.constant 2 : index
    %c0_30 = arith.constant 0 : index
    %20 = vector.load %arg12[%c1_28, %c2_29, %c0_30] : memref<18x18x8xf32, #tpu.memory_space<vmem>>, vector<16x16x8xf32>
    %21 = vector.shape_cast %20 : vector<16x16x8xf32> to vector<256x8xf32>
    %c0_31 = arith.constant 0 : index
    %c40 = arith.constant 40 : index
    %22 = vector.load %arg13[%c0_31, %c40] : memref<256x72xf32, #tpu.memory_space<vmem>>, vector<256x8xf32>
    tpu.vector_store %arg13[%c0_31, %c40], %21 {strides = array<i32>} : memref<256x72xf32, #tpu.memory_space<vmem>>, vector<256x8xf32>,
    %c2_32 = arith.constant 2 : index
    %c0_33 = arith.constant 0 : index
    %c0_34 = arith.constant 0 : index
    %23 = vector.load %arg12[%c2_32, %c0_33, %c0_34] : memref<18x18x8xf32, #tpu.memory_space<vmem>>, vector<16x16x8xf32>
    %24 = vector.shape_cast %23 : vector<16x16x8xf32> to vector<256x8xf32>
    %c0_35 = arith.constant 0 : index
    %c48 = arith.constant 48 : index
    %25 = vector.load %arg13[%c0_35, %c48] : memref<256x72xf32, #tpu.memory_space<vmem>>, vector<256x8xf32>
    tpu.vector_store %arg13[%c0_35, %c48], %24 {strides = array<i32>} : memref<256x72xf32, #tpu.memory_space<vmem>>, vector<256x8xf32>,
    %c2_36 = arith.constant 2 : index
    %c1_37 = arith.constant 1 : index
    %c0_38 = arith.constant 0 : index
    %26 = vector.load %arg12[%c2_36, %c1_37, %c0_38] : memref<18x18x8xf32, #tpu.memory_space<vmem>>, vector<16x16x8xf32>
    %27 = vector.shape_cast %26 : vector<16x16x8xf32> to vector<256x8xf32>
    %c0_39 = arith.constant 0 : index
    %c56 = arith.constant 56 : index
    %28 = vector.load %arg13[%c0_39, %c56] : memref<256x72xf32, #tpu.memory_space<vmem>>, vector<256x8xf32>
    tpu.vector_store %arg13[%c0_39, %c56], %27 {strides = array<i32>} : memref<256x72xf32, #tpu.memory_space<vmem>>, vector<256x8xf32>,
    %c2_40 = arith.constant 2 : index
    %c2_41 = arith.constant 2 : index
    %c0_42 = arith.constant 0 : index
    %29 = vector.load %arg12[%c2_40, %c2_41, %c0_42] : memref<18x18x8xf32, #tpu.memory_space<vmem>>, vector<16x16x8xf32>
    %30 = vector.shape_cast %29 : vector<16x16x8xf32> to vector<256x8xf32>
    %c0_43 = arith.constant 0 : index
    %c64 = arith.constant 64 : index
    %31 = vector.load %arg13[%c0_43, %c64] : memref<256x72xf32, #tpu.memory_space<vmem>>, vector<256x8xf32>
    tpu.vector_store %arg13[%c0_43, %c64], %30 {strides = array<i32>} : memref<256x72xf32, #tpu.memory_space<vmem>>, vector<256x8xf32>,
    %c0_44 = arith.constant 0 : index
    %c0_45 = arith.constant 0 : index
    %32 = vector.load %arg13[%c0_44, %c0_45] : memref<256x72xf32, #tpu.memory_space<vmem>>, vector<256x72xf32>
    %c0_46 = arith.constant 0 : index
    %c0_47 = arith.constant 0 : index
    %33 = vector.load %arg2[%c0_46, %c0_47] : memref<72x128xf32, #tpu.memory_space<vmem>>, vector<72x128xf32>
    %cst_48 = arith.constant dense<0.000000e+00> : vector<256x128xf32>
    %34 = tpu.matmul %32, %33, %cst_48 {dimension_numbers = #tpu.dot_dimension_numbers<[1], [0], [0], [1], [0, 0, 1, 1], [], []>} : vector<256x72xf32>, vector<72x128xf32>, vector<256x128xf32> -> vector<256x128xf32>
    %c0_49 = arith.constant 0 : index
    %c0_50 = arith.constant 0 : index
    %35 = vector.load %arg3[%c0_49, %c0_50] : memref<1x128xf32, #tpu.memory_space<vmem>>, vector<1x128xf32>
    %c0_51 = arith.constant 0 : index
    %c0_52 = arith.constant 0 : index
    %36 = vector.load %arg4[%c0_51, %c0_52] : memref<1x128xf32, #tpu.memory_space<vmem>>, vector<1x128xf32>
    %cst_53 = arith.constant dense<0.000000e+00> : vector<128xf32>
    %37 = vector.multi_reduction <add>, %34, %cst_53 [0] : vector<256x128xf32> to vector<128xf32>
    %38 = vector.shape_cast %37 : vector<128xf32> to vector<1x128xf32>
    %cst_54 = arith.constant 3.906250e-03 : f32
    %39 = vector.broadcast %cst_54 : f32 to vector<1x128xf32>
    %40 = arith.mulf %38, %39 : vector<1x128xf32>
    %41 = vector.broadcast %40 : vector<1x128xf32> to vector<256x128xf32>
    %42 = arith.subf %34, %41 : vector<256x128xf32>
    %43 = arith.mulf %42, %42 : vector<256x128xf32>
    %cst_55 = arith.constant dense<0.000000e+00> : vector<128xf32>
    %44 = vector.multi_reduction <add>, %43, %cst_55 [0] : vector<256x128xf32> to vector<128xf32>
    %45 = vector.shape_cast %44 : vector<128xf32> to vector<1x128xf32>
    %cst_56 = arith.constant 3.906250e-03 : f32
    %46 = vector.broadcast %cst_56 : f32 to vector<1x128xf32>
    %47 = arith.mulf %45, %46 : vector<1x128xf32>
    %cst_57 = arith.constant 9.99999974E-6 : f32
    %48 = vector.broadcast %cst_57 : f32 to vector<1x128xf32>
    %49 = arith.addf %47, %48 : vector<1x128xf32>
    %50 = math.rsqrt %49 : vector<1x128xf32>
    %51 = arith.mulf %35, %50 : vector<1x128xf32>
    %52 = vector.broadcast %51 : vector<1x128xf32> to vector<256x128xf32>
    %53 = arith.mulf %42, %52 : vector<256x128xf32>
    %54 = vector.broadcast %36 : vector<1x128xf32> to vector<256x128xf32>
    %55 = arith.addf %53, %54 : vector<256x128xf32>
    %cst_58 = arith.constant 0.000000e+00 : f32
    %56 = vector.broadcast %cst_58 : f32 to vector<256x128xf32>
    %57 = arith.cmpf oge, %55, %56 : vector<256x128xf32>
    %cst_59 = arith.constant 0.00999999977 : f32
    %58 = vector.broadcast %cst_59 : f32 to vector<256x128xf32>
    %59 = arith.mulf %58, %55 : vector<256x128xf32>
    %60 = arith.select %57, %55, %59 : vector<256x128xi1>, vector<256x128xf32>
    %cst_60 = arith.constant 0.000000e+00 : f32
    %61 = vector.broadcast %cst_60 : f32 to vector<18x18x128xf32>
    %c0_61 = arith.constant 0 : index
    %c0_62 = arith.constant 0 : index
    %c0_63 = arith.constant 0 : index
    %62 = vector.load %arg14[%c0_61, %c0_62, %c0_63] : memref<18x18x128xf32, #tpu.memory_space<vmem>>, vector<18x18x128xf32>
    tpu.vector_store %arg14[%c0_61, %c0_62, %c0_63], %61 {strides = array<i32>} : memref<18x18x128xf32, #tpu.memory_space<vmem>>, vector<18x18x128xf32>,
    %63 = vector.shape_cast %60 : vector<256x128xf32> to vector<16x16x128xf32>
    %c1_64 = arith.constant 1 : index
    %c1_65 = arith.constant 1 : index
    %c0_66 = arith.constant 0 : index
    %64 = vector.load %arg14[%c1_64, %c1_65, %c0_66] : memref<18x18x128xf32, #tpu.memory_space<vmem>>, vector<16x16x128xf32>
    tpu.vector_store %arg14[%c1_64, %c1_65, %c0_66], %63 {strides = array<i32>} : memref<18x18x128xf32, #tpu.memory_space<vmem>>, vector<16x16x128xf32>,
    %c0_67 = arith.constant 0 : index
    %c0_68 = arith.constant 0 : index
    %c0_69 = arith.constant 0 : index
    %65 = vector.load %arg14[%c0_67, %c0_68, %c0_69] : memref<18x18x128xf32, #tpu.memory_space<vmem>>, vector<16x16x128xf32>
    %66 = vector.shape_cast %65 : vector<16x16x128xf32> to vector<256x128xf32>
    %c0_70 = arith.constant 0 : index
    %c0_71 = arith.constant 0 : index
    %67 = vector.load %arg15[%c0_70, %c0_71] : memref<256x1152xf32, #tpu.memory_space<vmem>>, vector<256x128xf32>
    tpu.vector_store %arg15[%c0_70, %c0_71], %66 {strides = array<i32>} : memref<256x1152xf32, #tpu.memory_space<vmem>>, vector<256x128xf32>,
    %c0_72 = arith.constant 0 : index
    %c1_73 = arith.constant 1 : index
    %c0_74 = arith.constant 0 : index
    %68 = vector.load %arg14[%c0_72, %c1_73, %c0_74] : memref<18x18x128xf32, #tpu.memory_space<vmem>>, vector<16x16x128xf32>
    %69 = vector.shape_cast %68 : vector<16x16x128xf32> to vector<256x128xf32>
    %c0_75 = arith.constant 0 : index
    %c128 = arith.constant 128 : index
    %70 = vector.load %arg15[%c0_75, %c128] : memref<256x1152xf32, #tpu.memory_space<vmem>>, vector<256x128xf32>
    tpu.vector_store %arg15[%c0_75, %c128], %69 {strides = array<i32>} : memref<256x1152xf32, #tpu.memory_space<vmem>>, vector<256x128xf32>,
    %c0_76 = arith.constant 0 : index
    %c2_77 = arith.constant 2 : index
    %c0_78 = arith.constant 0 : index
    %71 = vector.load %arg14[%c0_76, %c2_77, %c0_78] : memref<18x18x128xf32, #tpu.memory_space<vmem>>, vector<16x16x128xf32>
    %72 = vector.shape_cast %71 : vector<16x16x128xf32> to vector<256x128xf32>
    %c0_79 = arith.constant 0 : index
    %c256 = arith.constant 256 : index
    %73 = vector.load %arg15[%c0_79, %c256] : memref<256x1152xf32, #tpu.memory_space<vmem>>, vector<256x128xf32>
    tpu.vector_store %arg15[%c0_79, %c256], %72 {strides = array<i32>} : memref<256x1152xf32, #tpu.memory_space<vmem>>, vector<256x128xf32>,
    %c1_80 = arith.constant 1 : index
    %c0_81 = arith.constant 0 : index
    %c0_82 = arith.constant 0 : index
    %74 = vector.load %arg14[%c1_80, %c0_81, %c0_82] : memref<18x18x128xf32, #tpu.memory_space<vmem>>, vector<16x16x128xf32>
    %75 = vector.shape_cast %74 : vector<16x16x128xf32> to vector<256x128xf32>
    %c0_83 = arith.constant 0 : index
    %c384 = arith.constant 384 : index
    %76 = vector.load %arg15[%c0_83, %c384] : memref<256x1152xf32, #tpu.memory_space<vmem>>, vector<256x128xf32>
    tpu.vector_store %arg15[%c0_83, %c384], %75 {strides = array<i32>} : memref<256x1152xf32, #tpu.memory_space<vmem>>, vector<256x128xf32>,
    %c1_84 = arith.constant 1 : index
    %c1_85 = arith.constant 1 : index
    %c0_86 = arith.constant 0 : index
    %77 = vector.load %arg14[%c1_84, %c1_85, %c0_86] : memref<18x18x128xf32, #tpu.memory_space<vmem>>, vector<16x16x128xf32>
    %78 = vector.shape_cast %77 : vector<16x16x128xf32> to vector<256x128xf32>
    %c0_87 = arith.constant 0 : index
    %c512 = arith.constant 512 : index
    %79 = vector.load %arg15[%c0_87, %c512] : memref<256x1152xf32, #tpu.memory_space<vmem>>, vector<256x128xf32>
    tpu.vector_store %arg15[%c0_87, %c512], %78 {strides = array<i32>} : memref<256x1152xf32, #tpu.memory_space<vmem>>, vector<256x128xf32>,
    %c1_88 = arith.constant 1 : index
    %c2_89 = arith.constant 2 : index
    %c0_90 = arith.constant 0 : index
    %80 = vector.load %arg14[%c1_88, %c2_89, %c0_90] : memref<18x18x128xf32, #tpu.memory_space<vmem>>, vector<16x16x128xf32>
    %81 = vector.shape_cast %80 : vector<16x16x128xf32> to vector<256x128xf32>
    %c0_91 = arith.constant 0 : index
    %c640 = arith.constant 640 : index
    %82 = vector.load %arg15[%c0_91, %c640] : memref<256x1152xf32, #tpu.memory_space<vmem>>, vector<256x128xf32>
    tpu.vector_store %arg15[%c0_91, %c640], %81 {strides = array<i32>} : memref<256x1152xf32, #tpu.memory_space<vmem>>, vector<256x128xf32>,
    %c2_92 = arith.constant 2 : index
    %c0_93 = arith.constant 0 : index
    %c0_94 = arith.constant 0 : index
    %83 = vector.load %arg14[%c2_92, %c0_93, %c0_94] : memref<18x18x128xf32, #tpu.memory_space<vmem>>, vector<16x16x128xf32>
    %84 = vector.shape_cast %83 : vector<16x16x128xf32> to vector<256x128xf32>
    %c0_95 = arith.constant 0 : index
    %c768 = arith.constant 768 : index
    %85 = vector.load %arg15[%c0_95, %c768] : memref<256x1152xf32, #tpu.memory_space<vmem>>, vector<256x128xf32>
    tpu.vector_store %arg15[%c0_95, %c768], %84 {strides = array<i32>} : memref<256x1152xf32, #tpu.memory_space<vmem>>, vector<256x128xf32>,
    %c2_96 = arith.constant 2 : index
    %c1_97 = arith.constant 1 : index
    %c0_98 = arith.constant 0 : index
    %86 = vector.load %arg14[%c2_96, %c1_97, %c0_98] : memref<18x18x128xf32, #tpu.memory_space<vmem>>, vector<16x16x128xf32>
    %87 = vector.shape_cast %86 : vector<16x16x128xf32> to vector<256x128xf32>
    %c0_99 = arith.constant 0 : index
    %c896 = arith.constant 896 : index
    %88 = vector.load %arg15[%c0_99, %c896] : memref<256x1152xf32, #tpu.memory_space<vmem>>, vector<256x128xf32>
    tpu.vector_store %arg15[%c0_99, %c896], %87 {strides = array<i32>} : memref<256x1152xf32, #tpu.memory_space<vmem>>, vector<256x128xf32>,
    %c2_100 = arith.constant 2 : index
    %c2_101 = arith.constant 2 : index
    %c0_102 = arith.constant 0 : index
    %89 = vector.load %arg14[%c2_100, %c2_101, %c0_102] : memref<18x18x128xf32, #tpu.memory_space<vmem>>, vector<16x16x128xf32>
    %90 = vector.shape_cast %89 : vector<16x16x128xf32> to vector<256x128xf32>
    %c0_103 = arith.constant 0 : index
    %c1024 = arith.constant 1024 : index
    %91 = vector.load %arg15[%c0_103, %c1024] : memref<256x1152xf32, #tpu.memory_space<vmem>>, vector<256x128xf32>
    tpu.vector_store %arg15[%c0_103, %c1024], %90 {strides = array<i32>} : memref<256x1152xf32, #tpu.memory_space<vmem>>, vector<256x128xf32>,
    %c0_104 = arith.constant 0 : index
    %c0_105 = arith.constant 0 : index
    %92 = vector.load %arg15[%c0_104, %c0_105] : memref<256x1152xf32, #tpu.memory_space<vmem>>, vector<256x1152xf32>
    %c0_106 = arith.constant 0 : index
    %c0_107 = arith.constant 0 : index
    %93 = vector.load %arg5[%c0_106, %c0_107] : memref<1152x128xf32, #tpu.memory_space<vmem>>, vector<1152x128xf32>
    %cst_108 = arith.constant dense<0.000000e+00> : vector<256x128xf32>
    %94 = tpu.matmul %92, %93, %cst_108 {dimension_numbers = #tpu.dot_dimension_numbers<[1], [0], [0], [1], [0, 0, 1, 1], [], []>} : vector<256x1152xf32>, vector<1152x128xf32>, vector<256x128xf32> -> vector<256x128xf32>
    %c0_109 = arith.constant 0 : index
    %c0_110 = arith.constant 0 : index
    %95 = vector.load %arg6[%c0_109, %c0_110] : memref<1x128xf32, #tpu.memory_space<vmem>>, vector<1x128xf32>
    %c0_111 = arith.constant 0 : index
    %c0_112 = arith.constant 0 : index
    %96 = vector.load %arg7[%c0_111, %c0_112] : memref<1x128xf32, #tpu.memory_space<vmem>>, vector<1x128xf32>
    %cst_113 = arith.constant dense<0.000000e+00> : vector<128xf32>
    %97 = vector.multi_reduction <add>, %94, %cst_113 [0] : vector<256x128xf32> to vector<128xf32>
    %98 = vector.shape_cast %97 : vector<128xf32> to vector<1x128xf32>
    %cst_114 = arith.constant 3.906250e-03 : f32
    %99 = vector.broadcast %cst_114 : f32 to vector<1x128xf32>
    %100 = arith.mulf %98, %99 : vector<1x128xf32>
    %101 = vector.broadcast %100 : vector<1x128xf32> to vector<256x128xf32>
    %102 = arith.subf %94, %101 : vector<256x128xf32>
    %103 = arith.mulf %102, %102 : vector<256x128xf32>
    %cst_115 = arith.constant dense<0.000000e+00> : vector<128xf32>
    %104 = vector.multi_reduction <add>, %103, %cst_115 [0] : vector<256x128xf32> to vector<128xf32>
    %105 = vector.shape_cast %104 : vector<128xf32> to vector<1x128xf32>
    %cst_116 = arith.constant 3.906250e-03 : f32
    %106 = vector.broadcast %cst_116 : f32 to vector<1x128xf32>
    %107 = arith.mulf %105, %106 : vector<1x128xf32>
    %cst_117 = arith.constant 9.99999974E-6 : f32
    %108 = vector.broadcast %cst_117 : f32 to vector<1x128xf32>
    %109 = arith.addf %107, %108 : vector<1x128xf32>
    %110 = math.rsqrt %109 : vector<1x128xf32>
    %111 = arith.mulf %95, %110 : vector<1x128xf32>
    %112 = vector.broadcast %111 : vector<1x128xf32> to vector<256x128xf32>
    %113 = arith.mulf %102, %112 : vector<256x128xf32>
    %114 = vector.broadcast %96 : vector<1x128xf32> to vector<256x128xf32>
    %115 = arith.addf %113, %114 : vector<256x128xf32>
    %c0_118 = arith.constant 0 : index
    %c0_119 = arith.constant 0 : index
    %c0_120 = arith.constant 0 : index
    %c0_121 = arith.constant 0 : index
    %116 = vector.load %arg1[%c0_118, %c0_119, %c0_120, %c0_121] : memref<1x16x16x8xf32, #tpu.memory_space<vmem>>, vector<1x16x16x8xf32>
    %117 = vector.shape_cast %116 : vector<1x16x16x8xf32> to vector<256x8xf32>
    %c0_122 = arith.constant 0 : index
    %c0_123 = arith.constant 0 : index
    %118 = vector.load %arg8[%c0_122, %c0_123] : memref<8x128xf32, #tpu.memory_space<vmem>>, vector<8x128xf32>
    %cst_124 = arith.constant dense<0.000000e+00> : vector<256x128xf32>
    %119 = tpu.matmul %117, %118, %cst_124 {dimension_numbers = #tpu.dot_dimension_numbers<[1], [0], [0], [1], [0, 0, 1, 1], [], []>} : vector<256x8xf32>, vector<8x128xf32>, vector<256x128xf32> -> vector<256x128xf32>
    %c0_125 = arith.constant 0 : index
    %c0_126 = arith.constant 0 : index
    %120 = vector.load %arg9[%c0_125, %c0_126] : memref<1x128xf32, #tpu.memory_space<vmem>>, vector<1x128xf32>
    %c0_127 = arith.constant 0 : index
    %c0_128 = arith.constant 0 : index
    %121 = vector.load %arg10[%c0_127, %c0_128] : memref<1x128xf32, #tpu.memory_space<vmem>>, vector<1x128xf32>
    %cst_129 = arith.constant dense<0.000000e+00> : vector<128xf32>
    %122 = vector.multi_reduction <add>, %119, %cst_129 [0] : vector<256x128xf32> to vector<128xf32>
    %123 = vector.shape_cast %122 : vector<128xf32> to vector<1x128xf32>
    %cst_130 = arith.constant 3.906250e-03 : f32
    %124 = vector.broadcast %cst_130 : f32 to vector<1x128xf32>
    %125 = arith.mulf %123, %124 : vector<1x128xf32>
    %126 = vector.broadcast %125 : vector<1x128xf32> to vector<256x128xf32>
    %127 = arith.subf %119, %126 : vector<256x128xf32>
    %128 = arith.mulf %127, %127 : vector<256x128xf32>
    %cst_131 = arith.constant dense<0.000000e+00> : vector<128xf32>
    %129 = vector.multi_reduction <add>, %128, %cst_131 [0] : vector<256x128xf32> to vector<128xf32>
    %130 = vector.shape_cast %129 : vector<128xf32> to vector<1x128xf32>
    %cst_132 = arith.constant 3.906250e-03 : f32
    %131 = vector.broadcast %cst_132 : f32 to vector<1x128xf32>
    %132 = arith.mulf %130, %131 : vector<1x128xf32>
    %cst_133 = arith.constant 9.99999974E-6 : f32
    %133 = vector.broadcast %cst_133 : f32 to vector<1x128xf32>
    %134 = arith.addf %132, %133 : vector<1x128xf32>
    %135 = math.rsqrt %134 : vector<1x128xf32>
    %136 = arith.mulf %120, %135 : vector<1x128xf32>
    %137 = vector.broadcast %136 : vector<1x128xf32> to vector<256x128xf32>
    %138 = arith.mulf %127, %137 : vector<256x128xf32>
    %139 = vector.broadcast %121 : vector<1x128xf32> to vector<256x128xf32>
    %140 = arith.addf %138, %139 : vector<256x128xf32>
    %141 = arith.addf %115, %140 : vector<256x128xf32>
    %cst_134 = arith.constant 0.000000e+00 : f32
    %142 = vector.broadcast %cst_134 : f32 to vector<256x128xf32>
    %143 = arith.cmpf oge, %141, %142 : vector<256x128xf32>
    %cst_135 = arith.constant 0.00999999977 : f32
    %144 = vector.broadcast %cst_135 : f32 to vector<256x128xf32>
    %145 = arith.mulf %144, %141 : vector<256x128xf32>
    %146 = arith.select %143, %141, %145 : vector<256x128xi1>, vector<256x128xf32>
    %147 = vector.shape_cast %146 : vector<256x128xf32> to vector<1x16x16x128xf32>
    %c0_136 = arith.constant 0 : index
    %c0_137 = arith.constant 0 : index
    %c0_138 = arith.constant 0 : index
    %c0_139 = arith.constant 0 : index
    %148 = vector.load %arg11[%c0_136, %c0_137, %c0_138, %c0_139] : memref<1x16x16x128xf32, #tpu.memory_space<vmem>>, vector<1x16x16x128xf32>
    tpu.vector_store %arg11[%c0_136, %c0_137, %c0_138, %c0_139], %147 {strides = array<i32>} : memref<1x16x16x128xf32, #tpu.memory_space<vmem>>, vector<1x16x16x128xf32>,
    return
  }
  func.func @transform_0(%arg0: i32) -> (i32, i32, i32, i32) {
    %c0_i32 = arith.constant 0 : i32
    %c0_i32_0 = arith.constant 0 : i32
    %c0_i32_1 = arith.constant 0 : i32
    %c0_i32_2 = arith.constant 0 : i32
    return %arg0, %c0_i32, %c0_i32_0, %c0_i32_1 : i32, i32, i32, i32
  }
  func.func @transform_1(%arg0: i32) -> (i32, i32) {
    %c0_i32 = arith.constant 0 : i32
    %c0_i32_0 = arith.constant 0 : i32
    %c0_i32_1 = arith.constant 0 : i32
    return %c0_i32, %c0_i32_0 : i32, i32
  }
  func.func @transform_2(%arg0: i32) -> (i32, i32) {
    %c0_i32 = arith.constant 0 : i32
    %c0_i32_0 = arith.constant 0 : i32
    %c0_i32_1 = arith.constant 0 : i32
    return %c0_i32, %c0_i32_0 : i32, i32
  }
  func.func @transform_3(%arg0: i32) -> (i32, i32) {
    %c0_i32 = arith.constant 0 : i32
    %c0_i32_0 = arith.constant 0 : i32
    %c0_i32_1 = arith.constant 0 : i32
    return %c0_i32, %c0_i32_0 : i32, i32
  }
  func.func @transform_4(%arg0: i32) -> (i32, i32) {
    %c0_i32 = arith.constant 0 : i32
    %c0_i32_0 = arith.constant 0 : i32
    %c0_i32_1 = arith.constant 0 : i32
    return %c0_i32, %c0_i32_0 : i32, i32
  }
  func.func @transform_5(%arg0: i32) -> (i32, i32) {
    %c0_i32 = arith.constant 0 : i32
    %c0_i32_0 = arith.constant 0 : i32
    %c0_i32_1 = arith.constant 0 : i32
    return %c0_i32, %c0_i32_0 : i32, i32
  }
  func.func @transform_6(%arg0: i32) -> (i32, i32) {
    %c0_i32 = arith.constant 0 : i32
    %c0_i32_0 = arith.constant 0 : i32
    %c0_i32_1 = arith.constant 0 : i32
    return %c0_i32, %c0_i32_0 : i32, i32
  }
  func.func @transform_7(%arg0: i32) -> (i32, i32) {
    %c0_i32 = arith.constant 0 : i32
    %c0_i32_0 = arith.constant 0 : i32
    %c0_i32_1 = arith.constant 0 : i32
    return %c0_i32, %c0_i32_0 : i32, i32
  }
  func.func @transform_8(%arg0: i32) -> (i32, i32) {
    %c0_i32 = arith.constant 0 : i32
    %c0_i32_0 = arith.constant 0 : i32
    %c0_i32_1 = arith.constant 0 : i32
    return %c0_i32, %c0_i32_0 : i32, i32
  }
  func.func @transform_9(%arg0: i32) -> (i32, i32) {
    %c0_i32 = arith.constant 0 : i32
    %c0_i32_0 = arith.constant 0 : i32
    %c0_i32_1 = arith.constant 0 : i32
    return %c0_i32, %c0_i32_0 : i32, i32
  }
  func.func @transform_10(%arg0: i32) -> (i32, i32, i32, i32) {
    %c0_i32 = arith.constant 0 : i32
    %c0_i32_0 = arith.constant 0 : i32
    %c0_i32_1 = arith.constant 0 : i32
    %c0_i32_2 = arith.constant 0 : i32
    return %arg0, %c0_i32, %c0_i32_0, %c0_i32_1 : i32, i32, i32, i32
  }
}

</mosaic_0001>

<llo_original>
// kernel: basic_residual_block.1
$region0: #{basic_residual_block.1}
  #allocation0 [shape = 'u32[]', space=smem, size = 0x4, offset = 0x4, fixed_abs, tag = 'smem constant byte address 0x4 - core index']
  #allocation1 [shape = 'u32[144,128]{1,0:T(1,128)}', space=vmem, size = 0x12000, scoped, tag = 'internal scratch']
  #allocation2 [shape = 'f32[18,18,8]{2,1,0:T(8,128)}', space=vmem, size = 0x36000, scoped, tag = 'scratch operand']
  #allocation3 [shape = 'f32[256,72]{1,0:T(8,128)}', space=vmem, size = 0x20000, scoped, tag = 'scratch operand']
  #allocation4 [shape = 'f32[18,18,128]{2,1,0:T(8,128)}', space=vmem, size = 0x36000, scoped, tag = 'scratch operand']
  #allocation5 [shape = 'f32[256,1152]{1,0:T(8,128)}', space=vmem, size = 0x120000, scoped, tag = 'scratch operand']
  %s0 = inlined_call_operand.vmem [shape: f32[2,16,16,8], index: 0, kind: input, shape index: {}]
  %s1 = inlined_call_operand.vmem [shape: f32[72,128], index: 1, kind: input, shape index: {}]
  %s2 = inlined_call_operand.vmem [shape: f32[1,128], index: 2, kind: input, shape index: {}]
  %s3 = inlined_call_operand.vmem [shape: f32[1,128], index: 3, kind: input, shape index: {}]
  %s4 = inlined_call_operand.vmem [shape: f32[1152,128], index: 4, kind: input, shape index: {}]
  %s5 = inlined_call_operand.vmem [shape: f32[1,128], index: 5, kind: input, shape index: {}]
  %s6 = inlined_call_operand.vmem [shape: f32[1,128], index: 6, kind: input, shape index: {}]
  %s7 = inlined_call_operand.vmem [shape: f32[8,128], index: 7, kind: input, shape index: {}]
  %s8 = inlined_call_operand.vmem [shape: f32[1,128], index: 8, kind: input, shape index: {}]
  %s9 = inlined_call_operand.vmem [shape: f32[1,128], index: 9, kind: input, shape index: {}]
  %s10 = inlined_call_operand.vmem [shape: f32[2,16,16,128], index: 10, kind: output, shape index: {}]
  %s11 = sld [smem:[#allocation0]]
  $region73: #{basic_residual_block.1} parent=0
    _
  %s13 = ssub.s32 1, %s11
  %s14 = scalar_select 0, %s13, %s11
  loop: start=0, step=1, limit=4
  $region2: #{basic_residual_block.1} parent=0 // loop_pre_header
    _
  $region3: #{basic_residual_block.1} parent=0 // loop_header
    %s16 = sphi 0, %s20
    %p17 = scmp.ge.s32.totalorder %s16, 4
    %s26 = sphi 0, %s28
    %s29 = sphi 0, %s26
    %s30 = sphi 0, %s29
    %s46 = sphi 0, %s30
    %s50 = sphi 0, %s50
    %s52 = sphi 0, %s50
    %s53 = sphi 0, %s52
    %s67 = sphi 0, %s53
    %s71 = sphi 0, %s71
    %s73 = sphi 0, %s71
    %s74 = sphi 0, %s73
    %s88 = sphi 0, %s74
    %s92 = sphi 0, %s92
    %s94 = sphi 0, %s92
    %s95 = sphi 0, %s94
    %s109 = sphi 0, %s95
    %s113 = sphi 0, %s113
    %s115 = sphi 0, %s113
    %s116 = sphi 0, %s115
    %s130 = sphi 0, %s116
    %s134 = sphi 0, %s134
    %s136 = sphi 0, %s134
    %s137 = sphi 0, %s136
    %s151 = sphi 0, %s137
    %s155 = sphi 0, %s155
    %s157 = sphi 0, %s155
    %s158 = sphi 0, %s157
    %s172 = sphi 0, %s158
    %s176 = sphi 0, %s176
    %s178 = sphi 0, %s176
    %s179 = sphi 0, %s178
    %s193 = sphi 0, %s179
    %s197 = sphi 0, %s197
    %s199 = sphi 0, %s197
    %s200 = sphi 0, %s199
    %s214 = sphi 0, %s200
    %s218 = sphi 0, %s218
    %s220 = sphi 0, %s218
    %s221 = sphi 0, %s220
    %s235 = sphi 0, %s221
    %s241 = sphi 0, %s243
    %s244 = sphi 0, %s241
    %s245 = sphi 0, %s244
    %s261 = sphi 0, %s245
  $region4: #{basic_residual_block.1} parent=0 // loop_header_branch
    %19 = sbr.rel (%p17) target = $region8
  $region5: #{basic_residual_block.1} parent=0 // loop_body
    %s21 = ssub.s32 %s16, 1
    %s22 = ssub.s32 %s16, 2
    %s23 = sadd.s32 %s16, 1
    %s24 = ssub.s32 %s16, %s23
    %p25 = scmp.eq.s32.totalorder %s24, 0
    %s27 = sadd.s32 %s26, 1
    %s28 = scalar_select %p25, %s26, %s27
    %p31 = pneg %p25
    %p32 = scmp.eq.s32.totalorder %s16, 1
    %p33 = por %p31, %p32
    %p34 = scmp.ne.s32.totalorder %s26, %s29
    %p35 = scmp.eq.s32.totalorder %s16, 0
    %p36 = por %p34, %p35
    %p37 = scmp.ne.s32.totalorder %s26, %s29
    %p38 = scmp.eq.s32.totalorder %s21, 1
    %p39 = por %p37, %p38
    %p40 = scmp.ne.s32.totalorder %s29, %s30
    %p41 = scmp.eq.s32.totalorder %s21, 0
    %p42 = por %p40, %p41
    %p43 = scmp.ne.s32.totalorder %s29, %s30
    %p44 = scmp.eq.s32.totalorder %s22, 1
    %p45 = por %p43, %p44
    %p47 = scmp.ne.s32.totalorder %s30, %s46
    %p48 = scmp.eq.s32.totalorder %s22, 0
    %p49 = por %p47, %p48
    %s51 = sadd.s32 %s50, 1
    %p54 = scmp.eq.s32.totalorder %s16, 1
    %p55 = scmp.ne.s32.totalorder %s50, %s52
    %p56 = scmp.eq.s32.totalorder %s16, 0
    %p57 = por %p55, %p56
    %p58 = scmp.ne.s32.totalorder %s50, %s52
    %p59 = scmp.eq.s32.totalorder %s21, 1
    %p60 = por %p58, %p59
    %p61 = scmp.ne.s32.totalorder %s52, %s53
    %p62 = scmp.eq.s32.totalorder %s21, 0
    %p63 = por %p61, %p62
    %p64 = scmp.ne.s32.totalorder %s52, %s53
    %p65 = scmp.eq.s32.totalorder %s22, 1
    %p66 = por %p64, %p65
    %p68 = scmp.ne.s32.totalorder %s53, %s67
    %p69 = scmp.eq.s32.totalorder %s22, 0
    %p70 = por %p68, %p69
    %s72 = sadd.s32 %s71, 1
    %p75 = scmp.eq.s32.totalorder %s16, 1
    %p76 = scmp.ne.s32.totalorder %s71, %s73
    %p77 = scmp.eq.s32.totalorder %s16, 0
    %p78 = por %p76, %p77
    %p79 = scmp.ne.s32.totalorder %s71, %s73
    %p80 = scmp.eq.s32.totalorder %s21, 1
    %p81 = por %p79, %p80
    %p82 = scmp.ne.s32.totalorder %s73, %s74
    %p83 = scmp.eq.s32.totalorder %s21, 0
    %p84 = por %p82, %p83
    %p85 = scmp.ne.s32.totalorder %s73, %s74
    %p86 = scmp.eq.s32.totalorder %s22, 1
    %p87 = por %p85, %p86
    %p89 = scmp.ne.s32.totalorder %s74, %s88
    %p90 = scmp.eq.s32.totalorder %s22, 0
    %p91 = por %p89, %p90
    %s93 = sadd.s32 %s92, 1
    %p96 = scmp.eq.s32.totalorder %s16, 1
    %p97 = scmp.ne.s32.totalorder %s92, %s94
    %p98 = scmp.eq.s32.totalorder %s16, 0
    %p99 = por %p97, %p98
    %p100 = scmp.ne.s32.totalorder %s92, %s94
    %p101 = scmp.eq.s32.totalorder %s21, 1
    %p102 = por %p100, %p101
    %p103 = scmp.ne.s32.totalorder %s94, %s95
    %p104 = scmp.eq.s32.totalorder %s21, 0
    %p105 = por %p103, %p104
    %p106 = scmp.ne.s32.totalorder %s94, %s95
    %p107 = scmp.eq.s32.totalorder %s22, 1
    %p108 = por %p106, %p107
    %p110 = scmp.ne.s32.totalorder %s95, %s109
    %p111 = scmp.eq.s32.totalorder %s22, 0
    %p112 = por %p110, %p111
    %s114 = sadd.s32 %s113, 1
    %p117 = scmp.eq.s32.totalorder %s16, 1
    %p118 = scmp.ne.s32.totalorder %s113, %s115
    %p119 = scmp.eq.s32.totalorder %s16, 0
    %p120 = por %p118, %p119
    %p121 = scmp.ne.s32.totalorder %s113, %s115
    %p122 = scmp.eq.s32.totalorder %s21, 1
    %p123 = por %p121, %p122
    %p124 = scmp.ne.s32.totalorder %s115, %s116
    %p125 = scmp.eq.s32.totalorder %s21, 0
    %p126 = por %p124, %p125
    %p127 = scmp.ne.s32.totalorder %s115, %s116
    %p128 = scmp.eq.s32.totalorder %s22, 1
    %p129 = por %p127, %p128
    %p131 = scmp.ne.s32.totalorder %s116, %s130
    %p132 = scmp.eq.s32.totalorder %s22, 0
    %p133 = por %p131, %p132
    %s135 = sadd.s32 %s134, 1
    %p138 = scmp.eq.s32.totalorder %s16, 1
    %p139 = scmp.ne.s32.totalorder %s134, %s136
    %p140 = scmp.eq.s32.totalorder %s16, 0
    %p141 = por %p139, %p140
    %p142 = scmp.ne.s32.totalorder %s134, %s136
    %p143 = scmp.eq.s32.totalorder %s21, 1
    %p144 = por %p142, %p143
    %p145 = scmp.ne.s32.totalorder %s136, %s137
    %p146 = scmp.eq.s32.totalorder %s21, 0
    %p147 = por %p145, %p146
    %p148 = scmp.ne.s32.totalorder %s136, %s137
    %p149 = scmp.eq.s32.totalorder %s22, 1
    %p150 = por %p148, %p149
    %p152 = scmp.ne.s32.totalorder %s137, %s151
    %p153 = scmp.eq.s32.totalorder %s22, 0
    %p154 = por %p152, %p153
    %s156 = sadd.s32 %s155, 1
    %p159 = scmp.eq.s32.totalorder %s16, 1
    %p160 = scmp.ne.s32.totalorder %s155, %s157
    %p161 = scmp.eq.s32.totalorder %s16, 0
    %p162 = por %p160, %p161
    %p163 = scmp.ne.s32.totalorder %s155, %s157
    %p164 = scmp.eq.s32.totalorder %s21, 1
    %p165 = por %p163, %p164
    %p166 = scmp.ne.s32.totalorder %s157, %s158
    %p167 = scmp.eq.s32.totalorder %s21, 0
    %p168 = por %p166, %p167
    %p169 = scmp.ne.s32.totalorder %s157, %s158
    %p170 = scmp.eq.s32.totalorder %s22, 1
    %p171 = por %p169, %p170
    %p173 = scmp.ne.s32.totalorder %s158, %s172
    %p174 = scmp.eq.s32.totalorder %s22, 0
    %p175 = por %p173, %p174
    %s177 = sadd.s32 %s176, 1
    %p180 = scmp.eq.s32.totalorder %s16, 1
    %p181 = scmp.ne.s32.totalorder %s176, %s178
    %p182 = scmp.eq.s32.totalorder %s16, 0
    %p183 = por %p181, %p182
    %p184 = scmp.ne.s32.totalorder %s176, %s178
    %p185 = scmp.eq.s32.totalorder %s21, 1
    %p186 = por %p184, %p185
    %p187 = scmp.ne.s32.totalorder %s178, %s179
    %p188 = scmp.eq.s32.totalorder %s21, 0
    %p189 = por %p187, %p188
    %p190 = scmp.ne.s32.totalorder %s178, %s179
    %p191 = scmp.eq.s32.totalorder %s22, 1
    %p192 = por %p190, %p191
    %p194 = scmp.ne.s32.totalorder %s179, %s193
    %p195 = scmp.eq.s32.totalorder %s22, 0
    %p196 = por %p194, %p195
    %s198 = sadd.s32 %s197, 1
    %p201 = scmp.eq.s32.totalorder %s16, 1
    %p202 = scmp.ne.s32.totalorder %s197, %s199
    %p203 = scmp.eq.s32.totalorder %s16, 0
    %p204 = por %p202, %p203
    %p205 = scmp.ne.s32.totalorder %s197, %s199
    %p206 = scmp.eq.s32.totalorder %s21, 1
    %p207 = por %p205, %p206
    %p208 = scmp.ne.s32.totalorder %s199, %s200
    %p209 = scmp.eq.s32.totalorder %s21, 0
    %p210 = por %p208, %p209
    %p211 = scmp.ne.s32.totalorder %s199, %s200
    %p212 = scmp.eq.s32.totalorder %s22, 1
    %p213 = por %p211, %p212
    %p215 = scmp.ne.s32.totalorder %s200, %s214
    %p216 = scmp.eq.s32.totalorder %s22, 0
    %p217 = por %p215, %p216
    %s219 = sadd.s32 %s218, 1
    %p222 = scmp.eq.s32.totalorder %s16, 1
    %p223 = scmp.ne.s32.totalorder %s218, %s220
    %p224 = scmp.eq.s32.totalorder %s16, 0
    %p225 = por %p223, %p224
    %p226 = scmp.ne.s32.totalorder %s218, %s220
    %p227 = scmp.eq.s32.totalorder %s21, 1
    %p228 = por %p226, %p227
    %p229 = scmp.ne.s32.totalorder %s220, %s221
    %p230 = scmp.eq.s32.totalorder %s21, 0
    %p231 = por %p229, %p230
    %p232 = scmp.ne.s32.totalorder %s220, %s221
    %p233 = scmp.eq.s32.totalorder %s22, 1
    %p234 = por %p232, %p233
    %p236 = scmp.ne.s32.totalorder %s221, %s235
    %p237 = scmp.eq.s32.totalorder %s22, 0
    %p238 = por %p236, %p237
    %s239 = ssub.s32 %s16, %s23
    %p240 = scmp.eq.s32.totalorder %s239, 0
    %s242 = sadd.s32 %s241, 1
    %s243 = scalar_select %p240, %s241, %s242
    %p246 = pneg %p240
    %p247 = scmp.eq.s32.totalorder %s16, 1
    %p248 = por %p246, %p247
    %p249 = scmp.ne.s32.totalorder %s241, %s244
    %p250 = scmp.eq.s32.totalorder %s16, 0
    %p251 = por %p249, %p250
    %p252 = scmp.ne.s32.totalorder %s241, %s244
    %p253 = scmp.eq.s32.totalorder %s21, 1
    %p254 = por %p252, %p253
    %p255 = scmp.ne.s32.totalorder %s244, %s245
    %p256 = scmp.eq.s32.totalorder %s21, 0
    %p257 = por %p255, %p256
    %p258 = scmp.ne.s32.totalorder %s244, %s245
    %p259 = scmp.eq.s32.totalorder %s22, 1
    %p260 = por %p258, %p259
    %p262 = scmp.ne.s32.totalorder %s245, %s261
    %p263 = scmp.eq.s32.totalorder %s22, 0
    %p264 = por %p262, %p263
    %p265 = scmp.le.s32.totalorder 1, %s16
    %p266 = scmp.lt.s32.totalorder %s16, 3
    %p267 = pnand %p265, %p266
    %p268 = pneg %p267
    // Predicated region
    $region9: #{basic_residual_block.1} parent=5 // pred_check
      _
    $region10: #{basic_residual_block.1} parent=5 // pred_check_branch
      %270 = sbr.rel (%p267) target = $region12
    $region11: #{basic_residual_block.1} parent=5 // pred_region
      %s271 = ssub.s32 %s16, 1
      // Predicated region
      $region13: #{basic_residual_block.1} parent=11 // pred_check
        %p272 = pneg %p63
      $region14: #{basic_residual_block.1} parent=11 // pred_check_branch
        %274 = sbr.rel (%p272) target = $region16
      $region15: #{basic_residual_block.1} parent=11 // pred_region
        _
      $region16: #{basic_residual_block.1} parent=11 // pred_fallthru
        _
      // Predicated region
      $region17: #{basic_residual_block.1} parent=11 // pred_check
        %p275 = pneg %p84
      $region18: #{basic_residual_block.1} parent=11 // pred_check_branch
        %277 = sbr.rel (%p275) target = $region20
      $region19: #{basic_residual_block.1} parent=11 // pred_region
        _
      $region20: #{basic_residual_block.1} parent=11 // pred_fallthru
        _
      // Predicated region
      $region21: #{basic_residual_block.1} parent=11 // pred_check
        %p278 = pneg %p105
      $region22: #{basic_residual_block.1} parent=11 // pred_check_branch
        %280 = sbr.rel (%p278) target = $region24
      $region23: #{basic_residual_block.1} parent=11 // pred_region
        _
      $region24: #{basic_residual_block.1} parent=11 // pred_fallthru
        _
      // Predicated region
      $region25: #{basic_residual_block.1} parent=11 // pred_check
        %p281 = pneg %p126
      $region26: #{basic_residual_block.1} parent=11 // pred_check_branch
        %283 = sbr.rel (%p281) target = $region28
      $region27: #{basic_residual_block.1} parent=11 // pred_region
        _
      $region28: #{basic_residual_block.1} parent=11 // pred_fallthru
        _
      // Predicated region
      $region29: #{basic_residual_block.1} parent=11 // pred_check
        %p284 = pneg %p147
      $region30: #{basic_residual_block.1} parent=11 // pred_check_branch
        %286 = sbr.rel (%p284) target = $region32
      $region31: #{basic_residual_block.1} parent=11 // pred_region
        _
      $region32: #{basic_residual_block.1} parent=11 // pred_fallthru
        _
      // Predicated region
      $region33: #{basic_residual_block.1} parent=11 // pred_check
        %p287 = pneg %p168
      $region34: #{basic_residual_block.1} parent=11 // pred_check_branch
        %289 = sbr.rel (%p287) target = $region36
      $region35: #{basic_residual_block.1} parent=11 // pred_region
        _
      $region36: #{basic_residual_block.1} parent=11 // pred_fallthru
        _
      // Predicated region
      $region37: #{basic_residual_block.1} parent=11 // pred_check
        %p290 = pneg %p189
      $region38: #{basic_residual_block.1} parent=11 // pred_check_branch
        %292 = sbr.rel (%p290) target = $region40
      $region39: #{basic_residual_block.1} parent=11 // pred_region
        _
      $region40: #{basic_residual_block.1} parent=11 // pred_fallthru
        _
      // Predicated region
      $region41: #{basic_residual_block.1} parent=11 // pred_check
        %p293 = pneg %p210
      $region42: #{basic_residual_block.1} parent=11 // pred_check_branch
        %295 = sbr.rel (%p293) target = $region44
      $region43: #{basic_residual_block.1} parent=11 // pred_region
        _
      $region44: #{basic_residual_block.1} parent=11 // pred_fallthru
        _
      // Predicated region
      $region45: #{basic_residual_block.1} parent=11 // pred_check
        %p296 = pneg %p231
      $region46: #{basic_residual_block.1} parent=11 // pred_check_branch
        %298 = sbr.rel (%p296) target = $region48
      $region47: #{basic_residual_block.1} parent=11 // pred_region
        _
      $region48: #{basic_residual_block.1} parent=11 // pred_fallthru
        _
    $region12: #{basic_residual_block.1} parent=5 // pred_fallthru
      _
    %p299 = scmp.lt.s32.totalorder %s16, 2
    // Predicated region
    $region49: #{basic_residual_block.1} parent=5 // pred_check
      %p300 = pneg %p299
    $region50: #{basic_residual_block.1} parent=5 // pred_check_branch
      %302 = sbr.rel (%p300) target = $region52
    $region51: #{basic_residual_block.1} parent=5 // pred_region
      // Predicated region
      $region53: #{basic_residual_block.1} parent=51 // pred_check
        %p303 = pneg %p36
      $region54: #{basic_residual_block.1} parent=51 // pred_check_branch
        %305 = sbr.rel (%p303) target = $region56
      $region55: #{basic_residual_block.1} parent=51 // pred_region
        %p306 = scmp.lt.s32.totalorder %s16, 1
        %s307 = scalar_select %p306, %s16, 1
        %s308 = smul.addr %s307, 32
        %s309 = smul.addr %s308, 8
        %s310 = scalar_lea.vmem %s0, %s309
      $region56: #{basic_residual_block.1} parent=51 // pred_fallthru
        _
    $region52: #{basic_residual_block.1} parent=5 // pred_fallthru
      _
    %p311 = scmp.le.s32.totalorder 1, %s16
    %p312 = scmp.lt.s32.totalorder %s16, 3
    %p313 = pnand %p311, %p312
    %p314 = pneg %p313
    // Predicated region
    $region57: #{basic_residual_block.1} parent=5 // pred_check
      _
    $region58: #{basic_residual_block.1} parent=5 // pred_check_branch
      %316 = sbr.rel (%p313) target = $region60
    $region59: #{basic_residual_block.1} parent=5 // pred_region
      %s317 = ssub.s32 %s16, 1
      %p318 = scmp.lt.s32.totalorder %s21, 1
      %s319 = scalar_select %p318, %s21, 1
      %s320 = smul.addr %s319, 32
      %s321 = smul.addr %s320, 8
      %s322 = scalar_lea.vmem %s0, %s321
      %p323 = pneg %p42
      %p324 = pneg %p39
      %p325 = pneg %p63
      %p326 = pneg %p60
      %p327 = pneg %p84
      %p328 = pneg %p81
      %p329 = pneg %p105
      %p330 = pneg %p102
      %p331 = pneg %p126
      %p332 = pneg %p123
      %p333 = pneg %p147
      %p334 = pneg %p144
      %p335 = pneg %p168
      %p336 = pneg %p165
      %p337 = pneg %p189
      %p338 = pneg %p186
      %p339 = pneg %p210
      %p340 = pneg %p207
      %p341 = pneg %p231
      %p342 = pneg %p228
      %p343 = pneg %p257
      %p344 = pneg %p254
      %p345 = scmp.lt.s32.totalorder %s21, 1
      %s346 = scalar_select %p345, %s21, 1
      %s347 = smul.addr %s346, 32
      %s348 = smul.addr %s347, 8
      %s349 = scalar_lea.vmem %s10, %s348
      %p350 = scmp.lt.s32.totalorder %s21, 1
      %s351 = scalar_select %p350, %s21, 1
      %s352 = smul.addr %s351, 32
      %s353 = smul.addr %s352, 8
      %s354 = scalar_lea.vmem %s0, %s353
      %p355 = scmp.lt.s32.totalorder %s21, 1
      %s356 = scalar_select %p355, %s21, 1
      %s357 = smul.addr %s356, 32
      %s358 = smul.addr %s357, 8
      %s359 = scalar_lea.vmem %s10, %s358
      %vm360 = vcmask 64512
      %361 = vst.msk [vmem:[#allocation2] sm:$0xff] %vm360, 0.0
      %362 = vst.msk [vmem:[#allocation2 + $0x8] sm:$0xff] %vm360, 0.0
      %vm363 = vcmask 58368
      %364 = vst.msk [vmem:[#allocation2 + $0x10] sm:$0x3] %vm363, 0.0
      %365 = vst.msk [vmem:[#allocation2 + $0x18] sm:$0xff] %vm360, 0.0
      %366 = vst.msk [vmem:[#allocation2 + $0x20] sm:$0xff] %vm360, 0.0
      %367 = vst.msk [vmem:[#allocation2 + $0x28] sm:$0x3] %vm363, 0.0
      %368 = vst.msk [vmem:[#allocation2 + $0x30] sm:$0xff] %vm360, 0.0
      %369 = vst.msk [vmem:[#allocation2 + $0x38] sm:$0xff] %vm360, 0.0
      %370 = vst.msk [vmem:[#allocation2 + $0x40] sm:$0x3] %vm363, 0.0
      %371 = vst.msk [vmem:[#allocation2 + $0x48] sm:$0xff] %vm360, 0.0
      %372 = vst.msk [vmem:[#allocation2 + $0x50] sm:$0xff] %vm360, 0.0
      %373 = vst.msk [vmem:[#allocation2 + $0x58] sm:$0x3] %vm363, 0.0
      %374 = vst.msk [vmem:[#allocation2 + $0x60] sm:$0xff] %vm360, 0.0
      %375 = vst.msk [vmem:[#allocation2 + $0x68] sm:$0xff] %vm360, 0.0
      %376 = vst.msk [vmem:[#allocation2 + $0x70] sm:$0x3] %vm363, 0.0
      %377 = vst.msk [vmem:[#allocation2 + $0x78] sm:$0xff] %vm360, 0.0
      %378 = vst.msk [vmem:[#allocation2 + $0x80] sm:$0xff] %vm360, 0.0
      %379 = vst.msk [vmem:[#allocation2 + $0x88] sm:$0x3] %vm363, 0.0
      %380 = vst.msk [vmem:[#allocation2 + $0x90] sm:$0xff] %vm360, 0.0
      %381 = vst.msk [vmem:[#allocation2 + $0x98] sm:$0xff] %vm360, 0.0
      %382 = vst.msk [vmem:[#allocation2 + $0xa0] sm:$0x3] %vm363, 0.0
      %383 = vst.msk [vmem:[#allocation2 + $0xa8] sm:$0xff] %vm360, 0.0
      %384 = vst.msk [vmem:[#allocation2 + $0xb0] sm:$0xff] %vm360, 0.0
      %385 = vst.msk [vmem:[#allocation2 + $0xb8] sm:$0x3] %vm363, 0.0
      %386 = vst.msk [vmem:[#allocation2 + $0xc0] sm:$0xff] %vm360, 0.0
      %387 = vst.msk [vmem:[#allocation2 + $0xc8] sm:$0xff] %vm360, 0.0
      %388 = vst.msk [vmem:[#allocation2 + $0xd0] sm:$0x3] %vm363, 0.0
      %389 = vst.msk [vmem:[#allocation2 + $0xd8] sm:$0xff] %vm360, 0.0
      %390 = vst.msk [vmem:[#allocation2 + $0xe0] sm:$0xff] %vm360, 0.0
      %391 = vst.msk [vmem:[#allocation2 + $0xe8] sm:$0x3] %vm363, 0.0
      %392 = vst.msk [vmem:[#allocation2 + $0xf0] sm:$0xff] %vm360, 0.0
      %393 = vst.msk [vmem:[#allocation2 + $0xf8] sm:$0xff] %vm360, 0.0
      %394 = vst.msk [vmem:[#allocation2 + $0x100] sm:$0x3] %vm363, 0.0
      %395 = vst.msk [vmem:[#allocation2 + $0x108] sm:$0xff] %vm360, 0.0
      %396 = vst.msk [vmem:[#allocation2 + $0x110] sm:$0xff] %vm360, 0.0
      %397 = vst.msk [vmem:[#allocation2 + $0x118] sm:$0x3] %vm363, 0.0
      %398 = vst.msk [vmem:[#allocation2 + $0x120] sm:$0xff] %vm360, 0.0
      %399 = vst.msk [vmem:[#allocation2 + $0x128] sm:$0xff] %vm360, 0.0
      %400 = vst.msk [vmem:[#allocation2 + $0x130] sm:$0x3] %vm363, 0.0
      %401 = vst.msk [vmem:[#allocation2 + $0x138] sm:$0xff] %vm360, 0.0
      %402 = vst.msk [vmem:[#allocation2 + $0x140] sm:$0xff] %vm360, 0.0
      %403 = vst.msk [vmem:[#allocation2 + $0x148] sm:$0x3] %vm363, 0.0
      %404 = vst.msk [vmem:[#allocation2 + $0x150] sm:$0xff] %vm360, 0.0
      %405 = vst.msk [vmem:[#allocation2 + $0x158] sm:$0xff] %vm360, 0.0
      %406 = vst.msk [vmem:[#allocation2 + $0x160] sm:$0x3] %vm363, 0.0
      %407 = vst.msk [vmem:[#allocation2 + $0x168] sm:$0xff] %vm360, 0.0
      %408 = vst.msk [vmem:[#allocation2 + $0x170] sm:$0xff] %vm360, 0.0
      %409 = vst.msk [vmem:[#allocation2 + $0x178] sm:$0x3] %vm363, 0.0
      %410 = vst.msk [vmem:[#allocation2 + $0x180] sm:$0xff] %vm360, 0.0
      %411 = vst.msk [vmem:[#allocation2 + $0x188] sm:$0xff] %vm360, 0.0
      %412 = vst.msk [vmem:[#allocation2 + $0x190] sm:$0x3] %vm363, 0.0
      %413 = vst.msk [vmem:[#allocation2 + $0x198] sm:$0xff] %vm360, 0.0
      %414 = vst.msk [vmem:[#allocation2 + $0x1a0] sm:$0xff] %vm360, 0.0
      %415 = vst.msk [vmem:[#allocation2 + $0x1a8] sm:$0x3] %vm363, 0.0
      %v416 = vld [vmem:[%s354] sm:$0xff]
      %v417 = vld [vmem:[%s354 + $0x8] sm:$0xff]
      %v418 = vld [vmem:[%s354 + $0x10] sm:$0xff]
      %v419 = vld [vmem:[%s354 + $0x18] sm:$0xff]
      %v420 = vld [vmem:[%s354 + $0x20] sm:$0xff]
      %v421 = vld [vmem:[%s354 + $0x28] sm:$0xff]
      %v422 = vld [vmem:[%s354 + $0x30] sm:$0xff]
      %v423 = vld [vmem:[%s354 + $0x38] sm:$0xff]
      %v424 = vld [vmem:[%s354 + $0x40] sm:$0xff]
      %v425 = vld [vmem:[%s354 + $0x48] sm:$0xff]
      %v426 = vld [vmem:[%s354 + $0x50] sm:$0xff]
      %v427 = vld [vmem:[%s354 + $0x58] sm:$0xff]
      %v428 = vld [vmem:[%s354 + $0x60] sm:$0xff]
      %v429 = vld [vmem:[%s354 + $0x68] sm:$0xff]
      %v430 = vld [vmem:[%s354 + $0x70] sm:$0xff]
      %v431 = vld [vmem:[%s354 + $0x78] sm:$0xff]
      %v432 = vld [vmem:[%s354 + $0x80] sm:$0xff]
      %v433 = vld [vmem:[%s354 + $0x88] sm:$0xff]
      %v434 = vld [vmem:[%s354 + $0x90] sm:$0xff]
      %v435 = vld [vmem:[%s354 + $0x98] sm:$0xff]
      %v436 = vld [vmem:[%s354 + $0xa0] sm:$0xff]
      %v437 = vld [vmem:[%s354 + $0xa8] sm:$0xff]
      %v438 = vld [vmem:[%s354 + $0xb0] sm:$0xff]
      %v439 = vld [vmem:[%s354 + $0xb8] sm:$0xff]
      %v440 = vld [vmem:[%s354 + $0xc0] sm:$0xff]
      %v441 = vld [vmem:[%s354 + $0xc8] sm:$0xff]
      %v442 = vld [vmem:[%s354 + $0xd0] sm:$0xff]
      %v443 = vld [vmem:[%s354 + $0xd8] sm:$0xff]
      %v444 = vld [vmem:[%s354 + $0xe0] sm:$0xff]
      %v445 = vld [vmem:[%s354 + $0xe8] sm:$0xff]
      %v446 = vld [vmem:[%s354 + $0xf0] sm:$0xff]
      %v447 = vld [vmem:[%s354 + $0xf8] sm:$0xff]
      %s448 = scalar_lea.vmem [#allocation2], 24
      %449 = vst.msk [vmem:[%s448 + $0x1] sm:$0xff] %vm360, %v416
      %450 = vst.msk [vmem:[%s448 + $0x9] sm:$0xff] %vm360, %v417
      %451 = vst.msk [vmem:[%s448 + $0x19] sm:$0xff] %vm360, %v418
      %452 = vst.msk [vmem:[%s448 + $0x21] sm:$0xff] %vm360, %v419
      %453 = vst.msk [vmem:[%s448 + $0x31] sm:$0xff] %vm360, %v420
      %454 = vst.msk [vmem:[%s448 + $0x39] sm:$0xff] %vm360, %v421
      %455 = vst.msk [vmem:[%s448 + $0x49] sm:$0xff] %vm360, %v422
      %456 = vst.msk [vmem:[%s448 + $0x51] sm:$0xff] %vm360, %v423
      %457 = vst.msk [vmem:[%s448 + $0x61] sm:$0xff] %vm360, %v424
      %458 = vst.msk [vmem:[%s448 + $0x69] sm:$0xff] %vm360, %v425
      %459 = vst.msk [vmem:[%s448 + $0x79] sm:$0xff] %vm360, %v426
      %460 = vst.msk [vmem:[%s448 + $0x81] sm:$0xff] %vm360, %v427
      %461 = vst.msk [vmem:[%s448 + $0x91] sm:$0xff] %vm360, %v428
      %462 = vst.msk [vmem:[%s448 + $0x99] sm:$0xff] %vm360, %v429
      %463 = vst.msk [vmem:[%s448 + $0xa9] sm:$0xff] %vm360, %v430
      %464 = vst.msk [vmem:[%s448 + $0xb1] sm:$0xff] %vm360, %v431
      %465 = vst.msk [vmem:[%s448 + $0xc1] sm:$0xff] %vm360, %v432
      %466 = vst.msk [vmem:[%s448 + $0xc9] sm:$0xff] %vm360, %v433
      %467 = vst.msk [vmem:[%s448 + $0xd9] sm:$0xff] %vm360, %v434
      %468 = vst.msk [vmem:[%s448 + $0xe1] sm:$0xff] %vm360, %v435
      %469 = vst.msk [vmem:[%s448 + $0xf1] sm:$0xff] %vm360, %v436
      %470 = vst.msk [vmem:[%s448 + $0xf9] sm:$0xff] %vm360, %v437
      %471 = vst.msk [vmem:[%s448 + $0x109] sm:$0xff] %vm360, %v438
      %472 = vst.msk [vmem:[%s448 + $0x111] sm:$0xff] %vm360, %v439
      %473 = vst.msk [vmem:[%s448 + $0x121] sm:$0xff] %vm360, %v440
      %474 = vst.msk [vmem:[%s448 + $0x129] sm:$0xff] %vm360, %v441
      %475 = vst.msk [vmem:[%s448 + $0x139] sm:$0xff] %vm360, %v442
      %476 = vst.msk [vmem:[%s448 + $0x141] sm:$0xff] %vm360, %v443
      %477 = vst.msk [vmem:[%s448 + $0x151] sm:$0xff] %vm360, %v444
      %478 = vst.msk [vmem:[%s448 + $0x159] sm:$0xff] %vm360, %v445
      %479 = vst.msk [vmem:[%s448 + $0x169] sm:$0xff] %vm360, %v446
      %480 = vst.msk [vmem:[%s448 + $0x171] sm:$0xff] %vm360, %v447
      %v481 = vld [vmem:[#allocation2] sm:$0xff]
      %v482 = vld [vmem:[#allocation2 + $0x8] sm:$0xff]
      %v483 = vld [vmem:[#allocation2 + $0x18] sm:$0xff]
      %v484 = vld [vmem:[#allocation2 + $0x20] sm:$0xff]
      %v485 = vld [vmem:[#allocation2 + $0x30] sm:$0xff]
      %v486 = vld [vmem:[#allocation2 + $0x38] sm:$0xff]
      %v487 = vld [vmem:[#allocation2 + $0x48] sm:$0xff]
      %v488 = vld [vmem:[#allocation2 + $0x50] sm:$0xff]
      %v489 = vld [vmem:[#allocation2 + $0x60] sm:$0xff]
      %v490 = vld [vmem:[#allocation2 + $0x68] sm:$0xff]
      %v491 = vld [vmem:[#allocation2 + $0x78] sm:$0xff]
      %v492 = vld [vmem:[#allocation2 + $0x80] sm:$0xff]
      %v493 = vld [vmem:[#allocation2 + $0x90] sm:$0xff]
      %v494 = vld [vmem:[#allocation2 + $0x98] sm:$0xff]
      %v495 = vld [vmem:[#allocation2 + $0xa8] sm:$0xff]
      %v496 = vld [vmem:[#allocation2 + $0xb0] sm:$0xff]
      %v497 = vld [vmem:[#allocation2 + $0xc0] sm:$0xff]
      %v498 = vld [vmem:[#allocation2 + $0xc8] sm:$0xff]
      %v499 = vld [vmem:[#allocation2 + $0xd8] sm:$0xff]
      %v500 = vld [vmem:[#allocation2 + $0xe0] sm:$0xff]
      %v501 = vld [vmem:[#allocation2 + $0xf0] sm:$0xff]
      %v502 = vld [vmem:[#allocation2 + $0xf8] sm:$0xff]
      %v503 = vld [vmem:[#allocation2 + $0x108] sm:$0xff]
      %v504 = vld [vmem:[#allocation2 + $0x110] sm:$0xff]
      %v505 = vld [vmem:[#allocation2 + $0x120] sm:$0xff]
      %v506 = vld [vmem:[#allocation2 + $0x128] sm:$0xff]
      %v507 = vld [vmem:[#allocation2 + $0x138] sm:$0xff]
      %v508 = vld [vmem:[#allocation2 + $0x140] sm:$0xff]
      %v509 = vld [vmem:[#allocation2 + $0x150] sm:$0xff]
      %v510 = vld [vmem:[#allocation2 + $0x158] sm:$0xff]
      %v511 = vld [vmem:[#allocation2 + $0x168] sm:$0xff]
      %v512 = vld [vmem:[#allocation2 + $0x170] sm:$0xff]
      %513 = vst.msk [vmem:[#allocation3] sm:$0xff] %vm360, %v481
      %514 = vst.msk [vmem:[#allocation3 + $0x8] sm:$0xff] %vm360, %v482
      %515 = vst.msk [vmem:[#allocation3 + $0x10] sm:$0xff] %vm360, %v483
      %516 = vst.msk [vmem:[#allocation3 + $0x18] sm:$0xff] %vm360, %v484
      %517 = vst.msk [vmem:[#allocation3 + $0x20] sm:$0xff] %vm360, %v485
      %518 = vst.msk [vmem:[#allocation3 + $0x28] sm:$0xff] %vm360, %v486
      %519 = vst.msk [vmem:[#allocation3 + $0x30] sm:$0xff] %vm360, %v487
      %520 = vst.msk [vmem:[#allocation3 + $0x38] sm:$0xff] %vm360, %v488
      %521 = vst.msk [vmem:[#allocation3 + $0x40] sm:$0xff] %vm360, %v489
      %522 = vst.msk [vmem:[#allocation3 + $0x48] sm:$0xff] %vm360, %v490
      %523 = vst.msk [vmem:[#allocation3 + $0x50] sm:$0xff] %vm360, %v491
      %524 = vst.msk [vmem:[#allocation3 + $0x58] sm:$0xff] %vm360, %v492
      %525 = vst.msk [vmem:[#allocation3 + $0x60] sm:$0xff] %vm360, %v493
      %526 = vst.msk [vmem:[#allocation3 + $0x68] sm:$0xff] %vm360, %v494
      %527 = vst.msk [vmem:[#allocation3 + $0x70] sm:$0xff] %vm360, %v495
      %528 = vst.msk [vmem:[#allocation3 + $0x78] sm:$0xff] %vm360, %v496
      %529 = vst.msk [vmem:[#allocation3 + $0x80] sm:$0xff] %vm360, %v497
      %530 = vst.msk [vmem:[#allocation3 + $0x88] sm:$0xff] %vm360, %v498
      %531 = vst.msk [vmem:[#allocation3 + $0x90] sm:$0xff] %vm360, %v499
      %532 = vst.msk [vmem:[#allocation3 + $0x98] sm:$0xff] %vm360, %v500
      %533 = vst.msk [vmem:[#allocation3 + $0xa0] sm:$0xff] %vm360, %v501
      %534 = vst.msk [vmem:[#allocation3 + $0xa8] sm:$0xff] %vm360, %v502
      %535 = vst.msk [vmem:[#allocation3 + $0xb0] sm:$0xff] %vm360, %v503
      %536 = vst.msk [vmem:[#allocation3 + $0xb8] sm:$0xff] %vm360, %v504
      %537 = vst.msk [vmem:[#allocation3 + $0xc0] sm:$0xff] %vm360, %v505
      %538 = vst.msk [vmem:[#allocation3 + $0xc8] sm:$0xff] %vm360, %v506
      %539 = vst.msk [vmem:[#allocation3 + $0xd0] sm:$0xff] %vm360, %v507
      %540 = vst.msk [vmem:[#allocation3 + $0xd8] sm:$0xff] %vm360, %v508
      %541 = vst.msk [vmem:[#allocation3 + $0xe0] sm:$0xff] %vm360, %v509
      %542 = vst.msk [vmem:[#allocation3 + $0xe8] sm:$0xff] %vm360, %v510
      %543 = vst.msk [vmem:[#allocation3 + $0xf0] sm:$0xff] %vm360, %v511
      %544 = vst.msk [vmem:[#allocation3 + $0xf8] sm:$0xff] %vm360, %v512
      %v545 = vld [vmem:[#allocation2 + $0x1] sm:$0xff]
      %v546 = vld [vmem:[#allocation2 + $0x9] sm:$0xff]
      %v547 = vld [vmem:[#allocation2 + $0x19] sm:$0xff]
      %v548 = vld [vmem:[#allocation2 + $0x21] sm:$0xff]
      %v549 = vld [vmem:[#allocation2 + $0x31] sm:$0xff]
      %v550 = vld [vmem:[#allocation2 + $0x39] sm:$0xff]
      %v551 = vld [vmem:[#allocation2 + $0x49] sm:$0xff]
      %v552 = vld [vmem:[#allocation2 + $0x51] sm:$0xff]
      %v553 = vld [vmem:[#allocation2 + $0x61] sm:$0xff]
      %v554 = vld [vmem:[#allocation2 + $0x69] sm:$0xff]
      %v555 = vld [vmem:[#allocation2 + $0x79] sm:$0xff]
      %v556 = vld [vmem:[#allocation2 + $0x81] sm:$0xff]
      %v557 = vld [vmem:[#allocation2 + $0x91] sm:$0xff]
      %v558 = vld [vmem:[#allocation2 + $0x99] sm:$0xff]
      %v559 = vld [vmem:[#allocation2 + $0xa9] sm:$0xff]
      %v560 = vld [vmem:[#allocation2 + $0xb1] sm:$0xff]
      %v561 = vld [vmem:[#allocation2 + $0xc1] sm:$0xff]
      %v562 = vld [vmem:[#allocation2 + $0xc9] sm:$0xff]
      %v563 = vld [vmem:[#allocation2 + $0xd9] sm:$0xff]
      %v564 = vld [vmem:[#allocation2 + $0xe1] sm:$0xff]
      %v565 = vld [vmem:[#allocation2 + $0xf1] sm:$0xff]
      %v566 = vld [vmem:[#allocation2 + $0xf9] sm:$0xff]
      %v567 = vld [vmem:[#allocation2 + $0x109] sm:$0xff]
      %v568 = vld [vmem:[#allocation2 + $0x111] sm:$0xff]
      %v569 = vld [vmem:[#allocation2 + $0x121] sm:$0xff]
      %v570 = vld [vmem:[#allocation2 + $0x129] sm:$0xff]
      %v571 = vld [vmem:[#allocation2 + $0x139] sm:$0xff]
      %v572 = vld [vmem:[#allocation2 + $0x141] sm:$0xff]
      %v573 = vld [vmem:[#allocation2 + $0x151] sm:$0xff]
      %v574 = vld [vmem:[#allocation2 + $0x159] sm:$0xff]
      %v575 = vld [vmem:[#allocation2 + $0x169] sm:$0xff]
      %v576 = vld [vmem:[#allocation2 + $0x171] sm:$0xff]
      %609 = vrot.lane.b32.xlu0 %v545, 8
      %v610 = vpop.permute.xlu0 %609
      %611 = vrot.lane.b32.xlu0 %v546, 8
      %v612 = vpop.permute.xlu0 %611
      %613 = vrot.lane.b32.xlu0 %v547, 8
      %v614 = vpop.permute.xlu0 %613
      %615 = vrot.lane.b32.xlu0 %v548, 8
      %v616 = vpop.permute.xlu0 %615
      %617 = vrot.lane.b32.xlu0 %v549, 8
      %v618 = vpop.permute.xlu0 %617
      %619 = vrot.lane.b32.xlu0 %v550, 8
      %v620 = vpop.permute.xlu0 %619
      %621 = vrot.lane.b32.xlu0 %v551, 8
      %v622 = vpop.permute.xlu0 %621
      %623 = vrot.lane.b32.xlu0 %v552, 8
      %v624 = vpop.permute.xlu0 %623
      %625 = vrot.lane.b32.xlu0 %v553, 8
      %v626 = vpop.permute.xlu0 %625
      %627 = vrot.lane.b32.xlu0 %v554, 8
      %v628 = vpop.permute.xlu0 %627
      %629 = vrot.lane.b32.xlu0 %v555, 8
      %v630 = vpop.permute.xlu0 %629
      %631 = vrot.lane.b32.xlu0 %v556, 8
      %v632 = vpop.permute.xlu0 %631
      %633 = vrot.lane.b32.xlu0 %v557, 8
      %v634 = vpop.permute.xlu0 %633
      %635 = vrot.lane.b32.xlu0 %v558, 8
      %v636 = vpop.permute.xlu0 %635
      %637 = vrot.lane.b32.xlu0 %v559, 8
      %v638 = vpop.permute.xlu0 %637
      %639 = vrot.lane.b32.xlu0 %v560, 8
      %v640 = vpop.permute.xlu0 %639
      %641 = vrot.lane.b32.xlu0 %v561, 8
      %v642 = vpop.permute.xlu0 %641
      %643 = vrot.lane.b32.xlu0 %v562, 8
      %v644 = vpop.permute.xlu0 %643
      %645 = vrot.lane.b32.xlu0 %v563, 8
      %v646 = vpop.permute.xlu0 %645
      %647 = vrot.lane.b32.xlu0 %v564, 8
      %v648 = vpop.permute.xlu0 %647
      %649 = vrot.lane.b32.xlu0 %v565, 8
      %v650 = vpop.permute.xlu0 %649
      %651 = vrot.lane.b32.xlu0 %v566, 8
      %v652 = vpop.permute.xlu0 %651
      %653 = vrot.lane.b32.xlu0 %v567, 8
      %v654 = vpop.permute.xlu0 %653
      %655 = vrot.lane.b32.xlu0 %v568, 8
      %v656 = vpop.permute.xlu0 %655
      %657 = vrot.lane.b32.xlu0 %v569, 8
      %v658 = vpop.permute.xlu0 %657
      %659 = vrot.lane.b32.xlu0 %v570, 8
      %v660 = vpop.permute.xlu0 %659
      %661 = vrot.lane.b32.xlu0 %v571, 8
      %v662 = vpop.permute.xlu0 %661
      %663 = vrot.lane.b32.xlu0 %v572, 8
      %v664 = vpop.permute.xlu0 %663
      %665 = vrot.lane.b32.xlu0 %v573, 8
      %v666 = vpop.permute.xlu0 %665
      %667 = vrot.lane.b32.xlu0 %v574, 8
      %v668 = vpop.permute.xlu0 %667
      %669 = vrot.lane.b32.xlu0 %v575, 8
      %v670 = vpop.permute.xlu0 %669
      %671 = vrot.lane.b32.xlu0 %v576, 8
      %v672 = vpop.permute.xlu0 %671
      %vm705 = vcmask 130112
      %706 = vst.msk [vmem:[#allocation3] sm:$0xff] %vm705, %v610
      %707 = vst.msk [vmem:[#allocation3 + $0x8] sm:$0xff] %vm705, %v612
      %708 = vst.msk [vmem:[#allocation3 + $0x10] sm:$0xff] %vm705, %v614
      %709 = vst.msk [vmem:[#allocation3 + $0x18] sm:$0xff] %vm705, %v616
      %710 = vst.msk [vmem:[#allocation3 + $0x20] sm:$0xff] %vm705, %v618
      %711 = vst.msk [vmem:[#allocation3 + $0x28] sm:$0xff] %vm705, %v620
      %712 = vst.msk [vmem:[#allocation3 + $0x30] sm:$0xff] %vm705, %v622
      %713 = vst.msk [vmem:[#allocation3 + $0x38] sm:$0xff] %vm705, %v624
      %714 = vst.msk [vmem:[#allocation3 + $0x40] sm:$0xff] %vm705, %v626
      %715 = vst.msk [vmem:[#allocation3 + $0x48] sm:$0xff] %vm705, %v628
      %716 = vst.msk [vmem:[#allocation3 + $0x50] sm:$0xff] %vm705, %v630
      %717 = vst.msk [vmem:[#allocation3 + $0x58] sm:$0xff] %vm705, %v632
      %718 = vst.msk [vmem:[#allocation3 + $0x60] sm:$0xff] %vm705, %v634
      %719 = vst.msk [vmem:[#allocation3 + $0x68] sm:$0xff] %vm705, %v636
      %720 = vst.msk [vmem:[#allocation3 + $0x70] sm:$0xff] %vm705, %v638
      %721 = vst.msk [vmem:[#allocation3 + $0x78] sm:$0xff] %vm705, %v640
      %722 = vst.msk [vmem:[#allocation3 + $0x80] sm:$0xff] %vm705, %v642
      %723 = vst.msk [vmem:[#allocation3 + $0x88] sm:$0xff] %vm705, %v644
      %724 = vst.msk [vmem:[#allocation3 + $0x90] sm:$0xff] %vm705, %v646
      %725 = vst.msk [vmem:[#allocation3 + $0x98] sm:$0xff] %vm705, %v648
      %726 = vst.msk [vmem:[#allocation3 + $0xa0] sm:$0xff] %vm705, %v650
      %727 = vst.msk [vmem:[#allocation3 + $0xa8] sm:$0xff] %vm705, %v652
      %728 = vst.msk [vmem:[#allocation3 + $0xb0] sm:$0xff] %vm705, %v654
      %729 = vst.msk [vmem:[#allocation3 + $0xb8] sm:$0xff] %vm705, %v656
      %730 = vst.msk [vmem:[#allocation3 + $0xc0] sm:$0xff] %vm705, %v658
      %731 = vst.msk [vmem:[#allocation3 + $0xc8] sm:$0xff] %vm705, %v660
      %732 = vst.msk [vmem:[#allocation3 + $0xd0] sm:$0xff] %vm705, %v662
      %733 = vst.msk [vmem:[#allocation3 + $0xd8] sm:$0xff] %vm705, %v664
      %734 = vst.msk [vmem:[#allocation3 + $0xe0] sm:$0xff] %vm705, %v666
      %735 = vst.msk [vmem:[#allocation3 + $0xe8] sm:$0xff] %vm705, %v668
      %736 = vst.msk [vmem:[#allocation3 + $0xf0] sm:$0xff] %vm705, %v670
      %737 = vst.msk [vmem:[#allocation3 + $0xf8] sm:$0xff] %vm705, %v672
      %v738 = vld [vmem:[#allocation2 + $0x2] sm:$0xff]
      %v739 = vld [vmem:[#allocation2 + $0xa] sm:$0xff]
      %v740 = vld [vmem:[#allocation2 + $0x1a] sm:$0xff]
      %v741 = vld [vmem:[#allocation2 + $0x22] sm:$0xff]
      %v742 = vld [vmem:[#allocation2 + $0x32] sm:$0xff]
      %v743 = vld [vmem:[#allocation2 + $0x3a] sm:$0xff]
      %v744 = vld [vmem:[#allocation2 + $0x4a] sm:$0xff]
      %v745 = vld [vmem:[#allocation2 + $0x52] sm:$0xff]
      %v746 = vld [vmem:[#allocation2 + $0x62] sm:$0xff]
      %v747 = vld [vmem:[#allocation2 + $0x6a] sm:$0xff]
      %v748 = vld [vmem:[#allocation2 + $0x7a] sm:$0xff]
      %v749 = vld [vmem:[#allocation2 + $0x82] sm:$0xff]
      %v750 = vld [vmem:[#allocation2 + $0x92] sm:$0xff]
      %v751 = vld [vmem:[#allocation2 + $0x9a] sm:$0xff]
      %v752 = vld [vmem:[#allocation2 + $0xaa] sm:$0xff]
      %v753 = vld [vmem:[#allocation2 + $0xb2] sm:$0xff]
      %v754 = vld [vmem:[#allocation2 + $0xc2] sm:$0xff]
      %v755 = vld [vmem:[#allocation2 + $0xca] sm:$0xff]
      %v756 = vld [vmem:[#allocation2 + $0xda] sm:$0xff]
      %v757 = vld [vmem:[#allocation2 + $0xe2] sm:$0xff]
      %v758 = vld [vmem:[#allocation2 + $0xf2] sm:$0xff]
      %v759 = vld [vmem:[#allocation2 + $0xfa] sm:$0xff]
      %v760 = vld [vmem:[#allocation2 + $0x10a] sm:$0xff]
      %v761 = vld [vmem:[#allocation2 + $0x112] sm:$0xff]
      %v762 = vld [vmem:[#allocation2 + $0x122] sm:$0xff]
      %v763 = vld [vmem:[#allocation2 + $0x12a] sm:$0xff]
      %v764 = vld [vmem:[#allocation2 + $0x13a] sm:$0xff]
      %v765 = vld [vmem:[#allocation2 + $0x142] sm:$0xff]
      %v766 = vld [vmem:[#allocation2 + $0x152] sm:$0xff]
      %v767 = vld [vmem:[#allocation2 + $0x15a] sm:$0xff]
      %v768 = vld [vmem:[#allocation2 + $0x16a] sm:$0xff]
      %v769 = vld [vmem:[#allocation2 + $0x172] sm:$0xff]
      %802 = vrot.lane.b32.xlu0 %v738, 16
      %v803 = vpop.permute.xlu0 %802
      %804 = vrot.lane.b32.xlu0 %v739, 16
      %v805 = vpop.permute.xlu0 %804
      %806 = vrot.lane.b32.xlu0 %v740, 16
      %v807 = vpop.permute.xlu0 %806
      %808 = vrot.lane.b32.xlu0 %v741, 16
      %v809 = vpop.permute.xlu0 %808
      %810 = vrot.lane.b32.xlu0 %v742, 16
      %v811 = vpop.permute.xlu0 %810
      %812 = vrot.lane.b32.xlu0 %v743, 16
      %v813 = vpop.permute.xlu0 %812
      %814 = vrot.lane.b32.xlu0 %v744, 16
      %v815 = vpop.permute.xlu0 %814
      %816 = vrot.lane.b32.xlu0 %v745, 16
      %v817 = vpop.permute.xlu0 %816
      %818 = vrot.lane.b32.xlu0 %v746, 16
      %v819 = vpop.permute.xlu0 %818
      %820 = vrot.lane.b32.xlu0 %v747, 16
      %v821 = vpop.permute.xlu0 %820
      %822 = vrot.lane.b32.xlu0 %v748, 16
      %v823 = vpop.permute.xlu0 %822
      %824 = vrot.lane.b32.xlu0 %v749, 16
      %v825 = vpop.permute.xlu0 %824
      %826 = vrot.lane.b32.xlu0 %v750, 16
      %v827 = vpop.permute.xlu0 %826
      %828 = vrot.lane.b32.xlu0 %v751, 16
      %v829 = vpop.permute.xlu0 %828
      %830 = vrot.lane.b32.xlu0 %v752, 16
      %v831 = vpop.permute.xlu0 %830
      %832 = vrot.lane.b32.xlu0 %v753, 16
      %v833 = vpop.permute.xlu0 %832
      %834 = vrot.lane.b32.xlu0 %v754, 16
      %v835 = vpop.permute.xlu0 %834
      %836 = vrot.lane.b32.xlu0 %v755, 16
      %v837 = vpop.permute.xlu0 %836
      %838 = vrot.lane.b32.xlu0 %v756, 16
      %v839 = vpop.permute.xlu0 %838
      %840 = vrot.lane.b32.xlu0 %v757, 16
      %v841 = vpop.permute.xlu0 %840
      %842 = vrot.lane.b32.xlu0 %v758, 16
      %v843 = vpop.permute.xlu0 %842
      %844 = vrot.lane.b32.xlu0 %v759, 16
      %v845 = vpop.permute.xlu0 %844
      %846 = vrot.lane.b32.xlu0 %v760, 16
      %v847 = vpop.permute.xlu0 %846
      %848 = vrot.lane.b32.xlu0 %v761, 16
      %v849 = vpop.permute.xlu0 %848
      %850 = vrot.lane.b32.xlu0 %v762, 16
      %v851 = vpop.permute.xlu0 %850
      %852 = vrot.lane.b32.xlu0 %v763, 16
      %v853 = vpop.permute.xlu0 %852
      %854 = vrot.lane.b32.xlu0 %v764, 16
      %v855 = vpop.permute.xlu0 %854
      %856 = vrot.lane.b32.xlu0 %v765, 16
      %v857 = vpop.permute.xlu0 %856
      %858 = vrot.lane.b32.xlu0 %v766, 16
      %v859 = vpop.permute.xlu0 %858
      %860 = vrot.lane.b32.xlu0 %v767, 16
      %v861 = vpop.permute.xlu0 %860
      %862 = vrot.lane.b32.xlu0 %v768, 16
      %v863 = vpop.permute.xlu0 %862
      %864 = vrot.lane.b32.xlu0 %v769, 16
      %v865 = vpop.permute.xlu0 %864
      %vm898 = vcmask 195712
      %899 = vst.msk [vmem:[#allocation3] sm:$0xff] %vm898, %v803
      %900 = vst.msk [vmem:[#allocation3 + $0x8] sm:$0xff] %vm898, %v805
      %901 = vst.msk [vmem:[#allocation3 + $0x10] sm:$0xff] %vm898, %v807
      %902 = vst.msk [vmem:[#allocation3 + $0x18] sm:$0xff] %vm898, %v809
      %903 = vst.msk [vmem:[#allocation3 + $0x20] sm:$0xff] %vm898, %v811
      %904 = vst.msk [vmem:[#allocation3 + $0x28] sm:$0xff] %vm898, %v813
      %905 = vst.msk [vmem:[#allocation3 + $0x30] sm:$0xff] %vm898, %v815
      %906 = vst.msk [vmem:[#allocation3 + $0x38] sm:$0xff] %vm898, %v817
      %907 = vst.msk [vmem:[#allocation3 + $0x40] sm:$0xff] %vm898, %v819
      %908 = vst.msk [vmem:[#allocation3 + $0x48] sm:$0xff] %vm898, %v821
      %909 = vst.msk [vmem:[#allocation3 + $0x50] sm:$0xff] %vm898, %v823
      %910 = vst.msk [vmem:[#allocation3 + $0x58] sm:$0xff] %vm898, %v825
      %911 = vst.msk [vmem:[#allocation3 + $0x60] sm:$0xff] %vm898, %v827
      %912 = vst.msk [vmem:[#allocation3 + $0x68] sm:$0xff] %vm898, %v829
      %913 = vst.msk [vmem:[#allocation3 + $0x70] sm:$0xff] %vm898, %v831
      %914 = vst.msk [vmem:[#allocation3 + $0x78] sm:$0xff] %vm898, %v833
      %915 = vst.msk [vmem:[#allocation3 + $0x80] sm:$0xff] %vm898, %v835
      %916 = vst.msk [vmem:[#allocation3 + $0x88] sm:$0xff] %vm898, %v837
      %917 = vst.msk [vmem:[#allocation3 + $0x90] sm:$0xff] %vm898, %v839
      %918 = vst.msk [vmem:[#allocation3 + $0x98] sm:$0xff] %vm898, %v841
      %919 = vst.msk [vmem:[#allocation3 + $0xa0] sm:$0xff] %vm898, %v843
      %920 = vst.msk [vmem:[#allocation3 + $0xa8] sm:$0xff] %vm898, %v845
      %921 = vst.msk [vmem:[#allocation3 + $0xb0] sm:$0xff] %vm898, %v847
      %922 = vst.msk [vmem:[#allocation3 + $0xb8] sm:$0xff] %vm898, %v849
      %923 = vst.msk [vmem:[#allocation3 + $0xc0] sm:$0xff] %vm898, %v851
      %924 = vst.msk [vmem:[#allocation3 + $0xc8] sm:$0xff] %vm898, %v853
      %925 = vst.msk [vmem:[#allocation3 + $0xd0] sm:$0xff] %vm898, %v855
      %926 = vst.msk [vmem:[#allocation3 + $0xd8] sm:$0xff] %vm898, %v857
      %927 = vst.msk [vmem:[#allocation3 + $0xe0] sm:$0xff] %vm898, %v859
      %928 = vst.msk [vmem:[#allocation3 + $0xe8] sm:$0xff] %vm898, %v861
      %929 = vst.msk [vmem:[#allocation3 + $0xf0] sm:$0xff] %vm898, %v863
      %930 = vst.msk [vmem:[#allocation3 + $0xf8] sm:$0xff] %vm898, %v865
      %v931 = vld [vmem:[%s448] sm:$0xff]
      %v932 = vld [vmem:[%s448 + $0x8] sm:$0xff]
      %v933 = vld [vmem:[%s448 + $0x18] sm:$0xff]
      %v934 = vld [vmem:[%s448 + $0x20] sm:$0xff]
      %v935 = vld [vmem:[%s448 + $0x30] sm:$0xff]
      %v936 = vld [vmem:[%s448 + $0x38] sm:$0xff]
      %v937 = vld [vmem:[%s448 + $0x48] sm:$0xff]
      %v938 = vld [vmem:[%s448 + $0x50] sm:$0xff]
      %v939 = vld [vmem:[%s448 + $0x60] sm:$0xff]
      %v940 = vld [vmem:[%s448 + $0x68] sm:$0xff]
      %v941 = vld [vmem:[%s448 + $0x78] sm:$0xff]
      %v942 = vld [vmem:[%s448 + $0x80] sm:$0xff]
      %v943 = vld [vmem:[%s448 + $0x90] sm:$0xff]
      %v944 = vld [vmem:[%s448 + $0x98] sm:$0xff]
      %v945 = vld [vmem:[%s448 + $0xa8] sm:$0xff]
      %v946 = vld [vmem:[%s448 + $0xb0] sm:$0xff]
      %v947 = vld [vmem:[%s448 + $0xc0] sm:$0xff]
      %v948 = vld [vmem:[%s448 + $0xc8] sm:$0xff]
      %v949 = vld [vmem:[%s448 + $0xd8] sm:$0xff]
      %v950 = vld [vmem:[%s448 + $0xe0] sm:$0xff]
      %v951 = vld [vmem:[%s448 + $0xf0] sm:$0xff]
      %v952 = vld [vmem:[%s448 + $0xf8] sm:$0xff]
      %v953 = vld [vmem:[%s448 + $0x108] sm:$0xff]
      %v954 = vld [vmem:[%s448 + $0x110] sm:$0xff]
      %v955 = vld [vmem:[%s448 + $0x120] sm:$0xff]
      %v956 = vld [vmem:[%s448 + $0x128] sm:$0xff]
      %v957 = vld [vmem:[%s448 + $0x138] sm:$0xff]
      %v958 = vld [vmem:[%s448 + $0x140] sm:$0xff]
      %v959 = vld [vmem:[%s448 + $0x150] sm:$0xff]
      %v960 = vld [vmem:[%s448 + $0x158] sm:$0xff]
      %v961 = vld [vmem:[%s448 + $0x168] sm:$0xff]
      %v962 = vld [vmem:[%s448 + $0x170] sm:$0xff]
      %995 = vrot.lane.b32.xlu0 %v931, 24
      %v996 = vpop.permute.xlu0 %995
      %997 = vrot.lane.b32.xlu0 %v932, 24
      %v998 = vpop.permute.xlu0 %997
      %999 = vrot.lane.b32.xlu0 %v933, 24
      %v1000 = vpop.permute.xlu0 %999
      %1001 = vrot.lane.b32.xlu0 %v934, 24
      %v1002 = vpop.permute.xlu0 %1001
      %1003 = vrot.lane.b32.xlu0 %v935, 24
      %v1004 = vpop.permute.xlu0 %1003
      %1005 = vrot.lane.b32.xlu0 %v936, 24
      %v1006 = vpop.permute.xlu0 %1005
      %1007 = vrot.lane.b32.xlu0 %v937, 24
      %v1008 = vpop.permute.xlu0 %1007
      %1009 = vrot.lane.b32.xlu0 %v938, 24
      %v1010 = vpop.permute.xlu0 %1009
      %1011 = vrot.lane.b32.xlu0 %v939, 24
      %v1012 = vpop.permute.xlu0 %1011
      %1013 = vrot.lane.b32.xlu0 %v940, 24
      %v1014 = vpop.permute.xlu0 %1013
      %1015 = vrot.lane.b32.xlu0 %v941, 24
      %v1016 = vpop.permute.xlu0 %1015
      %1017 = vrot.lane.b32.xlu0 %v942, 24
      %v1018 = vpop.permute.xlu0 %1017
      %1019 = vrot.lane.b32.xlu0 %v943, 24
      %v1020 = vpop.permute.xlu0 %1019
      %1021 = vrot.lane.b32.xlu0 %v944, 24
      %v1022 = vpop.permute.xlu0 %1021
      %1023 = vrot.lane.b32.xlu0 %v945, 24
      %v1024 = vpop.permute.xlu0 %1023
      %1025 = vrot.lane.b32.xlu0 %v946, 24
      %v1026 = vpop.permute.xlu0 %1025
      %1027 = vrot.lane.b32.xlu0 %v947, 24
      %v1028 = vpop.permute.xlu0 %1027
      %1029 = vrot.lane.b32.xlu0 %v948, 24
      %v1030 = vpop.permute.xlu0 %1029
      %1031 = vrot.lane.b32.xlu0 %v949, 24
      %v1032 = vpop.permute.xlu0 %1031
      %1033 = vrot.lane.b32.xlu0 %v950, 24
      %v1034 = vpop.permute.xlu0 %1033
      %1035 = vrot.lane.b32.xlu0 %v951, 24
      %v1036 = vpop.permute.xlu0 %1035
      %1037 = vrot.lane.b32.xlu0 %v952, 24
      %v1038 = vpop.permute.xlu0 %1037
      %1039 = vrot.lane.b32.xlu0 %v953, 24
      %v1040 = vpop.permute.xlu0 %1039
      %1041 = vrot.lane.b32.xlu0 %v954, 24
      %v1042 = vpop.permute.xlu0 %1041
      %1043 = vrot.lane.b32.xlu0 %v955, 24
      %v1044 = vpop.permute.xlu0 %1043
      %1045 = vrot.lane.b32.xlu0 %v956, 24
      %v1046 = vpop.permute.xlu0 %1045
      %1047 = vrot.lane.b32.xlu0 %v957, 24
      %v1048 = vpop.permute.xlu0 %1047
      %1049 = vrot.lane.b32.xlu0 %v958, 24
      %v1050 = vpop.permute.xlu0 %1049
      %1051 = vrot.lane.b32.xlu0 %v959, 24
      %v1052 = vpop.permute.xlu0 %1051
      %1053 = vrot.lane.b32.xlu0 %v960, 24
      %v1054 = vpop.permute.xlu0 %1053
      %1055 = vrot.lane.b32.xlu0 %v961, 24
      %v1056 = vpop.permute.xlu0 %1055
      %1057 = vrot.lane.b32.xlu0 %v962, 24
      %v1058 = vpop.permute.xlu0 %1057
      %vm1091 = vcmask 261312
      %1092 = vst.msk [vmem:[#allocation3] sm:$0xff] %vm1091, %v996
      %1093 = vst.msk [vmem:[#allocation3 + $0x8] sm:$0xff] %vm1091, %v998
      %1094 = vst.msk [vmem:[#allocation3 + $0x10] sm:$0xff] %vm1091, %v1000
      %1095 = vst.msk [vmem:[#allocation3 + $0x18] sm:$0xff] %vm1091, %v1002
      %1096 = vst.msk [vmem:[#allocation3 + $0x20] sm:$0xff] %vm1091, %v1004
      %1097 = vst.msk [vmem:[#allocation3 + $0x28] sm:$0xff] %vm1091, %v1006
      %1098 = vst.msk [vmem:[#allocation3 + $0x30] sm:$0xff] %vm1091, %v1008
      %1099 = vst.msk [vmem:[#allocation3 + $0x38] sm:$0xff] %vm1091, %v1010
      %1100 = vst.msk [vmem:[#allocation3 + $0x40] sm:$0xff] %vm1091, %v1012
      %1101 = vst.msk [vmem:[#allocation3 + $0x48] sm:$0xff] %vm1091, %v1014
      %1102 = vst.msk [vmem:[#allocation3 + $0x50] sm:$0xff] %vm1091, %v1016
      %1103 = vst.msk [vmem:[#allocation3 + $0x58] sm:$0xff] %vm1091, %v1018
      %1104 = vst.msk [vmem:[#allocation3 + $0x60] sm:$0xff] %vm1091, %v1020
      %1105 = vst.msk [vmem:[#allocation3 + $0x68] sm:$0xff] %vm1091, %v1022
      %1106 = vst.msk [vmem:[#allocation3 + $0x70] sm:$0xff] %vm1091, %v1024
      %1107 = vst.msk [vmem:[#allocation3 + $0x78] sm:$0xff] %vm1091, %v1026
      %1108 = vst.msk [vmem:[#allocation3 + $0x80] sm:$0xff] %vm1091, %v1028
      %1109 = vst.msk [vmem:[#allocation3 + $0x88] sm:$0xff] %vm1091, %v1030
      %1110 = vst.msk [vmem:[#allocation3 + $0x90] sm:$0xff] %vm1091, %v1032
      %1111 = vst.msk [vmem:[#allocation3 + $0x98] sm:$0xff] %vm1091, %v1034
      %1112 = vst.msk [vmem:[#allocation3 + $0xa0] sm:$0xff] %vm1091, %v1036
      %1113 = vst.msk [vmem:[#allocation3 + $0xa8] sm:$0xff] %vm1091, %v1038
      %1114 = vst.msk [vmem:[#allocation3 + $0xb0] sm:$0xff] %vm1091, %v1040
      %1115 = vst.msk [vmem:[#allocation3 + $0xb8] sm:$0xff] %vm1091, %v1042
      %1116 = vst.msk [vmem:[#allocation3 + $0xc0] sm:$0xff] %vm1091, %v1044
      %1117 = vst.msk [vmem:[#allocation3 + $0xc8] sm:$0xff] %vm1091, %v1046
      %1118 = vst.msk [vmem:[#allocation3 + $0xd0] sm:$0xff] %vm1091, %v1048
      %1119 = vst.msk [vmem:[#allocation3 + $0xd8] sm:$0xff] %vm1091, %v1050
      %1120 = vst.msk [vmem:[#allocation3 + $0xe0] sm:$0xff] %vm1091, %v1052
      %1121 = vst.msk [vmem:[#allocation3 + $0xe8] sm:$0xff] %vm1091, %v1054
      %1122 = vst.msk [vmem:[#allocation3 + $0xf0] sm:$0xff] %vm1091, %v1056
      %1123 = vst.msk [vmem:[#allocation3 + $0xf8] sm:$0xff] %vm1091, %v1058
      %v1124 = vld [vmem:[%s448 + $0x1] sm:$0xff]
      %v1125 = vld [vmem:[%s448 + $0x9] sm:$0xff]
      %v1126 = vld [vmem:[%s448 + $0x19] sm:$0xff]
      %v1127 = vld [vmem:[%s448 + $0x21] sm:$0xff]
      %v1128 = vld [vmem:[%s448 + $0x31] sm:$0xff]
      %v1129 = vld [vmem:[%s448 + $0x39] sm:$0xff]
      %v1130 = vld [vmem:[%s448 + $0x49] sm:$0xff]
      %v1131 = vld [vmem:[%s448 + $0x51] sm:$0xff]
      %v1132 = vld [vmem:[%s448 + $0x61] sm:$0xff]
      %v1133 = vld [vmem:[%s448 + $0x69] sm:$0xff]
      %v1134 = vld [vmem:[%s448 + $0x79] sm:$0xff]
      %v1135 = vld [vmem:[%s448 + $0x81] sm:$0xff]
      %v1136 = vld [vmem:[%s448 + $0x91] sm:$0xff]
      %v1137 = vld [vmem:[%s448 + $0x99] sm:$0xff]
      %v1138 = vld [vmem:[%s448 + $0xa9] sm:$0xff]
      %v1139 = vld [vmem:[%s448 + $0xb1] sm:$0xff]
      %v1140 = vld [vmem:[%s448 + $0xc1] sm:$0xff]
      %v1141 = vld [vmem:[%s448 + $0xc9] sm:$0xff]
      %v1142 = vld [vmem:[%s448 + $0xd9] sm:$0xff]
      %v1143 = vld [vmem:[%s448 + $0xe1] sm:$0xff]
      %v1144 = vld [vmem:[%s448 + $0xf1] sm:$0xff]
      %v1145 = vld [vmem:[%s448 + $0xf9] sm:$0xff]
      %v1146 = vld [vmem:[%s448 + $0x109] sm:$0xff]
      %v1147 = vld [vmem:[%s448 + $0x111] sm:$0xff]
      %v1148 = vld [vmem:[%s448 + $0x121] sm:$0xff]
      %v1149 = vld [vmem:[%s448 + $0x129] sm:$0xff]
      %v1150 = vld [vmem:[%s448 + $0x139] sm:$0xff]
      %v1151 = vld [vmem:[%s448 + $0x141] sm:$0xff]
      %v1152 = vld [vmem:[%s448 + $0x151] sm:$0xff]
      %v1153 = vld [vmem:[%s448 + $0x159] sm:$0xff]
      %v1154 = vld [vmem:[%s448 + $0x169] sm:$0xff]
      %v1155 = vld [vmem:[%s448 + $0x171] sm:$0xff]
      %1188 = vrot.lane.b32.xlu0 %v1124, 32
      %v1189 = vpop.permute.xlu0 %1188
      %1190 = vrot.lane.b32.xlu0 %v1125, 32
      %v1191 = vpop.permute.xlu0 %1190
      %1192 = vrot.lane.b32.xlu0 %v1126, 32
      %v1193 = vpop.permute.xlu0 %1192
      %1194 = vrot.lane.b32.xlu0 %v1127, 32
      %v1195 = vpop.permute.xlu0 %1194
      %1196 = vrot.lane.b32.xlu0 %v1128, 32
      %v1197 = vpop.permute.xlu0 %1196
      %1198 = vrot.lane.b32.xlu0 %v1129, 32
      %v1199 = vpop.permute.xlu0 %1198
      %1200 = vrot.lane.b32.xlu0 %v1130, 32
      %v1201 = vpop.permute.xlu0 %1200
      %1202 = vrot.lane.b32.xlu0 %v1131, 32
      %v1203 = vpop.permute.xlu0 %1202
      %1204 = vrot.lane.b32.xlu0 %v1132, 32
      %v1205 = vpop.permute.xlu0 %1204
      %1206 = vrot.lane.b32.xlu0 %v1133, 32
      %v1207 = vpop.permute.xlu0 %1206
      %1208 = vrot.lane.b32.xlu0 %v1134, 32
      %v1209 = vpop.permute.xlu0 %1208
      %1210 = vrot.lane.b32.xlu0 %v1135, 32
      %v1211 = vpop.permute.xlu0 %1210
      %1212 = vrot.lane.b32.xlu0 %v1136, 32
      %v1213 = vpop.permute.xlu0 %1212
      %1214 = vrot.lane.b32.xlu0 %v1137, 32
      %v1215 = vpop.permute.xlu0 %1214
      %1216 = vrot.lane.b32.xlu0 %v1138, 32
      %v1217 = vpop.permute.xlu0 %1216
      %1218 = vrot.lane.b32.xlu0 %v1139, 32
      %v1219 = vpop.permute.xlu0 %1218
      %1220 = vrot.lane.b32.xlu0 %v1140, 32
      %v1221 = vpop.permute.xlu0 %1220
      %1222 = vrot.lane.b32.xlu0 %v1141, 32
      %v1223 = vpop.permute.xlu0 %1222
      %1224 = vrot.lane.b32.xlu0 %v1142, 32
      %v1225 = vpop.permute.xlu0 %1224
      %1226 = vrot.lane.b32.xlu0 %v1143, 32
      %v1227 = vpop.permute.xlu0 %1226
      %1228 = vrot.lane.b32.xlu0 %v1144, 32
      %v1229 = vpop.permute.xlu0 %1228
      %1230 = vrot.lane.b32.xlu0 %v1145, 32
      %v1231 = vpop.permute.xlu0 %1230
      %1232 = vrot.lane.b32.xlu0 %v1146, 32
      %v1233 = vpop.permute.xlu0 %1232
      %1234 = vrot.lane.b32.xlu0 %v1147, 32
      %v1235 = vpop.permute.xlu0 %1234
      %1236 = vrot.lane.b32.xlu0 %v1148, 32
      %v1237 = vpop.permute.xlu0 %1236
      %1238 = vrot.lane.b32.xlu0 %v1149, 32
      %v1239 = vpop.permute.xlu0 %1238
      %1240 = vrot.lane.b32.xlu0 %v1150, 32
      %v1241 = vpop.permute.xlu0 %1240
      %1242 = vrot.lane.b32.xlu0 %v1151, 32
      %v1243 = vpop.permute.xlu0 %1242
      %1244 = vrot.lane.b32.xlu0 %v1152, 32
      %v1245 = vpop.permute.xlu0 %1244
      %1246 = vrot.lane.b32.xlu0 %v1153, 32
      %v1247 = vpop.permute.xlu0 %1246
      %1248 = vrot.lane.b32.xlu0 %v1154, 32
      %v1249 = vpop.permute.xlu0 %1248
      %1250 = vrot.lane.b32.xlu0 %v1155, 32
      %v1251 = vpop.permute.xlu0 %1250
      %vm1284 = vcmask 326912
      %1285 = vst.msk [vmem:[#allocation3] sm:$0xff] %vm1284, %v1189
      %1286 = vst.msk [vmem:[#allocation3 + $0x8] sm:$0xff] %vm1284, %v1191
      %1287 = vst.msk [vmem:[#allocation3 + $0x10] sm:$0xff] %vm1284, %v1193
      %1288 = vst.msk [vmem:[#allocation3 + $0x18] sm:$0xff] %vm1284, %v1195
      %1289 = vst.msk [vmem:[#allocation3 + $0x20] sm:$0xff] %vm1284, %v1197
      %1290 = vst.msk [vmem:[#allocation3 + $0x28] sm:$0xff] %vm1284, %v1199
      %1291 = vst.msk [vmem:[#allocation3 + $0x30] sm:$0xff] %vm1284, %v1201
      %1292 = vst.msk [vmem:[#allocation3 + $0x38] sm:$0xff] %vm1284, %v1203
      %1293 = vst.msk [vmem:[#allocation3 + $0x40] sm:$0xff] %vm1284, %v1205
      %1294 = vst.msk [vmem:[#allocation3 + $0x48] sm:$0xff] %vm1284, %v1207
      %1295 = vst.msk [vmem:[#allocation3 + $0x50] sm:$0xff] %vm1284, %v1209
      %1296 = vst.msk [vmem:[#allocation3 + $0x58] sm:$0xff] %vm1284, %v1211
      %1297 = vst.msk [vmem:[#allocation3 + $0x60] sm:$0xff] %vm1284, %v1213
      %1298 = vst.msk [vmem:[#allocation3 + $0x68] sm:$0xff] %vm1284, %v1215
      %1299 = vst.msk [vmem:[#allocation3 + $0x70] sm:$0xff] %vm1284, %v1217
      %1300 = vst.msk [vmem:[#allocation3 + $0x78] sm:$0xff] %vm1284, %v1219
      %1301 = vst.msk [vmem:[#allocation3 + $0x80] sm:$0xff] %vm1284, %v1221
      %1302 = vst.msk [vmem:[#allocation3 + $0x88] sm:$0xff] %vm1284, %v1223
      %1303 = vst.msk [vmem:[#allocation3 + $0x90] sm:$0xff] %vm1284, %v1225
      %1304 = vst.msk [vmem:[#allocation3 + $0x98] sm:$0xff] %vm1284, %v1227
      %1305 = vst.msk [vmem:[#allocation3 + $0xa0] sm:$0xff] %vm1284, %v1229
      %1306 = vst.msk [vmem:[#allocation3 + $0xa8] sm:$0xff] %vm1284, %v1231
      %1307 = vst.msk [vmem:[#allocation3 + $0xb0] sm:$0xff] %vm1284, %v1233
      %1308 = vst.msk [vmem:[#allocation3 + $0xb8] sm:$0xff] %vm1284, %v1235
      %1309 = vst.msk [vmem:[#allocation3 + $0xc0] sm:$0xff] %vm1284, %v1237
      %1310 = vst.msk [vmem:[#allocation3 + $0xc8] sm:$0xff] %vm1284, %v1239
      %1311 = vst.msk [vmem:[#allocation3 + $0xd0] sm:$0xff] %vm1284, %v1241
      %1312 = vst.msk [vmem:[#allocation3 + $0xd8] sm:$0xff] %vm1284, %v1243
      %1313 = vst.msk [vmem:[#allocation3 + $0xe0] sm:$0xff] %vm1284, %v1245
      %1314 = vst.msk [vmem:[#allocation3 + $0xe8] sm:$0xff] %vm1284, %v1247
      %1315 = vst.msk [vmem:[#allocation3 + $0xf0] sm:$0xff] %vm1284, %v1249
      %1316 = vst.msk [vmem:[#allocation3 + $0xf8] sm:$0xff] %vm1284, %v1251
      %v1317 = vld [vmem:[%s448 + $0x2] sm:$0xff]
      %v1318 = vld [vmem:[%s448 + $0xa] sm:$0xff]
      %v1319 = vld [vmem:[%s448 + $0x1a] sm:$0xff]
      %v1320 = vld [vmem:[%s448 + $0x22] sm:$0xff]
      %v1321 = vld [vmem:[%s448 + $0x32] sm:$0xff]
      %v1322 = vld [vmem:[%s448 + $0x3a] sm:$0xff]
      %v1323 = vld [vmem:[%s448 + $0x4a] sm:$0xff]
      %v1324 = vld [vmem:[%s448 + $0x52] sm:$0xff]
      %v1325 = vld [vmem:[%s448 + $0x62] sm:$0xff]
      %v1326 = vld [vmem:[%s448 + $0x6a] sm:$0xff]
      %v1327 = vld [vmem:[%s448 + $0x7a] sm:$0xff]
      %v1328 = vld [vmem:[%s448 + $0x82] sm:$0xff]
      %v1329 = vld [vmem:[%s448 + $0x92] sm:$0xff]
      %v1330 = vld [vmem:[%s448 + $0x9a] sm:$0xff]
      %v1331 = vld [vmem:[%s448 + $0xaa] sm:$0xff]
      %v1332 = vld [vmem:[%s448 + $0xb2] sm:$0xff]
      %v1333 = vld [vmem:[%s448 + $0xc2] sm:$0xff]
      %v1334 = vld [vmem:[%s448 + $0xca] sm:$0xff]
      %v1335 = vld [vmem:[%s448 + $0xda] sm:$0xff]
      %v1336 = vld [vmem:[%s448 + $0xe2] sm:$0xff]
      %v1337 = vld [vmem:[%s448 + $0xf2] sm:$0xff]
      %v1338 = vld [vmem:[%s448 + $0xfa] sm:$0xff]
      %v1339 = vld [vmem:[%s448 + $0x10a] sm:$0xff]
      %v1340 = vld [vmem:[%s448 + $0x112] sm:$0xff]
      %v1341 = vld [vmem:[%s448 + $0x122] sm:$0xff]
      %v1342 = vld [vmem:[%s448 + $0x12a] sm:$0xff]
      %v1343 = vld [vmem:[%s448 + $0x13a] sm:$0xff]
      %v1344 = vld [vmem:[%s448 + $0x142] sm:$0xff]
      %v1345 = vld [vmem:[%s448 + $0x152] sm:$0xff]
      %v1346 = vld [vmem:[%s448 + $0x15a] sm:$0xff]
      %v1347 = vld [vmem:[%s448 + $0x16a] sm:$0xff]
      %v1348 = vld [vmem:[%s448 + $0x172] sm:$0xff]
      %1381 = vrot.lane.b32.xlu0 %v1317, 40
      %v1382 = vpop.permute.xlu0 %1381
      %1383 = vrot.lane.b32.xlu0 %v1318, 40
      %v1384 = vpop.permute.xlu0 %1383
      %1385 = vrot.lane.b32.xlu0 %v1319, 40
      %v1386 = vpop.permute.xlu0 %1385
      %1387 = vrot.lane.b32.xlu0 %v1320, 40
      %v1388 = vpop.permute.xlu0 %1387
      %1389 = vrot.lane.b32.xlu0 %v1321, 40
      %v1390 = vpop.permute.xlu0 %1389
      %1391 = vrot.lane.b32.xlu0 %v1322, 40
      %v1392 = vpop.permute.xlu0 %1391
      %1393 = vrot.lane.b32.xlu0 %v1323, 40
      %v1394 = vpop.permute.xlu0 %1393
      %1395 = vrot.lane.b32.xlu0 %v1324, 40
      %v1396 = vpop.permute.xlu0 %1395
      %1397 = vrot.lane.b32.xlu0 %v1325, 40
      %v1398 = vpop.permute.xlu0 %1397
      %1399 = vrot.lane.b32.xlu0 %v1326, 40
      %v1400 = vpop.permute.xlu0 %1399
      %1401 = vrot.lane.b32.xlu0 %v1327, 40
      %v1402 = vpop.permute.xlu0 %1401
      %1403 = vrot.lane.b32.xlu0 %v1328, 40
      %v1404 = vpop.permute.xlu0 %1403
      %1405 = vrot.lane.b32.xlu0 %v1329, 40
      %v1406 = vpop.permute.xlu0 %1405
      %1407 = vrot.lane.b32.xlu0 %v1330, 40
      %v1408 = vpop.permute.xlu0 %1407
      %1409 = vrot.lane.b32.xlu0 %v1331, 40
      %v1410 = vpop.permute.xlu0 %1409
      %1411 = vrot.lane.b32.xlu0 %v1332, 40
      %v1412 = vpop.permute.xlu0 %1411
      %1413 = vrot.lane.b32.xlu0 %v1333, 40
      %v1414 = vpop.permute.xlu0 %1413
      %1415 = vrot.lane.b32.xlu0 %v1334, 40
      %v1416 = vpop.permute.xlu0 %1415
      %1417 = vrot.lane.b32.xlu0 %v1335, 40
      %v1418 = vpop.permute.xlu0 %1417
      %1419 = vrot.lane.b32.xlu0 %v1336, 40
      %v1420 = vpop.permute.xlu0 %1419
      %1421 = vrot.lane.b32.xlu0 %v1337, 40
      %v1422 = vpop.permute.xlu0 %1421
      %1423 = vrot.lane.b32.xlu0 %v1338, 40
      %v1424 = vpop.permute.xlu0 %1423
      %1425 = vrot.lane.b32.xlu0 %v1339, 40
      %v1426 = vpop.permute.xlu0 %1425
      %1427 = vrot.lane.b32.xlu0 %v1340, 40
      %v1428 = vpop.permute.xlu0 %1427
      %1429 = vrot.lane.b32.xlu0 %v1341, 40
      %v1430 = vpop.permute.xlu0 %1429
      %1431 = vrot.lane.b32.xlu0 %v1342, 40
      %v1432 = vpop.permute.xlu0 %1431
      %1433 = vrot.lane.b32.xlu0 %v1343, 40
      %v1434 = vpop.permute.xlu0 %1433
      %1435 = vrot.lane.b32.xlu0 %v1344, 40
      %v1436 = vpop.permute.xlu0 %1435
      %1437 = vrot.lane.b32.xlu0 %v1345, 40
      %v1438 = vpop.permute.xlu0 %1437
      %1439 = vrot.lane.b32.xlu0 %v1346, 40
      %v1440 = vpop.permute.xlu0 %1439
      %1441 = vrot.lane.b32.xlu0 %v1347, 40
      %v1442 = vpop.permute.xlu0 %1441
      %1443 = vrot.lane.b32.xlu0 %v1348, 40
      %v1444 = vpop.permute.xlu0 %1443
      %vm1477 = vcmask 392512
      %1478 = vst.msk [vmem:[#allocation3] sm:$0xff] %vm1477, %v1382
      %1479 = vst.msk [vmem:[#allocation3 + $0x8] sm:$0xff] %vm1477, %v1384
      %1480 = vst.msk [vmem:[#allocation3 + $0x10] sm:$0xff] %vm1477, %v1386
      %1481 = vst.msk [vmem:[#allocation3 + $0x18] sm:$0xff] %vm1477, %v1388
      %1482 = vst.msk [vmem:[#allocation3 + $0x20] sm:$0xff] %vm1477, %v1390
      %1483 = vst.msk [vmem:[#allocation3 + $0x28] sm:$0xff] %vm1477, %v1392
      %1484 = vst.msk [vmem:[#allocation3 + $0x30] sm:$0xff] %vm1477, %v1394
      %1485 = vst.msk [vmem:[#allocation3 + $0x38] sm:$0xff] %vm1477, %v1396
      %1486 = vst.msk [vmem:[#allocation3 + $0x40] sm:$0xff] %vm1477, %v1398
      %1487 = vst.msk [vmem:[#allocation3 + $0x48] sm:$0xff] %vm1477, %v1400
      %1488 = vst.msk [vmem:[#allocation3 + $0x50] sm:$0xff] %vm1477, %v1402
      %1489 = vst.msk [vmem:[#allocation3 + $0x58] sm:$0xff] %vm1477, %v1404
      %1490 = vst.msk [vmem:[#allocation3 + $0x60] sm:$0xff] %vm1477, %v1406
      %1491 = vst.msk [vmem:[#allocation3 + $0x68] sm:$0xff] %vm1477, %v1408
      %1492 = vst.msk [vmem:[#allocation3 + $0x70] sm:$0xff] %vm1477, %v1410
      %1493 = vst.msk [vmem:[#allocation3 + $0x78] sm:$0xff] %vm1477, %v1412
      %1494 = vst.msk [vmem:[#allocation3 + $0x80] sm:$0xff] %vm1477, %v1414
      %1495 = vst.msk [vmem:[#allocation3 + $0x88] sm:$0xff] %vm1477, %v1416
      %1496 = vst.msk [vmem:[#allocation3 + $0x90] sm:$0xff] %vm1477, %v1418
      %1497 = vst.msk [vmem:[#allocation3 + $0x98] sm:$0xff] %vm1477, %v1420
      %1498 = vst.msk [vmem:[#allocation3 + $0xa0] sm:$0xff] %vm1477, %v1422
      %1499 = vst.msk [vmem:[#allocation3 + $0xa8] sm:$0xff] %vm1477, %v1424
      %1500 = vst.msk [vmem:[#allocation3 + $0xb0] sm:$0xff] %vm1477, %v1426
      %1501 = vst.msk [vmem:[#allocation3 + $0xb8] sm:$0xff] %vm1477, %v1428
      %1502 = vst.msk [vmem:[#allocation3 + $0xc0] sm:$0xff] %vm1477, %v1430
      %1503 = vst.msk [vmem:[#allocation3 + $0xc8] sm:$0xff] %vm1477, %v1432
      %1504 = vst.msk [vmem:[#allocation3 + $0xd0] sm:$0xff] %vm1477, %v1434
      %1505 = vst.msk [vmem:[#allocation3 + $0xd8] sm:$0xff] %vm1477, %v1436
      %1506 = vst.msk [vmem:[#allocation3 + $0xe0] sm:$0xff] %vm1477, %v1438
      %1507 = vst.msk [vmem:[#allocation3 + $0xe8] sm:$0xff] %vm1477, %v1440
      %1508 = vst.msk [vmem:[#allocation3 + $0xf0] sm:$0xff] %vm1477, %v1442
      %1509 = vst.msk [vmem:[#allocation3 + $0xf8] sm:$0xff] %vm1477, %v1444
      %s1510 = scalar_lea.vmem [#allocation2], 48
      %v1511 = vld [vmem:[%s1510] sm:$0xff]
      %v1512 = vld [vmem:[%s1510 + $0x8] sm:$0xff]
      %v1513 = vld [vmem:[%s1510 + $0x18] sm:$0xff]
      %v1514 = vld [vmem:[%s1510 + $0x20] sm:$0xff]
      %v1515 = vld [vmem:[%s1510 + $0x30] sm:$0xff]
      %v1516 = vld [vmem:[%s1510 + $0x38] sm:$0xff]
      %v1517 = vld [vmem:[%s1510 + $0x48] sm:$0xff]
      %v1518 = vld [vmem:[%s1510 + $0x50] sm:$0xff]
      %v1519 = vld [vmem:[%s1510 + $0x60] sm:$0xff]
      %v1520 = vld [vmem:[%s1510 + $0x68] sm:$0xff]
      %v1521 = vld [vmem:[%s1510 + $0x78] sm:$0xff]
      %v1522 = vld [vmem:[%s1510 + $0x80] sm:$0xff]
      %v1523 = vld [vmem:[%s1510 + $0x90] sm:$0xff]
      %v1524 = vld [vmem:[%s1510 + $0x98] sm:$0xff]
      %v1525 = vld [vmem:[%s1510 + $0xa8] sm:$0xff]
      %v1526 = vld [vmem:[%s1510 + $0xb0] sm:$0xff]
      %v1527 = vld [vmem:[%s1510 + $0xc0] sm:$0xff]
      %v1528 = vld [vmem:[%s1510 + $0xc8] sm:$0xff]
      %v1529 = vld [vmem:[%s1510 + $0xd8] sm:$0xff]
      %v1530 = vld [vmem:[%s1510 + $0xe0] sm:$0xff]
      %v1531 = vld [vmem:[%s1510 + $0xf0] sm:$0xff]
      %v1532 = vld [vmem:[%s1510 + $0xf8] sm:$0xff]
      %v1533 = vld [vmem:[%s1510 + $0x108] sm:$0xff]
      %v1534 = vld [vmem:[%s1510 + $0x110] sm:$0xff]
      %v1535 = vld [vmem:[%s1510 + $0x120] sm:$0xff]
      %v1536 = vld [vmem:[%s1510 + $0x128] sm:$0xff]
      %v1537 = vld [vmem:[%s1510 + $0x138] sm:$0xff]
      %v1538 = vld [vmem:[%s1510 + $0x140] sm:$0xff]
      %v1539 = vld [vmem:[%s1510 + $0x150] sm:$0xff]
      %v1540 = vld [vmem:[%s1510 + $0x158] sm:$0xff]
      %v1541 = vld [vmem:[%s1510 + $0x168] sm:$0xff]
      %v1542 = vld [vmem:[%s1510 + $0x170] sm:$0xff]
      %1575 = vrot.lane.b32.xlu0 %v1511, 48
      %v1576 = vpop.permute.xlu0 %1575
      %1577 = vrot.lane.b32.xlu0 %v1512, 48
      %v1578 = vpop.permute.xlu0 %1577
      %1579 = vrot.lane.b32.xlu0 %v1513, 48
      %v1580 = vpop.permute.xlu0 %1579
      %1581 = vrot.lane.b32.xlu0 %v1514, 48
      %v1582 = vpop.permute.xlu0 %1581
      %1583 = vrot.lane.b32.xlu0 %v1515, 48
      %v1584 = vpop.permute.xlu0 %1583
      %1585 = vrot.lane.b32.xlu0 %v1516, 48
      %v1586 = vpop.permute.xlu0 %1585
      %1587 = vrot.lane.b32.xlu0 %v1517, 48
      %v1588 = vpop.permute.xlu0 %1587
      %1589 = vrot.lane.b32.xlu0 %v1518, 48
      %v1590 = vpop.permute.xlu0 %1589
      %1591 = vrot.lane.b32.xlu0 %v1519, 48
      %v1592 = vpop.permute.xlu0 %1591
      %1593 = vrot.lane.b32.xlu0 %v1520, 48
      %v1594 = vpop.permute.xlu0 %1593
      %1595 = vrot.lane.b32.xlu0 %v1521, 48
      %v1596 = vpop.permute.xlu0 %1595
      %1597 = vrot.lane.b32.xlu0 %v1522, 48
      %v1598 = vpop.permute.xlu0 %1597
      %1599 = vrot.lane.b32.xlu0 %v1523, 48
      %v1600 = vpop.permute.xlu0 %1599
      %1601 = vrot.lane.b32.xlu0 %v1524, 48
      %v1602 = vpop.permute.xlu0 %1601
      %1603 = vrot.lane.b32.xlu0 %v1525, 48
      %v1604 = vpop.permute.xlu0 %1603
      %1605 = vrot.lane.b32.xlu0 %v1526, 48
      %v1606 = vpop.permute.xlu0 %1605
      %1607 = vrot.lane.b32.xlu0 %v1527, 48
      %v1608 = vpop.permute.xlu0 %1607
      %1609 = vrot.lane.b32.xlu0 %v1528, 48
      %v1610 = vpop.permute.xlu0 %1609
      %1611 = vrot.lane.b32.xlu0 %v1529, 48
      %v1612 = vpop.permute.xlu0 %1611
      %1613 = vrot.lane.b32.xlu0 %v1530, 48
      %v1614 = vpop.permute.xlu0 %1613
      %1615 = vrot.lane.b32.xlu0 %v1531, 48
      %v1616 = vpop.permute.xlu0 %1615
      %1617 = vrot.lane.b32.xlu0 %v1532, 48
      %v1618 = vpop.permute.xlu0 %1617
      %1619 = vrot.lane.b32.xlu0 %v1533, 48
      %v1620 = vpop.permute.xlu0 %1619
      %1621 = vrot.lane.b32.xlu0 %v1534, 48
      %v1622 = vpop.permute.xlu0 %1621
      %1623 = vrot.lane.b32.xlu0 %v1535, 48
      %v1624 = vpop.permute.xlu0 %1623
      %1625 = vrot.lane.b32.xlu0 %v1536, 48
      %v1626 = vpop.permute.xlu0 %1625
      %1627 = vrot.lane.b32.xlu0 %v1537, 48
      %v1628 = vpop.permute.xlu0 %1627
      %1629 = vrot.lane.b32.xlu0 %v1538, 48
      %v1630 = vpop.permute.xlu0 %1629
      %1631 = vrot.lane.b32.xlu0 %v1539, 48
      %v1632 = vpop.permute.xlu0 %1631
      %1633 = vrot.lane.b32.xlu0 %v1540, 48
      %v1634 = vpop.permute.xlu0 %1633
      %1635 = vrot.lane.b32.xlu0 %v1541, 48
      %v1636 = vpop.permute.xlu0 %1635
      %1637 = vrot.lane.b32.xlu0 %v1542, 48
      %v1638 = vpop.permute.xlu0 %1637
      %vm1671 = vcmask 458112
      %1672 = vst.msk [vmem:[#allocation3] sm:$0xff] %vm1671, %v1576
      %1673 = vst.msk [vmem:[#allocation3 + $0x8] sm:$0xff] %vm1671, %v1578
      %1674 = vst.msk [vmem:[#allocation3 + $0x10] sm:$0xff] %vm1671, %v1580
      %1675 = vst.msk [vmem:[#allocation3 + $0x18] sm:$0xff] %vm1671, %v1582
      %1676 = vst.msk [vmem:[#allocation3 + $0x20] sm:$0xff] %vm1671, %v1584
      %1677 = vst.msk [vmem:[#allocation3 + $0x28] sm:$0xff] %vm1671, %v1586
      %1678 = vst.msk [vmem:[#allocation3 + $0x30] sm:$0xff] %vm1671, %v1588
      %1679 = vst.msk [vmem:[#allocation3 + $0x38] sm:$0xff] %vm1671, %v1590
      %1680 = vst.msk [vmem:[#allocation3 + $0x40] sm:$0xff] %vm1671, %v1592
      %1681 = vst.msk [vmem:[#allocation3 + $0x48] sm:$0xff] %vm1671, %v1594
      %1682 = vst.msk [vmem:[#allocation3 + $0x50] sm:$0xff] %vm1671, %v1596
      %1683 = vst.msk [vmem:[#allocation3 + $0x58] sm:$0xff] %vm1671, %v1598
      %1684 = vst.msk [vmem:[#allocation3 + $0x60] sm:$0xff] %vm1671, %v1600
      %1685 = vst.msk [vmem:[#allocation3 + $0x68] sm:$0xff] %vm1671, %v1602
      %1686 = vst.msk [vmem:[#allocation3 + $0x70] sm:$0xff] %vm1671, %v1604
      %1687 = vst.msk [vmem:[#allocation3 + $0x78] sm:$0xff] %vm1671, %v1606
      %1688 = vst.msk [vmem:[#allocation3 + $0x80] sm:$0xff] %vm1671, %v1608
      %1689 = vst.msk [vmem:[#allocation3 + $0x88] sm:$0xff] %vm1671, %v1610
      %1690 = vst.msk [vmem:[#allocation3 + $0x90] sm:$0xff] %vm1671, %v1612
      %1691 = vst.msk [vmem:[#allocation3 + $0x98] sm:$0xff] %vm1671, %v1614
      %1692 = vst.msk [vmem:[#allocation3 + $0xa0] sm:$0xff] %vm1671, %v1616
      %1693 = vst.msk [vmem:[#allocation3 + $0xa8] sm:$0xff] %vm1671, %v1618
      %1694 = vst.msk [vmem:[#allocation3 + $0xb0] sm:$0xff] %vm1671, %v1620
      %1695 = vst.msk [vmem:[#allocation3 + $0xb8] sm:$0xff] %vm1671, %v1622
      %1696 = vst.msk [vmem:[#allocation3 + $0xc0] sm:$0xff] %vm1671, %v1624
      %1697 = vst.msk [vmem:[#allocation3 + $0xc8] sm:$0xff] %vm1671, %v1626
      %1698 = vst.msk [vmem:[#allocation3 + $0xd0] sm:$0xff] %vm1671, %v1628
      %1699 = vst.msk [vmem:[#allocation3 + $0xd8] sm:$0xff] %vm1671, %v1630
      %1700 = vst.msk [vmem:[#allocation3 + $0xe0] sm:$0xff] %vm1671, %v1632
      %1701 = vst.msk [vmem:[#allocation3 + $0xe8] sm:$0xff] %vm1671, %v1634
      %1702 = vst.msk [vmem:[#allocation3 + $0xf0] sm:$0xff] %vm1671, %v1636
      %1703 = vst.msk [vmem:[#allocation3 + $0xf8] sm:$0xff] %vm1671, %v1638
      %v1704 = vld [vmem:[%s1510 + $0x1] sm:$0xff]
      %v1705 = vld [vmem:[%s1510 + $0x9] sm:$0xff]
      %v1706 = vld [vmem:[%s1510 + $0x19] sm:$0xff]
      %v1707 = vld [vmem:[%s1510 + $0x21] sm:$0xff]
      %v1708 = vld [vmem:[%s1510 + $0x31] sm:$0xff]
      %v1709 = vld [vmem:[%s1510 + $0x39] sm:$0xff]
      %v1710 = vld [vmem:[%s1510 + $0x49] sm:$0xff]
      %v1711 = vld [vmem:[%s1510 + $0x51] sm:$0xff]
      %v1712 = vld [vmem:[%s1510 + $0x61] sm:$0xff]
      %v1713 = vld [vmem:[%s1510 + $0x69] sm:$0xff]
      %v1714 = vld [vmem:[%s1510 + $0x79] sm:$0xff]
      %v1715 = vld [vmem:[%s1510 + $0x81] sm:$0xff]
      %v1716 = vld [vmem:[%s1510 + $0x91] sm:$0xff]
      %v1717 = vld [vmem:[%s1510 + $0x99] sm:$0xff]
      %v1718 = vld [vmem:[%s1510 + $0xa9] sm:$0xff]
      %v1719 = vld [vmem:[%s1510 + $0xb1] sm:$0xff]
      %v1720 = vld [vmem:[%s1510 + $0xc1] sm:$0xff]
      %v1721 = vld [vmem:[%s1510 + $0xc9] sm:$0xff]
      %v1722 = vld [vmem:[%s1510 + $0xd9] sm:$0xff]
      %v1723 = vld [vmem:[%s1510 + $0xe1] sm:$0xff]
      %v1724 = vld [vmem:[%s1510 + $0xf1] sm:$0xff]
      %v1725 = vld [vmem:[%s1510 + $0xf9] sm:$0xff]
      %v1726 = vld [vmem:[%s1510 + $0x109] sm:$0xff]
      %v1727 = vld [vmem:[%s1510 + $0x111] sm:$0xff]
      %v1728 = vld [vmem:[%s1510 + $0x121] sm:$0xff]
      %v1729 = vld [vmem:[%s1510 + $0x129] sm:$0xff]
      %v1730 = vld [vmem:[%s1510 + $0x139] sm:$0xff]
      %v1731 = vld [vmem:[%s1510 + $0x141] sm:$0xff]
      %v1732 = vld [vmem:[%s1510 + $0x151] sm:$0xff]
      %v1733 = vld [vmem:[%s1510 + $0x159] sm:$0xff]
      %v1734 = vld [vmem:[%s1510 + $0x169] sm:$0xff]
      %v1735 = vld [vmem:[%s1510 + $0x171] sm:$0xff]
      %1768 = vrot.lane.b32.xlu0 %v1704, 56
      %v1769 = vpop.permute.xlu0 %1768
      %1770 = vrot.lane.b32.xlu0 %v1705, 56
      %v1771 = vpop.permute.xlu0 %1770
      %1772 = vrot.lane.b32.xlu0 %v1706, 56
      %v1773 = vpop.permute.xlu0 %1772
      %1774 = vrot.lane.b32.xlu0 %v1707, 56
      %v1775 = vpop.permute.xlu0 %1774
      %1776 = vrot.lane.b32.xlu0 %v1708, 56
      %v1777 = vpop.permute.xlu0 %1776
      %1778 = vrot.lane.b32.xlu0 %v1709, 56
      %v1779 = vpop.permute.xlu0 %1778
      %1780 = vrot.lane.b32.xlu0 %v1710, 56
      %v1781 = vpop.permute.xlu0 %1780
      %1782 = vrot.lane.b32.xlu0 %v1711, 56
      %v1783 = vpop.permute.xlu0 %1782
      %1784 = vrot.lane.b32.xlu0 %v1712, 56
      %v1785 = vpop.permute.xlu0 %1784
      %1786 = vrot.lane.b32.xlu0 %v1713, 56
      %v1787 = vpop.permute.xlu0 %1786
      %1788 = vrot.lane.b32.xlu0 %v1714, 56
      %v1789 = vpop.permute.xlu0 %1788
      %1790 = vrot.lane.b32.xlu0 %v1715, 56
      %v1791 = vpop.permute.xlu0 %1790
      %1792 = vrot.lane.b32.xlu0 %v1716, 56
      %v1793 = vpop.permute.xlu0 %1792
      %1794 = vrot.lane.b32.xlu0 %v1717, 56
      %v1795 = vpop.permute.xlu0 %1794
      %1796 = vrot.lane.b32.xlu0 %v1718, 56
      %v1797 = vpop.permute.xlu0 %1796
      %1798 = vrot.lane.b32.xlu0 %v1719, 56
      %v1799 = vpop.permute.xlu0 %1798
      %1800 = vrot.lane.b32.xlu0 %v1720, 56
      %v1801 = vpop.permute.xlu0 %1800
      %1802 = vrot.lane.b32.xlu0 %v1721, 56
      %v1803 = vpop.permute.xlu0 %1802
      %1804 = vrot.lane.b32.xlu0 %v1722, 56
      %v1805 = vpop.permute.xlu0 %1804
      %1806 = vrot.lane.b32.xlu0 %v1723, 56
      %v1807 = vpop.permute.xlu0 %1806
      %1808 = vrot.lane.b32.xlu0 %v1724, 56
      %v1809 = vpop.permute.xlu0 %1808
      %1810 = vrot.lane.b32.xlu0 %v1725, 56
      %v1811 = vpop.permute.xlu0 %1810
      %1812 = vrot.lane.b32.xlu0 %v1726, 56
      %v1813 = vpop.permute.xlu0 %1812
      %1814 = vrot.lane.b32.xlu0 %v1727, 56
      %v1815 = vpop.permute.xlu0 %1814
      %1816 = vrot.lane.b32.xlu0 %v1728, 56
      %v1817 = vpop.permute.xlu0 %1816
      %1818 = vrot.lane.b32.xlu0 %v1729, 56
      %v1819 = vpop.permute.xlu0 %1818
      %1820 = vrot.lane.b32.xlu0 %v1730, 56
      %v1821 = vpop.permute.xlu0 %1820
      %1822 = vrot.lane.b32.xlu0 %v1731, 56
      %v1823 = vpop.permute.xlu0 %1822
      %1824 = vrot.lane.b32.xlu0 %v1732, 56
      %v1825 = vpop.permute.xlu0 %1824
      %1826 = vrot.lane.b32.xlu0 %v1733, 56
      %v1827 = vpop.permute.xlu0 %1826
      %1828 = vrot.lane.b32.xlu0 %v1734, 56
      %v1829 = vpop.permute.xlu0 %1828
      %1830 = vrot.lane.b32.xlu0 %v1735, 56
      %v1831 = vpop.permute.xlu0 %1830
      %vm1864 = vcmask 523712
      %1865 = vst.msk [vmem:[#allocation3] sm:$0xff] %vm1864, %v1769
      %1866 = vst.msk [vmem:[#allocation3 + $0x8] sm:$0xff] %vm1864, %v1771
      %1867 = vst.msk [vmem:[#allocation3 + $0x10] sm:$0xff] %vm1864, %v1773
      %1868 = vst.msk [vmem:[#allocation3 + $0x18] sm:$0xff] %vm1864, %v1775
      %1869 = vst.msk [vmem:[#allocation3 + $0x20] sm:$0xff] %vm1864, %v1777
      %1870 = vst.msk [vmem:[#allocation3 + $0x28] sm:$0xff] %vm1864, %v1779
      %1871 = vst.msk [vmem:[#allocation3 + $0x30] sm:$0xff] %vm1864, %v1781
      %1872 = vst.msk [vmem:[#allocation3 + $0x38] sm:$0xff] %vm1864, %v1783
      %1873 = vst.msk [vmem:[#allocation3 + $0x40] sm:$0xff] %vm1864, %v1785
      %1874 = vst.msk [vmem:[#allocation3 + $0x48] sm:$0xff] %vm1864, %v1787
      %1875 = vst.msk [vmem:[#allocation3 + $0x50] sm:$0xff] %vm1864, %v1789
      %1876 = vst.msk [vmem:[#allocation3 + $0x58] sm:$0xff] %vm1864, %v1791
      %1877 = vst.msk [vmem:[#allocation3 + $0x60] sm:$0xff] %vm1864, %v1793
      %1878 = vst.msk [vmem:[#allocation3 + $0x68] sm:$0xff] %vm1864, %v1795
      %1879 = vst.msk [vmem:[#allocation3 + $0x70] sm:$0xff] %vm1864, %v1797
      %1880 = vst.msk [vmem:[#allocation3 + $0x78] sm:$0xff] %vm1864, %v1799
      %1881 = vst.msk [vmem:[#allocation3 + $0x80] sm:$0xff] %vm1864, %v1801
      %1882 = vst.msk [vmem:[#allocation3 + $0x88] sm:$0xff] %vm1864, %v1803
      %1883 = vst.msk [vmem:[#allocation3 + $0x90] sm:$0xff] %vm1864, %v1805
      %1884 = vst.msk [vmem:[#allocation3 + $0x98] sm:$0xff] %vm1864, %v1807
      %1885 = vst.msk [vmem:[#allocation3 + $0xa0] sm:$0xff] %vm1864, %v1809
      %1886 = vst.msk [vmem:[#allocation3 + $0xa8] sm:$0xff] %vm1864, %v1811
      %1887 = vst.msk [vmem:[#allocation3 + $0xb0] sm:$0xff] %vm1864, %v1813
      %1888 = vst.msk [vmem:[#allocation3 + $0xb8] sm:$0xff] %vm1864, %v1815
      %1889 = vst.msk [vmem:[#allocation3 + $0xc0] sm:$0xff] %vm1864, %v1817
      %1890 = vst.msk [vmem:[#allocation3 + $0xc8] sm:$0xff] %vm1864, %v1819
      %1891 = vst.msk [vmem:[#allocation3 + $0xd0] sm:$0xff] %vm1864, %v1821
      %1892 = vst.msk [vmem:[#allocation3 + $0xd8] sm:$0xff] %vm1864, %v1823
      %1893 = vst.msk [vmem:[#allocation3 + $0xe0] sm:$0xff] %vm1864, %v1825
      %1894 = vst.msk [vmem:[#allocation3 + $0xe8] sm:$0xff] %vm1864, %v1827
      %1895 = vst.msk [vmem:[#allocation3 + $0xf0] sm:$0xff] %vm1864, %v1829
      %1896 = vst.msk [vmem:[#allocation3 + $0xf8] sm:$0xff] %vm1864, %v1831
      %v1897 = vld [vmem:[%s1510 + $0x2] sm:$0xff]
      %v1898 = vld [vmem:[%s1510 + $0xa] sm:$0xff]
      %v1899 = vld [vmem:[%s1510 + $0x1a] sm:$0xff]
      %v1900 = vld [vmem:[%s1510 + $0x22] sm:$0xff]
      %v1901 = vld [vmem:[%s1510 + $0x32] sm:$0xff]
      %v1902 = vld [vmem:[%s1510 + $0x3a] sm:$0xff]
      %v1903 = vld [vmem:[%s1510 + $0x4a] sm:$0xff]
      %v1904 = vld [vmem:[%s1510 + $0x52] sm:$0xff]
      %v1905 = vld [vmem:[%s1510 + $0x62] sm:$0xff]
      %v1906 = vld [vmem:[%s1510 + $0x6a] sm:$0xff]
      %v1907 = vld [vmem:[%s1510 + $0x7a] sm:$0xff]
      %v1908 = vld [vmem:[%s1510 + $0x82] sm:$0xff]
      %v1909 = vld [vmem:[%s1510 + $0x92] sm:$0xff]
      %v1910 = vld [vmem:[%s1510 + $0x9a] sm:$0xff]
      %v1911 = vld [vmem:[%s1510 + $0xaa] sm:$0xff]
      %v1912 = vld [vmem:[%s1510 + $0xb2] sm:$0xff]
      %v1913 = vld [vmem:[%s1510 + $0xc2] sm:$0xff]
      %v1914 = vld [vmem:[%s1510 + $0xca] sm:$0xff]
      %v1915 = vld [vmem:[%s1510 + $0xda] sm:$0xff]
      %v1916 = vld [vmem:[%s1510 + $0xe2] sm:$0xff]
      %v1917 = vld [vmem:[%s1510 + $0xf2] sm:$0xff]
      %v1918 = vld [vmem:[%s1510 + $0xfa] sm:$0xff]
      %v1919 = vld [vmem:[%s1510 + $0x10a] sm:$0xff]
      %v1920 = vld [vmem:[%s1510 + $0x112] sm:$0xff]
      %v1921 = vld [vmem:[%s1510 + $0x122] sm:$0xff]
      %v1922 = vld [vmem:[%s1510 + $0x12a] sm:$0xff]
      %v1923 = vld [vmem:[%s1510 + $0x13a] sm:$0xff]
      %v1924 = vld [vmem:[%s1510 + $0x142] sm:$0xff]
      %v1925 = vld [vmem:[%s1510 + $0x152] sm:$0xff]
      %v1926 = vld [vmem:[%s1510 + $0x15a] sm:$0xff]
      %v1927 = vld [vmem:[%s1510 + $0x16a] sm:$0xff]
      %v1928 = vld [vmem:[%s1510 + $0x172] sm:$0xff]
      %1961 = vrot.lane.b32.xlu0 %v1897, 64
      %v1962 = vpop.permute.xlu0 %1961
      %1963 = vrot.lane.b32.xlu0 %v1898, 64
      %v1964 = vpop.permute.xlu0 %1963
      %1965 = vrot.lane.b32.xlu0 %v1899, 64
      %v1966 = vpop.permute.xlu0 %1965
      %1967 = vrot.lane.b32.xlu0 %v1900, 64
      %v1968 = vpop.permute.xlu0 %1967
      %1969 = vrot.lane.b32.xlu0 %v1901, 64
      %v1970 = vpop.permute.xlu0 %1969
      %1971 = vrot.lane.b32.xlu0 %v1902, 64
      %v1972 = vpop.permute.xlu0 %1971
      %1973 = vrot.lane.b32.xlu0 %v1903, 64
      %v1974 = vpop.permute.xlu0 %1973
      %1975 = vrot.lane.b32.xlu0 %v1904, 64
      %v1976 = vpop.permute.xlu0 %1975
      %1977 = vrot.lane.b32.xlu0 %v1905, 64
      %v1978 = vpop.permute.xlu0 %1977
      %1979 = vrot.lane.b32.xlu0 %v1906, 64
      %v1980 = vpop.permute.xlu0 %1979
      %1981 = vrot.lane.b32.xlu0 %v1907, 64
      %v1982 = vpop.permute.xlu0 %1981
      %1983 = vrot.lane.b32.xlu0 %v1908, 64
      %v1984 = vpop.permute.xlu0 %1983
      %1985 = vrot.lane.b32.xlu0 %v1909, 64
      %v1986 = vpop.permute.xlu0 %1985
      %1987 = vrot.lane.b32.xlu0 %v1910, 64
      %v1988 = vpop.permute.xlu0 %1987
      %1989 = vrot.lane.b32.xlu0 %v1911, 64
      %v1990 = vpop.permute.xlu0 %1989
      %1991 = vrot.lane.b32.xlu0 %v1912, 64
      %v1992 = vpop.permute.xlu0 %1991
      %1993 = vrot.lane.b32.xlu0 %v1913, 64
      %v1994 = vpop.permute.xlu0 %1993
      %1995 = vrot.lane.b32.xlu0 %v1914, 64
      %v1996 = vpop.permute.xlu0 %1995
      %1997 = vrot.lane.b32.xlu0 %v1915, 64
      %v1998 = vpop.permute.xlu0 %1997
      %1999 = vrot.lane.b32.xlu0 %v1916, 64
      %v2000 = vpop.permute.xlu0 %1999
      %2001 = vrot.lane.b32.xlu0 %v1917, 64
      %v2002 = vpop.permute.xlu0 %2001
      %2003 = vrot.lane.b32.xlu0 %v1918, 64
      %v2004 = vpop.permute.xlu0 %2003
      %2005 = vrot.lane.b32.xlu0 %v1919, 64
      %v2006 = vpop.permute.xlu0 %2005
      %2007 = vrot.lane.b32.xlu0 %v1920, 64
      %v2008 = vpop.permute.xlu0 %2007
      %2009 = vrot.lane.b32.xlu0 %v1921, 64
      %v2010 = vpop.permute.xlu0 %2009
      %2011 = vrot.lane.b32.xlu0 %v1922, 64
      %v2012 = vpop.permute.xlu0 %2011
      %2013 = vrot.lane.b32.xlu0 %v1923, 64
      %v2014 = vpop.permute.xlu0 %2013
      %2015 = vrot.lane.b32.xlu0 %v1924, 64
      %v2016 = vpop.permute.xlu0 %2015
      %2017 = vrot.lane.b32.xlu0 %v1925, 64
      %v2018 = vpop.permute.xlu0 %2017
      %2019 = vrot.lane.b32.xlu0 %v1926, 64
      %v2020 = vpop.permute.xlu0 %2019
      %2021 = vrot.lane.b32.xlu0 %v1927, 64
      %v2022 = vpop.permute.xlu0 %2021
      %2023 = vrot.lane.b32.xlu0 %v1928, 64
      %v2024 = vpop.permute.xlu0 %2023
      %vm2057 = vcmask 589312
      %2058 = vst.msk [vmem:[#allocation3] sm:$0xff] %vm2057, %v1962
      %2059 = vst.msk [vmem:[#allocation3 + $0x8] sm:$0xff] %vm2057, %v1964
      %2060 = vst.msk [vmem:[#allocation3 + $0x10] sm:$0xff] %vm2057, %v1966
      %2061 = vst.msk [vmem:[#allocation3 + $0x18] sm:$0xff] %vm2057, %v1968
      %2062 = vst.msk [vmem:[#allocation3 + $0x20] sm:$0xff] %vm2057, %v1970
      %2063 = vst.msk [vmem:[#allocation3 + $0x28] sm:$0xff] %vm2057, %v1972
      %2064 = vst.msk [vmem:[#allocation3 + $0x30] sm:$0xff] %vm2057, %v1974
      %2065 = vst.msk [vmem:[#allocation3 + $0x38] sm:$0xff] %vm2057, %v1976
      %2066 = vst.msk [vmem:[#allocation3 + $0x40] sm:$0xff] %vm2057, %v1978
      %2067 = vst.msk [vmem:[#allocation3 + $0x48] sm:$0xff] %vm2057, %v1980
      %2068 = vst.msk [vmem:[#allocation3 + $0x50] sm:$0xff] %vm2057, %v1982
      %2069 = vst.msk [vmem:[#allocation3 + $0x58] sm:$0xff] %vm2057, %v1984
      %2070 = vst.msk [vmem:[#allocation3 + $0x60] sm:$0xff] %vm2057, %v1986
      %2071 = vst.msk [vmem:[#allocation3 + $0x68] sm:$0xff] %vm2057, %v1988
      %2072 = vst.msk [vmem:[#allocation3 + $0x70] sm:$0xff] %vm2057, %v1990
      %2073 = vst.msk [vmem:[#allocation3 + $0x78] sm:$0xff] %vm2057, %v1992
      %2074 = vst.msk [vmem:[#allocation3 + $0x80] sm:$0xff] %vm2057, %v1994
      %2075 = vst.msk [vmem:[#allocation3 + $0x88] sm:$0xff] %vm2057, %v1996
      %2076 = vst.msk [vmem:[#allocation3 + $0x90] sm:$0xff] %vm2057, %v1998
      %2077 = vst.msk [vmem:[#allocation3 + $0x98] sm:$0xff] %vm2057, %v2000
      %2078 = vst.msk [vmem:[#allocation3 + $0xa0] sm:$0xff] %vm2057, %v2002
      %2079 = vst.msk [vmem:[#allocation3 + $0xa8] sm:$0xff] %vm2057, %v2004
      %2080 = vst.msk [vmem:[#allocation3 + $0xb0] sm:$0xff] %vm2057, %v2006
      %2081 = vst.msk [vmem:[#allocation3 + $0xb8] sm:$0xff] %vm2057, %v2008
      %2082 = vst.msk [vmem:[#allocation3 + $0xc0] sm:$0xff] %vm2057, %v2010
      %2083 = vst.msk [vmem:[#allocation3 + $0xc8] sm:$0xff] %vm2057, %v2012
      %2084 = vst.msk [vmem:[#allocation3 + $0xd0] sm:$0xff] %vm2057, %v2014
      %2085 = vst.msk [vmem:[#allocation3 + $0xd8] sm:$0xff] %vm2057, %v2016
      %2086 = vst.msk [vmem:[#allocation3 + $0xe0] sm:$0xff] %vm2057, %v2018
      %2087 = vst.msk [vmem:[#allocation3 + $0xe8] sm:$0xff] %vm2057, %v2020
      %2088 = vst.msk [vmem:[#allocation3 + $0xf0] sm:$0xff] %vm2057, %v2022
      %2089 = vst.msk [vmem:[#allocation3 + $0xf8] sm:$0xff] %vm2057, %v2024
      %v2090 = vld [vmem:[#allocation3] sm:$0xff]
      %v2091 = vld [vmem:[#allocation3 + $0x8] sm:$0xff]
      %v2092 = vld [vmem:[#allocation3 + $0x10] sm:$0xff]
      %v2093 = vld [vmem:[#allocation3 + $0x18] sm:$0xff]
      %v2094 = vld [vmem:[#allocation3 + $0x20] sm:$0xff]
      %v2095 = vld [vmem:[#allocation3 + $0x28] sm:$0xff]
      %v2096 = vld [vmem:[#allocation3 + $0x30] sm:$0xff]
      %v2097 = vld [vmem:[#allocation3 + $0x38] sm:$0xff]
      %v2098 = vld [vmem:[#allocation3 + $0x40] sm:$0xff]
      %v2099 = vld [vmem:[#allocation3 + $0x48] sm:$0xff]
      %v2100 = vld [vmem:[#allocation3 + $0x50] sm:$0xff]
      %v2101 = vld [vmem:[#allocation3 + $0x58] sm:$0xff]
      %v2102 = vld [vmem:[#allocation3 + $0x60] sm:$0xff]
      %v2103 = vld [vmem:[#allocation3 + $0x68] sm:$0xff]
      %v2104 = vld [vmem:[#allocation3 + $0x70] sm:$0xff]
      %v2105 = vld [vmem:[#allocation3 + $0x78] sm:$0xff]
      %v2106 = vld [vmem:[#allocation3 + $0x80] sm:$0xff]
      %v2107 = vld [vmem:[#allocation3 + $0x88] sm:$0xff]
      %v2108 = vld [vmem:[#allocation3 + $0x90] sm:$0xff]
      %v2109 = vld [vmem:[#allocation3 + $0x98] sm:$0xff]
      %v2110 = vld [vmem:[#allocation3 + $0xa0] sm:$0xff]
      %v2111 = vld [vmem:[#allocation3 + $0xa8] sm:$0xff]
      %v2112 = vld [vmem:[#allocation3 + $0xb0] sm:$0xff]
      %v2113 = vld [vmem:[#allocation3 + $0xb8] sm:$0xff]
      %v2114 = vld [vmem:[#allocation3 + $0xc0] sm:$0xff]
      %v2115 = vld [vmem:[#allocation3 + $0xc8] sm:$0xff]
      %v2116 = vld [vmem:[#allocation3 + $0xd0] sm:$0xff]
      %v2117 = vld [vmem:[#allocation3 + $0xd8] sm:$0xff]
      %v2118 = vld [vmem:[#allocation3 + $0xe0] sm:$0xff]
      %v2119 = vld [vmem:[#allocation3 + $0xe8] sm:$0xff]
      %v2120 = vld [vmem:[#allocation3 + $0xf0] sm:$0xff]
      %v2121 = vld [vmem:[#allocation3 + $0xf8] sm:$0xff]
      %v2122 = vld [vmem:[%s1] sm:$0xff]
      %v2123 = vld [vmem:[%s1 + $0x8] sm:$0xff]
      %v2124 = vld [vmem:[%s1 + $0x10] sm:$0xff]
      %v2125 = vld [vmem:[%s1 + $0x18] sm:$0xff]
      %v2126 = vld [vmem:[%s1 + $0x20] sm:$0xff]
      %v2127 = vld [vmem:[%s1 + $0x28] sm:$0xff]
      %v2128 = vld [vmem:[%s1 + $0x30] sm:$0xff]
      %v2129 = vld [vmem:[%s1 + $0x38] sm:$0xff]
      %v2130 = vld [vmem:[%s1 + $0x40] sm:$0xff]
      %vm2131 = vcmask 588800
      %v2133 = vsel %vm2131, %v2090, 0
      %v2136 = vsel %vm2131, %v2091, 0
      %v2139 = vsel %vm2131, %v2092, 0
      %v2142 = vsel %vm2131, %v2093, 0
      %v2145 = vsel %vm2131, %v2094, 0
      %v2148 = vsel %vm2131, %v2095, 0
      %v2151 = vsel %vm2131, %v2096, 0
      %v2154 = vsel %vm2131, %v2097, 0
      %v2157 = vsel %vm2131, %v2098, 0
      %v2160 = vsel %vm2131, %v2099, 0
      %v2163 = vsel %vm2131, %v2100, 0
      %v2166 = vsel %vm2131, %v2101, 0
      %v2169 = vsel %vm2131, %v2102, 0
      %v2172 = vsel %vm2131, %v2103, 0
      %v2175 = vsel %vm2131, %v2104, 0
      %v2178 = vsel %vm2131, %v2105, 0
      %v2181 = vsel %vm2131, %v2106, 0
      %v2184 = vsel %vm2131, %v2107, 0
      %v2187 = vsel %vm2131, %v2108, 0
      %v2190 = vsel %vm2131, %v2109, 0
      %v2193 = vsel %vm2131, %v2110, 0
      %v2196 = vsel %vm2131, %v2111, 0
      %v2199 = vsel %vm2131, %v2112, 0
      %v2202 = vsel %vm2131, %v2113, 0
      %v2205 = vsel %vm2131, %v2114, 0
      %v2208 = vsel %vm2131, %v2115, 0
      %v2211 = vsel %vm2131, %v2116, 0
      %v2214 = vsel %vm2131, %v2117, 0
      %v2217 = vsel %vm2131, %v2118, 0
      %v2220 = vsel %vm2131, %v2119, 0
      %v2223 = vsel %vm2131, %v2120, 0
      %v2226 = vsel %vm2131, %v2121, 0
      %2228 = vmatprep.subr.mxu0 0.0
      %2229 = vmatpush1.msra.mxu0 %v2122
      %2230 = vmatprep.subr.mxu0 0.0
      %2231 = vmatpush1.msra.mxu0 %v2123
      %2232 = vmatprep.subr.mxu0 0.0
      %2233 = vmatpush1.msra.mxu0 %v2124
      %2234 = vmatprep.subr.mxu0 0.0
      %2235 = vmatpush1.msra.mxu0 %v2125
      %2236 = vmatprep.subr.mxu0 0.0
      %2237 = vmatpush1.msra.mxu0 %v2126
      %2238 = vmatprep.subr.mxu0 0.0
      %2239 = vmatpush1.msra.mxu0 %v2127
      %2240 = vmatprep.subr.mxu0 0.0
      %2241 = vmatpush1.msra.mxu0 %v2128
      %2242 = vmatprep.subr.mxu0 0.0
      %2243 = vmatpush1.msra.mxu0 %v2129
      %2244 = vmatprep.subr.mxu0 0.0
      %2245 = vmatpush1.msra.mxu0 %v2130
      %2246 = vmatprep.subr.mxu0 0.0
      %2247 = vmatpush1.msra.mxu0 0.0
      %2248 = vmatprep.subr.mxu0 0.0
      %2249 = vmatpush1.msra.mxu0 0.0
      %2250 = vmatprep.subr.mxu0 0.0
      %2251 = vmatpush1.msra.mxu0 0.0
      %2252 = vmatprep.subr.mxu0 0.0
      %2253 = vmatpush1.msra.mxu0 0.0
      %2254 = vmatprep.subr.mxu0 0.0
      %2255 = vmatpush1.msra.mxu0 0.0
      %2256 = vmatprep.subr.mxu0 0.0
      %2257 = vmatpush1.msra.mxu0 0.0
      %2258 = vmatprep.subr.mxu0 0.0
      %2259 = vmatpush1.msra.mxu0 0.0
      %2260 = vmatprep.subr.mxu0 0.0
      %2261 = vmatpush1.msra.mxu0 0.0
      %2262 = vmatprep.subr.mxu0 0.0
      %2263 = vmatpush1.msra.mxu0 0.0
      %2264 = vmatprep.subr.mxu0 0.0
      %2265 = vmatpush1.msra.mxu0 0.0
      %2266 = vmatprep.subr.mxu0 0.0
      %2267 = vmatpush1.msra.mxu0 0.0
      %2268 = vmatprep.subr.mxu0 0.0
      %2269 = vmatpush1.msra.mxu0 0.0
      %2270 = vmatprep.subr.mxu0 0.0
      %2271 = vmatpush1.msra.mxu0 0.0
      %2272 = vmatprep.subr.mxu0 0.0
      %2273 = vmatpush1.msra.mxu0 0.0
      %2274 = vmatprep.subr.mxu0 0.0
      %2275 = vmatpush1.msra.mxu0 0.0
      %2276 = vmatprep.subr.mxu0 0.0
      %2277 = vmatpush1.msra.mxu0 0.0
      %2278 = vmatprep.subr.mxu0 0.0
      %2279 = vmatpush1.msra.mxu0 0.0
      %2280 = vmatprep.subr.mxu0 0.0
      %2281 = vmatpush1.msra.mxu0 0.0
      %2282 = vmatprep.subr.mxu0 0.0
      %2283 = vmatpush1.msra.mxu0 0.0
      %2284 = vmatprep.subr.mxu0 0.0
      %2285 = vmatpush1.msra.mxu0 0.0
      %2286 = vmatprep.subr.mxu0 0.0
      %2287 = vmatpush1.msra.mxu0 0.0
      %2288 = vmatprep.subr.mxu0 0.0
      %2289 = vmatpush1.msra.mxu0 0.0
      %2290 = vmatprep.subr.mxu0 0.0
      %2291 = vmatpush1.msra.mxu0 0.0
      %2292 = vmatprep.mubr.f32.mxu0 0.0
      %2293 = vmatmul.mubr.f32.gmra.mrb[0].mxu0 %v2133
      %v2294 = vpop.f32.mrb[0].mxu0
      %v2295 = vadd.f32 0.0, %v2294
      %v2296 = vpop.f32.mrb[0].mxu0
      %2297 = vmatprep.mubr.f32.mxu0 0.0
      %2298 = vmatmul.mubr.f32.gmra.mrb[0].mxu0 %v2136
      %v2299 = vpop.f32.mrb[0].mxu0
      %v2300 = vadd.f32 0.0, %v2299
      %v2301 = vpop.f32.mrb[0].mxu0
      %2302 = vmatprep.mubr.f32.mxu0 0.0
      %2303 = vmatmul.mubr.f32.gmra.mrb[0].mxu0 %v2139
      %v2304 = vpop.f32.mrb[0].mxu0
      %v2305 = vadd.f32 0.0, %v2304
      %v2306 = vpop.f32.mrb[0].mxu0
      %2307 = vmatprep.mubr.f32.mxu0 0.0
      %2308 = vmatmul.mubr.f32.gmra.mrb[0].mxu0 %v2142
      %v2309 = vpop.f32.mrb[0].mxu0
      %v2310 = vadd.f32 0.0, %v2309
      %v2311 = vpop.f32.mrb[0].mxu0
      %2312 = vmatprep.mubr.f32.mxu0 0.0
      %2313 = vmatmul.mubr.f32.gmra.mrb[0].mxu0 %v2145
      %v2314 = vpop.f32.mrb[0].mxu0
      %v2315 = vadd.f32 0.0, %v2314
      %v2316 = vpop.f32.mrb[0].mxu0
      %2317 = vmatprep.mubr.f32.mxu0 0.0
      %2318 = vmatmul.mubr.f32.gmra.mrb[0].mxu0 %v2148
      %v2319 = vpop.f32.mrb[0].mxu0
      %v2320 = vadd.f32 0.0, %v2319
      %v2321 = vpop.f32.mrb[0].mxu0
      %2322 = vmatprep.mubr.f32.mxu0 0.0
      %2323 = vmatmul.mubr.f32.gmra.mrb[0].mxu0 %v2151
      %v2324 = vpop.f32.mrb[0].mxu0
      %v2325 = vadd.f32 0.0, %v2324
      %v2326 = vpop.f32.mrb[0].mxu0
      %2327 = vmatprep.mubr.f32.mxu0 0.0
      %2328 = vmatmul.mubr.f32.gmra.mrb[0].mxu0 %v2154
      %v2329 = vpop.f32.mrb[0].mxu0
      %v2330 = vadd.f32 0.0, %v2329
      %v2331 = vpop.f32.mrb[0].mxu0
      %2332 = vmatprep.mubr.f32.mxu0 0.0
      %2333 = vmatmul.mubr.f32.gmra.mrb[0].mxu0 %v2157
      %v2334 = vpop.f32.mrb[0].mxu0
      %v2335 = vadd.f32 0.0, %v2334
      %v2336 = vpop.f32.mrb[0].mxu0
      %2337 = vmatprep.mubr.f32.mxu0 0.0
      %2338 = vmatmul.mubr.f32.gmra.mrb[0].mxu0 %v2160
      %v2339 = vpop.f32.mrb[0].mxu0
      %v2340 = vadd.f32 0.0, %v2339
      %v2341 = vpop.f32.mrb[0].mxu0
      %2342 = vmatprep.mubr.f32.mxu0 0.0
      %2343 = vmatmul.mubr.f32.gmra.mrb[0].mxu0 %v2163
      %v2344 = vpop.f32.mrb[0].mxu0
      %v2345 = vadd.f32 0.0, %v2344
      %v2346 = vpop.f32.mrb[0].mxu0
      %2347 = vmatprep.mubr.f32.mxu0 0.0
      %2348 = vmatmul.mubr.f32.gmra.mrb[0].mxu0 %v2166
      %v2349 = vpop.f32.mrb[0].mxu0
      %v2350 = vadd.f32 0.0, %v2349
      %v2351 = vpop.f32.mrb[0].mxu0
      %2352 = vmatprep.mubr.f32.mxu0 0.0
      %2353 = vmatmul.mubr.f32.gmra.mrb[0].mxu0 %v2169
      %v2354 = vpop.f32.mrb[0].mxu0
      %v2355 = vadd.f32 0.0, %v2354
      %v2356 = vpop.f32.mrb[0].mxu0
      %2357 = vmatprep.mubr.f32.mxu0 0.0
      %2358 = vmatmul.mubr.f32.gmra.mrb[0].mxu0 %v2172
      %v2359 = vpop.f32.mrb[0].mxu0
      %v2360 = vadd.f32 0.0, %v2359
      %v2361 = vpop.f32.mrb[0].mxu0
      %2362 = vmatprep.mubr.f32.mxu0 0.0
      %2363 = vmatmul.mubr.f32.gmra.mrb[0].mxu0 %v2175
      %v2364 = vpop.f32.mrb[0].mxu0
      %v2365 = vadd.f32 0.0, %v2364
      %v2366 = vpop.f32.mrb[0].mxu0
      %2367 = vmatprep.mubr.f32.mxu0 0.0
      %2368 = vmatmul.mubr.f32.gmra.mrb[0].mxu0 %v2178
      %v2369 = vpop.f32.mrb[0].mxu0
      %v2370 = vadd.f32 0.0, %v2369
      %v2371 = vpop.f32.mrb[0].mxu0
      %2372 = vmatprep.mubr.f32.mxu0 0.0
      %2373 = vmatmul.mubr.f32.gmra.mrb[0].mxu0 %v2181
      %v2374 = vpop.f32.mrb[0].mxu0
      %v2375 = vadd.f32 0.0, %v2374
      %v2376 = vpop.f32.mrb[0].mxu0
      %2377 = vmatprep.mubr.f32.mxu0 0.0
      %2378 = vmatmul.mubr.f32.gmra.mrb[0].mxu0 %v2184
      %v2379 = vpop.f32.mrb[0].mxu0
      %v2380 = vadd.f32 0.0, %v2379
      %v2381 = vpop.f32.mrb[0].mxu0
      %2382 = vmatprep.mubr.f32.mxu0 0.0
      %2383 = vmatmul.mubr.f32.gmra.mrb[0].mxu0 %v2187
      %v2384 = vpop.f32.mrb[0].mxu0
      %v2385 = vadd.f32 0.0, %v2384
      %v2386 = vpop.f32.mrb[0].mxu0
      %2387 = vmatprep.mubr.f32.mxu0 0.0
      %2388 = vmatmul.mubr.f32.gmra.mrb[0].mxu0 %v2190
      %v2389 = vpop.f32.mrb[0].mxu0
      %v2390 = vadd.f32 0.0, %v2389
      %v2391 = vpop.f32.mrb[0].mxu0
      %2392 = vmatprep.mubr.f32.mxu0 0.0
      %2393 = vmatmul.mubr.f32.gmra.mrb[0].mxu0 %v2193
      %v2394 = vpop.f32.mrb[0].mxu0
      %v2395 = vadd.f32 0.0, %v2394
      %v2396 = vpop.f32.mrb[0].mxu0
      %2397 = vmatprep.mubr.f32.mxu0 0.0
      %2398 = vmatmul.mubr.f32.gmra.mrb[0].mxu0 %v2196
      %v2399 = vpop.f32.mrb[0].mxu0
      %v2400 = vadd.f32 0.0, %v2399
      %v2401 = vpop.f32.mrb[0].mxu0
      %2402 = vmatprep.mubr.f32.mxu0 0.0
      %2403 = vmatmul.mubr.f32.gmra.mrb[0].mxu0 %v2199
      %v2404 = vpop.f32.mrb[0].mxu0
      %v2405 = vadd.f32 0.0, %v2404
      %v2406 = vpop.f32.mrb[0].mxu0
      %2407 = vmatprep.mubr.f32.mxu0 0.0
      %2408 = vmatmul.mubr.f32.gmra.mrb[0].mxu0 %v2202
      %v2409 = vpop.f32.mrb[0].mxu0
      %v2410 = vadd.f32 0.0, %v2409
      %v2411 = vpop.f32.mrb[0].mxu0
      %2412 = vmatprep.mubr.f32.mxu0 0.0
      %2413 = vmatmul.mubr.f32.gmra.mrb[0].mxu0 %v2205
      %v2414 = vpop.f32.mrb[0].mxu0
      %v2415 = vadd.f32 0.0, %v2414
      %v2416 = vpop.f32.mrb[0].mxu0
      %2417 = vmatprep.mubr.f32.mxu0 0.0
      %2418 = vmatmul.mubr.f32.gmra.mrb[0].mxu0 %v2208
      %v2419 = vpop.f32.mrb[0].mxu0
      %v2420 = vadd.f32 0.0, %v2419
      %v2421 = vpop.f32.mrb[0].mxu0
      %2422 = vmatprep.mubr.f32.mxu0 0.0
      %2423 = vmatmul.mubr.f32.gmra.mrb[0].mxu0 %v2211
      %v2424 = vpop.f32.mrb[0].mxu0
      %v2425 = vadd.f32 0.0, %v2424
      %v2426 = vpop.f32.mrb[0].mxu0
      %2427 = vmatprep.mubr.f32.mxu0 0.0
      %2428 = vmatmul.mubr.f32.gmra.mrb[0].mxu0 %v2214
      %v2429 = vpop.f32.mrb[0].mxu0
      %v2430 = vadd.f32 0.0, %v2429
      %v2431 = vpop.f32.mrb[0].mxu0
      %2432 = vmatprep.mubr.f32.mxu0 0.0
      %2433 = vmatmul.mubr.f32.gmra.mrb[0].mxu0 %v2217
      %v2434 = vpop.f32.mrb[0].mxu0
      %v2435 = vadd.f32 0.0, %v2434
      %v2436 = vpop.f32.mrb[0].mxu0
      %2437 = vmatprep.mubr.f32.mxu0 0.0
      %2438 = vmatmul.mubr.f32.gmra.mrb[0].mxu0 %v2220
      %v2439 = vpop.f32.mrb[0].mxu0
      %v2440 = vadd.f32 0.0, %v2439
      %v2441 = vpop.f32.mrb[0].mxu0
      %2442 = vmatprep.mubr.f32.mxu0 0.0
      %2443 = vmatmul.mubr.f32.gmra.mrb[0].mxu0 %v2223
      %v2444 = vpop.f32.mrb[0].mxu0
      %v2445 = vadd.f32 0.0, %v2444
      %v2446 = vpop.f32.mrb[0].mxu0
      %2447 = vmatprep.mubr.f32.mxu0 0.0
      %2448 = vmatmul.mubr.f32.gmra.mrb[0].mxu0 %v2226
      %v2449 = vpop.f32.mrb[0].mxu0
      %v2450 = vadd.f32 0.0, %v2449
      %v2451 = vpop.f32.mrb[0].mxu0
      %2452 = vdwg.mxu0
      %v2453 = vld [vmem:[%s2] sm:$0x1]
      %v2454 = vld [vmem:[%s3] sm:$0x1]
      %v2455 = vadd.f32 %v2295, %v2300
      %v2456 = vadd.f32 %v2455, %v2305
      %v2457 = vadd.f32 %v2456, %v2310
      %v2458 = vadd.f32 %v2457, %v2315
      %v2459 = vadd.f32 %v2458, %v2320
      %v2460 = vadd.f32 %v2459, %v2325
      %v2461 = vadd.f32 %v2460, %v2330
      %v2462 = vadd.f32 %v2461, %v2335
      %v2463 = vadd.f32 %v2462, %v2340
      %v2464 = vadd.f32 %v2463, %v2345
      %v2465 = vadd.f32 %v2464, %v2350
      %v2466 = vadd.f32 %v2465, %v2355
      %v2467 = vadd.f32 %v2466, %v2360
      %v2468 = vadd.f32 %v2467, %v2365
      %v2469 = vadd.f32 %v2468, %v2370
      %v2470 = vadd.f32 %v2469, %v2375
      %v2471 = vadd.f32 %v2470, %v2380
      %v2472 = vadd.f32 %v2471, %v2385
      %v2473 = vadd.f32 %v2472, %v2390
      %v2474 = vadd.f32 %v2473, %v2395
      %v2475 = vadd.f32 %v2474, %v2400
      %v2476 = vadd.f32 %v2475, %v2405
      %v2477 = vadd.f32 %v2476, %v2410
      %v2478 = vadd.f32 %v2477, %v2415
      %v2479 = vadd.f32 %v2478, %v2420
      %v2480 = vadd.f32 %v2479, %v2425
      %v2481 = vadd.f32 %v2480, %v2430
      %v2482 = vadd.f32 %v2481, %v2435
      %v2483 = vadd.f32 %v2482, %v2440
      %v2484 = vadd.f32 %v2483, %v2445
      %v2485 = vadd.f32 %v2484, %v2450
      %v2486 = vrot.slane %v2485, 4
      %v2487 = vadd.f32 %v2485, %v2486
      %v2488 = vrot.slane %v2487, 2
      %v2489 = vadd.f32 %v2487, %v2488
      %v2490 = vrot.slane %v2489, 1
      %v2491 = vadd.f32 %v2489, %v2490
      %v2492 = vmul.f32 %v2491, 0.00390625
      %v2493 = vsub.f32 %v2295, %v2492
      %v2494 = vsub.f32 %v2300, %v2492
      %v2495 = vsub.f32 %v2305, %v2492
      %v2496 = vsub.f32 %v2310, %v2492
      %v2497 = vsub.f32 %v2315, %v2492
      %v2498 = vsub.f32 %v2320, %v2492
      %v2499 = vsub.f32 %v2325, %v2492
      %v2500 = vsub.f32 %v2330, %v2492
      %v2501 = vsub.f32 %v2335, %v2492
      %v2502 = vsub.f32 %v2340, %v2492
      %v2503 = vsub.f32 %v2345, %v2492
      %v2504 = vsub.f32 %v2350, %v2492
      %v2505 = vsub.f32 %v2355, %v2492
      %v2506 = vsub.f32 %v2360, %v2492
      %v2507 = vsub.f32 %v2365, %v2492
      %v2508 = vsub.f32 %v2370, %v2492
      %v2509 = vsub.f32 %v2375, %v2492
      %v2510 = vsub.f32 %v2380, %v2492
      %v2511 = vsub.f32 %v2385, %v2492
      %v2512 = vsub.f32 %v2390, %v2492
      %v2513 = vsub.f32 %v2395, %v2492
      %v2514 = vsub.f32 %v2400, %v2492
      %v2515 = vsub.f32 %v2405, %v2492
      %v2516 = vsub.f32 %v2410, %v2492
      %v2517 = vsub.f32 %v2415, %v2492
      %v2518 = vsub.f32 %v2420, %v2492
      %v2519 = vsub.f32 %v2425, %v2492
      %v2520 = vsub.f32 %v2430, %v2492
      %v2521 = vsub.f32 %v2435, %v2492
      %v2522 = vsub.f32 %v2440, %v2492
      %v2523 = vsub.f32 %v2445, %v2492
      %v2524 = vsub.f32 %v2450, %v2492
      %v2525 = vmul.f32 %v2493, %v2493
      %v2526 = vmul.f32 %v2494, %v2494
      %v2527 = vmul.f32 %v2495, %v2495
      %v2528 = vmul.f32 %v2496, %v2496
      %v2529 = vmul.f32 %v2497, %v2497
      %v2530 = vmul.f32 %v2498, %v2498
      %v2531 = vmul.f32 %v2499, %v2499
      %v2532 = vmul.f32 %v2500, %v2500
      %v2533 = vmul.f32 %v2501, %v2501
      %v2534 = vmul.f32 %v2502, %v2502
      %v2535 = vmul.f32 %v2503, %v2503
      %v2536 = vmul.f32 %v2504, %v2504
      %v2537 = vmul.f32 %v2505, %v2505
      %v2538 = vmul.f32 %v2506, %v2506
      %v2539 = vmul.f32 %v2507, %v2507
      %v2540 = vmul.f32 %v2508, %v2508
      %v2541 = vmul.f32 %v2509, %v2509
      %v2542 = vmul.f32 %v2510, %v2510
      %v2543 = vmul.f32 %v2511, %v2511
      %v2544 = vmul.f32 %v2512, %v2512
      %v2545 = vmul.f32 %v2513, %v2513
      %v2546 = vmul.f32 %v2514, %v2514
      %v2547 = vmul.f32 %v2515, %v2515
      %v2548 = vmul.f32 %v2516, %v2516
      %v2549 = vmul.f32 %v2517, %v2517
      %v2550 = vmul.f32 %v2518, %v2518
      %v2551 = vmul.f32 %v2519, %v2519
      %v2552 = vmul.f32 %v2520, %v2520
      %v2553 = vmul.f32 %v2521, %v2521
      %v2554 = vmul.f32 %v2522, %v2522
      %v2555 = vmul.f32 %v2523, %v2523
      %v2556 = vmul.f32 %v2524, %v2524
      %v2557 = vadd.f32 %v2525, %v2526
      %v2558 = vadd.f32 %v2557, %v2527
      %v2559 = vadd.f32 %v2558, %v2528
      %v2560 = vadd.f32 %v2559, %v2529
      %v2561 = vadd.f32 %v2560, %v2530
      %v2562 = vadd.f32 %v2561, %v2531
      %v2563 = vadd.f32 %v2562, %v2532
      %v2564 = vadd.f32 %v2563, %v2533
      %v2565 = vadd.f32 %v2564, %v2534
      %v2566 = vadd.f32 %v2565, %v2535
      %v2567 = vadd.f32 %v2566, %v2536
      %v2568 = vadd.f32 %v2567, %v2537
      %v2569 = vadd.f32 %v2568, %v2538
      %v2570 = vadd.f32 %v2569, %v2539
      %v2571 = vadd.f32 %v2570, %v2540
      %v2572 = vadd.f32 %v2571, %v2541
      %v2573 = vadd.f32 %v2572, %v2542
      %v2574 = vadd.f32 %v2573, %v2543
      %v2575 = vadd.f32 %v2574, %v2544
      %v2576 = vadd.f32 %v2575, %v2545
      %v2577 = vadd.f32 %v2576, %v2546
      %v2578 = vadd.f32 %v2577, %v2547
      %v2579 = vadd.f32 %v2578, %v2548
      %v2580 = vadd.f32 %v2579, %v2549
      %v2581 = vadd.f32 %v2580, %v2550
      %v2582 = vadd.f32 %v2581, %v2551
      %v2583 = vadd.f32 %v2582, %v2552
      %v2584 = vadd.f32 %v2583, %v2553
      %v2585 = vadd.f32 %v2584, %v2554
      %v2586 = vadd.f32 %v2585, %v2555
      %v2587 = vadd.f32 %v2586, %v2556
      %v2588 = vrot.slane %v2587, 4
      %v2589 = vadd.f32 %v2587, %v2588
      %v2590 = vrot.slane %v2589, 2
      %v2591 = vadd.f32 %v2589, %v2590
      %v2592 = vrot.slane %v2591, 1
      %v2593 = vadd.f32 %v2591, %v2592
      %v2594 = vmul.f32 %v2593, 0.00390625
      %v2595 = vadd.f32 %v2594, 1e-05
      %v2596 = vrsqrt.pop %v2595
      %v2597 = vmul.f32 %v2453, %v2596
      %v2599 = vlaneseq
      %v2600 = vshrl.u32 %v2599, 7
      %v2601 = vsub.s32 0, %v2600
      %v2602 = vrot.slane %v2597, %v2601
      %v2604 = vmul.f32 %v2493, %v2602
      %v2605 = vmul.f32 %v2494, %v2602
      %v2606 = vmul.f32 %v2495, %v2602
      %v2607 = vmul.f32 %v2496, %v2602
      %v2608 = vmul.f32 %v2497, %v2602
      %v2609 = vmul.f32 %v2498, %v2602
      %v2610 = vmul.f32 %v2499, %v2602
      %v2611 = vmul.f32 %v2500, %v2602
      %v2612 = vmul.f32 %v2501, %v2602
      %v2613 = vmul.f32 %v2502, %v2602
      %v2614 = vmul.f32 %v2503, %v2602
      %v2615 = vmul.f32 %v2504, %v2602
      %v2616 = vmul.f32 %v2505, %v2602
      %v2617 = vmul.f32 %v2506, %v2602
      %v2618 = vmul.f32 %v2507, %v2602
      %v2619 = vmul.f32 %v2508, %v2602
      %v2620 = vmul.f32 %v2509, %v2602
      %v2621 = vmul.f32 %v2510, %v2602
      %v2622 = vmul.f32 %v2511, %v2602
      %v2623 = vmul.f32 %v2512, %v2602
      %v2624 = vmul.f32 %v2513, %v2602
      %v2625 = vmul.f32 %v2514, %v2602
      %v2626 = vmul.f32 %v2515, %v2602
      %v2627 = vmul.f32 %v2516, %v2602
      %v2628 = vmul.f32 %v2517, %v2602
      %v2629 = vmul.f32 %v2518, %v2602
      %v2630 = vmul.f32 %v2519, %v2602
      %v2631 = vmul.f32 %v2520, %v2602
      %v2632 = vmul.f32 %v2521, %v2602
      %v2633 = vmul.f32 %v2522, %v2602
      %v2634 = vmul.f32 %v2523, %v2602
      %v2635 = vmul.f32 %v2524, %v2602
      %v2637 = vlaneseq
      %v2638 = vshrl.u32 %v2637, 7
      %v2639 = vsub.s32 0, %v2638
      %v2640 = vrot.slane %v2454, %v2639
      %v2642 = vadd.f32 %v2604, %v2640
      %v2643 = vadd.f32 %v2605, %v2640
      %v2644 = vadd.f32 %v2606, %v2640
      %v2645 = vadd.f32 %v2607, %v2640
      %v2646 = vadd.f32 %v2608, %v2640
      %v2647 = vadd.f32 %v2609, %v2640
      %v2648 = vadd.f32 %v2610, %v2640
      %v2649 = vadd.f32 %v2611, %v2640
      %v2650 = vadd.f32 %v2612, %v2640
      %v2651 = vadd.f32 %v2613, %v2640
      %v2652 = vadd.f32 %v2614, %v2640
      %v2653 = vadd.f32 %v2615, %v2640
      %v2654 = vadd.f32 %v2616, %v2640
      %v2655 = vadd.f32 %v2617, %v2640
      %v2656 = vadd.f32 %v2618, %v2640
      %v2657 = vadd.f32 %v2619, %v2640
      %v2658 = vadd.f32 %v2620, %v2640
      %v2659 = vadd.f32 %v2621, %v2640
      %v2660 = vadd.f32 %v2622, %v2640
      %v2661 = vadd.f32 %v2623, %v2640
      %v2662 = vadd.f32 %v2624, %v2640
      %v2663 = vadd.f32 %v2625, %v2640
      %v2664 = vadd.f32 %v2626, %v2640
      %v2665 = vadd.f32 %v2627, %v2640
      %v2666 = vadd.f32 %v2628, %v2640
      %v2667 = vadd.f32 %v2629, %v2640
      %v2668 = vadd.f32 %v2630, %v2640
      %v2669 = vadd.f32 %v2631, %v2640
      %v2670 = vadd.f32 %v2632, %v2640
      %v2671 = vadd.f32 %v2633, %v2640
      %v2672 = vadd.f32 %v2634, %v2640
      %v2673 = vadd.f32 %v2635, %v2640
      %vm2674 = vcmp.ge.f32.partialorder %v2642, 0.0
      %vm2675 = vcmp.ge.f32.partialorder %v2643, 0.0
      %vm2676 = vcmp.ge.f32.partialorder %v2644, 0.0
      %vm2677 = vcmp.ge.f32.partialorder %v2645, 0.0
      %vm2678 = vcmp.ge.f32.partialorder %v2646, 0.0
      %vm2679 = vcmp.ge.f32.partialorder %v2647, 0.0
      %vm2680 = vcmp.ge.f32.partialorder %v2648, 0.0
      %vm2681 = vcmp.ge.f32.partialorder %v2649, 0.0
      %vm2682 = vcmp.ge.f32.partialorder %v2650, 0.0
      %vm2683 = vcmp.ge.f32.partialorder %v2651, 0.0
      %vm2684 = vcmp.ge.f32.partialorder %v2652, 0.0
      %vm2685 = vcmp.ge.f32.partialorder %v2653, 0.0
      %vm2686 = vcmp.ge.f32.partialorder %v2654, 0.0
      %vm2687 = vcmp.ge.f32.partialorder %v2655, 0.0
      %vm2688 = vcmp.ge.f32.partialorder %v2656, 0.0
      %vm2689 = vcmp.ge.f32.partialorder %v2657, 0.0
      %vm2690 = vcmp.ge.f32.partialorder %v2658, 0.0
      %vm2691 = vcmp.ge.f32.partialorder %v2659, 0.0
      %vm2692 = vcmp.ge.f32.partialorder %v2660, 0.0
      %vm2693 = vcmp.ge.f32.partialorder %v2661, 0.0
      %vm2694 = vcmp.ge.f32.partialorder %v2662, 0.0
      %vm2695 = vcmp.ge.f32.partialorder %v2663, 0.0
      %vm2696 = vcmp.ge.f32.partialorder %v2664, 0.0
      %vm2697 = vcmp.ge.f32.partialorder %v2665, 0.0
      %vm2698 = vcmp.ge.f32.partialorder %v2666, 0.0
      %vm2699 = vcmp.ge.f32.partialorder %v2667, 0.0
      %vm2700 = vcmp.ge.f32.partialorder %v2668, 0.0
      %vm2701 = vcmp.ge.f32.partialorder %v2669, 0.0
      %vm2702 = vcmp.ge.f32.partialorder %v2670, 0.0
      %vm2703 = vcmp.ge.f32.partialorder %v2671, 0.0
      %vm2704 = vcmp.ge.f32.partialorder %v2672, 0.0
      %vm2705 = vcmp.ge.f32.partialorder %v2673, 0.0
      %v2706 = vmul.f32 %v2642, 0.01
      %v2707 = vmul.f32 %v2643, 0.01
      %v2708 = vmul.f32 %v2644, 0.01
      %v2709 = vmul.f32 %v2645, 0.01
      %v2710 = vmul.f32 %v2646, 0.01
      %v2711 = vmul.f32 %v2647, 0.01
      %v2712 = vmul.f32 %v2648, 0.01
      %v2713 = vmul.f32 %v2649, 0.01
      %v2714 = vmul.f32 %v2650, 0.01
      %v2715 = vmul.f32 %v2651, 0.01
      %v2716 = vmul.f32 %v2652, 0.01
      %v2717 = vmul.f32 %v2653, 0.01
      %v2718 = vmul.f32 %v2654, 0.01
      %v2719 = vmul.f32 %v2655, 0.01
      %v2720 = vmul.f32 %v2656, 0.01
      %v2721 = vmul.f32 %v2657, 0.01
      %v2722 = vmul.f32 %v2658, 0.01
      %v2723 = vmul.f32 %v2659, 0.01
      %v2724 = vmul.f32 %v2660, 0.01
      %v2725 = vmul.f32 %v2661, 0.01
      %v2726 = vmul.f32 %v2662, 0.01
      %v2727 = vmul.f32 %v2663, 0.01
      %v2728 = vmul.f32 %v2664, 0.01
      %v2729 = vmul.f32 %v2665, 0.01
      %v2730 = vmul.f32 %v2666, 0.01
      %v2731 = vmul.f32 %v2667, 0.01
      %v2732 = vmul.f32 %v2668, 0.01
      %v2733 = vmul.f32 %v2669, 0.01
      %v2734 = vmul.f32 %v2670, 0.01
      %v2735 = vmul.f32 %v2671, 0.01
      %v2736 = vmul.f32 %v2672, 0.01
      %v2737 = vmul.f32 %v2673, 0.01
      %v2738 = vsel %vm2674, %v2642, %v2706
      %v2739 = vsel %vm2675, %v2643, %v2707
      %v2740 = vsel %vm2676, %v2644, %v2708
      %v2741 = vsel %vm2677, %v2645, %v2709
      %v2742 = vsel %vm2678, %v2646, %v2710
      %v2743 = vsel %vm2679, %v2647, %v2711
      %v2744 = vsel %vm2680, %v2648, %v2712
      %v2745 = vsel %vm2681, %v2649, %v2713
      %v2746 = vsel %vm2682, %v2650, %v2714
      %v2747 = vsel %vm2683, %v2651, %v2715
      %v2748 = vsel %vm2684, %v2652, %v2716
      %v2749 = vsel %vm2685, %v2653, %v2717
      %v2750 = vsel %vm2686, %v2654, %v2718
      %v2751 = vsel %vm2687, %v2655, %v2719
      %v2752 = vsel %vm2688, %v2656, %v2720
      %v2753 = vsel %vm2689, %v2657, %v2721
      %v2754 = vsel %vm2690, %v2658, %v2722
      %v2755 = vsel %vm2691, %v2659, %v2723
      %v2756 = vsel %vm2692, %v2660, %v2724
      %v2757 = vsel %vm2693, %v2661, %v2725
      %v2758 = vsel %vm2694, %v2662, %v2726
      %v2759 = vsel %vm2695, %v2663, %v2727
      %v2760 = vsel %vm2696, %v2664, %v2728
      %v2761 = vsel %vm2697, %v2665, %v2729
      %v2762 = vsel %vm2698, %v2666, %v2730
      %v2763 = vsel %vm2699, %v2667, %v2731
      %v2764 = vsel %vm2700, %v2668, %v2732
      %v2765 = vsel %vm2701, %v2669, %v2733
      %v2766 = vsel %vm2702, %v2670, %v2734
      %v2767 = vsel %vm2703, %v2671, %v2735
      %v2768 = vsel %vm2704, %v2672, %v2736
      %v2769 = vsel %vm2705, %v2673, %v2737
      %2770 = vst [vmem:[#allocation4] sm:$0xff] 0.0
      %2771 = vst [vmem:[#allocation4 + $0x8] sm:$0xff] 0.0
      %2772 = vst [vmem:[#allocation4 + $0x10] sm:$0x3] 0.0
      %2773 = vst [vmem:[#allocation4 + $0x18] sm:$0xff] 0.0
      %2774 = vst [vmem:[#allocation4 + $0x20] sm:$0xff] 0.0
      %2775 = vst [vmem:[#allocation4 + $0x28] sm:$0x3] 0.0
      %2776 = vst [vmem:[#allocation4 + $0x30] sm:$0xff] 0.0
      %2777 = vst [vmem:[#allocation4 + $0x38] sm:$0xff] 0.0
      %2778 = vst [vmem:[#allocation4 + $0x40] sm:$0x3] 0.0
      %2779 = vst [vmem:[#allocation4 + $0x48] sm:$0xff] 0.0
      %2780 = vst [vmem:[#allocation4 + $0x50] sm:$0xff] 0.0
      %2781 = vst [vmem:[#allocation4 + $0x58] sm:$0x3] 0.0
      %2782 = vst [vmem:[#allocation4 + $0x60] sm:$0xff] 0.0
      %2783 = vst [vmem:[#allocation4 + $0x68] sm:$0xff] 0.0
      %2784 = vst [vmem:[#allocation4 + $0x70] sm:$0x3] 0.0
      %2785 = vst [vmem:[#allocation4 + $0x78] sm:$0xff] 0.0
      %2786 = vst [vmem:[#allocation4 + $0x80] sm:$0xff] 0.0
      %2787 = vst [vmem:[#allocation4 + $0x88] sm:$0x3] 0.0
      %2788 = vst [vmem:[#allocation4 + $0x90] sm:$0xff] 0.0
      %2789 = vst [vmem:[#allocation4 + $0x98] sm:$0xff] 0.0
      %2790 = vst [vmem:[#allocation4 + $0xa0] sm:$0x3] 0.0
      %2791 = vst [vmem:[#allocation4 + $0xa8] sm:$0xff] 0.0
      %2792 = vst [vmem:[#allocation4 + $0xb0] sm:$0xff] 0.0
      %2793 = vst [vmem:[#allocation4 + $0xb8] sm:$0x3] 0.0
      %2794 = vst [vmem:[#allocation4 + $0xc0] sm:$0xff] 0.0
      %2795 = vst [vmem:[#allocation4 + $0xc8] sm:$0xff] 0.0
      %2796 = vst [vmem:[#allocation4 + $0xd0] sm:$0x3] 0.0
      %2797 = vst [vmem:[#allocation4 + $0xd8] sm:$0xff] 0.0
      %2798 = vst [vmem:[#allocation4 + $0xe0] sm:$0xff] 0.0
      %2799 = vst [vmem:[#allocation4 + $0xe8] sm:$0x3] 0.0
      %2800 = vst [vmem:[#allocation4 + $0xf0] sm:$0xff] 0.0
      %2801 = vst [vmem:[#allocation4 + $0xf8] sm:$0xff] 0.0
      %2802 = vst [vmem:[#allocation4 + $0x100] sm:$0x3] 0.0
      %2803 = vst [vmem:[#allocation4 + $0x108] sm:$0xff] 0.0
      %2804 = vst [vmem:[#allocation4 + $0x110] sm:$0xff] 0.0
      %2805 = vst [vmem:[#allocation4 + $0x118] sm:$0x3] 0.0
      %2806 = vst [vmem:[#allocation4 + $0x120] sm:$0xff] 0.0
      %2807 = vst [vmem:[#allocation4 + $0x128] sm:$0xff] 0.0
      %2808 = vst [vmem:[#allocation4 + $0x130] sm:$0x3] 0.0
      %2809 = vst [vmem:[#allocation4 + $0x138] sm:$0xff] 0.0
      %2810 = vst [vmem:[#allocation4 + $0x140] sm:$0xff] 0.0
      %2811 = vst [vmem:[#allocation4 + $0x148] sm:$0x3] 0.0
      %2812 = vst [vmem:[#allocation4 + $0x150] sm:$0xff] 0.0
      %2813 = vst [vmem:[#allocation4 + $0x158] sm:$0xff] 0.0
      %2814 = vst [vmem:[#allocation4 + $0x160] sm:$0x3] 0.0
      %2815 = vst [vmem:[#allocation4 + $0x168] sm:$0xff] 0.0
      %2816 = vst [vmem:[#allocation4 + $0x170] sm:$0xff] 0.0
      %2817 = vst [vmem:[#allocation4 + $0x178] sm:$0x3] 0.0
      %2818 = vst [vmem:[#allocation4 + $0x180] sm:$0xff] 0.0
      %2819 = vst [vmem:[#allocation4 + $0x188] sm:$0xff] 0.0
      %2820 = vst [vmem:[#allocation4 + $0x190] sm:$0x3] 0.0
      %2821 = vst [vmem:[#allocation4 + $0x198] sm:$0xff] 0.0
      %2822 = vst [vmem:[#allocation4 + $0x1a0] sm:$0xff] 0.0
      %2823 = vst [vmem:[#allocation4 + $0x1a8] sm:$0x3] 0.0
      %s2824 = scalar_lea.vmem [#allocation4], 24
      %2825 = vst [vmem:[%s2824 + $0x1] sm:$0xff] %v2738
      %2826 = vst [vmem:[%s2824 + $0x9] sm:$0xff] %v2739
      %2827 = vst [vmem:[%s2824 + $0x19] sm:$0xff] %v2740
      %2828 = vst [vmem:[%s2824 + $0x21] sm:$0xff] %v2741
      %2829 = vst [vmem:[%s2824 + $0x31] sm:$0xff] %v2742
      %2830 = vst [vmem:[%s2824 + $0x39] sm:$0xff] %v2743
      %2831 = vst [vmem:[%s2824 + $0x49] sm:$0xff] %v2744
      %2832 = vst [vmem:[%s2824 + $0x51] sm:$0xff] %v2745
      %2833 = vst [vmem:[%s2824 + $0x61] sm:$0xff] %v2746
      %2834 = vst [vmem:[%s2824 + $0x69] sm:$0xff] %v2747
      %2835 = vst [vmem:[%s2824 + $0x79] sm:$0xff] %v2748
      %2836 = vst [vmem:[%s2824 + $0x81] sm:$0xff] %v2749
      %2837 = vst [vmem:[%s2824 + $0x91] sm:$0xff] %v2750
      %2838 = vst [vmem:[%s2824 + $0x99] sm:$0xff] %v2751
      %2839 = vst [vmem:[%s2824 + $0xa9] sm:$0xff] %v2752
      %2840 = vst [vmem:[%s2824 + $0xb1] sm:$0xff] %v2753
      %2841 = vst [vmem:[%s2824 + $0xc1] sm:$0xff] %v2754
      %2842 = vst [vmem:[%s2824 + $0xc9] sm:$0xff] %v2755
      %2843 = vst [vmem:[%s2824 + $0xd9] sm:$0xff] %v2756
      %2844 = vst [vmem:[%s2824 + $0xe1] sm:$0xff] %v2757
      %2845 = vst [vmem:[%s2824 + $0xf1] sm:$0xff] %v2758
      %2846 = vst [vmem:[%s2824 + $0xf9] sm:$0xff] %v2759
      %2847 = vst [vmem:[%s2824 + $0x109] sm:$0xff] %v2760
      %2848 = vst [vmem:[%s2824 + $0x111] sm:$0xff] %v2761
      %2849 = vst [vmem:[%s2824 + $0x121] sm:$0xff] %v2762
      %2850 = vst [vmem:[%s2824 + $0x129] sm:$0xff] %v2763
      %2851 = vst [vmem:[%s2824 + $0x139] sm:$0xff] %v2764
      %2852 = vst [vmem:[%s2824 + $0x141] sm:$0xff] %v2765
      %2853 = vst [vmem:[%s2824 + $0x151] sm:$0xff] %v2766
      %2854 = vst [vmem:[%s2824 + $0x159] sm:$0xff] %v2767
      %2855 = vst [vmem:[%s2824 + $0x169] sm:$0xff] %v2768
      %2856 = vst [vmem:[%s2824 + $0x171] sm:$0xff] %v2769
      %v2857 = vld [vmem:[#allocation4] sm:$0xff]
      %v2858 = vld [vmem:[#allocation4 + $0x8] sm:$0xff]
      %v2859 = vld [vmem:[#allocation4 + $0x18] sm:$0xff]
      %v2860 = vld [vmem:[#allocation4 + $0x20] sm:$0xff]
      %v2861 = vld [vmem:[#allocation4 + $0x30] sm:$0xff]
      %v2862 = vld [vmem:[#allocation4 + $0x38] sm:$0xff]
      %v2863 = vld [vmem:[#allocation4 + $0x48] sm:$0xff]
      %v2864 = vld [vmem:[#allocation4 + $0x50] sm:$0xff]
      %v2865 = vld [vmem:[#allocation4 + $0x60] sm:$0xff]
      %v2866 = vld [vmem:[#allocation4 + $0x68] sm:$0xff]
      %v2867 = vld [vmem:[#allocation4 + $0x78] sm:$0xff]
      %v2868 = vld [vmem:[#allocation4 + $0x80] sm:$0xff]
      %v2869 = vld [vmem:[#allocation4 + $0x90] sm:$0xff]
      %v2870 = vld [vmem:[#allocation4 + $0x98] sm:$0xff]
      %v2871 = vld [vmem:[#allocation4 + $0xa8] sm:$0xff]
      %v2872 = vld [vmem:[#allocation4 + $0xb0] sm:$0xff]
      %v2873 = vld [vmem:[#allocation4 + $0xc0] sm:$0xff]
      %v2874 = vld [vmem:[#allocation4 + $0xc8] sm:$0xff]
      %v2875 = vld [vmem:[#allocation4 + $0xd8] sm:$0xff]
      %v2876 = vld [vmem:[#allocation4 + $0xe0] sm:$0xff]
      %v2877 = vld [vmem:[#allocation4 + $0xf0] sm:$0xff]
      %v2878 = vld [vmem:[#allocation4 + $0xf8] sm:$0xff]
      %v2879 = vld [vmem:[#allocation4 + $0x108] sm:$0xff]
      %v2880 = vld [vmem:[#allocation4 + $0x110] sm:$0xff]
      %v2881 = vld [vmem:[#allocation4 + $0x120] sm:$0xff]
      %v2882 = vld [vmem:[#allocation4 + $0x128] sm:$0xff]
      %v2883 = vld [vmem:[#allocation4 + $0x138] sm:$0xff]
      %v2884 = vld [vmem:[#allocation4 + $0x140] sm:$0xff]
      %v2885 = vld [vmem:[#allocation4 + $0x150] sm:$0xff]
      %v2886 = vld [vmem:[#allocation4 + $0x158] sm:$0xff]
      %v2887 = vld [vmem:[#allocation4 + $0x168] sm:$0xff]
      %v2888 = vld [vmem:[#allocation4 + $0x170] sm:$0xff]
      %2889 = vst [vmem:[#allocation5] sm:$0xff] %v2857
      %2890 = vst [vmem:[#allocation5 + $0x48] sm:$0xff] %v2858
      %2891 = vst [vmem:[#allocation5 + $0x90] sm:$0xff] %v2859
      %2892 = vst [vmem:[#allocation5 + $0xd8] sm:$0xff] %v2860
      %2893 = vst [vmem:[#allocation5 + $0x120] sm:$0xff] %v2861
      %2894 = vst [vmem:[#allocation5 + $0x168] sm:$0xff] %v2862
      %2895 = vst [vmem:[#allocation5 + $0x1b0] sm:$0xff] %v2863
      %2896 = vst [vmem:[#allocation5 + $0x1f8] sm:$0xff] %v2864
      %2897 = vst [vmem:[#allocation5 + $0x240] sm:$0xff] %v2865
      %2898 = vst [vmem:[#allocation5 + $0x288] sm:$0xff] %v2866
      %2899 = vst [vmem:[#allocation5 + $0x2d0] sm:$0xff] %v2867
      %2900 = vst [vmem:[#allocation5 + $0x318] sm:$0xff] %v2868
      %2901 = vst [vmem:[#allocation5 + $0x360] sm:$0xff] %v2869
      %2902 = vst [vmem:[#allocation5 + $0x3a8] sm:$0xff] %v2870
      %2903 = vst [vmem:[#allocation5 + $0x3f0] sm:$0xff] %v2871
      %2904 = vst [vmem:[#allocation5 + $0x438] sm:$0xff] %v2872
      %2905 = vst [vmem:[#allocation5 + $0x480] sm:$0xff] %v2873
      %2906 = vst [vmem:[#allocation5 + $0x4c8] sm:$0xff] %v2874
      %2907 = vst [vmem:[#allocation5 + $0x510] sm:$0xff] %v2875
      %2908 = vst [vmem:[#allocation5 + $0x558] sm:$0xff] %v2876
      %2909 = vst [vmem:[#allocation5 + $0x5a0] sm:$0xff] %v2877
      %2910 = vst [vmem:[#allocation5 + $0x5e8] sm:$0xff] %v2878
      %2911 = vst [vmem:[#allocation5 + $0x630] sm:$0xff] %v2879
      %2912 = vst [vmem:[#allocation5 + $0x678] sm:$0xff] %v2880
      %2913 = vst [vmem:[#allocation5 + $0x6c0] sm:$0xff] %v2881
      %2914 = vst [vmem:[#allocation5 + $0x708] sm:$0xff] %v2882
      %2915 = vst [vmem:[#allocation5 + $0x750] sm:$0xff] %v2883
      %2916 = vst [vmem:[#allocation5 + $0x798] sm:$0xff] %v2884
      %2917 = vst [vmem:[#allocation5 + $0x7e0] sm:$0xff] %v2885
      %2918 = vst [vmem:[#allocation5 + $0x828] sm:$0xff] %v2886
      %2919 = vst [vmem:[#allocation5 + $0x870] sm:$0xff] %v2887
      %2920 = vst [vmem:[#allocation5 + $0x8b8] sm:$0xff] %v2888
      %v2921 = vld [vmem:[#allocation4 + $0x1] sm:$0xff]
      %v2922 = vld [vmem:[#allocation4 + $0x9] sm:$0xff]
      %v2923 = vld [vmem:[#allocation4 + $0x19] sm:$0xff]
      %v2924 = vld [vmem:[#allocation4 + $0x21] sm:$0xff]
      %v2925 = vld [vmem:[#allocation4 + $0x31] sm:$0xff]
      %v2926 = vld [vmem:[#allocation4 + $0x39] sm:$0xff]
      %v2927 = vld [vmem:[#allocation4 + $0x49] sm:$0xff]
      %v2928 = vld [vmem:[#allocation4 + $0x51] sm:$0xff]
      %v2929 = vld [vmem:[#allocation4 + $0x61] sm:$0xff]
      %v2930 = vld [vmem:[#allocation4 + $0x69] sm:$0xff]
      %v2931 = vld [vmem:[#allocation4 + $0x79] sm:$0xff]
      %v2932 = vld [vmem:[#allocation4 + $0x81] sm:$0xff]
      %v2933 = vld [vmem:[#allocation4 + $0x91] sm:$0xff]
      %v2934 = vld [vmem:[#allocation4 + $0x99] sm:$0xff]
      %v2935 = vld [vmem:[#allocation4 + $0xa9] sm:$0xff]
      %v2936 = vld [vmem:[#allocation4 + $0xb1] sm:$0xff]
      %v2937 = vld [vmem:[#allocation4 + $0xc1] sm:$0xff]
      %v2938 = vld [vmem:[#allocation4 + $0xc9] sm:$0xff]
      %v2939 = vld [vmem:[#allocation4 + $0xd9] sm:$0xff]
      %v2940 = vld [vmem:[#allocation4 + $0xe1] sm:$0xff]
      %v2941 = vld [vmem:[#allocation4 + $0xf1] sm:$0xff]
      %v2942 = vld [vmem:[#allocation4 + $0xf9] sm:$0xff]
      %v2943 = vld [vmem:[#allocation4 + $0x109] sm:$0xff]
      %v2944 = vld [vmem:[#allocation4 + $0x111] sm:$0xff]
      %v2945 = vld [vmem:[#allocation4 + $0x121] sm:$0xff]
      %v2946 = vld [vmem:[#allocation4 + $0x129] sm:$0xff]
      %v2947 = vld [vmem:[#allocation4 + $0x139] sm:$0xff]
      %v2948 = vld [vmem:[#allocation4 + $0x141] sm:$0xff]
      %v2949 = vld [vmem:[#allocation4 + $0x151] sm:$0xff]
      %v2950 = vld [vmem:[#allocation4 + $0x159] sm:$0xff]
      %v2951 = vld [vmem:[#allocation4 + $0x169] sm:$0xff]
      %v2952 = vld [vmem:[#allocation4 + $0x171] sm:$0xff]
      %2953 = vst [vmem:[#allocation5 + $0x8] sm:$0xff] %v2921
      %2954 = vst [vmem:[#allocation5 + $0x50] sm:$0xff] %v2922
      %2955 = vst [vmem:[#allocation5 + $0x98] sm:$0xff] %v2923
      %2956 = vst [vmem:[#allocation5 + $0xe0] sm:$0xff] %v2924
      %2957 = vst [vmem:[#allocation5 + $0x128] sm:$0xff] %v2925
      %2958 = vst [vmem:[#allocation5 + $0x170] sm:$0xff] %v2926
      %2959 = vst [vmem:[#allocation5 + $0x1b8] sm:$0xff] %v2927
      %2960 = vst [vmem:[#allocation5 + $0x200] sm:$0xff] %v2928
      %2961 = vst [vmem:[#allocation5 + $0x248] sm:$0xff] %v2929
      %2962 = vst [vmem:[#allocation5 + $0x290] sm:$0xff] %v2930
      %2963 = vst [vmem:[#allocation5 + $0x2d8] sm:$0xff] %v2931
      %2964 = vst [vmem:[#allocation5 + $0x320] sm:$0xff] %v2932
      %2965 = vst [vmem:[#allocation5 + $0x368] sm:$0xff] %v2933
      %2966 = vst [vmem:[#allocation5 + $0x3b0] sm:$0xff] %v2934
      %2967 = vst [vmem:[#allocation5 + $0x3f8] sm:$0xff] %v2935
      %2968 = vst [vmem:[#allocation5 + $0x440] sm:$0xff] %v2936
      %2969 = vst [vmem:[#allocation5 + $0x488] sm:$0xff] %v2937
      %2970 = vst [vmem:[#allocation5 + $0x4d0] sm:$0xff] %v2938
      %2971 = vst [vmem:[#allocation5 + $0x518] sm:$0xff] %v2939
      %2972 = vst [vmem:[#allocation5 + $0x560] sm:$0xff] %v2940
      %2973 = vst [vmem:[#allocation5 + $0x5a8] sm:$0xff] %v2941
      %2974 = vst [vmem:[#allocation5 + $0x5f0] sm:$0xff] %v2942
      %2975 = vst [vmem:[#allocation5 + $0x638] sm:$0xff] %v2943
      %2976 = vst [vmem:[#allocation5 + $0x680] sm:$0xff] %v2944
      %2977 = vst [vmem:[#allocation5 + $0x6c8] sm:$0xff] %v2945
      %2978 = vst [vmem:[#allocation5 + $0x710] sm:$0xff] %v2946
      %2979 = vst [vmem:[#allocation5 + $0x758] sm:$0xff] %v2947
      %2980 = vst [vmem:[#allocation5 + $0x7a0] sm:$0xff] %v2948
      %2981 = vst [vmem:[#allocation5 + $0x7e8] sm:$0xff] %v2949
      %2982 = vst [vmem:[#allocation5 + $0x830] sm:$0xff] %v2950
      %2983 = vst [vmem:[#allocation5 + $0x878] sm:$0xff] %v2951
      %2984 = vst [vmem:[#allocation5 + $0x8c0] sm:$0xff] %v2952
      %v2985 = vld [vmem:[#allocation4 + $0x2] sm:$0xff]
      %v2986 = vld [vmem:[#allocation4 + $0xa] sm:$0xff]
      %v2987 = vld [vmem:[#allocation4 + $0x1a] sm:$0xff]
      %v2988 = vld [vmem:[#allocation4 + $0x22] sm:$0xff]
      %v2989 = vld [vmem:[#allocation4 + $0x32] sm:$0xff]
      %v2990 = vld [vmem:[#allocation4 + $0x3a] sm:$0xff]
      %v2991 = vld [vmem:[#allocation4 + $0x4a] sm:$0xff]
      %v2992 = vld [vmem:[#allocation4 + $0x52] sm:$0xff]
      %v2993 = vld [vmem:[#allocation4 + $0x62] sm:$0xff]
      %v2994 = vld [vmem:[#allocation4 + $0x6a] sm:$0xff]
      %v2995 = vld [vmem:[#allocation4 + $0x7a] sm:$0xff]
      %v2996 = vld [vmem:[#allocation4 + $0x82] sm:$0xff]
      %v2997 = vld [vmem:[#allocation4 + $0x92] sm:$0xff]
      %v2998 = vld [vmem:[#allocation4 + $0x9a] sm:$0xff]
      %v2999 = vld [vmem:[#allocation4 + $0xaa] sm:$0xff]
      %v3000 = vld [vmem:[#allocation4 + $0xb2] sm:$0xff]
      %v3001 = vld [vmem:[#allocation4 + $0xc2] sm:$0xff]
      %v3002 = vld [vmem:[#allocation4 + $0xca] sm:$0xff]
      %v3003 = vld [vmem:[#allocation4 + $0xda] sm:$0xff]
      %v3004 = vld [vmem:[#allocation4 + $0xe2] sm:$0xff]
      %v3005 = vld [vmem:[#allocation4 + $0xf2] sm:$0xff]
      %v3006 = vld [vmem:[#allocation4 + $0xfa] sm:$0xff]
      %v3007 = vld [vmem:[#allocation4 + $0x10a] sm:$0xff]
      %v3008 = vld [vmem:[#allocation4 + $0x112] sm:$0xff]
      %v3009 = vld [vmem:[#allocation4 + $0x122] sm:$0xff]
      %v3010 = vld [vmem:[#allocation4 + $0x12a] sm:$0xff]
      %v3011 = vld [vmem:[#allocation4 + $0x13a] sm:$0xff]
      %v3012 = vld [vmem:[#allocation4 + $0x142] sm:$0xff]
      %v3013 = vld [vmem:[#allocation4 + $0x152] sm:$0xff]
      %v3014 = vld [vmem:[#allocation4 + $0x15a] sm:$0xff]
      %v3015 = vld [vmem:[#allocation4 + $0x16a] sm:$0xff]
      %v3016 = vld [vmem:[#allocation4 + $0x172] sm:$0xff]
      %3017 = vst [vmem:[#allocation5 + $0x10] sm:$0xff] %v2985
      %3018 = vst [vmem:[#allocation5 + $0x58] sm:$0xff] %v2986
      %3019 = vst [vmem:[#allocation5 + $0xa0] sm:$0xff] %v2987
      %3020 = vst [vmem:[#allocation5 + $0xe8] sm:$0xff] %v2988
      %3021 = vst [vmem:[#allocation5 + $0x130] sm:$0xff] %v2989
      %3022 = vst [vmem:[#allocation5 + $0x178] sm:$0xff] %v2990
      %3023 = vst [vmem:[#allocation5 + $0x1c0] sm:$0xff] %v2991
      %3024 = vst [vmem:[#allocation5 + $0x208] sm:$0xff] %v2992
      %3025 = vst [vmem:[#allocation5 + $0x250] sm:$0xff] %v2993
      %3026 = vst [vmem:[#allocation5 + $0x298] sm:$0xff] %v2994
      %3027 = vst [vmem:[#allocation5 + $0x2e0] sm:$0xff] %v2995
      %3028 = vst [vmem:[#allocation5 + $0x328] sm:$0xff] %v2996
      %3029 = vst [vmem:[#allocation5 + $0x370] sm:$0xff] %v2997
      %3030 = vst [vmem:[#allocation5 + $0x3b8] sm:$0xff] %v2998
      %3031 = vst [vmem:[#allocation5 + $0x400] sm:$0xff] %v2999
      %3032 = vst [vmem:[#allocation5 + $0x448] sm:$0xff] %v3000
      %3033 = vst [vmem:[#allocation5 + $0x490] sm:$0xff] %v3001
      %3034 = vst [vmem:[#allocation5 + $0x4d8] sm:$0xff] %v3002
      %3035 = vst [vmem:[#allocation5 + $0x520] sm:$0xff] %v3003
      %3036 = vst [vmem:[#allocation5 + $0x568] sm:$0xff] %v3004
      %3037 = vst [vmem:[#allocation5 + $0x5b0] sm:$0xff] %v3005
      %3038 = vst [vmem:[#allocation5 + $0x5f8] sm:$0xff] %v3006
      %3039 = vst [vmem:[#allocation5 + $0x640] sm:$0xff] %v3007
      %3040 = vst [vmem:[#allocation5 + $0x688] sm:$0xff] %v3008
      %3041 = vst [vmem:[#allocation5 + $0x6d0] sm:$0xff] %v3009
      %3042 = vst [vmem:[#allocation5 + $0x718] sm:$0xff] %v3010
      %3043 = vst [vmem:[#allocation5 + $0x760] sm:$0xff] %v3011
      %3044 = vst [vmem:[#allocation5 + $0x7a8] sm:$0xff] %v3012
      %3045 = vst [vmem:[#allocation5 + $0x7f0] sm:$0xff] %v3013
      %3046 = vst [vmem:[#allocation5 + $0x838] sm:$0xff] %v3014
      %3047 = vst [vmem:[#allocation5 + $0x880] sm:$0xff] %v3015
      %3048 = vst [vmem:[#allocation5 + $0x8c8] sm:$0xff] %v3016
      %v3049 = vld [vmem:[%s2824] sm:$0xff]
      %v3050 = vld [vmem:[%s2824 + $0x8] sm:$0xff]
      %v3051 = vld [vmem:[%s2824 + $0x18] sm:$0xff]
      %v3052 = vld [vmem:[%s2824 + $0x20] sm:$0xff]
      %v3053 = vld [vmem:[%s2824 + $0x30] sm:$0xff]
      %v3054 = vld [vmem:[%s2824 + $0x38] sm:$0xff]
      %v3055 = vld [vmem:[%s2824 + $0x48] sm:$0xff]
      %v3056 = vld [vmem:[%s2824 + $0x50] sm:$0xff]
      %v3057 = vld [vmem:[%s2824 + $0x60] sm:$0xff]
      %v3058 = vld [vmem:[%s2824 + $0x68] sm:$0xff]
      %v3059 = vld [vmem:[%s2824 + $0x78] sm:$0xff]
      %v3060 = vld [vmem:[%s2824 + $0x80] sm:$0xff]
      %v3061 = vld [vmem:[%s2824 + $0x90] sm:$0xff]
      %v3062 = vld [vmem:[%s2824 + $0x98] sm:$0xff]
      %v3063 = vld [vmem:[%s2824 + $0xa8] sm:$0xff]
      %v3064 = vld [vmem:[%s2824 + $0xb0] sm:$0xff]
      %v3065 = vld [vmem:[%s2824 + $0xc0] sm:$0xff]
      %v3066 = vld [vmem:[%s2824 + $0xc8] sm:$0xff]
      %v3067 = vld [vmem:[%s2824 + $0xd8] sm:$0xff]
      %v3068 = vld [vmem:[%s2824 + $0xe0] sm:$0xff]
      %v3069 = vld [vmem:[%s2824 + $0xf0] sm:$0xff]
      %v3070 = vld [vmem:[%s2824 + $0xf8] sm:$0xff]
      %v3071 = vld [vmem:[%s2824 + $0x108] sm:$0xff]
      %v3072 = vld [vmem:[%s2824 + $0x110] sm:$0xff]
      %v3073 = vld [vmem:[%s2824 + $0x120] sm:$0xff]
      %v3074 = vld [vmem:[%s2824 + $0x128] sm:$0xff]
      %v3075 = vld [vmem:[%s2824 + $0x138] sm:$0xff]
      %v3076 = vld [vmem:[%s2824 + $0x140] sm:$0xff]
      %v3077 = vld [vmem:[%s2824 + $0x150] sm:$0xff]
      %v3078 = vld [vmem:[%s2824 + $0x158] sm:$0xff]
      %v3079 = vld [vmem:[%s2824 + $0x168] sm:$0xff]
      %v3080 = vld [vmem:[%s2824 + $0x170] sm:$0xff]
      %3081 = vst [vmem:[#allocation5 + $0x18] sm:$0xff] %v3049
      %3082 = vst [vmem:[#allocation5 + $0x60] sm:$0xff] %v3050
      %3083 = vst [vmem:[#allocation5 + $0xa8] sm:$0xff] %v3051
      %3084 = vst [vmem:[#allocation5 + $0xf0] sm:$0xff] %v3052
      %3085 = vst [vmem:[#allocation5 + $0x138] sm:$0xff] %v3053
      %3086 = vst [vmem:[#allocation5 + $0x180] sm:$0xff] %v3054
      %3087 = vst [vmem:[#allocation5 + $0x1c8] sm:$0xff] %v3055
      %3088 = vst [vmem:[#allocation5 + $0x210] sm:$0xff] %v3056
      %3089 = vst [vmem:[#allocation5 + $0x258] sm:$0xff] %v3057
      %3090 = vst [vmem:[#allocation5 + $0x2a0] sm:$0xff] %v3058
      %3091 = vst [vmem:[#allocation5 + $0x2e8] sm:$0xff] %v3059
      %3092 = vst [vmem:[#allocation5 + $0x330] sm:$0xff] %v3060
      %3093 = vst [vmem:[#allocation5 + $0x378] sm:$0xff] %v3061
      %3094 = vst [vmem:[#allocation5 + $0x3c0] sm:$0xff] %v3062
      %3095 = vst [vmem:[#allocation5 + $0x408] sm:$0xff] %v3063
      %3096 = vst [vmem:[#allocation5 + $0x450] sm:$0xff] %v3064
      %3097 = vst [vmem:[#allocation5 + $0x498] sm:$0xff] %v3065
      %3098 = vst [vmem:[#allocation5 + $0x4e0] sm:$0xff] %v3066
      %3099 = vst [vmem:[#allocation5 + $0x528] sm:$0xff] %v3067
      %3100 = vst [vmem:[#allocation5 + $0x570] sm:$0xff] %v3068
      %3101 = vst [vmem:[#allocation5 + $0x5b8] sm:$0xff] %v3069
      %3102 = vst [vmem:[#allocation5 + $0x600] sm:$0xff] %v3070
      %3103 = vst [vmem:[#allocation5 + $0x648] sm:$0xff] %v3071
      %3104 = vst [vmem:[#allocation5 + $0x690] sm:$0xff] %v3072
      %3105 = vst [vmem:[#allocation5 + $0x6d8] sm:$0xff] %v3073
      %3106 = vst [vmem:[#allocation5 + $0x720] sm:$0xff] %v3074
      %3107 = vst [vmem:[#allocation5 + $0x768] sm:$0xff] %v3075
      %3108 = vst [vmem:[#allocation5 + $0x7b0] sm:$0xff] %v3076
      %3109 = vst [vmem:[#allocation5 + $0x7f8] sm:$0xff] %v3077
      %3110 = vst [vmem:[#allocation5 + $0x840] sm:$0xff] %v3078
      %3111 = vst [vmem:[#allocation5 + $0x888] sm:$0xff] %v3079
      %3112 = vst [vmem:[#allocation5 + $0x8d0] sm:$0xff] %v3080
      %v3113 = vld [vmem:[%s2824 + $0x1] sm:$0xff]
      %v3114 = vld [vmem:[%s2824 + $0x9] sm:$0xff]
      %v3115 = vld [vmem:[%s2824 + $0x19] sm:$0xff]
      %v3116 = vld [vmem:[%s2824 + $0x21] sm:$0xff]
      %v3117 = vld [vmem:[%s2824 + $0x31] sm:$0xff]
      %v3118 = vld [vmem:[%s2824 + $0x39] sm:$0xff]
      %v3119 = vld [vmem:[%s2824 + $0x49] sm:$0xff]
      %v3120 = vld [vmem:[%s2824 + $0x51] sm:$0xff]
      %v3121 = vld [vmem:[%s2824 + $0x61] sm:$0xff]
      %v3122 = vld [vmem:[%s2824 + $0x69] sm:$0xff]
      %v3123 = vld [vmem:[%s2824 + $0x79] sm:$0xff]
      %v3124 = vld [vmem:[%s2824 + $0x81] sm:$0xff]
      %v3125 = vld [vmem:[%s2824 + $0x91] sm:$0xff]
      %v3126 = vld [vmem:[%s2824 + $0x99] sm:$0xff]
      %v3127 = vld [vmem:[%s2824 + $0xa9] sm:$0xff]
      %v3128 = vld [vmem:[%s2824 + $0xb1] sm:$0xff]
      %v3129 = vld [vmem:[%s2824 + $0xc1] sm:$0xff]
      %v3130 = vld [vmem:[%s2824 + $0xc9] sm:$0xff]
      %v3131 = vld [vmem:[%s2824 + $0xd9] sm:$0xff]
      %v3132 = vld [vmem:[%s2824 + $0xe1] sm:$0xff]
      %v3133 = vld [vmem:[%s2824 + $0xf1] sm:$0xff]
      %v3134 = vld [vmem:[%s2824 + $0xf9] sm:$0xff]
      %v3135 = vld [vmem:[%s2824 + $0x109] sm:$0xff]
      %v3136 = vld [vmem:[%s2824 + $0x111] sm:$0xff]
      %v3137 = vld [vmem:[%s2824 + $0x121] sm:$0xff]
      %v3138 = vld [vmem:[%s2824 + $0x129] sm:$0xff]
      %v3139 = vld [vmem:[%s2824 + $0x139] sm:$0xff]
      %v3140 = vld [vmem:[%s2824 + $0x141] sm:$0xff]
      %v3141 = vld [vmem:[%s2824 + $0x151] sm:$0xff]
      %v3142 = vld [vmem:[%s2824 + $0x159] sm:$0xff]
      %v3143 = vld [vmem:[%s2824 + $0x169] sm:$0xff]
      %v3144 = vld [vmem:[%s2824 + $0x171] sm:$0xff]
      %3145 = vst [vmem:[#allocation5 + $0x20] sm:$0xff] %v3113
      %3146 = vst [vmem:[#allocation5 + $0x68] sm:$0xff] %v3114
      %3147 = vst [vmem:[#allocation5 + $0xb0] sm:$0xff] %v3115
      %3148 = vst [vmem:[#allocation5 + $0xf8] sm:$0xff] %v3116
      %3149 = vst [vmem:[#allocation5 + $0x140] sm:$0xff] %v3117
      %3150 = vst [vmem:[#allocation5 + $0x188] sm:$0xff] %v3118
      %3151 = vst [vmem:[#allocation5 + $0x1d0] sm:$0xff] %v3119
      %3152 = vst [vmem:[#allocation5 + $0x218] sm:$0xff] %v3120
      %3153 = vst [vmem:[#allocation5 + $0x260] sm:$0xff] %v3121
      %3154 = vst [vmem:[#allocation5 + $0x2a8] sm:$0xff] %v3122
      %3155 = vst [vmem:[#allocation5 + $0x2f0] sm:$0xff] %v3123
      %3156 = vst [vmem:[#allocation5 + $0x338] sm:$0xff] %v3124
      %3157 = vst [vmem:[#allocation5 + $0x380] sm:$0xff] %v3125
      %3158 = vst [vmem:[#allocation5 + $0x3c8] sm:$0xff] %v3126
      %3159 = vst [vmem:[#allocation5 + $0x410] sm:$0xff] %v3127
      %3160 = vst [vmem:[#allocation5 + $0x458] sm:$0xff] %v3128
      %3161 = vst [vmem:[#allocation5 + $0x4a0] sm:$0xff] %v3129
      %3162 = vst [vmem:[#allocation5 + $0x4e8] sm:$0xff] %v3130
      %3163 = vst [vmem:[#allocation5 + $0x530] sm:$0xff] %v3131
      %3164 = vst [vmem:[#allocation5 + $0x578] sm:$0xff] %v3132
      %3165 = vst [vmem:[#allocation5 + $0x5c0] sm:$0xff] %v3133
      %3166 = vst [vmem:[#allocation5 + $0x608] sm:$0xff] %v3134
      %3167 = vst [vmem:[#allocation5 + $0x650] sm:$0xff] %v3135
      %3168 = vst [vmem:[#allocation5 + $0x698] sm:$0xff] %v3136
      %3169 = vst [vmem:[#allocation5 + $0x6e0] sm:$0xff] %v3137
      %3170 = vst [vmem:[#allocation5 + $0x728] sm:$0xff] %v3138
      %3171 = vst [vmem:[#allocation5 + $0x770] sm:$0xff] %v3139
      %3172 = vst [vmem:[#allocation5 + $0x7b8] sm:$0xff] %v3140
      %3173 = vst [vmem:[#allocation5 + $0x800] sm:$0xff] %v3141
      %3174 = vst [vmem:[#allocation5 + $0x848] sm:$0xff] %v3142
      %3175 = vst [vmem:[#allocation5 + $0x890] sm:$0xff] %v3143
      %3176 = vst [vmem:[#allocation5 + $0x8d8] sm:$0xff] %v3144
      %v3177 = vld [vmem:[%s2824 + $0x2] sm:$0xff]
      %v3178 = vld [vmem:[%s2824 + $0xa] sm:$0xff]
      %v3179 = vld [vmem:[%s2824 + $0x1a] sm:$0xff]
      %v3180 = vld [vmem:[%s2824 + $0x22] sm:$0xff]
      %v3181 = vld [vmem:[%s2824 + $0x32] sm:$0xff]
      %v3182 = vld [vmem:[%s2824 + $0x3a] sm:$0xff]
      %v3183 = vld [vmem:[%s2824 + $0x4a] sm:$0xff]
      %v3184 = vld [vmem:[%s2824 + $0x52] sm:$0xff]
      %v3185 = vld [vmem:[%s2824 + $0x62] sm:$0xff]
      %v3186 = vld [vmem:[%s2824 + $0x6a] sm:$0xff]
      %v3187 = vld [vmem:[%s2824 + $0x7a] sm:$0xff]
      %v3188 = vld [vmem:[%s2824 + $0x82] sm:$0xff]
      %v3189 = vld [vmem:[%s2824 + $0x92] sm:$0xff]
      %v3190 = vld [vmem:[%s2824 + $0x9a] sm:$0xff]
      %v3191 = vld [vmem:[%s2824 + $0xaa] sm:$0xff]
      %v3192 = vld [vmem:[%s2824 + $0xb2] sm:$0xff]
      %v3193 = vld [vmem:[%s2824 + $0xc2] sm:$0xff]
      %v3194 = vld [vmem:[%s2824 + $0xca] sm:$0xff]
      %v3195 = vld [vmem:[%s2824 + $0xda] sm:$0xff]
      %v3196 = vld [vmem:[%s2824 + $0xe2] sm:$0xff]
      %v3197 = vld [vmem:[%s2824 + $0xf2] sm:$0xff]
      %v3198 = vld [vmem:[%s2824 + $0xfa] sm:$0xff]
      %v3199 = vld [vmem:[%s2824 + $0x10a] sm:$0xff]
      %v3200 = vld [vmem:[%s2824 + $0x112] sm:$0xff]
      %v3201 = vld [vmem:[%s2824 + $0x122] sm:$0xff]
      %v3202 = vld [vmem:[%s2824 + $0x12a] sm:$0xff]
      %v3203 = vld [vmem:[%s2824 + $0x13a] sm:$0xff]
      %v3204 = vld [vmem:[%s2824 + $0x142] sm:$0xff]
      %v3205 = vld [vmem:[%s2824 + $0x152] sm:$0xff]
      %v3206 = vld [vmem:[%s2824 + $0x15a] sm:$0xff]
      %v3207 = vld [vmem:[%s2824 + $0x16a] sm:$0xff]
      %v3208 = vld [vmem:[%s2824 + $0x172] sm:$0xff]
      %3209 = vst [vmem:[#allocation5 + $0x28] sm:$0xff] %v3177
      %3210 = vst [vmem:[#allocation5 + $0x70] sm:$0xff] %v3178
      %3211 = vst [vmem:[#allocation5 + $0xb8] sm:$0xff] %v3179
      %3212 = vst [vmem:[#allocation5 + $0x100] sm:$0xff] %v3180
      %3213 = vst [vmem:[#allocation5 + $0x148] sm:$0xff] %v3181
      %3214 = vst [vmem:[#allocation5 + $0x190] sm:$0xff] %v3182
      %3215 = vst [vmem:[#allocation5 + $0x1d8] sm:$0xff] %v3183
      %3216 = vst [vmem:[#allocation5 + $0x220] sm:$0xff] %v3184
      %3217 = vst [vmem:[#allocation5 + $0x268] sm:$0xff] %v3185
      %3218 = vst [vmem:[#allocation5 + $0x2b0] sm:$0xff] %v3186
      %3219 = vst [vmem:[#allocation5 + $0x2f8] sm:$0xff] %v3187
      %3220 = vst [vmem:[#allocation5 + $0x340] sm:$0xff] %v3188
      %3221 = vst [vmem:[#allocation5 + $0x388] sm:$0xff] %v3189
      %3222 = vst [vmem:[#allocation5 + $0x3d0] sm:$0xff] %v3190
      %3223 = vst [vmem:[#allocation5 + $0x418] sm:$0xff] %v3191
      %3224 = vst [vmem:[#allocation5 + $0x460] sm:$0xff] %v3192
      %3225 = vst [vmem:[#allocation5 + $0x4a8] sm:$0xff] %v3193
      %3226 = vst [vmem:[#allocation5 + $0x4f0] sm:$0xff] %v3194
      %3227 = vst [vmem:[#allocation5 + $0x538] sm:$0xff] %v3195
      %3228 = vst [vmem:[#allocation5 + $0x580] sm:$0xff] %v3196
      %3229 = vst [vmem:[#allocation5 + $0x5c8] sm:$0xff] %v3197
      %3230 = vst [vmem:[#allocation5 + $0x610] sm:$0xff] %v3198
      %3231 = vst [vmem:[#allocation5 + $0x658] sm:$0xff] %v3199
      %3232 = vst [vmem:[#allocation5 + $0x6a0] sm:$0xff] %v3200
      %3233 = vst [vmem:[#allocation5 + $0x6e8] sm:$0xff] %v3201
      %3234 = vst [vmem:[#allocation5 + $0x730] sm:$0xff] %v3202
      %3235 = vst [vmem:[#allocation5 + $0x778] sm:$0xff] %v3203
      %3236 = vst [vmem:[#allocation5 + $0x7c0] sm:$0xff] %v3204
      %3237 = vst [vmem:[#allocation5 + $0x808] sm:$0xff] %v3205
      %3238 = vst [vmem:[#allocation5 + $0x850] sm:$0xff] %v3206
      %3239 = vst [vmem:[#allocation5 + $0x898] sm:$0xff] %v3207
      %3240 = vst [vmem:[#allocation5 + $0x8e0] sm:$0xff] %v3208
      %s3241 = scalar_lea.vmem [#allocation4], 48
      %v3242 = vld [vmem:[%s3241] sm:$0xff]
      %v3243 = vld [vmem:[%s3241 + $0x8] sm:$0xff]
      %v3244 = vld [vmem:[%s3241 + $0x18] sm:$0xff]
      %v3245 = vld [vmem:[%s3241 + $0x20] sm:$0xff]
      %v3246 = vld [vmem:[%s3241 + $0x30] sm:$0xff]
      %v3247 = vld [vmem:[%s3241 + $0x38] sm:$0xff]
      %v3248 = vld [vmem:[%s3241 + $0x48] sm:$0xff]
      %v3249 = vld [vmem:[%s3241 + $0x50] sm:$0xff]
      %v3250 = vld [vmem:[%s3241 + $0x60] sm:$0xff]
      %v3251 = vld [vmem:[%s3241 + $0x68] sm:$0xff]
      %v3252 = vld [vmem:[%s3241 + $0x78] sm:$0xff]
      %v3253 = vld [vmem:[%s3241 + $0x80] sm:$0xff]
      %v3254 = vld [vmem:[%s3241 + $0x90] sm:$0xff]
      %v3255 = vld [vmem:[%s3241 + $0x98] sm:$0xff]
      %v3256 = vld [vmem:[%s3241 + $0xa8] sm:$0xff]
      %v3257 = vld [vmem:[%s3241 + $0xb0] sm:$0xff]
      %v3258 = vld [vmem:[%s3241 + $0xc0] sm:$0xff]
      %v3259 = vld [vmem:[%s3241 + $0xc8] sm:$0xff]
      %v3260 = vld [vmem:[%s3241 + $0xd8] sm:$0xff]
      %v3261 = vld [vmem:[%s3241 + $0xe0] sm:$0xff]
      %v3262 = vld [vmem:[%s3241 + $0xf0] sm:$0xff]
      %v3263 = vld [vmem:[%s3241 + $0xf8] sm:$0xff]
      %v3264 = vld [vmem:[%s3241 + $0x108] sm:$0xff]
      %v3265 = vld [vmem:[%s3241 + $0x110] sm:$0xff]
      %v3266 = vld [vmem:[%s3241 + $0x120] sm:$0xff]
      %v3267 = vld [vmem:[%s3241 + $0x128] sm:$0xff]
      %v3268 = vld [vmem:[%s3241 + $0x138] sm:$0xff]
      %v3269 = vld [vmem:[%s3241 + $0x140] sm:$0xff]
      %v3270 = vld [vmem:[%s3241 + $0x150] sm:$0xff]
      %v3271 = vld [vmem:[%s3241 + $0x158] sm:$0xff]
      %v3272 = vld [vmem:[%s3241 + $0x168] sm:$0xff]
      %v3273 = vld [vmem:[%s3241 + $0x170] sm:$0xff]
      %3274 = vst [vmem:[#allocation5 + $0x30] sm:$0xff] %v3242
      %3275 = vst [vmem:[#allocation5 + $0x78] sm:$0xff] %v3243
      %3276 = vst [vmem:[#allocation5 + $0xc0] sm:$0xff] %v3244
      %3277 = vst [vmem:[#allocation5 + $0x108] sm:$0xff] %v3245
      %3278 = vst [vmem:[#allocation5 + $0x150] sm:$0xff] %v3246
      %3279 = vst [vmem:[#allocation5 + $0x198] sm:$0xff] %v3247
      %3280 = vst [vmem:[#allocation5 + $0x1e0] sm:$0xff] %v3248
      %3281 = vst [vmem:[#allocation5 + $0x228] sm:$0xff] %v3249
      %3282 = vst [vmem:[#allocation5 + $0x270] sm:$0xff] %v3250
      %3283 = vst [vmem:[#allocation5 + $0x2b8] sm:$0xff] %v3251
      %3284 = vst [vmem:[#allocation5 + $0x300] sm:$0xff] %v3252
      %3285 = vst [vmem:[#allocation5 + $0x348] sm:$0xff] %v3253
      %3286 = vst [vmem:[#allocation5 + $0x390] sm:$0xff] %v3254
      %3287 = vst [vmem:[#allocation5 + $0x3d8] sm:$0xff] %v3255
      %3288 = vst [vmem:[#allocation5 + $0x420] sm:$0xff] %v3256
      %3289 = vst [vmem:[#allocation5 + $0x468] sm:$0xff] %v3257
      %3290 = vst [vmem:[#allocation5 + $0x4b0] sm:$0xff] %v3258
      %3291 = vst [vmem:[#allocation5 + $0x4f8] sm:$0xff] %v3259
      %3292 = vst [vmem:[#allocation5 + $0x540] sm:$0xff] %v3260
      %3293 = vst [vmem:[#allocation5 + $0x588] sm:$0xff] %v3261
      %3294 = vst [vmem:[#allocation5 + $0x5d0] sm:$0xff] %v3262
      %3295 = vst [vmem:[#allocation5 + $0x618] sm:$0xff] %v3263
      %3296 = vst [vmem:[#allocation5 + $0x660] sm:$0xff] %v3264
      %3297 = vst [vmem:[#allocation5 + $0x6a8] sm:$0xff] %v3265
      %3298 = vst [vmem:[#allocation5 + $0x6f0] sm:$0xff] %v3266
      %3299 = vst [vmem:[#allocation5 + $0x738] sm:$0xff] %v3267
      %3300 = vst [vmem:[#allocation5 + $0x780] sm:$0xff] %v3268
      %3301 = vst [vmem:[#allocation5 + $0x7c8] sm:$0xff] %v3269
      %3302 = vst [vmem:[#allocation5 + $0x810] sm:$0xff] %v3270
      %3303 = vst [vmem:[#allocation5 + $0x858] sm:$0xff] %v3271
      %3304 = vst [vmem:[#allocation5 + $0x8a0] sm:$0xff] %v3272
      %3305 = vst [vmem:[#allocation5 + $0x8e8] sm:$0xff] %v3273
      %v3306 = vld [vmem:[%s3241 + $0x1] sm:$0xff]
      %v3307 = vld [vmem:[%s3241 + $0x9] sm:$0xff]
      %v3308 = vld [vmem:[%s3241 + $0x19] sm:$0xff]
      %v3309 = vld [vmem:[%s3241 + $0x21] sm:$0xff]
      %v3310 = vld [vmem:[%s3241 + $0x31] sm:$0xff]
      %v3311 = vld [vmem:[%s3241 + $0x39] sm:$0xff]
      %v3312 = vld [vmem:[%s3241 + $0x49] sm:$0xff]
      %v3313 = vld [vmem:[%s3241 + $0x51] sm:$0xff]
      %v3314 = vld [vmem:[%s3241 + $0x61] sm:$0xff]
      %v3315 = vld [vmem:[%s3241 + $0x69] sm:$0xff]
      %v3316 = vld [vmem:[%s3241 + $0x79] sm:$0xff]
      %v3317 = vld [vmem:[%s3241 + $0x81] sm:$0xff]
      %v3318 = vld [vmem:[%s3241 + $0x91] sm:$0xff]
      %v3319 = vld [vmem:[%s3241 + $0x99] sm:$0xff]
      %v3320 = vld [vmem:[%s3241 + $0xa9] sm:$0xff]
      %v3321 = vld [vmem:[%s3241 + $0xb1] sm:$0xff]
      %v3322 = vld [vmem:[%s3241 + $0xc1] sm:$0xff]
      %v3323 = vld [vmem:[%s3241 + $0xc9] sm:$0xff]
      %v3324 = vld [vmem:[%s3241 + $0xd9] sm:$0xff]
      %v3325 = vld [vmem:[%s3241 + $0xe1] sm:$0xff]
      %v3326 = vld [vmem:[%s3241 + $0xf1] sm:$0xff]
      %v3327 = vld [vmem:[%s3241 + $0xf9] sm:$0xff]
      %v3328 = vld [vmem:[%s3241 + $0x109] sm:$0xff]
      %v3329 = vld [vmem:[%s3241 + $0x111] sm:$0xff]
      %v3330 = vld [vmem:[%s3241 + $0x121] sm:$0xff]
      %v3331 = vld [vmem:[%s3241 + $0x129] sm:$0xff]
      %v3332 = vld [vmem:[%s3241 + $0x139] sm:$0xff]
      %v3333 = vld [vmem:[%s3241 + $0x141] sm:$0xff]
      %v3334 = vld [vmem:[%s3241 + $0x151] sm:$0xff]
      %v3335 = vld [vmem:[%s3241 + $0x159] sm:$0xff]
      %v3336 = vld [vmem:[%s3241 + $0x169] sm:$0xff]
      %v3337 = vld [vmem:[%s3241 + $0x171] sm:$0xff]
      %3338 = vst [vmem:[#allocation5 + $0x38] sm:$0xff] %v3306
      %3339 = vst [vmem:[#allocation5 + $0x80] sm:$0xff] %v3307
      %3340 = vst [vmem:[#allocation5 + $0xc8] sm:$0xff] %v3308
      %3341 = vst [vmem:[#allocation5 + $0x110] sm:$0xff] %v3309
      %3342 = vst [vmem:[#allocation5 + $0x158] sm:$0xff] %v3310
      %3343 = vst [vmem:[#allocation5 + $0x1a0] sm:$0xff] %v3311
      %3344 = vst [vmem:[#allocation5 + $0x1e8] sm:$0xff] %v3312
      %3345 = vst [vmem:[#allocation5 + $0x230] sm:$0xff] %v3313
      %3346 = vst [vmem:[#allocation5 + $0x278] sm:$0xff] %v3314
      %3347 = vst [vmem:[#allocation5 + $0x2c0] sm:$0xff] %v3315
      %3348 = vst [vmem:[#allocation5 + $0x308] sm:$0xff] %v3316
      %3349 = vst [vmem:[#allocation5 + $0x350] sm:$0xff] %v3317
      %3350 = vst [vmem:[#allocation5 + $0x398] sm:$0xff] %v3318
      %3351 = vst [vmem:[#allocation5 + $0x3e0] sm:$0xff] %v3319
      %3352 = vst [vmem:[#allocation5 + $0x428] sm:$0xff] %v3320
      %3353 = vst [vmem:[#allocation5 + $0x470] sm:$0xff] %v3321
      %3354 = vst [vmem:[#allocation5 + $0x4b8] sm:$0xff] %v3322
      %3355 = vst [vmem:[#allocation5 + $0x500] sm:$0xff] %v3323
      %3356 = vst [vmem:[#allocation5 + $0x548] sm:$0xff] %v3324
      %3357 = vst [vmem:[#allocation5 + $0x590] sm:$0xff] %v3325
      %3358 = vst [vmem:[#allocation5 + $0x5d8] sm:$0xff] %v3326
      %3359 = vst [vmem:[#allocation5 + $0x620] sm:$0xff] %v3327
      %3360 = vst [vmem:[#allocation5 + $0x668] sm:$0xff] %v3328
      %3361 = vst [vmem:[#allocation5 + $0x6b0] sm:$0xff] %v3329
      %3362 = vst [vmem:[#allocation5 + $0x6f8] sm:$0xff] %v3330
      %3363 = vst [vmem:[#allocation5 + $0x740] sm:$0xff] %v3331
      %3364 = vst [vmem:[#allocation5 + $0x788] sm:$0xff] %v3332
      %3365 = vst [vmem:[#allocation5 + $0x7d0] sm:$0xff] %v3333
      %3366 = vst [vmem:[#allocation5 + $0x818] sm:$0xff] %v3334
      %3367 = vst [vmem:[#allocation5 + $0x860] sm:$0xff] %v3335
      %3368 = vst [vmem:[#allocation5 + $0x8a8] sm:$0xff] %v3336
      %3369 = vst [vmem:[#allocation5 + $0x8f0] sm:$0xff] %v3337
      %v3370 = vld [vmem:[%s3241 + $0x2] sm:$0xff]
      %v3371 = vld [vmem:[%s3241 + $0xa] sm:$0xff]
      %v3372 = vld [vmem:[%s3241 + $0x1a] sm:$0xff]
      %v3373 = vld [vmem:[%s3241 + $0x22] sm:$0xff]
      %v3374 = vld [vmem:[%s3241 + $0x32] sm:$0xff]
      %v3375 = vld [vmem:[%s3241 + $0x3a] sm:$0xff]
      %v3376 = vld [vmem:[%s3241 + $0x4a] sm:$0xff]
      %v3377 = vld [vmem:[%s3241 + $0x52] sm:$0xff]
      %v3378 = vld [vmem:[%s3241 + $0x62] sm:$0xff]
      %v3379 = vld [vmem:[%s3241 + $0x6a] sm:$0xff]
      %v3380 = vld [vmem:[%s3241 + $0x7a] sm:$0xff]
      %v3381 = vld [vmem:[%s3241 + $0x82] sm:$0xff]
      %v3382 = vld [vmem:[%s3241 + $0x92] sm:$0xff]
      %v3383 = vld [vmem:[%s3241 + $0x9a] sm:$0xff]
      %v3384 = vld [vmem:[%s3241 + $0xaa] sm:$0xff]
      %v3385 = vld [vmem:[%s3241 + $0xb2] sm:$0xff]
      %v3386 = vld [vmem:[%s3241 + $0xc2] sm:$0xff]
      %v3387 = vld [vmem:[%s3241 + $0xca] sm:$0xff]
      %v3388 = vld [vmem:[%s3241 + $0xda] sm:$0xff]
      %v3389 = vld [vmem:[%s3241 + $0xe2] sm:$0xff]
      %v3390 = vld [vmem:[%s3241 + $0xf2] sm:$0xff]
      %v3391 = vld [vmem:[%s3241 + $0xfa] sm:$0xff]
      %v3392 = vld [vmem:[%s3241 + $0x10a] sm:$0xff]
      %v3393 = vld [vmem:[%s3241 + $0x112] sm:$0xff]
      %v3394 = vld [vmem:[%s3241 + $0x122] sm:$0xff]
      %v3395 = vld [vmem:[%s3241 + $0x12a] sm:$0xff]
      %v3396 = vld [vmem:[%s3241 + $0x13a] sm:$0xff]
      %v3397 = vld [vmem:[%s3241 + $0x142] sm:$0xff]
      %v3398 = vld [vmem:[%s3241 + $0x152] sm:$0xff]
      %v3399 = vld [vmem:[%s3241 + $0x15a] sm:$0xff]
      %v3400 = vld [vmem:[%s3241 + $0x16a] sm:$0xff]
      %v3401 = vld [vmem:[%s3241 + $0x172] sm:$0xff]
      %3402 = vst [vmem:[#allocation5 + $0x40] sm:$0xff] %v3370
      %3403 = vst [vmem:[#allocation5 + $0x88] sm:$0xff] %v3371
      %3404 = vst [vmem:[#allocation5 + $0xd0] sm:$0xff] %v3372
      %3405 = vst [vmem:[#allocation5 + $0x118] sm:$0xff] %v3373
      %3406 = vst [vmem:[#allocation5 + $0x160] sm:$0xff] %v3374
      %3407 = vst [vmem:[#allocation5 + $0x1a8] sm:$0xff] %v3375
      %3408 = vst [vmem:[#allocation5 + $0x1f0] sm:$0xff] %v3376
      %3409 = vst [vmem:[#allocation5 + $0x238] sm:$0xff] %v3377
      %3410 = vst [vmem:[#allocation5 + $0x280] sm:$0xff] %v3378
      %3411 = vst [vmem:[#allocation5 + $0x2c8] sm:$0xff] %v3379
      %3412 = vst [vmem:[#allocation5 + $0x310] sm:$0xff] %v3380
      %3413 = vst [vmem:[#allocation5 + $0x358] sm:$0xff] %v3381
      %3414 = vst [vmem:[#allocation5 + $0x3a0] sm:$0xff] %v3382
      %3415 = vst [vmem:[#allocation5 + $0x3e8] sm:$0xff] %v3383
      %3416 = vst [vmem:[#allocation5 + $0x430] sm:$0xff] %v3384
      %3417 = vst [vmem:[#allocation5 + $0x478] sm:$0xff] %v3385
      %3418 = vst [vmem:[#allocation5 + $0x4c0] sm:$0xff] %v3386
      %3419 = vst [vmem:[#allocation5 + $0x508] sm:$0xff] %v3387
      %3420 = vst [vmem:[#allocation5 + $0x550] sm:$0xff] %v3388
      %3421 = vst [vmem:[#allocation5 + $0x598] sm:$0xff] %v3389
      %3422 = vst [vmem:[#allocation5 + $0x5e0] sm:$0xff] %v3390
      %3423 = vst [vmem:[#allocation5 + $0x628] sm:$0xff] %v3391
      %3424 = vst [vmem:[#allocation5 + $0x670] sm:$0xff] %v3392
      %3425 = vst [vmem:[#allocation5 + $0x6b8] sm:$0xff] %v3393
      %3426 = vst [vmem:[#allocation5 + $0x700] sm:$0xff] %v3394
      %3427 = vst [vmem:[#allocation5 + $0x748] sm:$0xff] %v3395
      %3428 = vst [vmem:[#allocation5 + $0x790] sm:$0xff] %v3396
      %3429 = vst [vmem:[#allocation5 + $0x7d8] sm:$0xff] %v3397
      %3430 = vst [vmem:[#allocation5 + $0x820] sm:$0xff] %v3398
      %3431 = vst [vmem:[#allocation5 + $0x868] sm:$0xff] %v3399
      %3432 = vst [vmem:[#allocation5 + $0x8b0] sm:$0xff] %v3400
      %3433 = vst [vmem:[#allocation5 + $0x8f8] sm:$0xff] %v3401
      %v3434 = vld [vmem:[#allocation5] sm:$0xff]
      %v3435 = vld [vmem:[#allocation5 + $0x8] sm:$0xff]
      %v3436 = vld [vmem:[#allocation5 + $0x10] sm:$0xff]
      %v3437 = vld [vmem:[#allocation5 + $0x18] sm:$0xff]
      %v3438 = vld [vmem:[#allocation5 + $0x20] sm:$0xff]
      %v3439 = vld [vmem:[#allocation5 + $0x28] sm:$0xff]
      %v3440 = vld [vmem:[#allocation5 + $0x30] sm:$0xff]
      %v3441 = vld [vmem:[#allocation5 + $0x38] sm:$0xff]
      %v3442 = vld [vmem:[#allocation5 + $0x40] sm:$0xff]
      %v3443 = vld [vmem:[#allocation5 + $0x48] sm:$0xff]
      %v3444 = vld [vmem:[#allocation5 + $0x50] sm:$0xff]
      %v3445 = vld [vmem:[#allocation5 + $0x58] sm:$0xff]
      %v3446 = vld [vmem:[#allocation5 + $0x60] sm:$0xff]
      %v3447 = vld [vmem:[#allocation5 + $0x68] sm:$0xff]
      %v3448 = vld [vmem:[#allocation5 + $0x70] sm:$0xff]
      %v3449 = vld [vmem:[#allocation5 + $0x78] sm:$0xff]
      %v3450 = vld [vmem:[#allocation5 + $0x80] sm:$0xff]
      %v3451 = vld [vmem:[#allocation5 + $0x88] sm:$0xff]
      %v3452 = vld [vmem:[#allocation5 + $0x90] sm:$0xff]
      %v3453 = vld [vmem:[#allocation5 + $0x98] sm:$0xff]
      %v3454 = vld [vmem:[#allocation5 + $0xa0] sm:$0xff]
      %v3455 = vld [vmem:[#allocation5 + $0xa8] sm:$0xff]
      %v3456 = vld [vmem:[#allocation5 + $0xb0] sm:$0xff]
      %v3457 = vld [vmem:[#allocation5 + $0xb8] sm:$0xff]
      %v3458 = vld [vmem:[#allocation5 + $0xc0] sm:$0xff]
      %v3459 = vld [vmem:[#allocation5 + $0xc8] sm:$0xff]
      %v3460 = vld [vmem:[#allocation5 + $0xd0] sm:$0xff]
      %v3461 = vld [vmem:[#allocation5 + $0xd8] sm:$0xff]
      %v3462 = vld [vmem:[#allocation5 + $0xe0] sm:$0xff]
      %v3463 = vld [vmem:[#allocation5 + $0xe8] sm:$0xff]
      %v3464 = vld [vmem:[#allocation5 + $0xf0] sm:$0xff]
      %v3465 = vld [vmem:[#allocation5 + $0xf8] sm:$0xff]
      %v3466 = vld [vmem:[#allocation5 + $0x100] sm:$0xff]
      %v3467 = vld [vmem:[#allocation5 + $0x108] sm:$0xff]
      %v3468 = vld [vmem:[#allocation5 + $0x110] sm:$0xff]
      %v3469 = vld [vmem:[#allocation5 + $0x118] sm:$0xff]
      %v3470 = vld [vmem:[#allocation5 + $0x120] sm:$0xff]
      %v3471 = vld [vmem:[#allocation5 + $0x128] sm:$0xff]
      %v3472 = vld [vmem:[#allocation5 + $0x130] sm:$0xff]
      %v3473 = vld [vmem:[#allocation5 + $0x138] sm:$0xff]
      %v3474 = vld [vmem:[#allocation5 + $0x140] sm:$0xff]
      %v3475 = vld [vmem:[#allocation5 + $0x148] sm:$0xff]
      %v3476 = vld [vmem:[#allocation5 + $0x150] sm:$0xff]
      %v3477 = vld [vmem:[#allocation5 + $0x158] sm:$0xff]
      %v3478 = vld [vmem:[#allocation5 + $0x160] sm:$0xff]
      %v3479 = vld [vmem:[#allocation5 + $0x168] sm:$0xff]
      %v3480 = vld [vmem:[#allocation5 + $0x170] sm:$0xff]
      %v3481 = vld [vmem:[#allocation5 + $0x178] sm:$0xff]
      %v3482 = vld [vmem:[#allocation5 + $0x180] sm:$0xff]
      %v3483 = vld [vmem:[#allocation5 + $0x188] sm:$0xff]
      %v3484 = vld [vmem:[#allocation5 + $0x190] sm:$0xff]
      %v3485 = vld [vmem:[#allocation5 + $0x198] sm:$0xff]
      %v3486 = vld [vmem:[#allocation5 + $0x1a0] sm:$0xff]
      %v3487 = vld [vmem:[#allocation5 + $0x1a8] sm:$0xff]
      %v3488 = vld [vmem:[#allocation5 + $0x1b0] sm:$0xff]
      %v3489 = vld [vmem:[#allocation5 + $0x1b8] sm:$0xff]
      %v3490 = vld [vmem:[#allocation5 + $0x1c0] sm:$0xff]
      %v3491 = vld [vmem:[#allocation5 + $0x1c8] sm:$0xff]
      %v3492 = vld [vmem:[#allocation5 + $0x1d0] sm:$0xff]
      %v3493 = vld [vmem:[#allocation5 + $0x1d8] sm:$0xff]
      %v3494 = vld [vmem:[#allocation5 + $0x1e0] sm:$0xff]
      %v3495 = vld [vmem:[#allocation5 + $0x1e8] sm:$0xff]
      %v3496 = vld [vmem:[#allocation5 + $0x1f0] sm:$0xff]
      %v3497 = vld [vmem:[#allocation5 + $0x1f8] sm:$0xff]
      %v3498 = vld [vmem:[#allocation5 + $0x200] sm:$0xff]
      %v3499 = vld [vmem:[#allocation5 + $0x208] sm:$0xff]
      %v3500 = vld [vmem:[#allocation5 + $0x210] sm:$0xff]
      %v3501 = vld [vmem:[#allocation5 + $0x218] sm:$0xff]
      %v3502 = vld [vmem:[#allocation5 + $0x220] sm:$0xff]
      %v3503 = vld [vmem:[#allocation5 + $0x228] sm:$0xff]
      %v3504 = vld [vmem:[#allocation5 + $0x230] sm:$0xff]
      %v3505 = vld [vmem:[#allocation5 + $0x238] sm:$0xff]
      %v3506 = vld [vmem:[#allocation5 + $0x240] sm:$0xff]
      %v3507 = vld [vmem:[#allocation5 + $0x248] sm:$0xff]
      %v3508 = vld [vmem:[#allocation5 + $0x250] sm:$0xff]
      %v3509 = vld [vmem:[#allocation5 + $0x258] sm:$0xff]
      %v3510 = vld [vmem:[#allocation5 + $0x260] sm:$0xff]
      %v3511 = vld [vmem:[#allocation5 + $0x268] sm:$0xff]
      %v3512 = vld [vmem:[#allocation5 + $0x270] sm:$0xff]
      %v3513 = vld [vmem:[#allocation5 + $0x278] sm:$0xff]
      %v3514 = vld [vmem:[#allocation5 + $0x280] sm:$0xff]
      %v3515 = vld [vmem:[#allocation5 + $0x288] sm:$0xff]
      %v3516 = vld [vmem:[#allocation5 + $0x290] sm:$0xff]
      %v3517 = vld [vmem:[#allocation5 + $0x298] sm:$0xff]
      %v3518 = vld [vmem:[#allocation5 + $0x2a0] sm:$0xff]
      %v3519 = vld [vmem:[#allocation5 + $0x2a8] sm:$0xff]
      %v3520 = vld [vmem:[#allocation5 + $0x2b0] sm:$0xff]
      %v3521 = vld [vmem:[#allocation5 + $0x2b8] sm:$0xff]
      %v3522 = vld [vmem:[#allocation5 + $0x2c0] sm:$0xff]
      %v3523 = vld [vmem:[#allocation5 + $0x2c8] sm:$0xff]
      %v3524 = vld [vmem:[#allocation5 + $0x2d0] sm:$0xff]
      %v3525 = vld [vmem:[#allocation5 + $0x2d8] sm:$0xff]
      %v3526 = vld [vmem:[#allocation5 + $0x2e0] sm:$0xff]
      %v3527 = vld [vmem:[#allocation5 + $0x2e8] sm:$0xff]
      %v3528 = vld [vmem:[#allocation5 + $0x2f0] sm:$0xff]
      %v3529 = vld [vmem:[#allocation5 + $0x2f8] sm:$0xff]
      %v3530 = vld [vmem:[#allocation5 + $0x300] sm:$0xff]
      %v3531 = vld [vmem:[#allocation5 + $0x308] sm:$0xff]
      %v3532 = vld [vmem:[#allocation5 + $0x310] sm:$0xff]
      %v3533 = vld [vmem:[#allocation5 + $0x318] sm:$0xff]
      %v3534 = vld [vmem:[#allocation5 + $0x320] sm:$0xff]
      %v3535 = vld [vmem:[#allocation5 + $0x328] sm:$0xff]
      %v3536 = vld [vmem:[#allocation5 + $0x330] sm:$0xff]
      %v3537 = vld [vmem:[#allocation5 + $0x338] sm:$0xff]
      %v3538 = vld [vmem:[#allocation5 + $0x340] sm:$0xff]
      %v3539 = vld [vmem:[#allocation5 + $0x348] sm:$0xff]
      %v3540 = vld [vmem:[#allocation5 + $0x350] sm:$0xff]
      %v3541 = vld [vmem:[#allocation5 + $0x358] sm:$0xff]
      %v3542 = vld [vmem:[#allocation5 + $0x360] sm:$0xff]
      %v3543 = vld [vmem:[#allocation5 + $0x368] sm:$0xff]
      %v3544 = vld [vmem:[#allocation5 + $0x370] sm:$0xff]
      %v3545 = vld [vmem:[#allocation5 + $0x378] sm:$0xff]
      %v3546 = vld [vmem:[#allocation5 + $0x380] sm:$0xff]
      %v3547 = vld [vmem:[#allocation5 + $0x388] sm:$0xff]
      %v3548 = vld [vmem:[#allocation5 + $0x390] sm:$0xff]
      %v3549 = vld [vmem:[#allocation5 + $0x398] sm:$0xff]
      %v3550 = vld [vmem:[#allocation5 + $0x3a0] sm:$0xff]
      %v3551 = vld [vmem:[#allocation5 + $0x3a8] sm:$0xff]
      %v3552 = vld [vmem:[#allocation5 + $0x3b0] sm:$0xff]
      %v3553 = vld [vmem:[#allocation5 + $0x3b8] sm:$0xff]
      %v3554 = vld [vmem:[#allocation5 + $0x3c0] sm:$0xff]
      %v3555 = vld [vmem:[#allocation5 + $0x3c8] sm:$0xff]
      %v3556 = vld [vmem:[#allocation5 + $0x3d0] sm:$0xff]
      %v3557 = vld [vmem:[#allocation5 + $0x3d8] sm:$0xff]
      %v3558 = vld [vmem:[#allocation5 + $0x3e0] sm:$0xff]
      %v3559 = vld [vmem:[#allocation5 + $0x3e8] sm:$0xff]
      %v3560 = vld [vmem:[#allocation5 + $0x3f0] sm:$0xff]
      %v3561 = vld [vmem:[#allocation5 + $0x3f8] sm:$0xff]
      %v3562 = vld [vmem:[#allocation5 + $0x400] sm:$0xff]
      %v3563 = vld [vmem:[#allocation5 + $0x408] sm:$0xff]
      %v3564 = vld [vmem:[#allocation5 + $0x410] sm:$0xff]
      %v3565 = vld [vmem:[#allocation5 + $0x418] sm:$0xff]
      %v3566 = vld [vmem:[#allocation5 + $0x420] sm:$0xff]
      %v3567 = vld [vmem:[#allocation5 + $0x428] sm:$0xff]
      %v3568 = vld [vmem:[#allocation5 + $0x430] sm:$0xff]
      %v3569 = vld [vmem:[#allocation5 + $0x438] sm:$0xff]
      %v3570 = vld [vmem:[#allocation5 + $0x440] sm:$0xff]
      %v3571 = vld [vmem:[#allocation5 + $0x448] sm:$0xff]
      %v3572 = vld [vmem:[#allocation5 + $0x450] sm:$0xff]
      %v3573 = vld [vmem:[#allocation5 + $0x458] sm:$0xff]
      %v3574 = vld [vmem:[#allocation5 + $0x460] sm:$0xff]
      %v3575 = vld [vmem:[#allocation5 + $0x468] sm:$0xff]
      %v3576 = vld [vmem:[#allocation5 + $0x470] sm:$0xff]
      %v3577 = vld [vmem:[#allocation5 + $0x478] sm:$0xff]
      %v3578 = vld [vmem:[#allocation5 + $0x480] sm:$0xff]
      %v3579 = vld [vmem:[#allocation5 + $0x488] sm:$0xff]
      %v3580 = vld [vmem:[#allocation5 + $0x490] sm:$0xff]
      %v3581 = vld [vmem:[#allocation5 + $0x498] sm:$0xff]
      %v3582 = vld [vmem:[#allocation5 + $0x4a0] sm:$0xff]
      %v3583 = vld [vmem:[#allocation5 + $0x4a8] sm:$0xff]
      %v3584 = vld [vmem:[#allocation5 + $0x4b0] sm:$0xff]
      %v3585 = vld [vmem:[#allocation5 + $0x4b8] sm:$0xff]
      %v3586 = vld [vmem:[#allocation5 + $0x4c0] sm:$0xff]
      %v3587 = vld [vmem:[#allocation5 + $0x4c8] sm:$0xff]
      %v3588 = vld [vmem:[#allocation5 + $0x4d0] sm:$0xff]
      %v3589 = vld [vmem:[#allocation5 + $0x4d8] sm:$0xff]
      %v3590 = vld [vmem:[#allocation5 + $0x4e0] sm:$0xff]
      %v3591 = vld [vmem:[#allocation5 + $0x4e8] sm:$0xff]
      %v3592 = vld [vmem:[#allocation5 + $0x4f0] sm:$0xff]
      %v3593 = vld [vmem:[#allocation5 + $0x4f8] sm:$0xff]
      %v3594 = vld [vmem:[#allocation5 + $0x500] sm:$0xff]
      %v3595 = vld [vmem:[#allocation5 + $0x508] sm:$0xff]
      %v3596 = vld [vmem:[#allocation5 + $0x510] sm:$0xff]
      %v3597 = vld [vmem:[#allocation5 + $0x518] sm:$0xff]
      %v3598 = vld [vmem:[#allocation5 + $0x520] sm:$0xff]
      %v3599 = vld [vmem:[#allocation5 + $0x528] sm:$0xff]
      %v3600 = vld [vmem:[#allocation5 + $0x530] sm:$0xff]
      %v3601 = vld [vmem:[#allocation5 + $0x538] sm:$0xff]
      %v3602 = vld [vmem:[#allocation5 + $0x540] sm:$0xff]
      %v3603 = vld [vmem:[#allocation5 + $0x548] sm:$0xff]
      %v3604 = vld [vmem:[#allocation5 + $0x550] sm:$0xff]
      %v3605 = vld [vmem:[#allocation5 + $0x558] sm:$0xff]
      %v3606 = vld [vmem:[#allocation5 + $0x560] sm:$0xff]
      %v3607 = vld [vmem:[#allocation5 + $0x568] sm:$0xff]
      %v3608 = vld [vmem:[#allocation5 + $0x570] sm:$0xff]
      %v3609 = vld [vmem:[#allocation5 + $0x578] sm:$0xff]
      %v3610 = vld [vmem:[#allocation5 + $0x580] sm:$0xff]
      %v3611 = vld [vmem:[#allocation5 + $0x588] sm:$0xff]
      %v3612 = vld [vmem:[#allocation5 + $0x590] sm:$0xff]
      %v3613 = vld [vmem:[#allocation5 + $0x598] sm:$0xff]
      %v3614 = vld [vmem:[#allocation5 + $0x5a0] sm:$0xff]
      %v3615 = vld [vmem:[#allocation5 + $0x5a8] sm:$0xff]
      %v3616 = vld [vmem:[#allocation5 + $0x5b0] sm:$0xff]
      %v3617 = vld [vmem:[#allocation5 + $0x5b8] sm:$0xff]
      %v3618 = vld [vmem:[#allocation5 + $0x5c0] sm:$0xff]
      %v3619 = vld [vmem:[#allocation5 + $0x5c8] sm:$0xff]
      %v3620 = vld [vmem:[#allocation5 + $0x5d0] sm:$0xff]
      %v3621 = vld [vmem:[#allocation5 + $0x5d8] sm:$0xff]
      %v3622 = vld [vmem:[#allocation5 + $0x5e0] sm:$0xff]
      %v3623 = vld [vmem:[#allocation5 + $0x5e8] sm:$0xff]
      %v3624 = vld [vmem:[#allocation5 + $0x5f0] sm:$0xff]
      %v3625 = vld [vmem:[#allocation5 + $0x5f8] sm:$0xff]
      %v3626 = vld [vmem:[#allocation5 + $0x600] sm:$0xff]
      %v3627 = vld [vmem:[#allocation5 + $0x608] sm:$0xff]
      %v3628 = vld [vmem:[#allocation5 + $0x610] sm:$0xff]
      %v3629 = vld [vmem:[#allocation5 + $0x618] sm:$0xff]
      %v3630 = vld [vmem:[#allocation5 + $0x620] sm:$0xff]
      %v3631 = vld [vmem:[#allocation5 + $0x628] sm:$0xff]
      %v3632 = vld [vmem:[#allocation5 + $0x630] sm:$0xff]
      %v3633 = vld [vmem:[#allocation5 + $0x638] sm:$0xff]
      %v3634 = vld [vmem:[#allocation5 + $0x640] sm:$0xff]
      %v3635 = vld [vmem:[#allocation5 + $0x648] sm:$0xff]
      %v3636 = vld [vmem:[#allocation5 + $0x650] sm:$0xff]
      %v3637 = vld [vmem:[#allocation5 + $0x658] sm:$0xff]
      %v3638 = vld [vmem:[#allocation5 + $0x660] sm:$0xff]
      %v3639 = vld [vmem:[#allocation5 + $0x668] sm:$0xff]
      %v3640 = vld [vmem:[#allocation5 + $0x670] sm:$0xff]
      %v3641 = vld [vmem:[#allocation5 + $0x678] sm:$0xff]
      %v3642 = vld [vmem:[#allocation5 + $0x680] sm:$0xff]
      %v3643 = vld [vmem:[#allocation5 + $0x688] sm:$0xff]
      %v3644 = vld [vmem:[#allocation5 + $0x690] sm:$0xff]
      %v3645 = vld [vmem:[#allocation5 + $0x698] sm:$0xff]
      %v3646 = vld [vmem:[#allocation5 + $0x6a0] sm:$0xff]
      %v3647 = vld [vmem:[#allocation5 + $0x6a8] sm:$0xff]
      %v3648 = vld [vmem:[#allocation5 + $0x6b0] sm:$0xff]
      %v3649 = vld [vmem:[#allocation5 + $0x6b8] sm:$0xff]
      %v3650 = vld [vmem:[#allocation5 + $0x6c0] sm:$0xff]
      %v3651 = vld [vmem:[#allocation5 + $0x6c8] sm:$0xff]
      %v3652 = vld [vmem:[#allocation5 + $0x6d0] sm:$0xff]
      %v3653 = vld [vmem:[#allocation5 + $0x6d8] sm:$0xff]
      %v3654 = vld [vmem:[#allocation5 + $0x6e0] sm:$0xff]
      %v3655 = vld [vmem:[#allocation5 + $0x6e8] sm:$0xff]
      %v3656 = vld [vmem:[#allocation5 + $0x6f0] sm:$0xff]
      %v3657 = vld [vmem:[#allocation5 + $0x6f8] sm:$0xff]
      %v3658 = vld [vmem:[#allocation5 + $0x700] sm:$0xff]
      %v3659 = vld [vmem:[#allocation5 + $0x708] sm:$0xff]
      %v3660 = vld [vmem:[#allocation5 + $0x710] sm:$0xff]
      %v3661 = vld [vmem:[#allocation5 + $0x718] sm:$0xff]
      %v3662 = vld [vmem:[#allocation5 + $0x720] sm:$0xff]
      %v3663 = vld [vmem:[#allocation5 + $0x728] sm:$0xff]
      %v3664 = vld [vmem:[#allocation5 + $0x730] sm:$0xff]
      %v3665 = vld [vmem:[#allocation5 + $0x738] sm:$0xff]
      %v3666 = vld [vmem:[#allocation5 + $0x740] sm:$0xff]
      %v3667 = vld [vmem:[#allocation5 + $0x748] sm:$0xff]
      %v3668 = vld [vmem:[#allocation5 + $0x750] sm:$0xff]
      %v3669 = vld [vmem:[#allocation5 + $0x758] sm:$0xff]
      %v3670 = vld [vmem:[#allocation5 + $0x760] sm:$0xff]
      %v3671 = vld [vmem:[#allocation5 + $0x768] sm:$0xff]
      %v3672 = vld [vmem:[#allocation5 + $0x770] sm:$0xff]
      %v3673 = vld [vmem:[#allocation5 + $0x778] sm:$0xff]
      %v3674 = vld [vmem:[#allocation5 + $0x780] sm:$0xff]
      %v3675 = vld [vmem:[#allocation5 + $0x788] sm:$0xff]
      %v3676 = vld [vmem:[#allocation5 + $0x790] sm:$0xff]
      %v3677 = vld [vmem:[#allocation5 + $0x798] sm:$0xff]
      %v3678 = vld [vmem:[#allocation5 + $0x7a0] sm:$0xff]
      %v3679 = vld [vmem:[#allocation5 + $0x7a8] sm:$0xff]
      %v3680 = vld [vmem:[#allocation5 + $0x7b0] sm:$0xff]
      %v3681 = vld [vmem:[#allocation5 + $0x7b8] sm:$0xff]
      %v3682 = vld [vmem:[#allocation5 + $0x7c0] sm:$0xff]
      %v3683 = vld [vmem:[#allocation5 + $0x7c8] sm:$0xff]
      %v3684 = vld [vmem:[#allocation5 + $0x7d0] sm:$0xff]
      %v3685 = vld [vmem:[#allocation5 + $0x7d8] sm:$0xff]
      %v3686 = vld [vmem:[#allocation5 + $0x7e0] sm:$0xff]
      %v3687 = vld [vmem:[#allocation5 + $0x7e8] sm:$0xff]
      %v3688 = vld [vmem:[#allocation5 + $0x7f0] sm:$0xff]
      %v3689 = vld [vmem:[#allocation5 + $0x7f8] sm:$0xff]
      %v3690 = vld [vmem:[#allocation5 + $0x800] sm:$0xff]
      %v3691 = vld [vmem:[#allocation5 + $0x808] sm:$0xff]
      %v3692 = vld [vmem:[#allocation5 + $0x810] sm:$0xff]
      %v3693 = vld [vmem:[#allocation5 + $0x818] sm:$0xff]
      %v3694 = vld [vmem:[#allocation5 + $0x820] sm:$0xff]
      %v3695 = vld [vmem:[#allocation5 + $0x828] sm:$0xff]
      %v3696 = vld [vmem:[#allocation5 + $0x830] sm:$0xff]
      %v3697 = vld [vmem:[#allocation5 + $0x838] sm:$0xff]
      %v3698 = vld [vmem:[#allocation5 + $0x840] sm:$0xff]
      %v3699 = vld [vmem:[#allocation5 + $0x848] sm:$0xff]
      %v3700 = vld [vmem:[#allocation5 + $0x850] sm:$0xff]
      %v3701 = vld [vmem:[#allocation5 + $0x858] sm:$0xff]
      %v3702 = vld [vmem:[#allocation5 + $0x860] sm:$0xff]
      %v3703 = vld [vmem:[#allocation5 + $0x868] sm:$0xff]
      %v3704 = vld [vmem:[#allocation5 + $0x870] sm:$0xff]
      %v3705 = vld [vmem:[#allocation5 + $0x878] sm:$0xff]
      %v3706 = vld [vmem:[#allocation5 + $0x880] sm:$0xff]
      %v3707 = vld [vmem:[#allocation5 + $0x888] sm:$0xff]
      %v3708 = vld [vmem:[#allocation5 + $0x890] sm:$0xff]
      %v3709 = vld [vmem:[#allocation5 + $0x898] sm:$0xff]
      %v3710 = vld [vmem:[#allocation5 + $0x8a0] sm:$0xff]
      %v3711 = vld [vmem:[#allocation5 + $0x8a8] sm:$0xff]
      %v3712 = vld [vmem:[#allocation5 + $0x8b0] sm:$0xff]
      %v3713 = vld [vmem:[#allocation5 + $0x8b8] sm:$0xff]
      %v3714 = vld [vmem:[#allocation5 + $0x8c0] sm:$0xff]
      %v3715 = vld [vmem:[#allocation5 + $0x8c8] sm:$0xff]
      %v3716 = vld [vmem:[#allocation5 + $0x8d0] sm:$0xff]
      %v3717 = vld [vmem:[#allocation5 + $0x8d8] sm:$0xff]
      %v3718 = vld [vmem:[#allocation5 + $0x8e0] sm:$0xff]
      %v3719 = vld [vmem:[#allocation5 + $0x8e8] sm:$0xff]
      %v3720 = vld [vmem:[#allocation5 + $0x8f0] sm:$0xff]
      %v3721 = vld [vmem:[#allocation5 + $0x8f8] sm:$0xff]
      %v3722 = vld [vmem:[%s4] sm:$0xff]
      %v3723 = vld [vmem:[%s4 + $0x8] sm:$0xff]
      %v3724 = vld [vmem:[%s4 + $0x10] sm:$0xff]
      %v3725 = vld [vmem:[%s4 + $0x18] sm:$0xff]
      %v3726 = vld [vmem:[%s4 + $0x20] sm:$0xff]
      %v3727 = vld [vmem:[%s4 + $0x28] sm:$0xff]
      %v3728 = vld [vmem:[%s4 + $0x30] sm:$0xff]
      %v3729 = vld [vmem:[%s4 + $0x38] sm:$0xff]
      %v3730 = vld [vmem:[%s4 + $0x40] sm:$0xff]
      %v3731 = vld [vmem:[%s4 + $0x48] sm:$0xff]
      %v3732 = vld [vmem:[%s4 + $0x50] sm:$0xff]
      %v3733 = vld [vmem:[%s4 + $0x58] sm:$0xff]
      %v3734 = vld [vmem:[%s4 + $0x60] sm:$0xff]
      %v3735 = vld [vmem:[%s4 + $0x68] sm:$0xff]
      %v3736 = vld [vmem:[%s4 + $0x70] sm:$0xff]
      %v3737 = vld [vmem:[%s4 + $0x78] sm:$0xff]
      %v3738 = vld [vmem:[%s4 + $0x80] sm:$0xff]
      %v3739 = vld [vmem:[%s4 + $0x88] sm:$0xff]
      %v3740 = vld [vmem:[%s4 + $0x90] sm:$0xff]
      %v3741 = vld [vmem:[%s4 + $0x98] sm:$0xff]
      %v3742 = vld [vmem:[%s4 + $0xa0] sm:$0xff]
      %v3743 = vld [vmem:[%s4 + $0xa8] sm:$0xff]
      %v3744 = vld [vmem:[%s4 + $0xb0] sm:$0xff]
      %v3745 = vld [vmem:[%s4 + $0xb8] sm:$0xff]
      %v3746 = vld [vmem:[%s4 + $0xc0] sm:$0xff]
      %v3747 = vld [vmem:[%s4 + $0xc8] sm:$0xff]
      %v3748 = vld [vmem:[%s4 + $0xd0] sm:$0xff]
      %v3749 = vld [vmem:[%s4 + $0xd8] sm:$0xff]
      %v3750 = vld [vmem:[%s4 + $0xe0] sm:$0xff]
      %v3751 = vld [vmem:[%s4 + $0xe8] sm:$0xff]
      %v3752 = vld [vmem:[%s4 + $0xf0] sm:$0xff]
      %v3753 = vld [vmem:[%s4 + $0xf8] sm:$0xff]
      %v3754 = vld [vmem:[%s4 + $0x100] sm:$0xff]
      %v3755 = vld [vmem:[%s4 + $0x108] sm:$0xff]
      %v3756 = vld [vmem:[%s4 + $0x110] sm:$0xff]
      %v3757 = vld [vmem:[%s4 + $0x118] sm:$0xff]
      %v3758 = vld [vmem:[%s4 + $0x120] sm:$0xff]
      %v3759 = vld [vmem:[%s4 + $0x128] sm:$0xff]
      %v3760 = vld [vmem:[%s4 + $0x130] sm:$0xff]
      %v3761 = vld [vmem:[%s4 + $0x138] sm:$0xff]
      %v3762 = vld [vmem:[%s4 + $0x140] sm:$0xff]
      %v3763 = vld [vmem:[%s4 + $0x148] sm:$0xff]
      %v3764 = vld [vmem:[%s4 + $0x150] sm:$0xff]
      %v3765 = vld [vmem:[%s4 + $0x158] sm:$0xff]
      %v3766 = vld [vmem:[%s4 + $0x160] sm:$0xff]
      %v3767 = vld [vmem:[%s4 + $0x168] sm:$0xff]
      %v3768 = vld [vmem:[%s4 + $0x170] sm:$0xff]
      %v3769 = vld [vmem:[%s4 + $0x178] sm:$0xff]
      %v3770 = vld [vmem:[%s4 + $0x180] sm:$0xff]
      %v3771 = vld [vmem:[%s4 + $0x188] sm:$0xff]
      %v3772 = vld [vmem:[%s4 + $0x190] sm:$0xff]
      %v3773 = vld [vmem:[%s4 + $0x198] sm:$0xff]
      %v3774 = vld [vmem:[%s4 + $0x1a0] sm:$0xff]
      %v3775 = vld [vmem:[%s4 + $0x1a8] sm:$0xff]
      %v3776 = vld [vmem:[%s4 + $0x1b0] sm:$0xff]
      %v3777 = vld [vmem:[%s4 + $0x1b8] sm:$0xff]
      %v3778 = vld [vmem:[%s4 + $0x1c0] sm:$0xff]
      %v3779 = vld [vmem:[%s4 + $0x1c8] sm:$0xff]
      %v3780 = vld [vmem:[%s4 + $0x1d0] sm:$0xff]
      %v3781 = vld [vmem:[%s4 + $0x1d8] sm:$0xff]
      %v3782 = vld [vmem:[%s4 + $0x1e0] sm:$0xff]
      %v3783 = vld [vmem:[%s4 + $0x1e8] sm:$0xff]
      %v3784 = vld [vmem:[%s4 + $0x1f0] sm:$0xff]
      %v3785 = vld [vmem:[%s4 + $0x1f8] sm:$0xff]
      %v3786 = vld [vmem:[%s4 + $0x200] sm:$0xff]
      %v3787 = vld [vmem:[%s4 + $0x208] sm:$0xff]
      %v3788 = vld [vmem:[%s4 + $0x210] sm:$0xff]
      %v3789 = vld [vmem:[%s4 + $0x218] sm:$0xff]
      %v3790 = vld [vmem:[%s4 + $0x220] sm:$0xff]
      %v3791 = vld [vmem:[%s4 + $0x228] sm:$0xff]
      %v3792 = vld [vmem:[%s4 + $0x230] sm:$0xff]
      %v3793 = vld [vmem:[%s4 + $0x238] sm:$0xff]
      %v3794 = vld [vmem:[%s4 + $0x240] sm:$0xff]
      %v3795 = vld [vmem:[%s4 + $0x248] sm:$0xff]
      %v3796 = vld [vmem:[%s4 + $0x250] sm:$0xff]
      %v3797 = vld [vmem:[%s4 + $0x258] sm:$0xff]
      %v3798 = vld [vmem:[%s4 + $0x260] sm:$0xff]
      %v3799 = vld [vmem:[%s4 + $0x268] sm:$0xff]
      %v3800 = vld [vmem:[%s4 + $0x270] sm:$0xff]
      %v3801 = vld [vmem:[%s4 + $0x278] sm:$0xff]
      %v3802 = vld [vmem:[%s4 + $0x280] sm:$0xff]
      %v3803 = vld [vmem:[%s4 + $0x288] sm:$0xff]
      %v3804 = vld [vmem:[%s4 + $0x290] sm:$0xff]
      %v3805 = vld [vmem:[%s4 + $0x298] sm:$0xff]
      %v3806 = vld [vmem:[%s4 + $0x2a0] sm:$0xff]
      %v3807 = vld [vmem:[%s4 + $0x2a8] sm:$0xff]
      %v3808 = vld [vmem:[%s4 + $0x2b0] sm:$0xff]
      %v3809 = vld [vmem:[%s4 + $0x2b8] sm:$0xff]
      %v3810 = vld [vmem:[%s4 + $0x2c0] sm:$0xff]
      %v3811 = vld [vmem:[%s4 + $0x2c8] sm:$0xff]
      %v3812 = vld [vmem:[%s4 + $0x2d0] sm:$0xff]
      %v3813 = vld [vmem:[%s4 + $0x2d8] sm:$0xff]
      %v3814 = vld [vmem:[%s4 + $0x2e0] sm:$0xff]
      %v3815 = vld [vmem:[%s4 + $0x2e8] sm:$0xff]
      %v3816 = vld [vmem:[%s4 + $0x2f0] sm:$0xff]
      %v3817 = vld [vmem:[%s4 + $0x2f8] sm:$0xff]
      %v3818 = vld [vmem:[%s4 + $0x300] sm:$0xff]
      %v3819 = vld [vmem:[%s4 + $0x308] sm:$0xff]
      %v3820 = vld [vmem:[%s4 + $0x310] sm:$0xff]
      %v3821 = vld [vmem:[%s4 + $0x318] sm:$0xff]
      %v3822 = vld [vmem:[%s4 + $0x320] sm:$0xff]
      %v3823 = vld [vmem:[%s4 + $0x328] sm:$0xff]
      %v3824 = vld [vmem:[%s4 + $0x330] sm:$0xff]
      %v3825 = vld [vmem:[%s4 + $0x338] sm:$0xff]
      %v3826 = vld [vmem:[%s4 + $0x340] sm:$0xff]
      %v3827 = vld [vmem:[%s4 + $0x348] sm:$0xff]
      %v3828 = vld [vmem:[%s4 + $0x350] sm:$0xff]
      %v3829 = vld [vmem:[%s4 + $0x358] sm:$0xff]
      %v3830 = vld [vmem:[%s4 + $0x360] sm:$0xff]
      %v3831 = vld [vmem:[%s4 + $0x368] sm:$0xff]
      %v3832 = vld [vmem:[%s4 + $0x370] sm:$0xff]
      %v3833 = vld [vmem:[%s4 + $0x378] sm:$0xff]
      %v3834 = vld [vmem:[%s4 + $0x380] sm:$0xff]
      %v3835 = vld [vmem:[%s4 + $0x388] sm:$0xff]
      %v3836 = vld [vmem:[%s4 + $0x390] sm:$0xff]
      %v3837 = vld [vmem:[%s4 + $0x398] sm:$0xff]
      %v3838 = vld [vmem:[%s4 + $0x3a0] sm:$0xff]
      %v3839 = vld [vmem:[%s4 + $0x3a8] sm:$0xff]
      %v3840 = vld [vmem:[%s4 + $0x3b0] sm:$0xff]
      %v3841 = vld [vmem:[%s4 + $0x3b8] sm:$0xff]
      %v3842 = vld [vmem:[%s4 + $0x3c0] sm:$0xff]
      %v3843 = vld [vmem:[%s4 + $0x3c8] sm:$0xff]
      %v3844 = vld [vmem:[%s4 + $0x3d0] sm:$0xff]
      %v3845 = vld [vmem:[%s4 + $0x3d8] sm:$0xff]
      %v3846 = vld [vmem:[%s4 + $0x3e0] sm:$0xff]
      %v3847 = vld [vmem:[%s4 + $0x3e8] sm:$0xff]
      %v3848 = vld [vmem:[%s4 + $0x3f0] sm:$0xff]
      %v3849 = vld [vmem:[%s4 + $0x3f8] sm:$0xff]
      %v3850 = vld [vmem:[%s4 + $0x400] sm:$0xff]
      %v3851 = vld [vmem:[%s4 + $0x408] sm:$0xff]
      %v3852 = vld [vmem:[%s4 + $0x410] sm:$0xff]
      %v3853 = vld [vmem:[%s4 + $0x418] sm:$0xff]
      %v3854 = vld [vmem:[%s4 + $0x420] sm:$0xff]
      %v3855 = vld [vmem:[%s4 + $0x428] sm:$0xff]
      %v3856 = vld [vmem:[%s4 + $0x430] sm:$0xff]
      %v3857 = vld [vmem:[%s4 + $0x438] sm:$0xff]
      %v3858 = vld [vmem:[%s4 + $0x440] sm:$0xff]
      %v3859 = vld [vmem:[%s4 + $0x448] sm:$0xff]
      %v3860 = vld [vmem:[%s4 + $0x450] sm:$0xff]
      %v3861 = vld [vmem:[%s4 + $0x458] sm:$0xff]
      %v3862 = vld [vmem:[%s4 + $0x460] sm:$0xff]
      %v3863 = vld [vmem:[%s4 + $0x468] sm:$0xff]
      %v3864 = vld [vmem:[%s4 + $0x470] sm:$0xff]
      %v3865 = vld [vmem:[%s4 + $0x478] sm:$0xff]
      %3866 = vmatprep.subr.mxu0 0.0
      %3867 = vmatpush1.msra.mxu0 %v3722
      %3868 = vmatprep.subr.mxu0 0.0
      %3869 = vmatpush1.msra.mxu0 %v3723
      %3870 = vmatprep.subr.mxu0 0.0
      %3871 = vmatpush1.msra.mxu0 %v3724
      %3872 = vmatprep.subr.mxu0 0.0
      %3873 = vmatpush1.msra.mxu0 %v3725
      %3874 = vmatprep.subr.mxu0 0.0
      %3875 = vmatpush1.msra.mxu0 %v3726
      %3876 = vmatprep.subr.mxu0 0.0
      %3877 = vmatpush1.msra.mxu0 %v3727
      %3878 = vmatprep.subr.mxu0 0.0
      %3879 = vmatpush1.msra.mxu0 %v3728
      %3880 = vmatprep.subr.mxu0 0.0
      %3881 = vmatpush1.msra.mxu0 %v3729
      %3882 = vmatprep.subr.mxu0 0.0
      %3883 = vmatpush1.msra.mxu0 %v3730
      %3884 = vmatprep.subr.mxu0 0.0
      %3885 = vmatpush1.msra.mxu0 %v3731
      %3886 = vmatprep.subr.mxu0 0.0
      %3887 = vmatpush1.msra.mxu0 %v3732
      %3888 = vmatprep.subr.mxu0 0.0
      %3889 = vmatpush1.msra.mxu0 %v3733
      %3890 = vmatprep.subr.mxu0 0.0
      %3891 = vmatpush1.msra.mxu0 %v3734
      %3892 = vmatprep.subr.mxu0 0.0
      %3893 = vmatpush1.msra.mxu0 %v3735
      %3894 = vmatprep.subr.mxu0 0.0
      %3895 = vmatpush1.msra.mxu0 %v3736
      %3896 = vmatprep.subr.mxu0 0.0
      %3897 = vmatpush1.msra.mxu0 %v3737
      %3898 = vmatprep.subr.mxu0 0.0
      %3899 = vmatpush1.msra.mxu0 %v3738
      %3900 = vmatprep.subr.mxu0 0.0
      %3901 = vmatpush1.msra.mxu0 %v3739
      %3902 = vmatprep.subr.mxu0 0.0
      %3903 = vmatpush1.msra.mxu0 %v3740
      %3904 = vmatprep.subr.mxu0 0.0
      %3905 = vmatpush1.msra.mxu0 %v3741
      %3906 = vmatprep.subr.mxu0 0.0
      %3907 = vmatpush1.msra.mxu0 %v3742
      %3908 = vmatprep.subr.mxu0 0.0
      %3909 = vmatpush1.msra.mxu0 %v3743
      %3910 = vmatprep.subr.mxu0 0.0
      %3911 = vmatpush1.msra.mxu0 %v3744
      %3912 = vmatprep.subr.mxu0 0.0
      %3913 = vmatpush1.msra.mxu0 %v3745
      %3914 = vmatprep.subr.mxu0 0.0
      %3915 = vmatpush1.msra.mxu0 %v3746
      %3916 = vmatprep.subr.mxu0 0.0
      %3917 = vmatpush1.msra.mxu0 %v3747
      %3918 = vmatprep.subr.mxu0 0.0
      %3919 = vmatpush1.msra.mxu0 %v3748
      %3920 = vmatprep.subr.mxu0 0.0
      %3921 = vmatpush1.msra.mxu0 %v3749
      %3922 = vmatprep.subr.mxu0 0.0
      %3923 = vmatpush1.msra.mxu0 %v3750
      %3924 = vmatprep.subr.mxu0 0.0
      %3925 = vmatpush1.msra.mxu0 %v3751
      %3926 = vmatprep.subr.mxu0 0.0
      %3927 = vmatpush1.msra.mxu0 %v3752
      %3928 = vmatprep.subr.mxu0 0.0
      %3929 = vmatpush1.msra.mxu0 %v3753
      %3930 = vmatprep.mubr.f32.mxu0 %v3435
      %3931 = vmatmul.mubr.f32.gmra.mrb[0].mxu0 %v3434
      %v3932 = vpop.f32.mrb[0].mxu0
      %v3933 = vadd.f32 0.0, %v3932
      %v3934 = vpop.f32.mrb[0].mxu0
      %3935 = vmatprep.mubr.f32.mxu0 %v3444
      %3936 = vmatmul.mubr.f32.gmra.mrb[0].mxu0 %v3443
      %v3937 = vpop.f32.mrb[0].mxu0
      %v3938 = vadd.f32 0.0, %v3937
      %v3939 = vpop.f32.mrb[0].mxu0
      %3940 = vmatprep.mubr.f32.mxu0 %v3453
      %3941 = vmatmul.mubr.f32.gmra.mrb[0].mxu0 %v3452
      %v3942 = vpop.f32.mrb[0].mxu0
      %v3943 = vadd.f32 0.0, %v3942
      %v3944 = vpop.f32.mrb[0].mxu0
      %3945 = vmatprep.mubr.f32.mxu0 %v3462
      %3946 = vmatmul.mubr.f32.gmra.mrb[0].mxu0 %v3461
      %v3947 = vpop.f32.mrb[0].mxu0
      %v3948 = vadd.f32 0.0, %v3947
      %v3949 = vpop.f32.mrb[0].mxu0
      %3950 = vmatprep.mubr.f32.mxu0 %v3471
      %3951 = vmatmul.mubr.f32.gmra.mrb[0].mxu0 %v3470
      %v3952 = vpop.f32.mrb[0].mxu0
      %v3953 = vadd.f32 0.0, %v3952
      %v3954 = vpop.f32.mrb[0].mxu0
      %3955 = vmatprep.mubr.f32.mxu0 %v3480
      %3956 = vmatmul.mubr.f32.gmra.mrb[0].mxu0 %v3479
      %v3957 = vpop.f32.mrb[0].mxu0
      %v3958 = vadd.f32 0.0, %v3957
      %v3959 = vpop.f32.mrb[0].mxu0
      %3960 = vmatprep.mubr.f32.mxu0 %v3489
      %3961 = vmatmul.mubr.f32.gmra.mrb[0].mxu0 %v3488
      %v3962 = vpop.f32.mrb[0].mxu0
      %v3963 = vadd.f32 0.0, %v3962
      %v3964 = vpop.f32.mrb[0].mxu0
      %3965 = vmatprep.mubr.f32.mxu0 %v3498
      %3966 = vmatmul.mubr.f32.gmra.mrb[0].mxu0 %v3497
      %v3967 = vpop.f32.mrb[0].mxu0
      %v3968 = vadd.f32 0.0, %v3967
      %v3969 = vpop.f32.mrb[0].mxu0
      %3970 = vmatprep.mubr.f32.mxu0 %v3507
      %3971 = vmatmul.mubr.f32.gmra.mrb[0].mxu0 %v3506
      %v3972 = vpop.f32.mrb[0].mxu0
      %v3973 = vadd.f32 0.0, %v3972
      %v3974 = vpop.f32.mrb[0].mxu0
      %3975 = vmatprep.mubr.f32.mxu0 %v3516
      %3976 = vmatmul.mubr.f32.gmra.mrb[0].mxu0 %v3515
      %v3977 = vpop.f32.mrb[0].mxu0
      %v3978 = vadd.f32 0.0, %v3977
      %v3979 = vpop.f32.mrb[0].mxu0
      %3980 = vmatprep.mubr.f32.mxu0 %v3525
      %3981 = vmatmul.mubr.f32.gmra.mrb[0].mxu0 %v3524
      %v3982 = vpop.f32.mrb[0].mxu0
      %v3983 = vadd.f32 0.0, %v3982
      %v3984 = vpop.f32.mrb[0].mxu0
      %3985 = vmatprep.mubr.f32.mxu0 %v3534
      %3986 = vmatmul.mubr.f32.gmra.mrb[0].mxu0 %v3533
      %v3987 = vpop.f32.mrb[0].mxu0
      %v3988 = vadd.f32 0.0, %v3987
      %v3989 = vpop.f32.mrb[0].mxu0
      %3990 = vmatprep.mubr.f32.mxu0 %v3543
      %3991 = vmatmul.mubr.f32.gmra.mrb[0].mxu0 %v3542
      %v3992 = vpop.f32.mrb[0].mxu0
      %v3993 = vadd.f32 0.0, %v3992
      %v3994 = vpop.f32.mrb[0].mxu0
      %3995 = vmatprep.mubr.f32.mxu0 %v3552
      %3996 = vmatmul.mubr.f32.gmra.mrb[0].mxu0 %v3551
      %v3997 = vpop.f32.mrb[0].mxu0
      %v3998 = vadd.f32 0.0, %v3997
      %v3999 = vpop.f32.mrb[0].mxu0
      %4000 = vmatprep.mubr.f32.mxu0 %v3561
      %4001 = vmatmul.mubr.f32.gmra.mrb[0].mxu0 %v3560
      %v4002 = vpop.f32.mrb[0].mxu0
      %v4003 = vadd.f32 0.0, %v4002
      %v4004 = vpop.f32.mrb[0].mxu0
      %4005 = vmatprep.mubr.f32.mxu0 %v3570
      %4006 = vmatmul.mubr.f32.gmra.mrb[0].mxu0 %v3569
      %v4007 = vpop.f32.mrb[0].mxu0
      %v4008 = vadd.f32 0.0, %v4007
      %v4009 = vpop.f32.mrb[0].mxu0
      %4010 = vmatprep.mubr.f32.mxu0 %v3579
      %4011 = vmatmul.mubr.f32.gmra.mrb[0].mxu0 %v3578
      %v4012 = vpop.f32.mrb[0].mxu0
      %v4013 = vadd.f32 0.0, %v4012
      %v4014 = vpop.f32.mrb[0].mxu0
      %4015 = vmatprep.mubr.f32.mxu0 %v3588
      %4016 = vmatmul.mubr.f32.gmra.mrb[0].mxu0 %v3587
      %v4017 = vpop.f32.mrb[0].mxu0
      %v4018 = vadd.f32 0.0, %v4017
      %v4019 = vpop.f32.mrb[0].mxu0
      %4020 = vmatprep.mubr.f32.mxu0 %v3597
      %4021 = vmatmul.mubr.f32.gmra.mrb[0].mxu0 %v3596
      %v4022 = vpop.f32.mrb[0].mxu0
      %v4023 = vadd.f32 0.0, %v4022
      %v4024 = vpop.f32.mrb[0].mxu0
      %4025 = vmatprep.mubr.f32.mxu0 %v3606
      %4026 = vmatmul.mubr.f32.gmra.mrb[0].mxu0 %v3605
      %v4027 = vpop.f32.mrb[0].mxu0
      %v4028 = vadd.f32 0.0, %v4027
      %v4029 = vpop.f32.mrb[0].mxu0
      %4030 = vmatprep.mubr.f32.mxu0 %v3615
      %4031 = vmatmul.mubr.f32.gmra.mrb[0].mxu0 %v3614
      %v4032 = vpop.f32.mrb[0].mxu0
      %v4033 = vadd.f32 0.0, %v4032
      %v4034 = vpop.f32.mrb[0].mxu0
      %4035 = vmatprep.mubr.f32.mxu0 %v3624
      %4036 = vmatmul.mubr.f32.gmra.mrb[0].mxu0 %v3623
      %v4037 = vpop.f32.mrb[0].mxu0
      %v4038 = vadd.f32 0.0, %v4037
      %v4039 = vpop.f32.mrb[0].mxu0
      %4040 = vmatprep.mubr.f32.mxu0 %v3633
      %4041 = vmatmul.mubr.f32.gmra.mrb[0].mxu0 %v3632
      %v4042 = vpop.f32.mrb[0].mxu0
      %v4043 = vadd.f32 0.0, %v4042
      %v4044 = vpop.f32.mrb[0].mxu0
      %4045 = vmatprep.mubr.f32.mxu0 %v3642
      %4046 = vmatmul.mubr.f32.gmra.mrb[0].mxu0 %v3641
      %v4047 = vpop.f32.mrb[0].mxu0
      %v4048 = vadd.f32 0.0, %v4047
      %v4049 = vpop.f32.mrb[0].mxu0
      %4050 = vmatprep.mubr.f32.mxu0 %v3651
      %4051 = vmatmul.mubr.f32.gmra.mrb[0].mxu0 %v3650
      %v4052 = vpop.f32.mrb[0].mxu0
      %v4053 = vadd.f32 0.0, %v4052
      %v4054 = vpop.f32.mrb[0].mxu0
      %4055 = vmatprep.mubr.f32.mxu0 %v3660
      %4056 = vmatmul.mubr.f32.gmra.mrb[0].mxu0 %v3659
      %v4057 = vpop.f32.mrb[0].mxu0
      %v4058 = vadd.f32 0.0, %v4057
      %v4059 = vpop.f32.mrb[0].mxu0
      %4060 = vmatprep.mubr.f32.mxu0 %v3669
      %4061 = vmatmul.mubr.f32.gmra.mrb[0].mxu0 %v3668
      %v4062 = vpop.f32.mrb[0].mxu0
      %v4063 = vadd.f32 0.0, %v4062
      %v4064 = vpop.f32.mrb[0].mxu0
      %4065 = vmatprep.mubr.f32.mxu0 %v3678
      %4066 = vmatmul.mubr.f32.gmra.mrb[0].mxu0 %v3677
      %v4067 = vpop.f32.mrb[0].mxu0
      %v4068 = vadd.f32 0.0, %v4067
      %v4069 = vpop.f32.mrb[0].mxu0
      %4070 = vmatprep.mubr.f32.mxu0 %v3687
      %4071 = vmatmul.mubr.f32.gmra.mrb[0].mxu0 %v3686
      %v4072 = vpop.f32.mrb[0].mxu0
      %v4073 = vadd.f32 0.0, %v4072
      %v4074 = vpop.f32.mrb[0].mxu0
      %4075 = vmatprep.mubr.f32.mxu0 %v3696
      %4076 = vmatmul.mubr.f32.gmra.mrb[0].mxu0 %v3695
      %v4077 = vpop.f32.mrb[0].mxu0
      %v4078 = vadd.f32 0.0, %v4077
      %v4079 = vpop.f32.mrb[0].mxu0
      %4080 = vmatprep.mubr.f32.mxu0 %v3705
      %4081 = vmatmul.mubr.f32.gmra.mrb[0].mxu0 %v3704
      %v4082 = vpop.f32.mrb[0].mxu0
      %v4083 = vadd.f32 0.0, %v4082
      %v4084 = vpop.f32.mrb[0].mxu0
      %4085 = vmatprep.mubr.f32.mxu0 %v3714
      %4086 = vmatmul.mubr.f32.gmra.mrb[0].mxu0 %v3713
      %v4087 = vpop.f32.mrb[0].mxu0
      %v4088 = vadd.f32 0.0, %v4087
      %v4089 = vpop.f32.mrb[0].mxu0
      %4090 = vdwg.mxu0
      %4091 = vmatprep.subr.mxu0 0.0
      %4092 = vmatpush1.msra.mxu0 %v3754
      %4093 = vmatprep.subr.mxu0 0.0
      %4094 = vmatpush1.msra.mxu0 %v3755
      %4095 = vmatprep.subr.mxu0 0.0
      %4096 = vmatpush1.msra.mxu0 %v3756
      %4097 = vmatprep.subr.mxu0 0.0
      %4098 = vmatpush1.msra.mxu0 %v3757
      %4099 = vmatprep.subr.mxu0 0.0
      %4100 = vmatpush1.msra.mxu0 %v3758
      %4101 = vmatprep.subr.mxu0 0.0
      %4102 = vmatpush1.msra.mxu0 %v3759
      %4103 = vmatprep.subr.mxu0 0.0
      %4104 = vmatpush1.msra.mxu0 %v3760
      %4105 = vmatprep.subr.mxu0 0.0
      %4106 = vmatpush1.msra.mxu0 %v3761
      %4107 = vmatprep.subr.mxu0 0.0
      %4108 = vmatpush1.msra.mxu0 %v3762
      %4109 = vmatprep.subr.mxu0 0.0
      %4110 = vmatpush1.msra.mxu0 %v3763
      %4111 = vmatprep.subr.mxu0 0.0
      %4112 = vmatpush1.msra.mxu0 %v3764
      %4113 = vmatprep.subr.mxu0 0.0
      %4114 = vmatpush1.msra.mxu0 %v3765
      %4115 = vmatprep.subr.mxu0 0.0
      %4116 = vmatpush1.msra.mxu0 %v3766
      %4117 = vmatprep.subr.mxu0 0.0
      %4118 = vmatpush1.msra.mxu0 %v3767
      %4119 = vmatprep.subr.mxu0 0.0
      %4120 = vmatpush1.msra.mxu0 %v3768
      %4121 = vmatprep.subr.mxu0 0.0
      %4122 = vmatpush1.msra.mxu0 %v3769
      %4123 = vmatprep.subr.mxu0 0.0
      %4124 = vmatpush1.msra.mxu0 %v3770
      %4125 = vmatprep.subr.mxu0 0.0
      %4126 = vmatpush1.msra.mxu0 %v3771
      %4127 = vmatprep.subr.mxu0 0.0
      %4128 = vmatpush1.msra.mxu0 %v3772
      %4129 = vmatprep.subr.mxu0 0.0
      %4130 = vmatpush1.msra.mxu0 %v3773
      %4131 = vmatprep.subr.mxu0 0.0
      %4132 = vmatpush1.msra.mxu0 %v3774
      %4133 = vmatprep.subr.mxu0 0.0
      %4134 = vmatpush1.msra.mxu0 %v3775
      %4135 = vmatprep.subr.mxu0 0.0
      %4136 = vmatpush1.msra.mxu0 %v3776
      %4137 = vmatprep.subr.mxu0 0.0
      %4138 = vmatpush1.msra.mxu0 %v3777
      %4139 = vmatprep.subr.mxu0 0.0
      %4140 = vmatpush1.msra.mxu0 %v3778
      %4141 = vmatprep.subr.mxu0 0.0
      %4142 = vmatpush1.msra.mxu0 %v3779
      %4143 = vmatprep.subr.mxu0 0.0
      %4144 = vmatpush1.msra.mxu0 %v3780
      %4145 = vmatprep.subr.mxu0 0.0
      %4146 = vmatpush1.msra.mxu0 %v3781
      %4147 = vmatprep.subr.mxu0 0.0
      %4148 = vmatpush1.msra.mxu0 %v3782
      %4149 = vmatprep.subr.mxu0 0.0
      %4150 = vmatpush1.msra.mxu0 %v3783
      %4151 = vmatprep.subr.mxu0 0.0
      %4152 = vmatpush1.msra.mxu0 %v3784
      %4153 = vmatprep.subr.mxu0 0.0
      %4154 = vmatpush1.msra.mxu0 %v3785
      %4155 = vmatprep.mubr.f32.mxu0 %v3437
      %4156 = vmatmul.mubr.f32.gmra.mrb[0].mxu0 %v3436
      %v4157 = vpop.f32.mrb[0].mxu0
      %v4158 = vadd.f32 %v3933, %v4157
      %v4159 = vpop.f32.mrb[0].mxu0
      %4160 = vmatprep.mubr.f32.mxu0 %v3446
      %4161 = vmatmul.mubr.f32.gmra.mrb[0].mxu0 %v3445
      %v4162 = vpop.f32.mrb[0].mxu0
      %v4163 = vadd.f32 %v3938, %v4162
      %v4164 = vpop.f32.mrb[0].mxu0
      %4165 = vmatprep.mubr.f32.mxu0 %v3455
      %4166 = vmatmul.mubr.f32.gmra.mrb[0].mxu0 %v3454
      %v4167 = vpop.f32.mrb[0].mxu0
      %v4168 = vadd.f32 %v3943, %v4167
      %v4169 = vpop.f32.mrb[0].mxu0
      %4170 = vmatprep.mubr.f32.mxu0 %v3464
      %4171 = vmatmul.mubr.f32.gmra.mrb[0].mxu0 %v3463
      %v4172 = vpop.f32.mrb[0].mxu0
      %v4173 = vadd.f32 %v3948, %v4172
      %v4174 = vpop.f32.mrb[0].mxu0
      %4175 = vmatprep.mubr.f32.mxu0 %v3473
      %4176 = vmatmul.mubr.f32.gmra.mrb[0].mxu0 %v3472
      %v4177 = vpop.f32.mrb[0].mxu0
      %v4178 = vadd.f32 %v3953, %v4177
      %v4179 = vpop.f32.mrb[0].mxu0
      %4180 = vmatprep.mubr.f32.mxu0 %v3482
      %4181 = vmatmul.mubr.f32.gmra.mrb[0].mxu0 %v3481
      %v4182 = vpop.f32.mrb[0].mxu0
      %v4183 = vadd.f32 %v3958, %v4182
      %v4184 = vpop.f32.mrb[0].mxu0
      %4185 = vmatprep.mubr.f32.mxu0 %v3491
      %4186 = vmatmul.mubr.f32.gmra.mrb[0].mxu0 %v3490
      %v4187 = vpop.f32.mrb[0].mxu0
      %v4188 = vadd.f32 %v3963, %v4187
      %v4189 = vpop.f32.mrb[0].mxu0
      %4190 = vmatprep.mubr.f32.mxu0 %v3500
      %4191 = vmatmul.mubr.f32.gmra.mrb[0].mxu0 %v3499
      %v4192 = vpop.f32.mrb[0].mxu0
      %v4193 = vadd.f32 %v3968, %v4192
      %v4194 = vpop.f32.mrb[0].mxu0
      %4195 = vmatprep.mubr.f32.mxu0 %v3509
      %4196 = vmatmul.mubr.f32.gmra.mrb[0].mxu0 %v3508
      %v4197 = vpop.f32.mrb[0].mxu0
      %v4198 = vadd.f32 %v3973, %v4197
      %v4199 = vpop.f32.mrb[0].mxu0
      %4200 = vmatprep.mubr.f32.mxu0 %v3518
      %4201 = vmatmul.mubr.f32.gmra.mrb[0].mxu0 %v3517
      %v4202 = vpop.f32.mrb[0].mxu0
      %v4203 = vadd.f32 %v3978, %v4202
      %v4204 = vpop.f32.mrb[0].mxu0
      %4205 = vmatprep.mubr.f32.mxu0 %v3527
      %4206 = vmatmul.mubr.f32.gmra.mrb[0].mxu0 %v3526
      %v4207 = vpop.f32.mrb[0].mxu0
      %v4208 = vadd.f32 %v3983, %v4207
      %v4209 = vpop.f32.mrb[0].mxu0
      %4210 = vmatprep.mubr.f32.mxu0 %v3536
      %4211 = vmatmul.mubr.f32.gmra.mrb[0].mxu0 %v3535
      %v4212 = vpop.f32.mrb[0].mxu0
      %v4213 = vadd.f32 %v3988, %v4212
      %v4214 = vpop.f32.mrb[0].mxu0
      %4215 = vmatprep.mubr.f32.mxu0 %v3545
      %4216 = vmatmul.mubr.f32.gmra.mrb[0].mxu0 %v3544
      %v4217 = vpop.f32.mrb[0].mxu0
      %v4218 = vadd.f32 %v3993, %v4217
      %v4219 = vpop.f32.mrb[0].mxu0
      %4220 = vmatprep.mubr.f32.mxu0 %v3554
      %4221 = vmatmul.mubr.f32.gmra.mrb[0].mxu0 %v3553
      %v4222 = vpop.f32.mrb[0].mxu0
      %v4223 = vadd.f32 %v3998, %v4222
      %v4224 = vpop.f32.mrb[0].mxu0
      %4225 = vmatprep.mubr.f32.mxu0 %v3563
      %4226 = vmatmul.mubr.f32.gmra.mrb[0].mxu0 %v3562
      %v4227 = vpop.f32.mrb[0].mxu0
      %v4228 = vadd.f32 %v4003, %v4227
      %v4229 = vpop.f32.mrb[0].mxu0
      %4230 = vmatprep.mubr.f32.mxu0 %v3572
      %4231 = vmatmul.mubr.f32.gmra.mrb[0].mxu0 %v3571
      %v4232 = vpop.f32.mrb[0].mxu0
      %v4233 = vadd.f32 %v4008, %v4232
      %v4234 = vpop.f32.mrb[0].mxu0
      %4235 = vmatprep.mubr.f32.mxu0 %v3581
      %4236 = vmatmul.mubr.f32.gmra.mrb[0].mxu0 %v3580
      %v4237 = vpop.f32.mrb[0].mxu0
      %v4238 = vadd.f32 %v4013, %v4237
      %v4239 = vpop.f32.mrb[0].mxu0
      %4240 = vmatprep.mubr.f32.mxu0 %v3590
      %4241 = vmatmul.mubr.f32.gmra.mrb[0].mxu0 %v3589
      %v4242 = vpop.f32.mrb[0].mxu0
      %v4243 = vadd.f32 %v4018, %v4242
      %v4244 = vpop.f32.mrb[0].mxu0
      %4245 = vmatprep.mubr.f32.mxu0 %v3599
      %4246 = vmatmul.mubr.f32.gmra.mrb[0].mxu0 %v3598
      %v4247 = vpop.f32.mrb[0].mxu0
      %v4248 = vadd.f32 %v4023, %v4247
      %v4249 = vpop.f32.mrb[0].mxu0
      %4250 = vmatprep.mubr.f32.mxu0 %v3608
      %4251 = vmatmul.mubr.f32.gmra.mrb[0].mxu0 %v3607
      %v4252 = vpop.f32.mrb[0].mxu0
      %v4253 = vadd.f32 %v4028, %v4252
      %v4254 = vpop.f32.mrb[0].mxu0
      %4255 = vmatprep.mubr.f32.mxu0 %v3617
      %4256 = vmatmul.mubr.f32.gmra.mrb[0].mxu0 %v3616
      %v4257 = vpop.f32.mrb[0].mxu0
      %v4258 = vadd.f32 %v4033, %v4257
      %v4259 = vpop.f32.mrb[0].mxu0
      %4260 = vmatprep.mubr.f32.mxu0 %v3626
      %4261 = vmatmul.mubr.f32.gmra.mrb[0].mxu0 %v3625
      %v4262 = vpop.f32.mrb[0].mxu0
      %v4263 = vadd.f32 %v4038, %v4262
      %v4264 = vpop.f32.mrb[0].mxu0
      %4265 = vmatprep.mubr.f32.mxu0 %v3635
      %4266 = vmatmul.mubr.f32.gmra.mrb[0].mxu0 %v3634
      %v4267 = vpop.f32.mrb[0].mxu0
      %v4268 = vadd.f32 %v4043, %v4267
      %v4269 = vpop.f32.mrb[0].mxu0
      %4270 = vmatprep.mubr.f32.mxu0 %v3644
      %4271 = vmatmul.mubr.f32.gmra.mrb[0].mxu0 %v3643
      %v4272 = vpop.f32.mrb[0].mxu0
      %v4273 = vadd.f32 %v4048, %v4272
      %v4274 = vpop.f32.mrb[0].mxu0
      %4275 = vmatprep.mubr.f32.mxu0 %v3653
      %4276 = vmatmul.mubr.f32.gmra.mrb[0].mxu0 %v3652
      %v4277 = vpop.f32.mrb[0].mxu0
      %v4278 = vadd.f32 %v4053, %v4277
      %v4279 = vpop.f32.mrb[0].mxu0
      %4280 = vmatprep.mubr.f32.mxu0 %v3662
      %4281 = vmatmul.mubr.f32.gmra.mrb[0].mxu0 %v3661
      %v4282 = vpop.f32.mrb[0].mxu0
      %v4283 = vadd.f32 %v4058, %v4282
      %v4284 = vpop.f32.mrb[0].mxu0
      %4285 = vmatprep.mubr.f32.mxu0 %v3671
      %4286 = vmatmul.mubr.f32.gmra.mrb[0].mxu0 %v3670
      %v4287 = vpop.f32.mrb[0].mxu0
      %v4288 = vadd.f32 %v4063, %v4287
      %v4289 = vpop.f32.mrb[0].mxu0
      %4290 = vmatprep.mubr.f32.mxu0 %v3680
      %4291 = vmatmul.mubr.f32.gmra.mrb[0].mxu0 %v3679
      %v4292 = vpop.f32.mrb[0].mxu0
      %v4293 = vadd.f32 %v4068, %v4292
      %v4294 = vpop.f32.mrb[0].mxu0
      %4295 = vmatprep.mubr.f32.mxu0 %v3689
      %4296 = vmatmul.mubr.f32.gmra.mrb[0].mxu0 %v3688
      %v4297 = vpop.f32.mrb[0].mxu0
      %v4298 = vadd.f32 %v4073, %v4297
      %v4299 = vpop.f32.mrb[0].mxu0
      %4300 = vmatprep.mubr.f32.mxu0 %v3698
      %4301 = vmatmul.mubr.f32.gmra.mrb[0].mxu0 %v3697
      %v4302 = vpop.f32.mrb[0].mxu0
      %v4303 = vadd.f32 %v4078, %v4302
      %v4304 = vpop.f32.mrb[0].mxu0
      %4305 = vmatprep.mubr.f32.mxu0 %v3707
      %4306 = vmatmul.mubr.f32.gmra.mrb[0].mxu0 %v3706
      %v4307 = vpop.f32.mrb[0].mxu0
      %v4308 = vadd.f32 %v4083, %v4307
      %v4309 = vpop.f32.mrb[0].mxu0
      %4310 = vmatprep.mubr.f32.mxu0 %v3716
      %4311 = vmatmul.mubr.f32.gmra.mrb[0].mxu0 %v3715
      %v4312 = vpop.f32.mrb[0].mxu0
      %v4313 = vadd.f32 %v4088, %v4312
      %v4314 = vpop.f32.mrb[0].mxu0
      %4315 = vdwg.mxu0
      %4316 = vmatprep.subr.mxu0 0.0
      %4317 = vmatpush1.msra.mxu0 %v3786
      %4318 = vmatprep.subr.mxu0 0.0
      %4319 = vmatpush1.msra.mxu0 %v3787
      %4320 = vmatprep.subr.mxu0 0.0
      %4321 = vmatpush1.msra.mxu0 %v3788
      %4322 = vmatprep.subr.mxu0 0.0
      %4323 = vmatpush1.msra.mxu0 %v3789
      %4324 = vmatprep.subr.mxu0 0.0
      %4325 = vmatpush1.msra.mxu0 %v3790
      %4326 = vmatprep.subr.mxu0 0.0
      %4327 = vmatpush1.msra.mxu0 %v3791
      %4328 = vmatprep.subr.mxu0 0.0
      %4329 = vmatpush1.msra.mxu0 %v3792
      %4330 = vmatprep.subr.mxu0 0.0
      %4331 = vmatpush1.msra.mxu0 %v3793
      %4332 = vmatprep.subr.mxu0 0.0
      %4333 = vmatpush1.msra.mxu0 %v3794
      %4334 = vmatprep.subr.mxu0 0.0
      %4335 = vmatpush1.msra.mxu0 %v3795
      %4336 = vmatprep.subr.mxu0 0.0
      %4337 = vmatpush1.msra.mxu0 %v3796
      %4338 = vmatprep.subr.mxu0 0.0
      %4339 = vmatpush1.msra.mxu0 %v3797
      %4340 = vmatprep.subr.mxu0 0.0
      %4341 = vmatpush1.msra.mxu0 %v3798
      %4342 = vmatprep.subr.mxu0 0.0
      %4343 = vmatpush1.msra.mxu0 %v3799
      %4344 = vmatprep.subr.mxu0 0.0
      %4345 = vmatpush1.msra.mxu0 %v3800
      %4346 = vmatprep.subr.mxu0 0.0
      %4347 = vmatpush1.msra.mxu0 %v3801
      %4348 = vmatprep.subr.mxu0 0.0
      %4349 = vmatpush1.msra.mxu0 %v3802
      %4350 = vmatprep.subr.mxu0 0.0
      %4351 = vmatpush1.msra.mxu0 %v3803
      %4352 = vmatprep.subr.mxu0 0.0
      %4353 = vmatpush1.msra.mxu0 %v3804
      %4354 = vmatprep.subr.mxu0 0.0
      %4355 = vmatpush1.msra.mxu0 %v3805
      %4356 = vmatprep.subr.mxu0 0.0
      %4357 = vmatpush1.msra.mxu0 %v3806
      %4358 = vmatprep.subr.mxu0 0.0
      %4359 = vmatpush1.msra.mxu0 %v3807
      %4360 = vmatprep.subr.mxu0 0.0
      %4361 = vmatpush1.msra.mxu0 %v3808
      %4362 = vmatprep.subr.mxu0 0.0
      %4363 = vmatpush1.msra.mxu0 %v3809
      %4364 = vmatprep.subr.mxu0 0.0
      %4365 = vmatpush1.msra.mxu0 %v3810
      %4366 = vmatprep.subr.mxu0 0.0
      %4367 = vmatpush1.msra.mxu0 %v3811
      %4368 = vmatprep.subr.mxu0 0.0
      %4369 = vmatpush1.msra.mxu0 %v3812
      %4370 = vmatprep.subr.mxu0 0.0
      %4371 = vmatpush1.msra.mxu0 %v3813
      %4372 = vmatprep.subr.mxu0 0.0
      %4373 = vmatpush1.msra.mxu0 %v3814
      %4374 = vmatprep.subr.mxu0 0.0
      %4375 = vmatpush1.msra.mxu0 %v3815
      %4376 = vmatprep.subr.mxu0 0.0
      %4377 = vmatpush1.msra.mxu0 %v3816
      %4378 = vmatprep.subr.mxu0 0.0
      %4379 = vmatpush1.msra.mxu0 %v3817
      %4380 = vmatprep.mubr.f32.mxu0 %v3439
      %4381 = vmatmul.mubr.f32.gmra.mrb[0].mxu0 %v3438
      %v4382 = vpop.f32.mrb[0].mxu0
      %v4383 = vadd.f32 %v4158, %v4382
      %v4384 = vpop.f32.mrb[0].mxu0
      %4385 = vmatprep.mubr.f32.mxu0 %v3448
      %4386 = vmatmul.mubr.f32.gmra.mrb[0].mxu0 %v3447
      %v4387 = vpop.f32.mrb[0].mxu0
      %v4388 = vadd.f32 %v4163, %v4387
      %v4389 = vpop.f32.mrb[0].mxu0
      %4390 = vmatprep.mubr.f32.mxu0 %v3457
      %4391 = vmatmul.mubr.f32.gmra.mrb[0].mxu0 %v3456
      %v4392 = vpop.f32.mrb[0].mxu0
      %v4393 = vadd.f32 %v4168, %v4392
      %v4394 = vpop.f32.mrb[0].mxu0
      %4395 = vmatprep.mubr.f32.mxu0 %v3466
      %4396 = vmatmul.mubr.f32.gmra.mrb[0].mxu0 %v3465
      %v4397 = vpop.f32.mrb[0].mxu0
      %v4398 = vadd.f32 %v4173, %v4397
      %v4399 = vpop.f32.mrb[0].mxu0
      %4400 = vmatprep.mubr.f32.mxu0 %v3475
      %4401 = vmatmul.mubr.f32.gmra.mrb[0].mxu0 %v3474
      %v4402 = vpop.f32.mrb[0].mxu0
      %v4403 = vadd.f32 %v4178, %v4402
      %v4404 = vpop.f32.mrb[0].mxu0
      %4405 = vmatprep.mubr.f32.mxu0 %v3484
      %4406 = vmatmul.mubr.f32.gmra.mrb[0].mxu0 %v3483
      %v4407 = vpop.f32.mrb[0].mxu0
      %v4408 = vadd.f32 %v4183, %v4407
      %v4409 = vpop.f32.mrb[0].mxu0
      %4410 = vmatprep.mubr.f32.mxu0 %v3493
      %4411 = vmatmul.mubr.f32.gmra.mrb[0].mxu0 %v3492
      %v4412 = vpop.f32.mrb[0].mxu0
      %v4413 = vadd.f32 %v4188, %v4412
      %v4414 = vpop.f32.mrb[0].mxu0
      %4415 = vmatprep.mubr.f32.mxu0 %v3502
      %4416 = vmatmul.mubr.f32.gmra.mrb[0].mxu0 %v3501
      %v4417 = vpop.f32.mrb[0].mxu0
      %v4418 = vadd.f32 %v4193, %v4417
      %v4419 = vpop.f32.mrb[0].mxu0
      %4420 = vmatprep.mubr.f32.mxu0 %v3511
      %4421 = vmatmul.mubr.f32.gmra.mrb[0].mxu0 %v3510
      %v4422 = vpop.f32.mrb[0].mxu0
      %v4423 = vadd.f32 %v4198, %v4422
      %v4424 = vpop.f32.mrb[0].mxu0
      %4425 = vmatprep.mubr.f32.mxu0 %v3520
      %4426 = vmatmul.mubr.f32.gmra.mrb[0].mxu0 %v3519
      %v4427 = vpop.f32.mrb[0].mxu0
      %v4428 = vadd.f32 %v4203, %v4427
      %v4429 = vpop.f32.mrb[0].mxu0
      %4430 = vmatprep.mubr.f32.mxu0 %v3529
      %4431 = vmatmul.mubr.f32.gmra.mrb[0].mxu0 %v3528
      %v4432 = vpop.f32.mrb[0].mxu0
      %v4433 = vadd.f32 %v4208, %v4432
      %v4434 = vpop.f32.mrb[0].mxu0
      %4435 = vmatprep.mubr.f32.mxu0 %v3538
      %4436 = vmatmul.mubr.f32.gmra.mrb[0].mxu0 %v3537
      %v4437 = vpop.f32.mrb[0].mxu0
      %v4438 = vadd.f32 %v4213, %v4437
      %v4439 = vpop.f32.mrb[0].mxu0
      %4440 = vmatprep.mubr.f32.mxu0 %v3547
      %4441 = vmatmul.mubr.f32.gmra.mrb[0].mxu0 %v3546
      %v4442 = vpop.f32.mrb[0].mxu0
      %v4443 = vadd.f32 %v4218, %v4442
      %v4444 = vpop.f32.mrb[0].mxu0
      %4445 = vmatprep.mubr.f32.mxu0 %v3556
      %4446 = vmatmul.mubr.f32.gmra.mrb[0].mxu0 %v3555
      %v4447 = vpop.f32.mrb[0].mxu0
      %v4448 = vadd.f32 %v4223, %v4447
      %v4449 = vpop.f32.mrb[0].mxu0
      %4450 = vmatprep.mubr.f32.mxu0 %v3565
      %4451 = vmatmul.mubr.f32.gmra.mrb[0].mxu0 %v3564
      %v4452 = vpop.f32.mrb[0].mxu0
      %v4453 = vadd.f32 %v4228, %v4452
      %v4454 = vpop.f32.mrb[0].mxu0
      %4455 = vmatprep.mubr.f32.mxu0 %v3574
      %4456 = vmatmul.mubr.f32.gmra.mrb[0].mxu0 %v3573
      %v4457 = vpop.f32.mrb[0].mxu0
      %v4458 = vadd.f32 %v4233, %v4457
      %v4459 = vpop.f32.mrb[0].mxu0
      %4460 = vmatprep.mubr.f32.mxu0 %v3583
      %4461 = vmatmul.mubr.f32.gmra.mrb[0].mxu0 %v3582
      %v4462 = vpop.f32.mrb[0].mxu0
      %v4463 = vadd.f32 %v4238, %v4462
      %v4464 = vpop.f32.mrb[0].mxu0
      %4465 = vmatprep.mubr.f32.mxu0 %v3592
      %4466 = vmatmul.mubr.f32.gmra.mrb[0].mxu0 %v3591
      %v4467 = vpop.f32.mrb[0].mxu0
      %v4468 = vadd.f32 %v4243, %v4467
      %v4469 = vpop.f32.mrb[0].mxu0
      %4470 = vmatprep.mubr.f32.mxu0 %v3601
      %4471 = vmatmul.mubr.f32.gmra.mrb[0].mxu0 %v3600
      %v4472 = vpop.f32.mrb[0].mxu0
      %v4473 = vadd.f32 %v4248, %v4472
      %v4474 = vpop.f32.mrb[0].mxu0
      %4475 = vmatprep.mubr.f32.mxu0 %v3610
      %4476 = vmatmul.mubr.f32.gmra.mrb[0].mxu0 %v3609
      %v4477 = vpop.f32.mrb[0].mxu0
      %v4478 = vadd.f32 %v4253, %v4477
      %v4479 = vpop.f32.mrb[0].mxu0
      %4480 = vmatprep.mubr.f32.mxu0 %v3619
      %4481 = vmatmul.mubr.f32.gmra.mrb[0].mxu0 %v3618
      %v4482 = vpop.f32.mrb[0].mxu0
      %v4483 = vadd.f32 %v4258, %v4482
      %v4484 = vpop.f32.mrb[0].mxu0
      %4485 = vmatprep.mubr.f32.mxu0 %v3628
      %4486 = vmatmul.mubr.f32.gmra.mrb[0].mxu0 %v3627
      %v4487 = vpop.f32.mrb[0].mxu0
      %v4488 = vadd.f32 %v4263, %v4487
      %v4489 = vpop.f32.mrb[0].mxu0
      %4490 = vmatprep.mubr.f32.mxu0 %v3637
      %4491 = vmatmul.mubr.f32.gmra.mrb[0].mxu0 %v3636
      %v4492 = vpop.f32.mrb[0].mxu0
      %v4493 = vadd.f32 %v4268, %v4492
      %v4494 = vpop.f32.mrb[0].mxu0
      %4495 = vmatprep.mubr.f32.mxu0 %v3646
      %4496 = vmatmul.mubr.f32.gmra.mrb[0].mxu0 %v3645
      %v4497 = vpop.f32.mrb[0].mxu0
      %v4498 = vadd.f32 %v4273, %v4497
      %v4499 = vpop.f32.mrb[0].mxu0
      %4500 = vmatprep.mubr.f32.mxu0 %v3655
      %4501 = vmatmul.mubr.f32.gmra.mrb[0].mxu0 %v3654
      %v4502 = vpop.f32.mrb[0].mxu0
      %v4503 = vadd.f32 %v4278, %v4502
      %v4504 = vpop.f32.mrb[0].mxu0
      %4505 = vmatprep.mubr.f32.mxu0 %v3664
      %4506 = vmatmul.mubr.f32.gmra.mrb[0].mxu0 %v3663
      %v4507 = vpop.f32.mrb[0].mxu0
      %v4508 = vadd.f32 %v4283, %v4507
      %v4509 = vpop.f32.mrb[0].mxu0
      %4510 = vmatprep.mubr.f32.mxu0 %v3673
      %4511 = vmatmul.mubr.f32.gmra.mrb[0].mxu0 %v3672
      %v4512 = vpop.f32.mrb[0].mxu0
      %v4513 = vadd.f32 %v4288, %v4512
      %v4514 = vpop.f32.mrb[0].mxu0
      %4515 = vmatprep.mubr.f32.mxu0 %v3682
      %4516 = vmatmul.mubr.f32.gmra.mrb[0].mxu0 %v3681
      %v4517 = vpop.f32.mrb[0].mxu0
      %v4518 = vadd.f32 %v4293, %v4517
      %v4519 = vpop.f32.mrb[0].mxu0
      %4520 = vmatprep.mubr.f32.mxu0 %v3691
      %4521 = vmatmul.mubr.f32.gmra.mrb[0].mxu0 %v3690
      %v4522 = vpop.f32.mrb[0].mxu0
      %v4523 = vadd.f32 %v4298, %v4522
      %v4524 = vpop.f32.mrb[0].mxu0
      %4525 = vmatprep.mubr.f32.mxu0 %v3700
      %4526 = vmatmul.mubr.f32.gmra.mrb[0].mxu0 %v3699
      %v4527 = vpop.f32.mrb[0].mxu0
      %v4528 = vadd.f32 %v4303, %v4527
      %v4529 = vpop.f32.mrb[0].mxu0
      %4530 = vmatprep.mubr.f32.mxu0 %v3709
      %4531 = vmatmul.mubr.f32.gmra.mrb[0].mxu0 %v3708
      %v4532 = vpop.f32.mrb[0].mxu0
      %v4533 = vadd.f32 %v4308, %v4532
      %v4534 = vpop.f32.mrb[0].mxu0
      %4535 = vmatprep.mubr.f32.mxu0 %v3718
      %4536 = vmatmul.mubr.f32.gmra.mrb[0].mxu0 %v3717
      %v4537 = vpop.f32.mrb[0].mxu0
      %v4538 = vadd.f32 %v4313, %v4537
      %v4539 = vpop.f32.mrb[0].mxu0
      %4540 = vdwg.mxu0
      %4541 = vmatprep.subr.mxu0 0.0
      %4542 = vmatpush1.msra.mxu0 %v3818
      %4543 = vmatprep.subr.mxu0 0.0
      %4544 = vmatpush1.msra.mxu0 %v3819
      %4545 = vmatprep.subr.mxu0 0.0
      %4546 = vmatpush1.msra.mxu0 %v3820
      %4547 = vmatprep.subr.mxu0 0.0
      %4548 = vmatpush1.msra.mxu0 %v3821
      %4549 = vmatprep.subr.mxu0 0.0
      %4550 = vmatpush1.msra.mxu0 %v3822
      %4551 = vmatprep.subr.mxu0 0.0
      %4552 = vmatpush1.msra.mxu0 %v3823
      %4553 = vmatprep.subr.mxu0 0.0
      %4554 = vmatpush1.msra.mxu0 %v3824
      %4555 = vmatprep.subr.mxu0 0.0
      %4556 = vmatpush1.msra.mxu0 %v3825
      %4557 = vmatprep.subr.mxu0 0.0
      %4558 = vmatpush1.msra.mxu0 %v3826
      %4559 = vmatprep.subr.mxu0 0.0
      %4560 = vmatpush1.msra.mxu0 %v3827
      %4561 = vmatprep.subr.mxu0 0.0
      %4562 = vmatpush1.msra.mxu0 %v3828
      %4563 = vmatprep.subr.mxu0 0.0
      %4564 = vmatpush1.msra.mxu0 %v3829
      %4565 = vmatprep.subr.mxu0 0.0
      %4566 = vmatpush1.msra.mxu0 %v3830
      %4567 = vmatprep.subr.mxu0 0.0
      %4568 = vmatpush1.msra.mxu0 %v3831
      %4569 = vmatprep.subr.mxu0 0.0
      %4570 = vmatpush1.msra.mxu0 %v3832
      %4571 = vmatprep.subr.mxu0 0.0
      %4572 = vmatpush1.msra.mxu0 %v3833
      %4573 = vmatprep.subr.mxu0 0.0
      %4574 = vmatpush1.msra.mxu0 %v3834
      %4575 = vmatprep.subr.mxu0 0.0
      %4576 = vmatpush1.msra.mxu0 %v3835
      %4577 = vmatprep.subr.mxu0 0.0
      %4578 = vmatpush1.msra.mxu0 %v3836
      %4579 = vmatprep.subr.mxu0 0.0
      %4580 = vmatpush1.msra.mxu0 %v3837
      %4581 = vmatprep.subr.mxu0 0.0
      %4582 = vmatpush1.msra.mxu0 %v3838
      %4583 = vmatprep.subr.mxu0 0.0
      %4584 = vmatpush1.msra.mxu0 %v3839
      %4585 = vmatprep.subr.mxu0 0.0
      %4586 = vmatpush1.msra.mxu0 %v3840
      %4587 = vmatprep.subr.mxu0 0.0
      %4588 = vmatpush1.msra.mxu0 %v3841
      %4589 = vmatprep.subr.mxu0 0.0
      %4590 = vmatpush1.msra.mxu0 %v3842
      %4591 = vmatprep.subr.mxu0 0.0
      %4592 = vmatpush1.msra.mxu0 %v3843
      %4593 = vmatprep.subr.mxu0 0.0
      %4594 = vmatpush1.msra.mxu0 %v3844
      %4595 = vmatprep.subr.mxu0 0.0
      %4596 = vmatpush1.msra.mxu0 %v3845
      %4597 = vmatprep.subr.mxu0 0.0
      %4598 = vmatpush1.msra.mxu0 %v3846
      %4599 = vmatprep.subr.mxu0 0.0
      %4600 = vmatpush1.msra.mxu0 %v3847
      %4601 = vmatprep.subr.mxu0 0.0
      %4602 = vmatpush1.msra.mxu0 %v3848
      %4603 = vmatprep.subr.mxu0 0.0
      %4604 = vmatpush1.msra.mxu0 %v3849
      %4605 = vmatprep.mubr.f32.mxu0 %v3441
      %4606 = vmatmul.mubr.f32.gmra.mrb[0].mxu0 %v3440
      %v4607 = vpop.f32.mrb[0].mxu0
      %v4608 = vadd.f32 %v4383, %v4607
      %v4609 = vpop.f32.mrb[0].mxu0
      %4610 = vmatprep.mubr.f32.mxu0 %v3450
      %4611 = vmatmul.mubr.f32.gmra.mrb[0].mxu0 %v3449
      %v4612 = vpop.f32.mrb[0].mxu0
      %v4613 = vadd.f32 %v4388, %v4612
      %v4614 = vpop.f32.mrb[0].mxu0
      %4615 = vmatprep.mubr.f32.mxu0 %v3459
      %4616 = vmatmul.mubr.f32.gmra.mrb[0].mxu0 %v3458
      %v4617 = vpop.f32.mrb[0].mxu0
      %v4618 = vadd.f32 %v4393, %v4617
      %v4619 = vpop.f32.mrb[0].mxu0
      %4620 = vmatprep.mubr.f32.mxu0 %v3468
      %4621 = vmatmul.mubr.f32.gmra.mrb[0].mxu0 %v3467
      %v4622 = vpop.f32.mrb[0].mxu0
      %v4623 = vadd.f32 %v4398, %v4622
      %v4624 = vpop.f32.mrb[0].mxu0
      %4625 = vmatprep.mubr.f32.mxu0 %v3477
      %4626 = vmatmul.mubr.f32.gmra.mrb[0].mxu0 %v3476
      %v4627 = vpop.f32.mrb[0].mxu0
      %v4628 = vadd.f32 %v4403, %v4627
      %v4629 = vpop.f32.mrb[0].mxu0
      %4630 = vmatprep.mubr.f32.mxu0 %v3486
      %4631 = vmatmul.mubr.f32.gmra.mrb[0].mxu0 %v3485
      %v4632 = vpop.f32.mrb[0].mxu0
      %v4633 = vadd.f32 %v4408, %v4632
      %v4634 = vpop.f32.mrb[0].mxu0
      %4635 = vmatprep.mubr.f32.mxu0 %v3495
      %4636 = vmatmul.mubr.f32.gmra.mrb[0].mxu0 %v3494
      %v4637 = vpop.f32.mrb[0].mxu0
      %v4638 = vadd.f32 %v4413, %v4637
      %v4639 = vpop.f32.mrb[0].mxu0
      %4640 = vmatprep.mubr.f32.mxu0 %v3504
      %4641 = vmatmul.mubr.f32.gmra.mrb[0].mxu0 %v3503
      %v4642 = vpop.f32.mrb[0].mxu0
      %v4643 = vadd.f32 %v4418, %v4642
      %v4644 = vpop.f32.mrb[0].mxu0
      %4645 = vmatprep.mubr.f32.mxu0 %v3513
      %4646 = vmatmul.mubr.f32.gmra.mrb[0].mxu0 %v3512
      %v4647 = vpop.f32.mrb[0].mxu0
      %v4648 = vadd.f32 %v4423, %v4647
      %v4649 = vpop.f32.mrb[0].mxu0
      %4650 = vmatprep.mubr.f32.mxu0 %v3522
      %4651 = vmatmul.mubr.f32.gmra.mrb[0].mxu0 %v3521
      %v4652 = vpop.f32.mrb[0].mxu0
      %v4653 = vadd.f32 %v4428, %v4652
      %v4654 = vpop.f32.mrb[0].mxu0
      %4655 = vmatprep.mubr.f32.mxu0 %v3531
      %4656 = vmatmul.mubr.f32.gmra.mrb[0].mxu0 %v3530
      %v4657 = vpop.f32.mrb[0].mxu0
      %v4658 = vadd.f32 %v4433, %v4657
      %v4659 = vpop.f32.mrb[0].mxu0
      %4660 = vmatprep.mubr.f32.mxu0 %v3540
      %4661 = vmatmul.mubr.f32.gmra.mrb[0].mxu0 %v3539
      %v4662 = vpop.f32.mrb[0].mxu0
      %v4663 = vadd.f32 %v4438, %v4662
      %v4664 = vpop.f32.mrb[0].mxu0
      %4665 = vmatprep.mubr.f32.mxu0 %v3549
      %4666 = vmatmul.mubr.f32.gmra.mrb[0].mxu0 %v3548
      %v4667 = vpop.f32.mrb[0].mxu0
      %v4668 = vadd.f32 %v4443, %v4667
      %v4669 = vpop.f32.mrb[0].mxu0
      %4670 = vmatprep.mubr.f32.mxu0 %v3558
      %4671 = vmatmul.mubr.f32.gmra.mrb[0].mxu0 %v3557
      %v4672 = vpop.f32.mrb[0].mxu0
      %v4673 = vadd.f32 %v4448, %v4672
      %v4674 = vpop.f32.mrb[0].mxu0
      %4675 = vmatprep.mubr.f32.mxu0 %v3567
      %4676 = vmatmul.mubr.f32.gmra.mrb[0].mxu0 %v3566
      %v4677 = vpop.f32.mrb[0].mxu0
      %v4678 = vadd.f32 %v4453, %v4677
      %v4679 = vpop.f32.mrb[0].mxu0
      %4680 = vmatprep.mubr.f32.mxu0 %v3576
      %4681 = vmatmul.mubr.f32.gmra.mrb[0].mxu0 %v3575
      %v4682 = vpop.f32.mrb[0].mxu0
      %v4683 = vadd.f32 %v4458, %v4682
      %v4684 = vpop.f32.mrb[0].mxu0
      %4685 = vmatprep.mubr.f32.mxu0 %v3585
      %4686 = vmatmul.mubr.f32.gmra.mrb[0].mxu0 %v3584
      %v4687 = vpop.f32.mrb[0].mxu0
      %v4688 = vadd.f32 %v4463, %v4687
      %v4689 = vpop.f32.mrb[0].mxu0
      %4690 = vmatprep.mubr.f32.mxu0 %v3594
      %4691 = vmatmul.mubr.f32.gmra.mrb[0].mxu0 %v3593
      %v4692 = vpop.f32.mrb[0].mxu0
      %v4693 = vadd.f32 %v4468, %v4692
      %v4694 = vpop.f32.mrb[0].mxu0
      %4695 = vmatprep.mubr.f32.mxu0 %v3603
      %4696 = vmatmul.mubr.f32.gmra.mrb[0].mxu0 %v3602
      %v4697 = vpop.f32.mrb[0].mxu0
      %v4698 = vadd.f32 %v4473, %v4697
      %v4699 = vpop.f32.mrb[0].mxu0
      %4700 = vmatprep.mubr.f32.mxu0 %v3612
      %4701 = vmatmul.mubr.f32.gmra.mrb[0].mxu0 %v3611
      %v4702 = vpop.f32.mrb[0].mxu0
      %v4703 = vadd.f32 %v4478, %v4702
      %v4704 = vpop.f32.mrb[0].mxu0
      %4705 = vmatprep.mubr.f32.mxu0 %v3621
      %4706 = vmatmul.mubr.f32.gmra.mrb[0].mxu0 %v3620
      %v4707 = vpop.f32.mrb[0].mxu0
      %v4708 = vadd.f32 %v4483, %v4707
      %v4709 = vpop.f32.mrb[0].mxu0
      %4710 = vmatprep.mubr.f32.mxu0 %v3630
      %4711 = vmatmul.mubr.f32.gmra.mrb[0].mxu0 %v3629
      %v4712 = vpop.f32.mrb[0].mxu0
      %v4713 = vadd.f32 %v4488, %v4712
      %v4714 = vpop.f32.mrb[0].mxu0
      %4715 = vmatprep.mubr.f32.mxu0 %v3639
      %4716 = vmatmul.mubr.f32.gmra.mrb[0].mxu0 %v3638
      %v4717 = vpop.f32.mrb[0].mxu0
      %v4718 = vadd.f32 %v4493, %v4717
      %v4719 = vpop.f32.mrb[0].mxu0
      %4720 = vmatprep.mubr.f32.mxu0 %v3648
      %4721 = vmatmul.mubr.f32.gmra.mrb[0].mxu0 %v3647
      %v4722 = vpop.f32.mrb[0].mxu0
      %v4723 = vadd.f32 %v4498, %v4722
      %v4724 = vpop.f32.mrb[0].mxu0
      %4725 = vmatprep.mubr.f32.mxu0 %v3657
      %4726 = vmatmul.mubr.f32.gmra.mrb[0].mxu0 %v3656
      %v4727 = vpop.f32.mrb[0].mxu0
      %v4728 = vadd.f32 %v4503, %v4727
      %v4729 = vpop.f32.mrb[0].mxu0
      %4730 = vmatprep.mubr.f32.mxu0 %v3666
      %4731 = vmatmul.mubr.f32.gmra.mrb[0].mxu0 %v3665
      %v4732 = vpop.f32.mrb[0].mxu0
      %v4733 = vadd.f32 %v4508, %v4732
      %v4734 = vpop.f32.mrb[0].mxu0
      %4735 = vmatprep.mubr.f32.mxu0 %v3675
      %4736 = vmatmul.mubr.f32.gmra.mrb[0].mxu0 %v3674
      %v4737 = vpop.f32.mrb[0].mxu0
      %v4738 = vadd.f32 %v4513, %v4737
      %v4739 = vpop.f32.mrb[0].mxu0
      %4740 = vmatprep.mubr.f32.mxu0 %v3684
      %4741 = vmatmul.mubr.f32.gmra.mrb[0].mxu0 %v3683
      %v4742 = vpop.f32.mrb[0].mxu0
      %v4743 = vadd.f32 %v4518, %v4742
      %v4744 = vpop.f32.mrb[0].mxu0
      %4745 = vmatprep.mubr.f32.mxu0 %v3693
      %4746 = vmatmul.mubr.f32.gmra.mrb[0].mxu0 %v3692
      %v4747 = vpop.f32.mrb[0].mxu0
      %v4748 = vadd.f32 %v4523, %v4747
      %v4749 = vpop.f32.mrb[0].mxu0
      %4750 = vmatprep.mubr.f32.mxu0 %v3702
      %4751 = vmatmul.mubr.f32.gmra.mrb[0].mxu0 %v3701
      %v4752 = vpop.f32.mrb[0].mxu0
      %v4753 = vadd.f32 %v4528, %v4752
      %v4754 = vpop.f32.mrb[0].mxu0
      %4755 = vmatprep.mubr.f32.mxu0 %v3711
      %4756 = vmatmul.mubr.f32.gmra.mrb[0].mxu0 %v3710
      %v4757 = vpop.f32.mrb[0].mxu0
      %v4758 = vadd.f32 %v4533, %v4757
      %v4759 = vpop.f32.mrb[0].mxu0
      %4760 = vmatprep.mubr.f32.mxu0 %v3720
      %4761 = vmatmul.mubr.f32.gmra.mrb[0].mxu0 %v3719
      %v4762 = vpop.f32.mrb[0].mxu0
      %v4763 = vadd.f32 %v4538, %v4762
      %v4764 = vpop.f32.mrb[0].mxu0
      %4765 = vdwg.mxu0
      %4766 = vmatprep.subr.mxu0 0.0
      %4767 = vmatpush1.msra.mxu0 %v3850
      %4768 = vmatprep.subr.mxu0 0.0
      %4769 = vmatpush1.msra.mxu0 %v3851
      %4770 = vmatprep.subr.mxu0 0.0
      %4771 = vmatpush1.msra.mxu0 %v3852
      %4772 = vmatprep.subr.mxu0 0.0
      %4773 = vmatpush1.msra.mxu0 %v3853
      %4774 = vmatprep.subr.mxu0 0.0
      %4775 = vmatpush1.msra.mxu0 %v3854
      %4776 = vmatprep.subr.mxu0 0.0
      %4777 = vmatpush1.msra.mxu0 %v3855
      %4778 = vmatprep.subr.mxu0 0.0
      %4779 = vmatpush1.msra.mxu0 %v3856
      %4780 = vmatprep.subr.mxu0 0.0
      %4781 = vmatpush1.msra.mxu0 %v3857
      %4782 = vmatprep.subr.mxu0 0.0
      %4783 = vmatpush1.msra.mxu0 %v3858
      %4784 = vmatprep.subr.mxu0 0.0
      %4785 = vmatpush1.msra.mxu0 %v3859
      %4786 = vmatprep.subr.mxu0 0.0
      %4787 = vmatpush1.msra.mxu0 %v3860
      %4788 = vmatprep.subr.mxu0 0.0
      %4789 = vmatpush1.msra.mxu0 %v3861
      %4790 = vmatprep.subr.mxu0 0.0
      %4791 = vmatpush1.msra.mxu0 %v3862
      %4792 = vmatprep.subr.mxu0 0.0
      %4793 = vmatpush1.msra.mxu0 %v3863
      %4794 = vmatprep.subr.mxu0 0.0
      %4795 = vmatpush1.msra.mxu0 %v3864
      %4796 = vmatprep.subr.mxu0 0.0
      %4797 = vmatpush1.msra.mxu0 %v3865
      %4798 = vmatprep.subr.mxu0 0.0
      %4799 = vmatpush1.msra.mxu0 0.0
      %4800 = vmatprep.subr.mxu0 0.0
      %4801 = vmatpush1.msra.mxu0 0.0
      %4802 = vmatprep.subr.mxu0 0.0
      %4803 = vmatpush1.msra.mxu0 0.0
      %4804 = vmatprep.subr.mxu0 0.0
      %4805 = vmatpush1.msra.mxu0 0.0
      %4806 = vmatprep.subr.mxu0 0.0
      %4807 = vmatpush1.msra.mxu0 0.0
      %4808 = vmatprep.subr.mxu0 0.0
      %4809 = vmatpush1.msra.mxu0 0.0
      %4810 = vmatprep.subr.mxu0 0.0
      %4811 = vmatpush1.msra.mxu0 0.0
      %4812 = vmatprep.subr.mxu0 0.0
      %4813 = vmatpush1.msra.mxu0 0.0
      %4814 = vmatprep.subr.mxu0 0.0
      %4815 = vmatpush1.msra.mxu0 0.0
      %4816 = vmatprep.subr.mxu0 0.0
      %4817 = vmatpush1.msra.mxu0 0.0
      %4818 = vmatprep.subr.mxu0 0.0
      %4819 = vmatpush1.msra.mxu0 0.0
      %4820 = vmatprep.subr.mxu0 0.0
      %4821 = vmatpush1.msra.mxu0 0.0
      %4822 = vmatprep.subr.mxu0 0.0
      %4823 = vmatpush1.msra.mxu0 0.0
      %4824 = vmatprep.subr.mxu0 0.0
      %4825 = vmatpush1.msra.mxu0 0.0
      %4826 = vmatprep.subr.mxu0 0.0
      %4827 = vmatpush1.msra.mxu0 0.0
      %4828 = vmatprep.subr.mxu0 0.0
      %4829 = vmatpush1.msra.mxu0 0.0
      %4830 = vmatprep.mubr.f32.mxu0 0.0
      %4831 = vmatmul.mubr.f32.gmra.mrb[0].mxu0 %v3442
      %v4832 = vpop.f32.mrb[0].mxu0
      %v4833 = vadd.f32 %v4608, %v4832
      %v4834 = vpop.f32.mrb[0].mxu0
      %4835 = vmatprep.mubr.f32.mxu0 0.0
      %4836 = vmatmul.mubr.f32.gmra.mrb[0].mxu0 %v3451
      %v4837 = vpop.f32.mrb[0].mxu0
      %v4838 = vadd.f32 %v4613, %v4837
      %v4839 = vpop.f32.mrb[0].mxu0
      %4840 = vmatprep.mubr.f32.mxu0 0.0
      %4841 = vmatmul.mubr.f32.gmra.mrb[0].mxu0 %v3460
      %v4842 = vpop.f32.mrb[0].mxu0
      %v4843 = vadd.f32 %v4618, %v4842
      %v4844 = vpop.f32.mrb[0].mxu0
      %4845 = vmatprep.mubr.f32.mxu0 0.0
      %4846 = vmatmul.mubr.f32.gmra.mrb[0].mxu0 %v3469
      %v4847 = vpop.f32.mrb[0].mxu0
      %v4848 = vadd.f32 %v4623, %v4847
      %v4849 = vpop.f32.mrb[0].mxu0
      %4850 = vmatprep.mubr.f32.mxu0 0.0
      %4851 = vmatmul.mubr.f32.gmra.mrb[0].mxu0 %v3478
      %v4852 = vpop.f32.mrb[0].mxu0
      %v4853 = vadd.f32 %v4628, %v4852
      %v4854 = vpop.f32.mrb[0].mxu0
      %4855 = vmatprep.mubr.f32.mxu0 0.0
      %4856 = vmatmul.mubr.f32.gmra.mrb[0].mxu0 %v3487
      %v4857 = vpop.f32.mrb[0].mxu0
      %v4858 = vadd.f32 %v4633, %v4857
      %v4859 = vpop.f32.mrb[0].mxu0
      %4860 = vmatprep.mubr.f32.mxu0 0.0
      %4861 = vmatmul.mubr.f32.gmra.mrb[0].mxu0 %v3496
      %v4862 = vpop.f32.mrb[0].mxu0
      %v4863 = vadd.f32 %v4638, %v4862
      %v4864 = vpop.f32.mrb[0].mxu0
      %4865 = vmatprep.mubr.f32.mxu0 0.0
      %4866 = vmatmul.mubr.f32.gmra.mrb[0].mxu0 %v3505
      %v4867 = vpop.f32.mrb[0].mxu0
      %v4868 = vadd.f32 %v4643, %v4867
      %v4869 = vpop.f32.mrb[0].mxu0
      %4870 = vmatprep.mubr.f32.mxu0 0.0
      %4871 = vmatmul.mubr.f32.gmra.mrb[0].mxu0 %v3514
      %v4872 = vpop.f32.mrb[0].mxu0
      %v4873 = vadd.f32 %v4648, %v4872
      %v4874 = vpop.f32.mrb[0].mxu0
      %4875 = vmatprep.mubr.f32.mxu0 0.0
      %4876 = vmatmul.mubr.f32.gmra.mrb[0].mxu0 %v3523
      %v4877 = vpop.f32.mrb[0].mxu0
      %v4878 = vadd.f32 %v4653, %v4877
      %v4879 = vpop.f32.mrb[0].mxu0
      %4880 = vmatprep.mubr.f32.mxu0 0.0
      %4881 = vmatmul.mubr.f32.gmra.mrb[0].mxu0 %v3532
      %v4882 = vpop.f32.mrb[0].mxu0
      %v4883 = vadd.f32 %v4658, %v4882
      %v4884 = vpop.f32.mrb[0].mxu0
      %4885 = vmatprep.mubr.f32.mxu0 0.0
      %4886 = vmatmul.mubr.f32.gmra.mrb[0].mxu0 %v3541
      %v4887 = vpop.f32.mrb[0].mxu0
      %v4888 = vadd.f32 %v4663, %v4887
      %v4889 = vpop.f32.mrb[0].mxu0
      %4890 = vmatprep.mubr.f32.mxu0 0.0
      %4891 = vmatmul.mubr.f32.gmra.mrb[0].mxu0 %v3550
      %v4892 = vpop.f32.mrb[0].mxu0
      %v4893 = vadd.f32 %v4668, %v4892
      %v4894 = vpop.f32.mrb[0].mxu0
      %4895 = vmatprep.mubr.f32.mxu0 0.0
      %4896 = vmatmul.mubr.f32.gmra.mrb[0].mxu0 %v3559
      %v4897 = vpop.f32.mrb[0].mxu0
      %v4898 = vadd.f32 %v4673, %v4897
      %v4899 = vpop.f32.mrb[0].mxu0
      %4900 = vmatprep.mubr.f32.mxu0 0.0
      %4901 = vmatmul.mubr.f32.gmra.mrb[0].mxu0 %v3568
      %v4902 = vpop.f32.mrb[0].mxu0
      %v4903 = vadd.f32 %v4678, %v4902
      %v4904 = vpop.f32.mrb[0].mxu0
      %4905 = vmatprep.mubr.f32.mxu0 0.0
      %4906 = vmatmul.mubr.f32.gmra.mrb[0].mxu0 %v3577
      %v4907 = vpop.f32.mrb[0].mxu0
      %v4908 = vadd.f32 %v4683, %v4907
      %v4909 = vpop.f32.mrb[0].mxu0
      %4910 = vmatprep.mubr.f32.mxu0 0.0
      %4911 = vmatmul.mubr.f32.gmra.mrb[0].mxu0 %v3586
      %v4912 = vpop.f32.mrb[0].mxu0
      %v4913 = vadd.f32 %v4688, %v4912
      %v4914 = vpop.f32.mrb[0].mxu0
      %4915 = vmatprep.mubr.f32.mxu0 0.0
      %4916 = vmatmul.mubr.f32.gmra.mrb[0].mxu0 %v3595
      %v4917 = vpop.f32.mrb[0].mxu0
      %v4918 = vadd.f32 %v4693, %v4917
      %v4919 = vpop.f32.mrb[0].mxu0
      %4920 = vmatprep.mubr.f32.mxu0 0.0
      %4921 = vmatmul.mubr.f32.gmra.mrb[0].mxu0 %v3604
      %v4922 = vpop.f32.mrb[0].mxu0
      %v4923 = vadd.f32 %v4698, %v4922
      %v4924 = vpop.f32.mrb[0].mxu0
      %4925 = vmatprep.mubr.f32.mxu0 0.0
      %4926 = vmatmul.mubr.f32.gmra.mrb[0].mxu0 %v3613
      %v4927 = vpop.f32.mrb[0].mxu0
      %v4928 = vadd.f32 %v4703, %v4927
      %v4929 = vpop.f32.mrb[0].mxu0
      %4930 = vmatprep.mubr.f32.mxu0 0.0
      %4931 = vmatmul.mubr.f32.gmra.mrb[0].mxu0 %v3622
      %v4932 = vpop.f32.mrb[0].mxu0
      %v4933 = vadd.f32 %v4708, %v4932
      %v4934 = vpop.f32.mrb[0].mxu0
      %4935 = vmatprep.mubr.f32.mxu0 0.0
      %4936 = vmatmul.mubr.f32.gmra.mrb[0].mxu0 %v3631
      %v4937 = vpop.f32.mrb[0].mxu0
      %v4938 = vadd.f32 %v4713, %v4937
      %v4939 = vpop.f32.mrb[0].mxu0
      %4940 = vmatprep.mubr.f32.mxu0 0.0
      %4941 = vmatmul.mubr.f32.gmra.mrb[0].mxu0 %v3640
      %v4942 = vpop.f32.mrb[0].mxu0
      %v4943 = vadd.f32 %v4718, %v4942
      %v4944 = vpop.f32.mrb[0].mxu0
      %4945 = vmatprep.mubr.f32.mxu0 0.0
      %4946 = vmatmul.mubr.f32.gmra.mrb[0].mxu0 %v3649
      %v4947 = vpop.f32.mrb[0].mxu0
      %v4948 = vadd.f32 %v4723, %v4947
      %v4949 = vpop.f32.mrb[0].mxu0
      %4950 = vmatprep.mubr.f32.mxu0 0.0
      %4951 = vmatmul.mubr.f32.gmra.mrb[0].mxu0 %v3658
      %v4952 = vpop.f32.mrb[0].mxu0
      %v4953 = vadd.f32 %v4728, %v4952
      %v4954 = vpop.f32.mrb[0].mxu0
      %4955 = vmatprep.mubr.f32.mxu0 0.0
      %4956 = vmatmul.mubr.f32.gmra.mrb[0].mxu0 %v3667
      %v4957 = vpop.f32.mrb[0].mxu0
      %v4958 = vadd.f32 %v4733, %v4957
      %v4959 = vpop.f32.mrb[0].mxu0
      %4960 = vmatprep.mubr.f32.mxu0 0.0
      %4961 = vmatmul.mubr.f32.gmra.mrb[0].mxu0 %v3676
      %v4962 = vpop.f32.mrb[0].mxu0
      %v4963 = vadd.f32 %v4738, %v4962
      %v4964 = vpop.f32.mrb[0].mxu0
      %4965 = vmatprep.mubr.f32.mxu0 0.0
      %4966 = vmatmul.mubr.f32.gmra.mrb[0].mxu0 %v3685
      %v4967 = vpop.f32.mrb[0].mxu0
      %v4968 = vadd.f32 %v4743, %v4967
      %v4969 = vpop.f32.mrb[0].mxu0
      %4970 = vmatprep.mubr.f32.mxu0 0.0
      %4971 = vmatmul.mubr.f32.gmra.mrb[0].mxu0 %v3694
      %v4972 = vpop.f32.mrb[0].mxu0
      %v4973 = vadd.f32 %v4748, %v4972
      %v4974 = vpop.f32.mrb[0].mxu0
      %4975 = vmatprep.mubr.f32.mxu0 0.0
      %4976 = vmatmul.mubr.f32.gmra.mrb[0].mxu0 %v3703
      %v4977 = vpop.f32.mrb[0].mxu0
      %v4978 = vadd.f32 %v4753, %v4977
      %v4979 = vpop.f32.mrb[0].mxu0
      %4980 = vmatprep.mubr.f32.mxu0 0.0
      %4981 = vmatmul.mubr.f32.gmra.mrb[0].mxu0 %v3712
      %v4982 = vpop.f32.mrb[0].mxu0
      %v4983 = vadd.f32 %v4758, %v4982
      %v4984 = vpop.f32.mrb[0].mxu0
      %4985 = vmatprep.mubr.f32.mxu0 0.0
      %4986 = vmatmul.mubr.f32.gmra.mrb[0].mxu0 %v3721
      %v4987 = vpop.f32.mrb[0].mxu0
      %v4988 = vadd.f32 %v4763, %v4987
      %v4989 = vpop.f32.mrb[0].mxu0
      %4990 = vdwg.mxu0
      %v4991 = vld [vmem:[%s5] sm:$0x1]
      %v4992 = vld [vmem:[%s6] sm:$0x1]
      %v4993 = vadd.f32 %v4833, %v4838
      %v4994 = vadd.f32 %v4993, %v4843
      %v4995 = vadd.f32 %v4994, %v4848
      %v4996 = vadd.f32 %v4995, %v4853
      %v4997 = vadd.f32 %v4996, %v4858
      %v4998 = vadd.f32 %v4997, %v4863
      %v4999 = vadd.f32 %v4998, %v4868
      %v5000 = vadd.f32 %v4999, %v4873
      %v5001 = vadd.f32 %v5000, %v4878
      %v5002 = vadd.f32 %v5001, %v4883
      %v5003 = vadd.f32 %v5002, %v4888
      %v5004 = vadd.f32 %v5003, %v4893
      %v5005 = vadd.f32 %v5004, %v4898
      %v5006 = vadd.f32 %v5005, %v4903
      %v5007 = vadd.f32 %v5006, %v4908
      %v5008 = vadd.f32 %v5007, %v4913
      %v5009 = vadd.f32 %v5008, %v4918
      %v5010 = vadd.f32 %v5009, %v4923
      %v5011 = vadd.f32 %v5010, %v4928
      %v5012 = vadd.f32 %v5011, %v4933
      %v5013 = vadd.f32 %v5012, %v4938
      %v5014 = vadd.f32 %v5013, %v4943
      %v5015 = vadd.f32 %v5014, %v4948
      %v5016 = vadd.f32 %v5015, %v4953
      %v5017 = vadd.f32 %v5016, %v4958
      %v5018 = vadd.f32 %v5017, %v4963
      %v5019 = vadd.f32 %v5018, %v4968
      %v5020 = vadd.f32 %v5019, %v4973
      %v5021 = vadd.f32 %v5020, %v4978
      %v5022 = vadd.f32 %v5021, %v4983
      %v5023 = vadd.f32 %v5022, %v4988
      %v5024 = vrot.slane %v5023, 4
      %v5025 = vadd.f32 %v5023, %v5024
      %v5026 = vrot.slane %v5025, 2
      %v5027 = vadd.f32 %v5025, %v5026
      %v5028 = vrot.slane %v5027, 1
      %v5029 = vadd.f32 %v5027, %v5028
      %v5030 = vmul.f32 %v5029, 0.00390625
      %v5031 = vsub.f32 %v4833, %v5030
      %v5032 = vsub.f32 %v4838, %v5030
      %v5033 = vsub.f32 %v4843, %v5030
      %v5034 = vsub.f32 %v4848, %v5030
      %v5035 = vsub.f32 %v4853, %v5030
      %v5036 = vsub.f32 %v4858, %v5030
      %v5037 = vsub.f32 %v4863, %v5030
      %v5038 = vsub.f32 %v4868, %v5030
      %v5039 = vsub.f32 %v4873, %v5030
      %v5040 = vsub.f32 %v4878, %v5030
      %v5041 = vsub.f32 %v4883, %v5030
      %v5042 = vsub.f32 %v4888, %v5030
      %v5043 = vsub.f32 %v4893, %v5030
      %v5044 = vsub.f32 %v4898, %v5030
      %v5045 = vsub.f32 %v4903, %v5030
      %v5046 = vsub.f32 %v4908, %v5030
      %v5047 = vsub.f32 %v4913, %v5030
      %v5048 = vsub.f32 %v4918, %v5030
      %v5049 = vsub.f32 %v4923, %v5030
      %v5050 = vsub.f32 %v4928, %v5030
      %v5051 = vsub.f32 %v4933, %v5030
      %v5052 = vsub.f32 %v4938, %v5030
      %v5053 = vsub.f32 %v4943, %v5030
      %v5054 = vsub.f32 %v4948, %v5030
      %v5055 = vsub.f32 %v4953, %v5030
      %v5056 = vsub.f32 %v4958, %v5030
      %v5057 = vsub.f32 %v4963, %v5030
      %v5058 = vsub.f32 %v4968, %v5030
      %v5059 = vsub.f32 %v4973, %v5030
      %v5060 = vsub.f32 %v4978, %v5030
      %v5061 = vsub.f32 %v4983, %v5030
      %v5062 = vsub.f32 %v4988, %v5030
      %v5063 = vmul.f32 %v5031, %v5031
      %v5064 = vmul.f32 %v5032, %v5032
      %v5065 = vmul.f32 %v5033, %v5033
      %v5066 = vmul.f32 %v5034, %v5034
      %v5067 = vmul.f32 %v5035, %v5035
      %v5068 = vmul.f32 %v5036, %v5036
      %v5069 = vmul.f32 %v5037, %v5037
      %v5070 = vmul.f32 %v5038, %v5038
      %v5071 = vmul.f32 %v5039, %v5039
      %v5072 = vmul.f32 %v5040, %v5040
      %v5073 = vmul.f32 %v5041, %v5041
      %v5074 = vmul.f32 %v5042, %v5042
      %v5075 = vmul.f32 %v5043, %v5043
      %v5076 = vmul.f32 %v5044, %v5044
      %v5077 = vmul.f32 %v5045, %v5045
      %v5078 = vmul.f32 %v5046, %v5046
      %v5079 = vmul.f32 %v5047, %v5047
      %v5080 = vmul.f32 %v5048, %v5048
      %v5081 = vmul.f32 %v5049, %v5049
      %v5082 = vmul.f32 %v5050, %v5050
      %v5083 = vmul.f32 %v5051, %v5051
      %v5084 = vmul.f32 %v5052, %v5052
      %v5085 = vmul.f32 %v5053, %v5053
      %v5086 = vmul.f32 %v5054, %v5054
      %v5087 = vmul.f32 %v5055, %v5055
      %v5088 = vmul.f32 %v5056, %v5056
      %v5089 = vmul.f32 %v5057, %v5057
      %v5090 = vmul.f32 %v5058, %v5058
      %v5091 = vmul.f32 %v5059, %v5059
      %v5092 = vmul.f32 %v5060, %v5060
      %v5093 = vmul.f32 %v5061, %v5061
      %v5094 = vmul.f32 %v5062, %v5062
      %v5095 = vadd.f32 %v5063, %v5064
      %v5096 = vadd.f32 %v5095, %v5065
      %v5097 = vadd.f32 %v5096, %v5066
      %v5098 = vadd.f32 %v5097, %v5067
      %v5099 = vadd.f32 %v5098, %v5068
      %v5100 = vadd.f32 %v5099, %v5069
      %v5101 = vadd.f32 %v5100, %v5070
      %v5102 = vadd.f32 %v5101, %v5071
      %v5103 = vadd.f32 %v5102, %v5072
      %v5104 = vadd.f32 %v5103, %v5073
      %v5105 = vadd.f32 %v5104, %v5074
      %v5106 = vadd.f32 %v5105, %v5075
      %v5107 = vadd.f32 %v5106, %v5076
      %v5108 = vadd.f32 %v5107, %v5077
      %v5109 = vadd.f32 %v5108, %v5078
      %v5110 = vadd.f32 %v5109, %v5079
      %v5111 = vadd.f32 %v5110, %v5080
      %v5112 = vadd.f32 %v5111, %v5081
      %v5113 = vadd.f32 %v5112, %v5082
      %v5114 = vadd.f32 %v5113, %v5083
      %v5115 = vadd.f32 %v5114, %v5084
      %v5116 = vadd.f32 %v5115, %v5085
      %v5117 = vadd.f32 %v5116, %v5086
      %v5118 = vadd.f32 %v5117, %v5087
      %v5119 = vadd.f32 %v5118, %v5088
      %v5120 = vadd.f32 %v5119, %v5089
      %v5121 = vadd.f32 %v5120, %v5090
      %v5122 = vadd.f32 %v5121, %v5091
      %v5123 = vadd.f32 %v5122, %v5092
      %v5124 = vadd.f32 %v5123, %v5093
      %v5125 = vadd.f32 %v5124, %v5094
      %v5126 = vrot.slane %v5125, 4
      %v5127 = vadd.f32 %v5125, %v5126
      %v5128 = vrot.slane %v5127, 2
      %v5129 = vadd.f32 %v5127, %v5128
      %v5130 = vrot.slane %v5129, 1
      %v5131 = vadd.f32 %v5129, %v5130
      %v5132 = vmul.f32 %v5131, 0.00390625
      %v5133 = vadd.f32 %v5132, 1e-05
      %v5134 = vrsqrt.pop %v5133
      %v5135 = vmul.f32 %v4991, %v5134
      %v5137 = vlaneseq
      %v5138 = vshrl.u32 %v5137, 7
      %v5139 = vsub.s32 0, %v5138
      %v5140 = vrot.slane %v5135, %v5139
      %v5142 = vmul.f32 %v5031, %v5140
      %v5143 = vmul.f32 %v5032, %v5140
      %v5144 = vmul.f32 %v5033, %v5140
      %v5145 = vmul.f32 %v5034, %v5140
      %v5146 = vmul.f32 %v5035, %v5140
      %v5147 = vmul.f32 %v5036, %v5140
      %v5148 = vmul.f32 %v5037, %v5140
      %v5149 = vmul.f32 %v5038, %v5140
      %v5150 = vmul.f32 %v5039, %v5140
      %v5151 = vmul.f32 %v5040, %v5140
      %v5152 = vmul.f32 %v5041, %v5140
      %v5153 = vmul.f32 %v5042, %v5140
      %v5154 = vmul.f32 %v5043, %v5140
      %v5155 = vmul.f32 %v5044, %v5140
      %v5156 = vmul.f32 %v5045, %v5140
      %v5157 = vmul.f32 %v5046, %v5140
      %v5158 = vmul.f32 %v5047, %v5140
      %v5159 = vmul.f32 %v5048, %v5140
      %v5160 = vmul.f32 %v5049, %v5140
      %v5161 = vmul.f32 %v5050, %v5140
      %v5162 = vmul.f32 %v5051, %v5140
      %v5163 = vmul.f32 %v5052, %v5140
      %v5164 = vmul.f32 %v5053, %v5140
      %v5165 = vmul.f32 %v5054, %v5140
      %v5166 = vmul.f32 %v5055, %v5140
      %v5167 = vmul.f32 %v5056, %v5140
      %v5168 = vmul.f32 %v5057, %v5140
      %v5169 = vmul.f32 %v5058, %v5140
      %v5170 = vmul.f32 %v5059, %v5140
      %v5171 = vmul.f32 %v5060, %v5140
      %v5172 = vmul.f32 %v5061, %v5140
      %v5173 = vmul.f32 %v5062, %v5140
      %v5175 = vlaneseq
      %v5176 = vshrl.u32 %v5175, 7
      %v5177 = vsub.s32 0, %v5176
      %v5178 = vrot.slane %v4992, %v5177
      %v5180 = vadd.f32 %v5142, %v5178
      %v5181 = vadd.f32 %v5143, %v5178
      %v5182 = vadd.f32 %v5144, %v5178
      %v5183 = vadd.f32 %v5145, %v5178
      %v5184 = vadd.f32 %v5146, %v5178
      %v5185 = vadd.f32 %v5147, %v5178
      %v5186 = vadd.f32 %v5148, %v5178
      %v5187 = vadd.f32 %v5149, %v5178
      %v5188 = vadd.f32 %v5150, %v5178
      %v5189 = vadd.f32 %v5151, %v5178
      %v5190 = vadd.f32 %v5152, %v5178
      %v5191 = vadd.f32 %v5153, %v5178
      %v5192 = vadd.f32 %v5154, %v5178
      %v5193 = vadd.f32 %v5155, %v5178
      %v5194 = vadd.f32 %v5156, %v5178
      %v5195 = vadd.f32 %v5157, %v5178
      %v5196 = vadd.f32 %v5158, %v5178
      %v5197 = vadd.f32 %v5159, %v5178
      %v5198 = vadd.f32 %v5160, %v5178
      %v5199 = vadd.f32 %v5161, %v5178
      %v5200 = vadd.f32 %v5162, %v5178
      %v5201 = vadd.f32 %v5163, %v5178
      %v5202 = vadd.f32 %v5164, %v5178
      %v5203 = vadd.f32 %v5165, %v5178
      %v5204 = vadd.f32 %v5166, %v5178
      %v5205 = vadd.f32 %v5167, %v5178
      %v5206 = vadd.f32 %v5168, %v5178
      %v5207 = vadd.f32 %v5169, %v5178
      %v5208 = vadd.f32 %v5170, %v5178
      %v5209 = vadd.f32 %v5171, %v5178
      %v5210 = vadd.f32 %v5172, %v5178
      %v5211 = vadd.f32 %v5173, %v5178
      %v5212 = vld [vmem:[%s354] sm:$0xff]
      %v5213 = vld [vmem:[%s354 + $0x8] sm:$0xff]
      %v5214 = vld [vmem:[%s354 + $0x10] sm:$0xff]
      %v5215 = vld [vmem:[%s354 + $0x18] sm:$0xff]
      %v5216 = vld [vmem:[%s354 + $0x20] sm:$0xff]
      %v5217 = vld [vmem:[%s354 + $0x28] sm:$0xff]
      %v5218 = vld [vmem:[%s354 + $0x30] sm:$0xff]
      %v5219 = vld [vmem:[%s354 + $0x38] sm:$0xff]
      %v5220 = vld [vmem:[%s354 + $0x40] sm:$0xff]
      %v5221 = vld [vmem:[%s354 + $0x48] sm:$0xff]
      %v5222 = vld [vmem:[%s354 + $0x50] sm:$0xff]
      %v5223 = vld [vmem:[%s354 + $0x58] sm:$0xff]
      %v5224 = vld [vmem:[%s354 + $0x60] sm:$0xff]
      %v5225 = vld [vmem:[%s354 + $0x68] sm:$0xff]
      %v5226 = vld [vmem:[%s354 + $0x70] sm:$0xff]
      %v5227 = vld [vmem:[%s354 + $0x78] sm:$0xff]
      %v5228 = vld [vmem:[%s354 + $0x80] sm:$0xff]
      %v5229 = vld [vmem:[%s354 + $0x88] sm:$0xff]
      %v5230 = vld [vmem:[%s354 + $0x90] sm:$0xff]
      %v5231 = vld [vmem:[%s354 + $0x98] sm:$0xff]
      %v5232 = vld [vmem:[%s354 + $0xa0] sm:$0xff]
      %v5233 = vld [vmem:[%s354 + $0xa8] sm:$0xff]
      %v5234 = vld [vmem:[%s354 + $0xb0] sm:$0xff]
      %v5235 = vld [vmem:[%s354 + $0xb8] sm:$0xff]
      %v5236 = vld [vmem:[%s354 + $0xc0] sm:$0xff]
      %v5237 = vld [vmem:[%s354 + $0xc8] sm:$0xff]
      %v5238 = vld [vmem:[%s354 + $0xd0] sm:$0xff]
      %v5239 = vld [vmem:[%s354 + $0xd8] sm:$0xff]
      %v5240 = vld [vmem:[%s354 + $0xe0] sm:$0xff]
      %v5241 = vld [vmem:[%s354 + $0xe8] sm:$0xff]
      %v5242 = vld [vmem:[%s354 + $0xf0] sm:$0xff]
      %v5243 = vld [vmem:[%s354 + $0xf8] sm:$0xff]
      %v5244 = vld [vmem:[%s7] sm:$0xff]
      %v5246 = vsel %vm360, %v5212, 0
      %v5249 = vsel %vm360, %v5213, 0
      %v5252 = vsel %vm360, %v5214, 0
      %v5255 = vsel %vm360, %v5215, 0
      %v5258 = vsel %vm360, %v5216, 0
      %v5261 = vsel %vm360, %v5217, 0
      %v5264 = vsel %vm360, %v5218, 0
      %v5267 = vsel %vm360, %v5219, 0
      %v5270 = vsel %vm360, %v5220, 0
      %v5273 = vsel %vm360, %v5221, 0
      %v5276 = vsel %vm360, %v5222, 0
      %v5279 = vsel %vm360, %v5223, 0
      %v5282 = vsel %vm360, %v5224, 0
      %v5285 = vsel %vm360, %v5225, 0
      %v5288 = vsel %vm360, %v5226, 0
      %v5291 = vsel %vm360, %v5227, 0
      %v5294 = vsel %vm360, %v5228, 0
      %v5297 = vsel %vm360, %v5229, 0
      %v5300 = vsel %vm360, %v5230, 0
      %v5303 = vsel %vm360, %v5231, 0
      %v5306 = vsel %vm360, %v5232, 0
      %v5309 = vsel %vm360, %v5233, 0
      %v5312 = vsel %vm360, %v5234, 0
      %v5315 = vsel %vm360, %v5235, 0
      %v5318 = vsel %vm360, %v5236, 0
      %v5321 = vsel %vm360, %v5237, 0
      %v5324 = vsel %vm360, %v5238, 0
      %v5327 = vsel %vm360, %v5239, 0
      %v5330 = vsel %vm360, %v5240, 0
      %v5333 = vsel %vm360, %v5241, 0
      %v5336 = vsel %vm360, %v5242, 0
      %v5339 = vsel %vm360, %v5243, 0
      %5341 = vmatprep.subr.mxu0 0.0
      %5342 = vmatpush1.msra.mxu0 %v5244
      %5343 = vmatprep.subr.mxu0 0.0
      %5344 = vmatpush1.msra.mxu0 0.0
      %5345 = vmatprep.subr.mxu0 0.0
      %5346 = vmatpush1.msra.mxu0 0.0
      %5347 = vmatprep.subr.mxu0 0.0
      %5348 = vmatpush1.msra.mxu0 0.0
      %5349 = vmatprep.subr.mxu0 0.0
      %5350 = vmatpush1.msra.mxu0 0.0
      %5351 = vmatprep.subr.mxu0 0.0
      %5352 = vmatpush1.msra.mxu0 0.0
      %5353 = vmatprep.subr.mxu0 0.0
      %5354 = vmatpush1.msra.mxu0 0.0
      %5355 = vmatprep.subr.mxu0 0.0
      %5356 = vmatpush1.msra.mxu0 0.0
      %5357 = vmatprep.subr.mxu0 0.0
      %5358 = vmatpush1.msra.mxu0 0.0
      %5359 = vmatprep.subr.mxu0 0.0
      %5360 = vmatpush1.msra.mxu0 0.0
      %5361 = vmatprep.subr.mxu0 0.0
      %5362 = vmatpush1.msra.mxu0 0.0
      %5363 = vmatprep.subr.mxu0 0.0
      %5364 = vmatpush1.msra.mxu0 0.0
      %5365 = vmatprep.subr.mxu0 0.0
      %5366 = vmatpush1.msra.mxu0 0.0
      %5367 = vmatprep.subr.mxu0 0.0
      %5368 = vmatpush1.msra.mxu0 0.0
      %5369 = vmatprep.subr.mxu0 0.0
      %5370 = vmatpush1.msra.mxu0 0.0
      %5371 = vmatprep.subr.mxu0 0.0
      %5372 = vmatpush1.msra.mxu0 0.0
      %5373 = vmatprep.subr.mxu0 0.0
      %5374 = vmatpush1.msra.mxu0 0.0
      %5375 = vmatprep.subr.mxu0 0.0
      %5376 = vmatpush1.msra.mxu0 0.0
      %5377 = vmatprep.subr.mxu0 0.0
      %5378 = vmatpush1.msra.mxu0 0.0
      %5379 = vmatprep.subr.mxu0 0.0
      %5380 = vmatpush1.msra.mxu0 0.0
      %5381 = vmatprep.subr.mxu0 0.0
      %5382 = vmatpush1.msra.mxu0 0.0
      %5383 = vmatprep.subr.mxu0 0.0
      %5384 = vmatpush1.msra.mxu0 0.0
      %5385 = vmatprep.subr.mxu0 0.0
      %5386 = vmatpush1.msra.mxu0 0.0
      %5387 = vmatprep.subr.mxu0 0.0
      %5388 = vmatpush1.msra.mxu0 0.0
      %5389 = vmatprep.subr.mxu0 0.0
      %5390 = vmatpush1.msra.mxu0 0.0
      %5391 = vmatprep.subr.mxu0 0.0
      %5392 = vmatpush1.msra.mxu0 0.0
      %5393 = vmatprep.subr.mxu0 0.0
      %5394 = vmatpush1.msra.mxu0 0.0
      %5395 = vmatprep.subr.mxu0 0.0
      %5396 = vmatpush1.msra.mxu0 0.0
      %5397 = vmatprep.subr.mxu0 0.0
      %5398 = vmatpush1.msra.mxu0 0.0
      %5399 = vmatprep.subr.mxu0 0.0
      %5400 = vmatpush1.msra.mxu0 0.0
      %5401 = vmatprep.subr.mxu0 0.0
      %5402 = vmatpush1.msra.mxu0 0.0
      %5403 = vmatprep.subr.mxu0 0.0
      %5404 = vmatpush1.msra.mxu0 0.0
      %5405 = vmatprep.mubr.f32.mxu0 0.0
      %5406 = vmatmul.mubr.f32.gmra.mrb[0].mxu0 %v5246
      %v5407 = vpop.f32.mrb[0].mxu0
      %v5408 = vadd.f32 0.0, %v5407
      %v5409 = vpop.f32.mrb[0].mxu0
      %5410 = vmatprep.mubr.f32.mxu0 0.0
      %5411 = vmatmul.mubr.f32.gmra.mrb[0].mxu0 %v5249
      %v5412 = vpop.f32.mrb[0].mxu0
      %v5413 = vadd.f32 0.0, %v5412
      %v5414 = vpop.f32.mrb[0].mxu0
      %5415 = vmatprep.mubr.f32.mxu0 0.0
      %5416 = vmatmul.mubr.f32.gmra.mrb[0].mxu0 %v5252
      %v5417 = vpop.f32.mrb[0].mxu0
      %v5418 = vadd.f32 0.0, %v5417
      %v5419 = vpop.f32.mrb[0].mxu0
      %5420 = vmatprep.mubr.f32.mxu0 0.0
      %5421 = vmatmul.mubr.f32.gmra.mrb[0].mxu0 %v5255
      %v5422 = vpop.f32.mrb[0].mxu0
      %v5423 = vadd.f32 0.0, %v5422
      %v5424 = vpop.f32.mrb[0].mxu0
      %5425 = vmatprep.mubr.f32.mxu0 0.0
      %5426 = vmatmul.mubr.f32.gmra.mrb[0].mxu0 %v5258
      %v5427 = vpop.f32.mrb[0].mxu0
      %v5428 = vadd.f32 0.0, %v5427
      %v5429 = vpop.f32.mrb[0].mxu0
      %5430 = vmatprep.mubr.f32.mxu0 0.0
      %5431 = vmatmul.mubr.f32.gmra.mrb[0].mxu0 %v5261
      %v5432 = vpop.f32.mrb[0].mxu0
      %v5433 = vadd.f32 0.0, %v5432
      %v5434 = vpop.f32.mrb[0].mxu0
      %5435 = vmatprep.mubr.f32.mxu0 0.0
      %5436 = vmatmul.mubr.f32.gmra.mrb[0].mxu0 %v5264
      %v5437 = vpop.f32.mrb[0].mxu0
      %v5438 = vadd.f32 0.0, %v5437
      %v5439 = vpop.f32.mrb[0].mxu0
      %5440 = vmatprep.mubr.f32.mxu0 0.0
      %5441 = vmatmul.mubr.f32.gmra.mrb[0].mxu0 %v5267
      %v5442 = vpop.f32.mrb[0].mxu0
      %v5443 = vadd.f32 0.0, %v5442
      %v5444 = vpop.f32.mrb[0].mxu0
      %5445 = vmatprep.mubr.f32.mxu0 0.0
      %5446 = vmatmul.mubr.f32.gmra.mrb[0].mxu0 %v5270
      %v5447 = vpop.f32.mrb[0].mxu0
      %v5448 = vadd.f32 0.0, %v5447
      %v5449 = vpop.f32.mrb[0].mxu0
      %5450 = vmatprep.mubr.f32.mxu0 0.0
      %5451 = vmatmul.mubr.f32.gmra.mrb[0].mxu0 %v5273
      %v5452 = vpop.f32.mrb[0].mxu0
      %v5453 = vadd.f32 0.0, %v5452
      %v5454 = vpop.f32.mrb[0].mxu0
      %5455 = vmatprep.mubr.f32.mxu0 0.0
      %5456 = vmatmul.mubr.f32.gmra.mrb[0].mxu0 %v5276
      %v5457 = vpop.f32.mrb[0].mxu0
      %v5458 = vadd.f32 0.0, %v5457
      %v5459 = vpop.f32.mrb[0].mxu0
      %5460 = vmatprep.mubr.f32.mxu0 0.0
      %5461 = vmatmul.mubr.f32.gmra.mrb[0].mxu0 %v5279
      %v5462 = vpop.f32.mrb[0].mxu0
      %v5463 = vadd.f32 0.0, %v5462
      %v5464 = vpop.f32.mrb[0].mxu0
      %5465 = vmatprep.mubr.f32.mxu0 0.0
      %5466 = vmatmul.mubr.f32.gmra.mrb[0].mxu0 %v5282
      %v5467 = vpop.f32.mrb[0].mxu0
      %v5468 = vadd.f32 0.0, %v5467
      %v5469 = vpop.f32.mrb[0].mxu0
      %5470 = vmatprep.mubr.f32.mxu0 0.0
      %5471 = vmatmul.mubr.f32.gmra.mrb[0].mxu0 %v5285
      %v5472 = vpop.f32.mrb[0].mxu0
      %v5473 = vadd.f32 0.0, %v5472
      %v5474 = vpop.f32.mrb[0].mxu0
      %5475 = vmatprep.mubr.f32.mxu0 0.0
      %5476 = vmatmul.mubr.f32.gmra.mrb[0].mxu0 %v5288
      %v5477 = vpop.f32.mrb[0].mxu0
      %v5478 = vadd.f32 0.0, %v5477
      %v5479 = vpop.f32.mrb[0].mxu0
      %5480 = vmatprep.mubr.f32.mxu0 0.0
      %5481 = vmatmul.mubr.f32.gmra.mrb[0].mxu0 %v5291
      %v5482 = vpop.f32.mrb[0].mxu0
      %v5483 = vadd.f32 0.0, %v5482
      %v5484 = vpop.f32.mrb[0].mxu0
      %5485 = vmatprep.mubr.f32.mxu0 0.0
      %5486 = vmatmul.mubr.f32.gmra.mrb[0].mxu0 %v5294
      %v5487 = vpop.f32.mrb[0].mxu0
      %v5488 = vadd.f32 0.0, %v5487
      %v5489 = vpop.f32.mrb[0].mxu0
      %5490 = vmatprep.mubr.f32.mxu0 0.0
      %5491 = vmatmul.mubr.f32.gmra.mrb[0].mxu0 %v5297
      %v5492 = vpop.f32.mrb[0].mxu0
      %v5493 = vadd.f32 0.0, %v5492
      %v5494 = vpop.f32.mrb[0].mxu0
      %5495 = vmatprep.mubr.f32.mxu0 0.0
      %5496 = vmatmul.mubr.f32.gmra.mrb[0].mxu0 %v5300
      %v5497 = vpop.f32.mrb[0].mxu0
      %v5498 = vadd.f32 0.0, %v5497
      %v5499 = vpop.f32.mrb[0].mxu0
      %5500 = vmatprep.mubr.f32.mxu0 0.0
      %5501 = vmatmul.mubr.f32.gmra.mrb[0].mxu0 %v5303
      %v5502 = vpop.f32.mrb[0].mxu0
      %v5503 = vadd.f32 0.0, %v5502
      %v5504 = vpop.f32.mrb[0].mxu0
      %5505 = vmatprep.mubr.f32.mxu0 0.0
      %5506 = vmatmul.mubr.f32.gmra.mrb[0].mxu0 %v5306
      %v5507 = vpop.f32.mrb[0].mxu0
      %v5508 = vadd.f32 0.0, %v5507
      %v5509 = vpop.f32.mrb[0].mxu0
      %5510 = vmatprep.mubr.f32.mxu0 0.0
      %5511 = vmatmul.mubr.f32.gmra.mrb[0].mxu0 %v5309
      %v5512 = vpop.f32.mrb[0].mxu0
      %v5513 = vadd.f32 0.0, %v5512
      %v5514 = vpop.f32.mrb[0].mxu0
      %5515 = vmatprep.mubr.f32.mxu0 0.0
      %5516 = vmatmul.mubr.f32.gmra.mrb[0].mxu0 %v5312
      %v5517 = vpop.f32.mrb[0].mxu0
      %v5518 = vadd.f32 0.0, %v5517
      %v5519 = vpop.f32.mrb[0].mxu0
      %5520 = vmatprep.mubr.f32.mxu0 0.0
      %5521 = vmatmul.mubr.f32.gmra.mrb[0].mxu0 %v5315
      %v5522 = vpop.f32.mrb[0].mxu0
      %v5523 = vadd.f32 0.0, %v5522
      %v5524 = vpop.f32.mrb[0].mxu0
      %5525 = vmatprep.mubr.f32.mxu0 0.0
      %5526 = vmatmul.mubr.f32.gmra.mrb[0].mxu0 %v5318
      %v5527 = vpop.f32.mrb[0].mxu0
      %v5528 = vadd.f32 0.0, %v5527
      %v5529 = vpop.f32.mrb[0].mxu0
      %5530 = vmatprep.mubr.f32.mxu0 0.0
      %5531 = vmatmul.mubr.f32.gmra.mrb[0].mxu0 %v5321
      %v5532 = vpop.f32.mrb[0].mxu0
      %v5533 = vadd.f32 0.0, %v5532
      %v5534 = vpop.f32.mrb[0].mxu0
      %5535 = vmatprep.mubr.f32.mxu0 0.0
      %5536 = vmatmul.mubr.f32.gmra.mrb[0].mxu0 %v5324
      %v5537 = vpop.f32.mrb[0].mxu0
      %v5538 = vadd.f32 0.0, %v5537
      %v5539 = vpop.f32.mrb[0].mxu0
      %5540 = vmatprep.mubr.f32.mxu0 0.0
      %5541 = vmatmul.mubr.f32.gmra.mrb[0].mxu0 %v5327
      %v5542 = vpop.f32.mrb[0].mxu0
      %v5543 = vadd.f32 0.0, %v5542
      %v5544 = vpop.f32.mrb[0].mxu0
      %5545 = vmatprep.mubr.f32.mxu0 0.0
      %5546 = vmatmul.mubr.f32.gmra.mrb[0].mxu0 %v5330
      %v5547 = vpop.f32.mrb[0].mxu0
      %v5548 = vadd.f32 0.0, %v5547
      %v5549 = vpop.f32.mrb[0].mxu0
      %5550 = vmatprep.mubr.f32.mxu0 0.0
      %5551 = vmatmul.mubr.f32.gmra.mrb[0].mxu0 %v5333
      %v5552 = vpop.f32.mrb[0].mxu0
      %v5553 = vadd.f32 0.0, %v5552
      %v5554 = vpop.f32.mrb[0].mxu0
      %5555 = vmatprep.mubr.f32.mxu0 0.0
      %5556 = vmatmul.mubr.f32.gmra.mrb[0].mxu0 %v5336
      %v5557 = vpop.f32.mrb[0].mxu0
      %v5558 = vadd.f32 0.0, %v5557
      %v5559 = vpop.f32.mrb[0].mxu0
      %5560 = vmatprep.mubr.f32.mxu0 0.0
      %5561 = vmatmul.mubr.f32.gmra.mrb[0].mxu0 %v5339
      %v5562 = vpop.f32.mrb[0].mxu0
      %v5563 = vadd.f32 0.0, %v5562
      %v5564 = vpop.f32.mrb[0].mxu0
      %5565 = vdwg.mxu0
      %v5566 = vld [vmem:[%s8] sm:$0x1]
      %v5567 = vld [vmem:[%s9] sm:$0x1]
      %v5568 = vadd.f32 %v5408, %v5413
      %v5569 = vadd.f32 %v5568, %v5418
      %v5570 = vadd.f32 %v5569, %v5423
      %v5571 = vadd.f32 %v5570, %v5428
      %v5572 = vadd.f32 %v5571, %v5433
      %v5573 = vadd.f32 %v5572, %v5438
      %v5574 = vadd.f32 %v5573, %v5443
      %v5575 = vadd.f32 %v5574, %v5448
      %v5576 = vadd.f32 %v5575, %v5453
      %v5577 = vadd.f32 %v5576, %v5458
      %v5578 = vadd.f32 %v5577, %v5463
      %v5579 = vadd.f32 %v5578, %v5468
      %v5580 = vadd.f32 %v5579, %v5473
      %v5581 = vadd.f32 %v5580, %v5478
      %v5582 = vadd.f32 %v5581, %v5483
      %v5583 = vadd.f32 %v5582, %v5488
      %v5584 = vadd.f32 %v5583, %v5493
      %v5585 = vadd.f32 %v5584, %v5498
      %v5586 = vadd.f32 %v5585, %v5503
      %v5587 = vadd.f32 %v5586, %v5508
      %v5588 = vadd.f32 %v5587, %v5513
      %v5589 = vadd.f32 %v5588, %v5518
      %v5590 = vadd.f32 %v5589, %v5523
      %v5591 = vadd.f32 %v5590, %v5528
      %v5592 = vadd.f32 %v5591, %v5533
      %v5593 = vadd.f32 %v5592, %v5538
      %v5594 = vadd.f32 %v5593, %v5543
      %v5595 = vadd.f32 %v5594, %v5548
      %v5596 = vadd.f32 %v5595, %v5553
      %v5597 = vadd.f32 %v5596, %v5558
      %v5598 = vadd.f32 %v5597, %v5563
      %v5599 = vrot.slane %v5598, 4
      %v5600 = vadd.f32 %v5598, %v5599
      %v5601 = vrot.slane %v5600, 2
      %v5602 = vadd.f32 %v5600, %v5601
      %v5603 = vrot.slane %v5602, 1
      %v5604 = vadd.f32 %v5602, %v5603
      %v5605 = vmul.f32 %v5604, 0.00390625
      %v5606 = vsub.f32 %v5408, %v5605
      %v5607 = vsub.f32 %v5413, %v5605
      %v5608 = vsub.f32 %v5418, %v5605
      %v5609 = vsub.f32 %v5423, %v5605
      %v5610 = vsub.f32 %v5428, %v5605
      %v5611 = vsub.f32 %v5433, %v5605
      %v5612 = vsub.f32 %v5438, %v5605
      %v5613 = vsub.f32 %v5443, %v5605
      %v5614 = vsub.f32 %v5448, %v5605
      %v5615 = vsub.f32 %v5453, %v5605
      %v5616 = vsub.f32 %v5458, %v5605
      %v5617 = vsub.f32 %v5463, %v5605
      %v5618 = vsub.f32 %v5468, %v5605
      %v5619 = vsub.f32 %v5473, %v5605
      %v5620 = vsub.f32 %v5478, %v5605
      %v5621 = vsub.f32 %v5483, %v5605
      %v5622 = vsub.f32 %v5488, %v5605
      %v5623 = vsub.f32 %v5493, %v5605
      %v5624 = vsub.f32 %v5498, %v5605
      %v5625 = vsub.f32 %v5503, %v5605
      %v5626 = vsub.f32 %v5508, %v5605
      %v5627 = vsub.f32 %v5513, %v5605
      %v5628 = vsub.f32 %v5518, %v5605
      %v5629 = vsub.f32 %v5523, %v5605
      %v5630 = vsub.f32 %v5528, %v5605
      %v5631 = vsub.f32 %v5533, %v5605
      %v5632 = vsub.f32 %v5538, %v5605
      %v5633 = vsub.f32 %v5543, %v5605
      %v5634 = vsub.f32 %v5548, %v5605
      %v5635 = vsub.f32 %v5553, %v5605
      %v5636 = vsub.f32 %v5558, %v5605
      %v5637 = vsub.f32 %v5563, %v5605
      %v5638 = vmul.f32 %v5606, %v5606
      %v5639 = vmul.f32 %v5607, %v5607
      %v5640 = vmul.f32 %v5608, %v5608
      %v5641 = vmul.f32 %v5609, %v5609
      %v5642 = vmul.f32 %v5610, %v5610
      %v5643 = vmul.f32 %v5611, %v5611
      %v5644 = vmul.f32 %v5612, %v5612
      %v5645 = vmul.f32 %v5613, %v5613
      %v5646 = vmul.f32 %v5614, %v5614
      %v5647 = vmul.f32 %v5615, %v5615
      %v5648 = vmul.f32 %v5616, %v5616
      %v5649 = vmul.f32 %v5617, %v5617
      %v5650 = vmul.f32 %v5618, %v5618
      %v5651 = vmul.f32 %v5619, %v5619
      %v5652 = vmul.f32 %v5620, %v5620
      %v5653 = vmul.f32 %v5621, %v5621
      %v5654 = vmul.f32 %v5622, %v5622
      %v5655 = vmul.f32 %v5623, %v5623
      %v5656 = vmul.f32 %v5624, %v5624
      %v5657 = vmul.f32 %v5625, %v5625
      %v5658 = vmul.f32 %v5626, %v5626
      %v5659 = vmul.f32 %v5627, %v5627
      %v5660 = vmul.f32 %v5628, %v5628
      %v5661 = vmul.f32 %v5629, %v5629
      %v5662 = vmul.f32 %v5630, %v5630
      %v5663 = vmul.f32 %v5631, %v5631
      %v5664 = vmul.f32 %v5632, %v5632
      %v5665 = vmul.f32 %v5633, %v5633
      %v5666 = vmul.f32 %v5634, %v5634
      %v5667 = vmul.f32 %v5635, %v5635
      %v5668 = vmul.f32 %v5636, %v5636
      %v5669 = vmul.f32 %v5637, %v5637
      %v5670 = vadd.f32 %v5638, %v5639
      %v5671 = vadd.f32 %v5670, %v5640
      %v5672 = vadd.f32 %v5671, %v5641
      %v5673 = vadd.f32 %v5672, %v5642
      %v5674 = vadd.f32 %v5673, %v5643
      %v5675 = vadd.f32 %v5674, %v5644
      %v5676 = vadd.f32 %v5675, %v5645
      %v5677 = vadd.f32 %v5676, %v5646
      %v5678 = vadd.f32 %v5677, %v5647
      %v5679 = vadd.f32 %v5678, %v5648
      %v5680 = vadd.f32 %v5679, %v5649
      %v5681 = vadd.f32 %v5680, %v5650
      %v5682 = vadd.f32 %v5681, %v5651
      %v5683 = vadd.f32 %v5682, %v5652
      %v5684 = vadd.f32 %v5683, %v5653
      %v5685 = vadd.f32 %v5684, %v5654
      %v5686 = vadd.f32 %v5685, %v5655
      %v5687 = vadd.f32 %v5686, %v5656
      %v5688 = vadd.f32 %v5687, %v5657
      %v5689 = vadd.f32 %v5688, %v5658
      %v5690 = vadd.f32 %v5689, %v5659
      %v5691 = vadd.f32 %v5690, %v5660
      %v5692 = vadd.f32 %v5691, %v5661
      %v5693 = vadd.f32 %v5692, %v5662
      %v5694 = vadd.f32 %v5693, %v5663
      %v5695 = vadd.f32 %v5694, %v5664
      %v5696 = vadd.f32 %v5695, %v5665
      %v5697 = vadd.f32 %v5696, %v5666
      %v5698 = vadd.f32 %v5697, %v5667
      %v5699 = vadd.f32 %v5698, %v5668
      %v5700 = vadd.f32 %v5699, %v5669
      %v5701 = vrot.slane %v5700, 4
      %v5702 = vadd.f32 %v5700, %v5701
      %v5703 = vrot.slane %v5702, 2
      %v5704 = vadd.f32 %v5702, %v5703
      %v5705 = vrot.slane %v5704, 1
      %v5706 = vadd.f32 %v5704, %v5705
      %v5707 = vmul.f32 %v5706, 0.00390625
      %v5708 = vadd.f32 %v5707, 1e-05
      %v5709 = vrsqrt.pop %v5708
      %v5710 = vmul.f32 %v5566, %v5709
      %v5712 = vlaneseq
      %v5713 = vshrl.u32 %v5712, 7
      %v5714 = vsub.s32 0, %v5713
      %v5715 = vrot.slane %v5710, %v5714
      %v5717 = vmul.f32 %v5606, %v5715
      %v5718 = vmul.f32 %v5607, %v5715
      %v5719 = vmul.f32 %v5608, %v5715
      %v5720 = vmul.f32 %v5609, %v5715
      %v5721 = vmul.f32 %v5610, %v5715
      %v5722 = vmul.f32 %v5611, %v5715
      %v5723 = vmul.f32 %v5612, %v5715
      %v5724 = vmul.f32 %v5613, %v5715
      %v5725 = vmul.f32 %v5614, %v5715
      %v5726 = vmul.f32 %v5615, %v5715
      %v5727 = vmul.f32 %v5616, %v5715
      %v5728 = vmul.f32 %v5617, %v5715
      %v5729 = vmul.f32 %v5618, %v5715
      %v5730 = vmul.f32 %v5619, %v5715
      %v5731 = vmul.f32 %v5620, %v5715
      %v5732 = vmul.f32 %v5621, %v5715
      %v5733 = vmul.f32 %v5622, %v5715
      %v5734 = vmul.f32 %v5623, %v5715
      %v5735 = vmul.f32 %v5624, %v5715
      %v5736 = vmul.f32 %v5625, %v5715
      %v5737 = vmul.f32 %v5626, %v5715
      %v5738 = vmul.f32 %v5627, %v5715
      %v5739 = vmul.f32 %v5628, %v5715
      %v5740 = vmul.f32 %v5629, %v5715
      %v5741 = vmul.f32 %v5630, %v5715
      %v5742 = vmul.f32 %v5631, %v5715
      %v5743 = vmul.f32 %v5632, %v5715
      %v5744 = vmul.f32 %v5633, %v5715
      %v5745 = vmul.f32 %v5634, %v5715
      %v5746 = vmul.f32 %v5635, %v5715
      %v5747 = vmul.f32 %v5636, %v5715
      %v5748 = vmul.f32 %v5637, %v5715
      %v5750 = vlaneseq
      %v5751 = vshrl.u32 %v5750, 7
      %v5752 = vsub.s32 0, %v5751
      %v5753 = vrot.slane %v5567, %v5752
      %v5755 = vadd.f32 %v5717, %v5753
      %v5756 = vadd.f32 %v5718, %v5753
      %v5757 = vadd.f32 %v5719, %v5753
      %v5758 = vadd.f32 %v5720, %v5753
      %v5759 = vadd.f32 %v5721, %v5753
      %v5760 = vadd.f32 %v5722, %v5753
      %v5761 = vadd.f32 %v5723, %v5753
      %v5762 = vadd.f32 %v5724, %v5753
      %v5763 = vadd.f32 %v5725, %v5753
      %v5764 = vadd.f32 %v5726, %v5753
      %v5765 = vadd.f32 %v5727, %v5753
      %v5766 = vadd.f32 %v5728, %v5753
      %v5767 = vadd.f32 %v5729, %v5753
      %v5768 = vadd.f32 %v5730, %v5753
      %v5769 = vadd.f32 %v5731, %v5753
      %v5770 = vadd.f32 %v5732, %v5753
      %v5771 = vadd.f32 %v5733, %v5753
      %v5772 = vadd.f32 %v5734, %v5753
      %v5773 = vadd.f32 %v5735, %v5753
      %v5774 = vadd.f32 %v5736, %v5753
      %v5775 = vadd.f32 %v5737, %v5753
      %v5776 = vadd.f32 %v5738, %v5753
      %v5777 = vadd.f32 %v5739, %v5753
      %v5778 = vadd.f32 %v5740, %v5753
      %v5779 = vadd.f32 %v5741, %v5753
      %v5780 = vadd.f32 %v5742, %v5753
      %v5781 = vadd.f32 %v5743, %v5753
      %v5782 = vadd.f32 %v5744, %v5753
      %v5783 = vadd.f32 %v5745, %v5753
      %v5784 = vadd.f32 %v5746, %v5753
      %v5785 = vadd.f32 %v5747, %v5753
      %v5786 = vadd.f32 %v5748, %v5753
      %v5787 = vadd.f32 %v5180, %v5755
      %v5788 = vadd.f32 %v5181, %v5756
      %v5789 = vadd.f32 %v5182, %v5757
      %v5790 = vadd.f32 %v5183, %v5758
      %v5791 = vadd.f32 %v5184, %v5759
      %v5792 = vadd.f32 %v5185, %v5760
      %v5793 = vadd.f32 %v5186, %v5761
      %v5794 = vadd.f32 %v5187, %v5762
      %v5795 = vadd.f32 %v5188, %v5763
      %v5796 = vadd.f32 %v5189, %v5764
      %v5797 = vadd.f32 %v5190, %v5765
      %v5798 = vadd.f32 %v5191, %v5766
      %v5799 = vadd.f32 %v5192, %v5767
      %v5800 = vadd.f32 %v5193, %v5768
      %v5801 = vadd.f32 %v5194, %v5769
      %v5802 = vadd.f32 %v5195, %v5770
      %v5803 = vadd.f32 %v5196, %v5771
      %v5804 = vadd.f32 %v5197, %v5772
      %v5805 = vadd.f32 %v5198, %v5773
      %v5806 = vadd.f32 %v5199, %v5774
      %v5807 = vadd.f32 %v5200, %v5775
      %v5808 = vadd.f32 %v5201, %v5776
      %v5809 = vadd.f32 %v5202, %v5777
      %v5810 = vadd.f32 %v5203, %v5778
      %v5811 = vadd.f32 %v5204, %v5779
      %v5812 = vadd.f32 %v5205, %v5780
      %v5813 = vadd.f32 %v5206, %v5781
      %v5814 = vadd.f32 %v5207, %v5782
      %v5815 = vadd.f32 %v5208, %v5783
      %v5816 = vadd.f32 %v5209, %v5784
      %v5817 = vadd.f32 %v5210, %v5785
      %v5818 = vadd.f32 %v5211, %v5786
      %vm5819 = vcmp.ge.f32.partialorder %v5787, 0.0
      %vm5820 = vcmp.ge.f32.partialorder %v5788, 0.0
      %vm5821 = vcmp.ge.f32.partialorder %v5789, 0.0
      %vm5822 = vcmp.ge.f32.partialorder %v5790, 0.0
      %vm5823 = vcmp.ge.f32.partialorder %v5791, 0.0
      %vm5824 = vcmp.ge.f32.partialorder %v5792, 0.0
      %vm5825 = vcmp.ge.f32.partialorder %v5793, 0.0
      %vm5826 = vcmp.ge.f32.partialorder %v5794, 0.0
      %vm5827 = vcmp.ge.f32.partialorder %v5795, 0.0
      %vm5828 = vcmp.ge.f32.partialorder %v5796, 0.0
      %vm5829 = vcmp.ge.f32.partialorder %v5797, 0.0
      %vm5830 = vcmp.ge.f32.partialorder %v5798, 0.0
      %vm5831 = vcmp.ge.f32.partialorder %v5799, 0.0
      %vm5832 = vcmp.ge.f32.partialorder %v5800, 0.0
      %vm5833 = vcmp.ge.f32.partialorder %v5801, 0.0
      %vm5834 = vcmp.ge.f32.partialorder %v5802, 0.0
      %vm5835 = vcmp.ge.f32.partialorder %v5803, 0.0
      %vm5836 = vcmp.ge.f32.partialorder %v5804, 0.0
      %vm5837 = vcmp.ge.f32.partialorder %v5805, 0.0
      %vm5838 = vcmp.ge.f32.partialorder %v5806, 0.0
      %vm5839 = vcmp.ge.f32.partialorder %v5807, 0.0
      %vm5840 = vcmp.ge.f32.partialorder %v5808, 0.0
      %vm5841 = vcmp.ge.f32.partialorder %v5809, 0.0
      %vm5842 = vcmp.ge.f32.partialorder %v5810, 0.0
      %vm5843 = vcmp.ge.f32.partialorder %v5811, 0.0
      %vm5844 = vcmp.ge.f32.partialorder %v5812, 0.0
      %vm5845 = vcmp.ge.f32.partialorder %v5813, 0.0
      %vm5846 = vcmp.ge.f32.partialorder %v5814, 0.0
      %vm5847 = vcmp.ge.f32.partialorder %v5815, 0.0
      %vm5848 = vcmp.ge.f32.partialorder %v5816, 0.0
      %vm5849 = vcmp.ge.f32.partialorder %v5817, 0.0
      %vm5850 = vcmp.ge.f32.partialorder %v5818, 0.0
      %v5851 = vmul.f32 %v5787, 0.01
      %v5852 = vmul.f32 %v5788, 0.01
      %v5853 = vmul.f32 %v5789, 0.01
      %v5854 = vmul.f32 %v5790, 0.01
      %v5855 = vmul.f32 %v5791, 0.01
      %v5856 = vmul.f32 %v5792, 0.01
      %v5857 = vmul.f32 %v5793, 0.01
      %v5858 = vmul.f32 %v5794, 0.01
      %v5859 = vmul.f32 %v5795, 0.01
      %v5860 = vmul.f32 %v5796, 0.01
      %v5861 = vmul.f32 %v5797, 0.01
      %v5862 = vmul.f32 %v5798, 0.01
      %v5863 = vmul.f32 %v5799, 0.01
      %v5864 = vmul.f32 %v5800, 0.01
      %v5865 = vmul.f32 %v5801, 0.01
      %v5866 = vmul.f32 %v5802, 0.01
      %v5867 = vmul.f32 %v5803, 0.01
      %v5868 = vmul.f32 %v5804, 0.01
      %v5869 = vmul.f32 %v5805, 0.01
      %v5870 = vmul.f32 %v5806, 0.01
      %v5871 = vmul.f32 %v5807, 0.01
      %v5872 = vmul.f32 %v5808, 0.01
      %v5873 = vmul.f32 %v5809, 0.01
      %v5874 = vmul.f32 %v5810, 0.01
      %v5875 = vmul.f32 %v5811, 0.01
      %v5876 = vmul.f32 %v5812, 0.01
      %v5877 = vmul.f32 %v5813, 0.01
      %v5878 = vmul.f32 %v5814, 0.01
      %v5879 = vmul.f32 %v5815, 0.01
      %v5880 = vmul.f32 %v5816, 0.01
      %v5881 = vmul.f32 %v5817, 0.01
      %v5882 = vmul.f32 %v5818, 0.01
      %v5883 = vsel %vm5819, %v5787, %v5851
      %v5884 = vsel %vm5820, %v5788, %v5852
      %v5885 = vsel %vm5821, %v5789, %v5853
      %v5886 = vsel %vm5822, %v5790, %v5854
      %v5887 = vsel %vm5823, %v5791, %v5855
      %v5888 = vsel %vm5824, %v5792, %v5856
      %v5889 = vsel %vm5825, %v5793, %v5857
      %v5890 = vsel %vm5826, %v5794, %v5858
      %v5891 = vsel %vm5827, %v5795, %v5859
      %v5892 = vsel %vm5828, %v5796, %v5860
      %v5893 = vsel %vm5829, %v5797, %v5861
      %v5894 = vsel %vm5830, %v5798, %v5862
      %v5895 = vsel %vm5831, %v5799, %v5863
      %v5896 = vsel %vm5832, %v5800, %v5864
      %v5897 = vsel %vm5833, %v5801, %v5865
      %v5898 = vsel %vm5834, %v5802, %v5866
      %v5899 = vsel %vm5835, %v5803, %v5867
      %v5900 = vsel %vm5836, %v5804, %v5868
      %v5901 = vsel %vm5837, %v5805, %v5869
      %v5902 = vsel %vm5838, %v5806, %v5870
      %v5903 = vsel %vm5839, %v5807, %v5871
      %v5904 = vsel %vm5840, %v5808, %v5872
      %v5905 = vsel %vm5841, %v5809, %v5873
      %v5906 = vsel %vm5842, %v5810, %v5874
      %v5907 = vsel %vm5843, %v5811, %v5875
      %v5908 = vsel %vm5844, %v5812, %v5876
      %v5909 = vsel %vm5845, %v5813, %v5877
      %v5910 = vsel %vm5846, %v5814, %v5878
      %v5911 = vsel %vm5847, %v5815, %v5879
      %v5912 = vsel %vm5848, %v5816, %v5880
      %v5913 = vsel %vm5849, %v5817, %v5881
      %v5914 = vsel %vm5850, %v5818, %v5882
      %5915 = vst [vmem:[%s359] sm:$0xff] %v5883
      %5916 = vst [vmem:[%s359 + $0x8] sm:$0xff] %v5884
      %5917 = vst [vmem:[%s359 + $0x10] sm:$0xff] %v5885
      %5918 = vst [vmem:[%s359 + $0x18] sm:$0xff] %v5886
      %5919 = vst [vmem:[%s359 + $0x20] sm:$0xff] %v5887
      %5920 = vst [vmem:[%s359 + $0x28] sm:$0xff] %v5888
      %5921 = vst [vmem:[%s359 + $0x30] sm:$0xff] %v5889
      %5922 = vst [vmem:[%s359 + $0x38] sm:$0xff] %v5890
      %5923 = vst [vmem:[%s359 + $0x40] sm:$0xff] %v5891
      %5924 = vst [vmem:[%s359 + $0x48] sm:$0xff] %v5892
      %5925 = vst [vmem:[%s359 + $0x50] sm:$0xff] %v5893
      %5926 = vst [vmem:[%s359 + $0x58] sm:$0xff] %v5894
      %5927 = vst [vmem:[%s359 + $0x60] sm:$0xff] %v5895
      %5928 = vst [vmem:[%s359 + $0x68] sm:$0xff] %v5896
      %5929 = vst [vmem:[%s359 + $0x70] sm:$0xff] %v5897
      %5930 = vst [vmem:[%s359 + $0x78] sm:$0xff] %v5898
      %5931 = vst [vmem:[%s359 + $0x80] sm:$0xff] %v5899
      %5932 = vst [vmem:[%s359 + $0x88] sm:$0xff] %v5900
      %5933 = vst [vmem:[%s359 + $0x90] sm:$0xff] %v5901
      %5934 = vst [vmem:[%s359 + $0x98] sm:$0xff] %v5902
      %5935 = vst [vmem:[%s359 + $0xa0] sm:$0xff] %v5903
      %5936 = vst [vmem:[%s359 + $0xa8] sm:$0xff] %v5904
      %5937 = vst [vmem:[%s359 + $0xb0] sm:$0xff] %v5905
      %5938 = vst [vmem:[%s359 + $0xb8] sm:$0xff] %v5906
      %5939 = vst [vmem:[%s359 + $0xc0] sm:$0xff] %v5907
      %5940 = vst [vmem:[%s359 + $0xc8] sm:$0xff] %v5908
      %5941 = vst [vmem:[%s359 + $0xd0] sm:$0xff] %v5909
      %5942 = vst [vmem:[%s359 + $0xd8] sm:$0xff] %v5910
      %5943 = vst [vmem:[%s359 + $0xe0] sm:$0xff] %v5911
      %5944 = vst [vmem:[%s359 + $0xe8] sm:$0xff] %v5912
      %5945 = vst [vmem:[%s359 + $0xf0] sm:$0xff] %v5913
      %5946 = vst [vmem:[%s359 + $0xf8] sm:$0xff] %v5914
      %p5947 = scmp.lt.s32.totalorder %s21, 1
      %s5948 = scalar_select %p5947, %s21, 1
      %s5949 = smul.addr %s5948, 32
      %s5950 = smul.addr %s5949, 8
      %s5951 = scalar_lea.vmem %s10, %s5950
      // Predicated region
      $region61: #{basic_residual_block.1} parent=59 // pred_check
        %p5952 = pneg %p254
      $region62: #{basic_residual_block.1} parent=59 // pred_check_branch
        %5954 = sbr.rel (%p5952) target = $region64
      $region63: #{basic_residual_block.1} parent=59 // pred_region
        _
      $region64: #{basic_residual_block.1} parent=59 // pred_fallthru
        _
    $region60: #{basic_residual_block.1} parent=5 // pred_fallthru
      _
    %p5955 = scmp.le.s32.totalorder 2, %s16
    // Predicated region
    $region65: #{basic_residual_block.1} parent=5 // pred_check
      %p5956 = pneg %p5955
    $region66: #{basic_residual_block.1} parent=5 // pred_check_branch
      %5958 = sbr.rel (%p5956) target = $region68
    $region67: #{basic_residual_block.1} parent=5 // pred_region
      %s5959 = ssub.s32 %s16, 2
      // Predicated region
      $region69: #{basic_residual_block.1} parent=67 // pred_check
        %p5960 = pneg %p260
      $region70: #{basic_residual_block.1} parent=67 // pred_check_branch
        %5962 = sbr.rel (%p5960) target = $region72
      $region71: #{basic_residual_block.1} parent=67 // pred_region
        %p5963 = scmp.lt.s32.totalorder %s22, 1
        %s5964 = scalar_select %p5963, %s22, 1
        %s5965 = smul.addr %s5964, 32
        %s5966 = smul.addr %s5965, 8
        %s5967 = scalar_lea.vmem %s10, %s5966
      $region72: #{basic_residual_block.1} parent=67 // pred_fallthru
        _
    $region68: #{basic_residual_block.1} parent=5 // pred_fallthru
      _
  $region6: #{basic_residual_block.1} parent=0 // loop_footer
    %s20 = sadd.s32 1, %s16
  $region7: #{basic_residual_block.1} parent=0 // loop_footer_branch
    %15 = sbr.rel target = $region3
  $region8: #{basic_residual_block.1} parent=0 // loop_exit
    _

</llo_original>
